<compile_context>
chip_gen: v7x
topology: tpu7x:2x2x1
jax: 0.10.0
libtpu: 0.0.40
codegen_flags: <defaults>
</compile_context>

<pallas_src>
import functools

import jax
import jax.numpy as jnp
from jax.experimental import pallas as pl
from jax.experimental.pallas import tpu as pltpu


def gcn_kernel(x_ref, adyn_ref, asta_ref, w_ref, b_ref, o_ref, hcat_ref, *,
               c_in, n_dyn, n_sta, order):
    """One batch element, time-major layout.

    x_ref    : (L, C, V)          activations, x_ref[l, c, v] = x[n, c, v, l]
    adyn_ref : (n_dyn', L, V, V)  dynamic supports, adyn_ref[s, l, v, w] = A_s[n, v, w, l]
    asta_ref : (n_sta', V, V)     static supports (grid-invariant)
    w_ref    : (C_out, C_cat)     1x1-conv weight (grid-invariant)
    b_ref    : (C_out, 1)         1x1-conv bias, f32 (grid-invariant)
    o_ref    : (L, C_out, V)      output
    hcat_ref : (L, C_cat, V)      VMEM scratch holding the channel-concatenated features
    """
    seq_len, _, n_nodes = x_ref.shape
    cdt = hcat_ref.dtype
    x0 = x_ref[...]                                   # (L, C, V)

    # channel block 0 of the torch.cat is x itself
    hcat_ref[:, 0:c_in, :] = x0
    blk = 1

    # dynamic supports: adjacency differs per timestep -> batched-over-L matmul
    for s in range(n_dyn):
        a = adyn_ref[s]                               # (L, V, V)
        xk = x0
        for _ in range(order):
            xk = jnp.einsum('lcv,lvw->lcw', xk, a,
                            preferred_element_type=jnp.float32).astype(cdt)
            hcat_ref[:, blk * c_in:(blk + 1) * c_in, :] = xk
            blk += 1

    # static supports: contraction over V is timestep-independent -> one flat
    # (L*C, V) @ (V, V) matmul (no Kronecker expansion, no redundant FLOPs)
    for s in range(n_sta):
        a = asta_ref[s]                               # (V, V)
        xk = x0
        for _ in range(order):
            xk = jnp.dot(xk.reshape(seq_len * c_in, n_nodes), a,
                         preferred_element_type=jnp.float32)
            xk = xk.reshape(seq_len, c_in, n_nodes).astype(cdt)
            hcat_ref[:, blk * c_in:(blk + 1) * c_in, :] = xk
            blk += 1

    # fused 1x1 conv: a single contraction with K = C_cat (replaces 2*S*order+1
    # small K=C matmuls + repeated accumulator passes)
    c_out, c_cat = w_ref.shape
    w_b = jnp.broadcast_to(w_ref[...], (seq_len, c_out, c_cat))   # built once, hoisted
    h = jnp.einsum('lok,lkv->lov', w_b, hcat_ref[...],
                   preferred_element_type=jnp.float32)
    h = h + b_ref[...][None, :, :]                    # bias add in f32
    o_ref[...] = h.astype(o_ref.dtype)
    # TODO(synk): F.dropout is identity in eval mode (training=False); training-mode
    # stochastic dropout (pltpu.prng_*) is not implemented.


def gcn_gcnm_dynamic_forward(x, support, w, b, *, order=2,
                             compute_dtype=jnp.float32,
                             single_buffer_invariants=True):
    """x: (N, C, V, L); support: first (up to) 2 entries dynamic (N, V, V, L),
    remaining entries static (V, V); w: (C_out, (order*len(support)+1)*C); b: (C_out,)."""
    n, c, v, l = x.shape
    s_total = len(support)
    n_dyn = min(2, s_total)
    dyn, sta = list(support[:n_dyn]), list(support[n_dyn:])
    n_sta = len(sta)
    c_out, c_cat = w.shape
    assert c_cat == (order * s_total + 1) * c

    # time-major layouts: node axis V last (lane axis)
    x_t = jnp.transpose(x, (0, 3, 1, 2)).astype(compute_dtype)            # (N, L, C, V)
    if n_dyn:
        a_dyn = jnp.stack([jnp.transpose(a, (0, 3, 1, 2)) for a in dyn], axis=1)
    else:
        a_dyn = jnp.zeros((n, 1, l, v, v), x.dtype)                       # unused dummy
    a_dyn = a_dyn.astype(compute_dtype)                                   # (N, nd', L, V, V)
    if n_sta:
        a_sta = jnp.stack(sta, axis=0)
    else:
        a_sta = jnp.zeros((1, v, v), x.dtype)                             # unused dummy
    a_sta = a_sta.astype(compute_dtype)                                   # (ns', V, V)
    w_c = w.astype(compute_dtype)
    b2 = b.astype(jnp.float32).reshape(c_out, 1)

    nd_blk = a_dyn.shape[1]
    ns_blk = a_sta.shape[0]

    def inv_spec(shape, index_map):
        # grid-invariant operands: request a single VMEM buffer (no re-DMA needed)
        if single_buffer_invariants:
            return pl.BlockSpec(shape, index_map, pipeline_mode=pl.Buffered(1))
        return pl.BlockSpec(shape, index_map)

    kernel = functools.partial(gcn_kernel, c_in=c, n_dyn=n_dyn, n_sta=n_sta,
                               order=order)

    # explicit VMEM budget: per-batch blocks double-buffered, invariants counted
    # conservatively at 2x, plus the concat scratch; generous headroom, capped.
    isz = jnp.dtype(compute_dtype).itemsize
    est_vmem = (2 * l * c * v * isz
                + 2 * nd_blk * l * v * v * isz
                + 2 * l * c_out * v * x.dtype.itemsize
                + 2 * ns_blk * v * v * isz
                + 2 * c_out * c_cat * isz
                + 2 * c_out * 4
                + l * c_cat * v * isz)
    vmem_limit = int(min(64 * 2**20, max(8 * 2**20, 4 * est_vmem)))

    out = pl.pallas_call(
        kernel,
        out_shape=jax.ShapeDtypeStruct((n, l, c_out, v), x.dtype),
        grid_spec=pltpu.PrefetchScalarGridSpec(
            num_scalar_prefetch=0,
            grid=(n,),
            in_specs=[
                pl.BlockSpec((None, l, c, v), lambda i: (i, 0, 0, 0)),            # x
                pl.BlockSpec((None, nd_blk, l, v, v), lambda i: (i, 0, 0, 0, 0)),  # dyn supports
                inv_spec((ns_blk, v, v), lambda i: (0, 0, 0)),                    # static supports
                inv_spec((c_out, c_cat), lambda i: (0, 0)),                       # 1x1-conv weight
                inv_spec((c_out, 1), lambda i: (0, 0)),                           # 1x1-conv bias
            ],
            out_specs=pl.BlockSpec((None, l, c_out, v), lambda i: (i, 0, 0, 0)),
            scratch_shapes=[pltpu.VMEM((l, c_cat, v), compute_dtype)],
        ),
        compiler_params=pltpu.CompilerParams(
            dimension_semantics=("parallel",),
            vmem_limit_bytes=vmem_limit,
        ),
    )(x_t, a_dyn, a_sta, w_c, b2)

    # (N, L, C_out, V) -> (N, C_out, V, L)
    return jnp.transpose(out, (0, 2, 3, 1))


def gcn_gcnm_dynamic_ref(x, support, w, b, order=2):
    """Pure-JAX reference mirroring the PyTorch forward (eval mode)."""
    out = [x]
    for a in support[:2]:
        x1 = jnp.einsum('ncvl,nvwl->ncwl', x, a, precision='highest')
        out.append(x1)
        for _ in range(2, order + 1):
            x2 = jnp.einsum('ncvl,nvwl->ncwl', x1, a, precision='highest')
            out.append(x2)
            x1 = x2
    if len(support) > 2:
        for a in support[2:]:
            x1 = jnp.einsum('ncvl,vw->ncwl', x, a, precision='highest')
            out.append(x1)
            for _ in range(2, order + 1):
                x2 = jnp.einsum('ncvl,vw->ncwl', x1, a, precision='highest')
                out.append(x2)
                x1 = x2
    h = jnp.concatenate(out, axis=1)
    h = jnp.einsum('ok,nkvl->novl', w, h, precision='highest') + b[None, :, None, None]
    return h  # dropout is identity in eval mode


if __name__ == "__main__":
    key = jax.random.PRNGKey(0)
    kx, kd0, kd1, ks, kw, kb = jax.random.split(key, 6)

    # gcn_gcnm_dynamic(c_in=32, c_out=32, support_len=3, order=2)
    N, C, V, L = 2, 32, 16, 8
    ORDER, SUPPORT_LEN = 2, 3
    C_OUT = 32
    C_CAT = (ORDER * SUPPORT_LEN + 1) * C  # 224

    x = jax.random.normal(kx, (N, C, V, L), dtype=jnp.float32)
    # first two supports are dynamic (batch- and timestep-dependent), third is static
    support = [
        jax.random.normal(kd0, (N, V, V, L), dtype=jnp.float32) / V,
        jax.random.normal(kd1, (N, V, V, L), dtype=jnp.float32) / V,
        jax.random.normal(ks, (V, V), dtype=jnp.float32) / V,
    ]
    # synthetic Conv2d(1x1) params: weight (C_out, C_cat), bias (C_out,)
    w = jax.random.normal(kw, (C_OUT, C_CAT), dtype=jnp.float32) * 0.05
    b = jax.random.normal(kb, (C_OUT,), dtype=jnp.float32) * 0.1

    def run(single_buffer):
        return jax.block_until_ready(
            gcn_gcnm_dynamic_forward(x, support, w, b, order=ORDER,
                                     single_buffer_invariants=single_buffer))

    try:
        out = run(True)
    except Exception:
        # pl.Buffered(1) single-buffering not supported by this build -> default specs.
        out = run(False)

    assert out.shape == (N, C_OUT, V, L)

    ref = gcn_gcnm_dynamic_ref(x, support, w, b, order=ORDER)
    # tolerance tightened from 5e-2 -> 1e-4 (f32 path typically lands around ~1e-6)
    rel_err = float(jnp.max(jnp.abs(out - ref)) / (jnp.max(jnp.abs(ref)) + 1e-6))
    assert rel_err < 1e-4, f"kernel/reference mismatch, rel err = {rel_err}"

    print("KERNEL_OK")
</pallas_src>

<mosaic_0001>
module attributes {stable_mosaic.version = 11 : i64} {
  func.func @gcn_kernel(%arg0: i32, %arg1: memref<1x8x32x16xf32, #tpu.memory_space<vmem>>, %arg2: memref<1x2x8x16x16xf32, #tpu.memory_space<vmem>>, %arg3: memref<1x16x16xf32, #tpu.memory_space<vmem>>, %arg4: memref<32x224xf32, #tpu.memory_space<vmem>>, %arg5: memref<32x1xf32, #tpu.memory_space<vmem>>, %arg6: memref<1x8x32x16xf32, #tpu.memory_space<vmem>>, %arg7: memref<8x224x16xf32, #tpu.memory_space<vmem>>) attributes {dimension_semantics = [#tpu.dimension_semantics<parallel>], iteration_bounds = array<i64: 2>, scalar_prefetch = 0 : i64, scratch_operands = 1 : i64, tpu.core_type = #tpu.core_type<tc>, window_params = [{transform_indices = @transform_0, window_bounds = array<i64: 1, 8, 32, 16>}, {transform_indices = @transform_1, window_bounds = array<i64: 1, 2, 8, 16, 16>}, {pipeline_mode = #tpu.pipeline_mode<synchronous>, transform_indices = @transform_2, window_bounds = array<i64: 1, 16, 16>}, {pipeline_mode = #tpu.pipeline_mode<synchronous>, transform_indices = @transform_3, window_bounds = array<i64: 32, 224>}, {pipeline_mode = #tpu.pipeline_mode<synchronous>, transform_indices = @transform_4, window_bounds = array<i64: 32, 1>}, {transform_indices = @transform_5, window_bounds = array<i64: 1, 8, 32, 16>}]} {
    %c0 = arith.constant 0 : index
    %c0_0 = arith.constant 0 : index
    %c0_1 = arith.constant 0 : index
    %c0_2 = arith.constant 0 : index
    %0 = vector.load %arg1[%c0, %c0_0, %c0_1, %c0_2] : memref<1x8x32x16xf32, #tpu.memory_space<vmem>>, vector<1x8x32x16xf32>
    %1 = vector.shape_cast %0 : vector<1x8x32x16xf32> to vector<8x32x16xf32>
    %c0_3 = arith.constant 0 : index
    %c0_4 = arith.constant 0 : index
    %c0_5 = arith.constant 0 : index
    %2 = vector.load %arg7[%c0_3, %c0_4, %c0_5] : memref<8x224x16xf32, #tpu.memory_space<vmem>>, vector<8x32x16xf32>
    tpu.vector_store %arg7[%c0_3, %c0_4, %c0_5], %1 {strides = array<i32>} : memref<8x224x16xf32, #tpu.memory_space<vmem>>, vector<8x32x16xf32>,
    %c0_6 = arith.constant 0 : index
    %c0_7 = arith.constant 0 : index
    %c0_8 = arith.constant 0 : index
    %c0_9 = arith.constant 0 : index
    %c0_10 = arith.constant 0 : index
    %3 = vector.load %arg2[%c0_6, %c0_7, %c0_8, %c0_9, %c0_10] : memref<1x2x8x16x16xf32, #tpu.memory_space<vmem>>, vector<1x1x8x16x16xf32>
    %4 = vector.shape_cast %3 : vector<1x1x8x16x16xf32> to vector<8x16x16xf32>
    "tpu.trace_start"() <{level = 10 : i32, message = "lcv,lvw->lcw"}> : () -> ()
    %cst = arith.constant dense<0.000000e+00> : vector<8x32x16xf32>
    %5 = tpu.matmul %1, %4, %cst {dimension_numbers = #tpu.dot_dimension_numbers<[2], [1], [1], [2], [0, 0, 0, 1, 1, 2], [0], [0]>} : vector<8x32x16xf32>, vector<8x16x16xf32>, vector<8x32x16xf32> -> vector<8x32x16xf32>
    "tpu.trace_stop"() : () -> ()
    %c0_11 = arith.constant 0 : index
    %c32 = arith.constant 32 : index
    %c0_12 = arith.constant 0 : index
    %6 = vector.load %arg7[%c0_11, %c32, %c0_12] : memref<8x224x16xf32, #tpu.memory_space<vmem>>, vector<8x32x16xf32>
    tpu.vector_store %arg7[%c0_11, %c32, %c0_12], %5 {strides = array<i32>} : memref<8x224x16xf32, #tpu.memory_space<vmem>>, vector<8x32x16xf32>,
    "tpu.trace_start"() <{level = 10 : i32, message = "lcv,lvw->lcw"}> : () -> ()
    %cst_13 = arith.constant dense<0.000000e+00> : vector<8x32x16xf32>
    %7 = tpu.matmul %5, %4, %cst_13 {dimension_numbers = #tpu.dot_dimension_numbers<[2], [1], [1], [2], [0, 0, 0, 1, 1, 2], [0], [0]>} : vector<8x32x16xf32>, vector<8x16x16xf32>, vector<8x32x16xf32> -> vector<8x32x16xf32>
    "tpu.trace_stop"() : () -> ()
    %c0_14 = arith.constant 0 : index
    %c64 = arith.constant 64 : index
    %c0_15 = arith.constant 0 : index
    %8 = vector.load %arg7[%c0_14, %c64, %c0_15] : memref<8x224x16xf32, #tpu.memory_space<vmem>>, vector<8x32x16xf32>
    tpu.vector_store %arg7[%c0_14, %c64, %c0_15], %7 {strides = array<i32>} : memref<8x224x16xf32, #tpu.memory_space<vmem>>, vector<8x32x16xf32>,
    %c0_16 = arith.constant 0 : index
    %c1 = arith.constant 1 : index
    %c0_17 = arith.constant 0 : index
    %c0_18 = arith.constant 0 : index
    %c0_19 = arith.constant 0 : index
    %9 = vector.load %arg2[%c0_16, %c1, %c0_17, %c0_18, %c0_19] : memref<1x2x8x16x16xf32, #tpu.memory_space<vmem>>, vector<1x1x8x16x16xf32>
    %10 = vector.shape_cast %9 : vector<1x1x8x16x16xf32> to vector<8x16x16xf32>
    "tpu.trace_start"() <{level = 10 : i32, message = "lcv,lvw->lcw"}> : () -> ()
    %cst_20 = arith.constant dense<0.000000e+00> : vector<8x32x16xf32>
    %11 = tpu.matmul %1, %10, %cst_20 {dimension_numbers = #tpu.dot_dimension_numbers<[2], [1], [1], [2], [0, 0, 0, 1, 1, 2], [0], [0]>} : vector<8x32x16xf32>, vector<8x16x16xf32>, vector<8x32x16xf32> -> vector<8x32x16xf32>
    "tpu.trace_stop"() : () -> ()
    %c0_21 = arith.constant 0 : index
    %c96 = arith.constant 96 : index
    %c0_22 = arith.constant 0 : index
    %12 = vector.load %arg7[%c0_21, %c96, %c0_22] : memref<8x224x16xf32, #tpu.memory_space<vmem>>, vector<8x32x16xf32>
    tpu.vector_store %arg7[%c0_21, %c96, %c0_22], %11 {strides = array<i32>} : memref<8x224x16xf32, #tpu.memory_space<vmem>>, vector<8x32x16xf32>,
    "tpu.trace_start"() <{level = 10 : i32, message = "lcv,lvw->lcw"}> : () -> ()
    %cst_23 = arith.constant dense<0.000000e+00> : vector<8x32x16xf32>
    %13 = tpu.matmul %11, %10, %cst_23 {dimension_numbers = #tpu.dot_dimension_numbers<[2], [1], [1], [2], [0, 0, 0, 1, 1, 2], [0], [0]>} : vector<8x32x16xf32>, vector<8x16x16xf32>, vector<8x32x16xf32> -> vector<8x32x16xf32>
    "tpu.trace_stop"() : () -> ()
    %c0_24 = arith.constant 0 : index
    %c128 = arith.constant 128 : index
    %c0_25 = arith.constant 0 : index
    %14 = vector.load %arg7[%c0_24, %c128, %c0_25] : memref<8x224x16xf32, #tpu.memory_space<vmem>>, vector<8x32x16xf32>
    tpu.vector_store %arg7[%c0_24, %c128, %c0_25], %13 {strides = array<i32>} : memref<8x224x16xf32, #tpu.memory_space<vmem>>, vector<8x32x16xf32>,
    %c0_26 = arith.constant 0 : index
    %c0_27 = arith.constant 0 : index
    %c0_28 = arith.constant 0 : index
    %15 = vector.load %arg3[%c0_26, %c0_27, %c0_28] : memref<1x16x16xf32, #tpu.memory_space<vmem>>, vector<1x16x16xf32>
    %16 = vector.shape_cast %15 : vector<1x16x16xf32> to vector<16x16xf32>
    %17 = vector.shape_cast %1 : vector<8x32x16xf32> to vector<256x16xf32>
    %cst_29 = arith.constant dense<0.000000e+00> : vector<256x16xf32>
    %18 = tpu.matmul %17, %16, %cst_29 {dimension_numbers = #tpu.dot_dimension_numbers<[1], [0], [0], [1], [0, 0, 1, 1], [], []>} : vector<256x16xf32>, vector<16x16xf32>, vector<256x16xf32> -> vector<256x16xf32>
    %19 = vector.shape_cast %18 : vector<256x16xf32> to vector<8x32x16xf32>
    %c0_30 = arith.constant 0 : index
    %c160 = arith.constant 160 : index
    %c0_31 = arith.constant 0 : index
    %20 = vector.load %arg7[%c0_30, %c160, %c0_31] : memref<8x224x16xf32, #tpu.memory_space<vmem>>, vector<8x32x16xf32>
    tpu.vector_store %arg7[%c0_30, %c160, %c0_31], %19 {strides = array<i32>} : memref<8x224x16xf32, #tpu.memory_space<vmem>>, vector<8x32x16xf32>,
    %21 = vector.shape_cast %19 : vector<8x32x16xf32> to vector<256x16xf32>
    %cst_32 = arith.constant dense<0.000000e+00> : vector<256x16xf32>
    %22 = tpu.matmul %21, %16, %cst_32 {dimension_numbers = #tpu.dot_dimension_numbers<[1], [0], [0], [1], [0, 0, 1, 1], [], []>} : vector<256x16xf32>, vector<16x16xf32>, vector<256x16xf32> -> vector<256x16xf32>
    %23 = vector.shape_cast %22 : vector<256x16xf32> to vector<8x32x16xf32>
    %c0_33 = arith.constant 0 : index
    %c192 = arith.constant 192 : index
    %c0_34 = arith.constant 0 : index
    %24 = vector.load %arg7[%c0_33, %c192, %c0_34] : memref<8x224x16xf32, #tpu.memory_space<vmem>>, vector<8x32x16xf32>
    tpu.vector_store %arg7[%c0_33, %c192, %c0_34], %23 {strides = array<i32>} : memref<8x224x16xf32, #tpu.memory_space<vmem>>, vector<8x32x16xf32>,
    %c0_35 = arith.constant 0 : index
    %c0_36 = arith.constant 0 : index
    %25 = vector.load %arg4[%c0_35, %c0_36] : memref<32x224xf32, #tpu.memory_space<vmem>>, vector<32x224xf32>
    %26 = vector.shape_cast %25 : vector<32x224xf32> to vector<1x32x224xf32>
    %27 = vector.broadcast %26 : vector<1x32x224xf32> to vector<8x32x224xf32>
    %c0_37 = arith.constant 0 : index
    %c0_38 = arith.constant 0 : index
    %c0_39 = arith.constant 0 : index
    %28 = vector.load %arg7[%c0_37, %c0_38, %c0_39] : memref<8x224x16xf32, #tpu.memory_space<vmem>>, vector<8x224x16xf32>
    "tpu.trace_start"() <{level = 10 : i32, message = "lok,lkv->lov"}> : () -> ()
    %cst_40 = arith.constant dense<0.000000e+00> : vector<8x32x16xf32>
    %29 = tpu.matmul %27, %28, %cst_40 {dimension_numbers = #tpu.dot_dimension_numbers<[2], [1], [1], [2], [0, 0, 0, 1, 1, 2], [0], [0]>} : vector<8x32x224xf32>, vector<8x224x16xf32>, vector<8x32x16xf32> -> vector<8x32x16xf32>
    "tpu.trace_stop"() : () -> ()
    %c0_41 = arith.constant 0 : index
    %c0_42 = arith.constant 0 : index
    %30 = vector.load %arg5[%c0_41, %c0_42] : memref<32x1xf32, #tpu.memory_space<vmem>>, vector<32x1xf32>
    %31 = vector.shape_cast %30 : vector<32x1xf32> to vector<1x32x1xf32>
    %32 = vector.broadcast %31 : vector<1x32x1xf32> to vector<8x32x16xf32>
    %33 = arith.addf %29, %32 : vector<8x32x16xf32>
    %c0_43 = arith.constant 0 : index
    %c0_44 = arith.constant 0 : index
    %c0_45 = arith.constant 0 : index
    %c0_46 = arith.constant 0 : index
    %34 = vector.load %arg6[%c0_43, %c0_44, %c0_45, %c0_46] : memref<1x8x32x16xf32, #tpu.memory_space<vmem>>, vector<1x8x32x16xf32>
    %35 = vector.shape_cast %34 : vector<1x8x32x16xf32> to vector<8x32x16xf32>
    %36 = vector.shape_cast %33 : vector<8x32x16xf32> to vector<1x8x32x16xf32>
    tpu.vector_store %arg6[%c0_43, %c0_44, %c0_45, %c0_46], %36 {strides = array<i32>} : memref<1x8x32x16xf32, #tpu.memory_space<vmem>>, vector<1x8x32x16xf32>,
    return
  }
  func.func @transform_0(%arg0: i32) -> (i32, i32, i32, i32) {
    %c0_i32 = arith.constant 0 : i32
    %c0_i32_0 = arith.constant 0 : i32
    %c0_i32_1 = arith.constant 0 : i32
    %c0_i32_2 = arith.constant 0 : i32
    return %arg0, %c0_i32, %c0_i32_0, %c0_i32_1 : i32, i32, i32, i32
  }
  func.func @transform_1(%arg0: i32) -> (i32, i32, i32, i32, i32) {
    %c0_i32 = arith.constant 0 : i32
    %c0_i32_0 = arith.constant 0 : i32
    %c0_i32_1 = arith.constant 0 : i32
    %c0_i32_2 = arith.constant 0 : i32
    %c0_i32_3 = arith.constant 0 : i32
    return %arg0, %c0_i32, %c0_i32_0, %c0_i32_1, %c0_i32_2 : i32, i32, i32, i32, i32
  }
  func.func @transform_2(%arg0: i32) -> (i32, i32, i32) {
    %c0_i32 = arith.constant 0 : i32
    %c0_i32_0 = arith.constant 0 : i32
    %c0_i32_1 = arith.constant 0 : i32
    %c0_i32_2 = arith.constant 0 : i32
    return %c0_i32, %c0_i32_0, %c0_i32_1 : i32, i32, i32
  }
  func.func @transform_3(%arg0: i32) -> (i32, i32) {
    %c0_i32 = arith.constant 0 : i32
    %c0_i32_0 = arith.constant 0 : i32
    %c0_i32_1 = arith.constant 0 : i32
    return %c0_i32, %c0_i32_0 : i32, i32
  }
  func.func @transform_4(%arg0: i32) -> (i32, i32) {
    %c0_i32 = arith.constant 0 : i32
    %c0_i32_0 = arith.constant 0 : i32
    %c0_i32_1 = arith.constant 0 : i32
    return %c0_i32, %c0_i32_0 : i32, i32
  }
  func.func @transform_5(%arg0: i32) -> (i32, i32, i32, i32) {
    %c0_i32 = arith.constant 0 : i32
    %c0_i32_0 = arith.constant 0 : i32
    %c0_i32_1 = arith.constant 0 : i32
    %c0_i32_2 = arith.constant 0 : i32
    return %arg0, %c0_i32, %c0_i32_0, %c0_i32_1 : i32, i32, i32, i32
  }
}

module attributes {stable_mosaic.version = 11 : i64} {
  func.func @gcn_kernel(%arg0: i32, %arg1: memref<1x8x32x16xf32, #tpu.memory_space<vmem>>, %arg2: memref<1x2x8x16x16xf32, #tpu.memory_space<vmem>>, %arg3: memref<1x16x16xf32, #tpu.memory_space<vmem>>, %arg4: memref<32x224xf32, #tpu.memory_space<vmem>>, %arg5: memref<32x1xf32, #tpu.memory_space<vmem>>, %arg6: memref<1x8x32x16xf32, #tpu.memory_space<vmem>>, %arg7: memref<8x224x16xf32, #tpu.memory_space<vmem>>) attributes {dimension_semantics = [#tpu.dimension_semantics<parallel>], iteration_bounds = array<i64: 2>, scalar_prefetch = 0 : i64, scratch_operands = 1 : i64, tpu.core_type = #tpu.core_type<tc>, window_params = [{transform_indices = @transform_0, window_bounds = array<i64: 1, 8, 32, 16>}, {transform_indices = @transform_1, window_bounds = array<i64: 1, 2, 8, 16, 16>}, {pipeline_mode = #tpu.pipeline_mode<synchronous>, transform_indices = @transform_2, window_bounds = array<i64: 1, 16, 16>}, {pipeline_mode = #tpu.pipeline_mode<synchronous>, transform_indices = @transform_3, window_bounds = array<i64: 32, 224>}, {pipeline_mode = #tpu.pipeline_mode<synchronous>, transform_indices = @transform_4, window_bounds = array<i64: 32, 1>}, {transform_indices = @transform_5, window_bounds = array<i64: 1, 8, 32, 16>}]} {
    %c0 = arith.constant 0 : index
    %c0_0 = arith.constant 0 : index
    %c0_1 = arith.constant 0 : index
    %c0_2 = arith.constant 0 : index
    %0 = vector.load %arg1[%c0, %c0_0, %c0_1, %c0_2] : memref<1x8x32x16xf32, #tpu.memory_space<vmem>>, vector<1x8x32x16xf32>
    %1 = vector.shape_cast %0 : vector<1x8x32x16xf32> to vector<8x32x16xf32>
    %c0_3 = arith.constant 0 : index
    %c0_4 = arith.constant 0 : index
    %c0_5 = arith.constant 0 : index
    %2 = vector.load %arg7[%c0_3, %c0_4, %c0_5] : memref<8x224x16xf32, #tpu.memory_space<vmem>>, vector<8x32x16xf32>
    tpu.vector_store %arg7[%c0_3, %c0_4, %c0_5], %1 {strides = array<i32>} : memref<8x224x16xf32, #tpu.memory_space<vmem>>, vector<8x32x16xf32>,
    %c0_6 = arith.constant 0 : index
    %c0_7 = arith.constant 0 : index
    %c0_8 = arith.constant 0 : index
    %c0_9 = arith.constant 0 : index
    %c0_10 = arith.constant 0 : index
    %3 = vector.load %arg2[%c0_6, %c0_7, %c0_8, %c0_9, %c0_10] : memref<1x2x8x16x16xf32, #tpu.memory_space<vmem>>, vector<1x1x8x16x16xf32>
    %4 = vector.shape_cast %3 : vector<1x1x8x16x16xf32> to vector<8x16x16xf32>
    "tpu.trace_start"() <{level = 10 : i32, message = "lcv,lvw->lcw"}> : () -> ()
    %cst = arith.constant dense<0.000000e+00> : vector<8x32x16xf32>
    %5 = tpu.matmul %1, %4, %cst {dimension_numbers = #tpu.dot_dimension_numbers<[2], [1], [1], [2], [0, 0, 0, 1, 1, 2], [0], [0]>} : vector<8x32x16xf32>, vector<8x16x16xf32>, vector<8x32x16xf32> -> vector<8x32x16xf32>
    "tpu.trace_stop"() : () -> ()
    %c0_11 = arith.constant 0 : index
    %c32 = arith.constant 32 : index
    %c0_12 = arith.constant 0 : index
    %6 = vector.load %arg7[%c0_11, %c32, %c0_12] : memref<8x224x16xf32, #tpu.memory_space<vmem>>, vector<8x32x16xf32>
    tpu.vector_store %arg7[%c0_11, %c32, %c0_12], %5 {strides = array<i32>} : memref<8x224x16xf32, #tpu.memory_space<vmem>>, vector<8x32x16xf32>,
    "tpu.trace_start"() <{level = 10 : i32, message = "lcv,lvw->lcw"}> : () -> ()
    %cst_13 = arith.constant dense<0.000000e+00> : vector<8x32x16xf32>
    %7 = tpu.matmul %5, %4, %cst_13 {dimension_numbers = #tpu.dot_dimension_numbers<[2], [1], [1], [2], [0, 0, 0, 1, 1, 2], [0], [0]>} : vector<8x32x16xf32>, vector<8x16x16xf32>, vector<8x32x16xf32> -> vector<8x32x16xf32>
    "tpu.trace_stop"() : () -> ()
    %c0_14 = arith.constant 0 : index
    %c64 = arith.constant 64 : index
    %c0_15 = arith.constant 0 : index
    %8 = vector.load %arg7[%c0_14, %c64, %c0_15] : memref<8x224x16xf32, #tpu.memory_space<vmem>>, vector<8x32x16xf32>
    tpu.vector_store %arg7[%c0_14, %c64, %c0_15], %7 {strides = array<i32>} : memref<8x224x16xf32, #tpu.memory_space<vmem>>, vector<8x32x16xf32>,
    %c0_16 = arith.constant 0 : index
    %c1 = arith.constant 1 : index
    %c0_17 = arith.constant 0 : index
    %c0_18 = arith.constant 0 : index
    %c0_19 = arith.constant 0 : index
    %9 = vector.load %arg2[%c0_16, %c1, %c0_17, %c0_18, %c0_19] : memref<1x2x8x16x16xf32, #tpu.memory_space<vmem>>, vector<1x1x8x16x16xf32>
    %10 = vector.shape_cast %9 : vector<1x1x8x16x16xf32> to vector<8x16x16xf32>
    "tpu.trace_start"() <{level = 10 : i32, message = "lcv,lvw->lcw"}> : () -> ()
    %cst_20 = arith.constant dense<0.000000e+00> : vector<8x32x16xf32>
    %11 = tpu.matmul %1, %10, %cst_20 {dimension_numbers = #tpu.dot_dimension_numbers<[2], [1], [1], [2], [0, 0, 0, 1, 1, 2], [0], [0]>} : vector<8x32x16xf32>, vector<8x16x16xf32>, vector<8x32x16xf32> -> vector<8x32x16xf32>
    "tpu.trace_stop"() : () -> ()
    %c0_21 = arith.constant 0 : index
    %c96 = arith.constant 96 : index
    %c0_22 = arith.constant 0 : index
    %12 = vector.load %arg7[%c0_21, %c96, %c0_22] : memref<8x224x16xf32, #tpu.memory_space<vmem>>, vector<8x32x16xf32>
    tpu.vector_store %arg7[%c0_21, %c96, %c0_22], %11 {strides = array<i32>} : memref<8x224x16xf32, #tpu.memory_space<vmem>>, vector<8x32x16xf32>,
    "tpu.trace_start"() <{level = 10 : i32, message = "lcv,lvw->lcw"}> : () -> ()
    %cst_23 = arith.constant dense<0.000000e+00> : vector<8x32x16xf32>
    %13 = tpu.matmul %11, %10, %cst_23 {dimension_numbers = #tpu.dot_dimension_numbers<[2], [1], [1], [2], [0, 0, 0, 1, 1, 2], [0], [0]>} : vector<8x32x16xf32>, vector<8x16x16xf32>, vector<8x32x16xf32> -> vector<8x32x16xf32>
    "tpu.trace_stop"() : () -> ()
    %c0_24 = arith.constant 0 : index
    %c128 = arith.constant 128 : index
    %c0_25 = arith.constant 0 : index
    %14 = vector.load %arg7[%c0_24, %c128, %c0_25] : memref<8x224x16xf32, #tpu.memory_space<vmem>>, vector<8x32x16xf32>
    tpu.vector_store %arg7[%c0_24, %c128, %c0_25], %13 {strides = array<i32>} : memref<8x224x16xf32, #tpu.memory_space<vmem>>, vector<8x32x16xf32>,
    %c0_26 = arith.constant 0 : index
    %c0_27 = arith.constant 0 : index
    %c0_28 = arith.constant 0 : index
    %15 = vector.load %arg3[%c0_26, %c0_27, %c0_28] : memref<1x16x16xf32, #tpu.memory_space<vmem>>, vector<1x16x16xf32>
    %16 = vector.shape_cast %15 : vector<1x16x16xf32> to vector<16x16xf32>
    %17 = vector.shape_cast %1 : vector<8x32x16xf32> to vector<256x16xf32>
    %cst_29 = arith.constant dense<0.000000e+00> : vector<256x16xf32>
    %18 = tpu.matmul %17, %16, %cst_29 {dimension_numbers = #tpu.dot_dimension_numbers<[1], [0], [0], [1], [0, 0, 1, 1], [], []>} : vector<256x16xf32>, vector<16x16xf32>, vector<256x16xf32> -> vector<256x16xf32>
    %19 = vector.shape_cast %18 : vector<256x16xf32> to vector<8x32x16xf32>
    %c0_30 = arith.constant 0 : index
    %c160 = arith.constant 160 : index
    %c0_31 = arith.constant 0 : index
    %20 = vector.load %arg7[%c0_30, %c160, %c0_31] : memref<8x224x16xf32, #tpu.memory_space<vmem>>, vector<8x32x16xf32>
    tpu.vector_store %arg7[%c0_30, %c160, %c0_31], %19 {strides = array<i32>} : memref<8x224x16xf32, #tpu.memory_space<vmem>>, vector<8x32x16xf32>,
    %21 = vector.shape_cast %19 : vector<8x32x16xf32> to vector<256x16xf32>
    %cst_32 = arith.constant dense<0.000000e+00> : vector<256x16xf32>
    %22 = tpu.matmul %21, %16, %cst_32 {dimension_numbers = #tpu.dot_dimension_numbers<[1], [0], [0], [1], [0, 0, 1, 1], [], []>} : vector<256x16xf32>, vector<16x16xf32>, vector<256x16xf32> -> vector<256x16xf32>
    %23 = vector.shape_cast %22 : vector<256x16xf32> to vector<8x32x16xf32>
    %c0_33 = arith.constant 0 : index
    %c192 = arith.constant 192 : index
    %c0_34 = arith.constant 0 : index
    %24 = vector.load %arg7[%c0_33, %c192, %c0_34] : memref<8x224x16xf32, #tpu.memory_space<vmem>>, vector<8x32x16xf32>
    tpu.vector_store %arg7[%c0_33, %c192, %c0_34], %23 {strides = array<i32>} : memref<8x224x16xf32, #tpu.memory_space<vmem>>, vector<8x32x16xf32>,
    %c0_35 = arith.constant 0 : index
    %c0_36 = arith.constant 0 : index
    %25 = vector.load %arg4[%c0_35, %c0_36] : memref<32x224xf32, #tpu.memory_space<vmem>>, vector<32x224xf32>
    %26 = vector.shape_cast %25 : vector<32x224xf32> to vector<1x32x224xf32>
    %27 = vector.broadcast %26 : vector<1x32x224xf32> to vector<8x32x224xf32>
    %c0_37 = arith.constant 0 : index
    %c0_38 = arith.constant 0 : index
    %c0_39 = arith.constant 0 : index
    %28 = vector.load %arg7[%c0_37, %c0_38, %c0_39] : memref<8x224x16xf32, #tpu.memory_space<vmem>>, vector<8x224x16xf32>
    "tpu.trace_start"() <{level = 10 : i32, message = "lok,lkv->lov"}> : () -> ()
    %cst_40 = arith.constant dense<0.000000e+00> : vector<8x32x16xf32>
    %29 = tpu.matmul %27, %28, %cst_40 {dimension_numbers = #tpu.dot_dimension_numbers<[2], [1], [1], [2], [0, 0, 0, 1, 1, 2], [0], [0]>} : vector<8x32x224xf32>, vector<8x224x16xf32>, vector<8x32x16xf32> -> vector<8x32x16xf32>
    "tpu.trace_stop"() : () -> ()
    %c0_41 = arith.constant 0 : index
    %c0_42 = arith.constant 0 : index
    %30 = vector.load %arg5[%c0_41, %c0_42] : memref<32x1xf32, #tpu.memory_space<vmem>>, vector<32x1xf32>
    %31 = vector.shape_cast %30 : vector<32x1xf32> to vector<1x32x1xf32>
    %32 = vector.broadcast %31 : vector<1x32x1xf32> to vector<8x32x16xf32>
    %33 = arith.addf %29, %32 : vector<8x32x16xf32>
    %c0_43 = arith.constant 0 : index
    %c0_44 = arith.constant 0 : index
    %c0_45 = arith.constant 0 : index
    %c0_46 = arith.constant 0 : index
    %34 = vector.load %arg6[%c0_43, %c0_44, %c0_45, %c0_46] : memref<1x8x32x16xf32, #tpu.memory_space<vmem>>, vector<1x8x32x16xf32>
    %35 = vector.shape_cast %34 : vector<1x8x32x16xf32> to vector<8x32x16xf32>
    %36 = vector.shape_cast %33 : vector<8x32x16xf32> to vector<1x8x32x16xf32>
    tpu.vector_store %arg6[%c0_43, %c0_44, %c0_45, %c0_46], %36 {strides = array<i32>} : memref<1x8x32x16xf32, #tpu.memory_space<vmem>>, vector<1x8x32x16xf32>,
    return
  }
  func.func @transform_0(%arg0: i32) -> (i32, i32, i32, i32) {
    %c0_i32 = arith.constant 0 : i32
    %c0_i32_0 = arith.constant 0 : i32
    %c0_i32_1 = arith.constant 0 : i32
    %c0_i32_2 = arith.constant 0 : i32
    return %arg0, %c0_i32, %c0_i32_0, %c0_i32_1 : i32, i32, i32, i32
  }
  func.func @transform_1(%arg0: i32) -> (i32, i32, i32, i32, i32) {
    %c0_i32 = arith.constant 0 : i32
    %c0_i32_0 = arith.constant 0 : i32
    %c0_i32_1 = arith.constant 0 : i32
    %c0_i32_2 = arith.constant 0 : i32
    %c0_i32_3 = arith.constant 0 : i32
    return %arg0, %c0_i32, %c0_i32_0, %c0_i32_1, %c0_i32_2 : i32, i32, i32, i32, i32
  }
  func.func @transform_2(%arg0: i32) -> (i32, i32, i32) {
    %c0_i32 = arith.constant 0 : i32
    %c0_i32_0 = arith.constant 0 : i32
    %c0_i32_1 = arith.constant 0 : i32
    %c0_i32_2 = arith.constant 0 : i32
    return %c0_i32, %c0_i32_0, %c0_i32_1 : i32, i32, i32
  }
  func.func @transform_3(%arg0: i32) -> (i32, i32) {
    %c0_i32 = arith.constant 0 : i32
    %c0_i32_0 = arith.constant 0 : i32
    %c0_i32_1 = arith.constant 0 : i32
    return %c0_i32, %c0_i32_0 : i32, i32
  }
  func.func @transform_4(%arg0: i32) -> (i32, i32) {
    %c0_i32 = arith.constant 0 : i32
    %c0_i32_0 = arith.constant 0 : i32
    %c0_i32_1 = arith.constant 0 : i32
    return %c0_i32, %c0_i32_0 : i32, i32
  }
  func.func @transform_5(%arg0: i32) -> (i32, i32, i32, i32) {
    %c0_i32 = arith.constant 0 : i32
    %c0_i32_0 = arith.constant 0 : i32
    %c0_i32_1 = arith.constant 0 : i32
    %c0_i32_2 = arith.constant 0 : i32
    return %arg0, %c0_i32, %c0_i32_0, %c0_i32_1 : i32, i32, i32, i32
  }
}

</mosaic_0001>

<llo_original>
// kernel: tpu_custom_call.1
$region0: #{tpu_custom_call.1}
  #allocation0 [shape = 'u32[]', space=smem, size = 0x4, offset = 0x4, fixed_abs, tag = 'smem constant byte address 0x4 - core index']
  #allocation1 [shape = 'u32[144,128]{1,0:T(1,128)}', space=vmem, size = 0x12000, scoped, tag = 'internal scratch']
  #allocation2 [shape = 'f32[8,224,16]{2,1,0:T(8,128)}', space=vmem, size = 0xe0000, scoped, tag = 'scratch operand']
  %s0 = inlined_call_operand.vmem [shape: f32[2,8,32,16], index: 0, kind: input, shape index: {}]
  %s1 = inlined_call_operand.vmem [shape: f32[2,2,8,16,16], index: 1, kind: input, shape index: {}]
  %s2 = inlined_call_operand.vmem [shape: f32[1,16,16], index: 2, kind: input, shape index: {}]
  %s3 = inlined_call_operand.vmem [shape: f32[32,224], index: 3, kind: input, shape index: {}]
  %s4 = inlined_call_operand.vmem [shape: f32[32,1], index: 4, kind: input, shape index: {}]
  %s5 = inlined_call_operand.vmem [shape: f32[2,8,32,16], index: 5, kind: output, shape index: {}]
  %s6 = sld [smem:[#allocation0]]
  $region53: #{tpu_custom_call.1} parent=0
    _
  %s8 = ssub.s32 1, %s6
  %s9 = scalar_select 0, %s8, %s6
  loop: start=0, step=1, limit=4
  $region2: #{tpu_custom_call.1} parent=0 // loop_pre_header
    _
  $region3: #{tpu_custom_call.1} parent=0 // loop_header
    %s11 = sphi 0, %s15
    %p12 = scmp.ge.s32.totalorder %s11, 4
    %s21 = sphi 0, %s23
    %s24 = sphi 0, %s21
    %s25 = sphi 0, %s24
    %s41 = sphi 0, %s25
    %s47 = sphi 0, %s49
    %s50 = sphi 0, %s47
    %s51 = sphi 0, %s50
    %s67 = sphi 0, %s51
    %s71 = sphi 0, %s71
    %s73 = sphi 0, %s71
    %s74 = sphi 0, %s73
    %s88 = sphi 0, %s74
    %s92 = sphi 0, %s92
    %s94 = sphi 0, %s92
    %s95 = sphi 0, %s94
    %s109 = sphi 0, %s95
    %s113 = sphi 0, %s113
    %s115 = sphi 0, %s113
    %s116 = sphi 0, %s115
    %s130 = sphi 0, %s116
    %s136 = sphi 0, %s138
    %s139 = sphi 0, %s136
    %s140 = sphi 0, %s139
    %s156 = sphi 0, %s140
  $region4: #{tpu_custom_call.1} parent=0 // loop_header_branch
    %14 = sbr.rel (%p12) target = $region8
  $region5: #{tpu_custom_call.1} parent=0 // loop_body
    %s16 = ssub.s32 %s11, 1
    %s17 = ssub.s32 %s11, 2
    %s18 = sadd.s32 %s11, 1
    %s19 = ssub.s32 %s11, %s18
    %p20 = scmp.eq.s32.totalorder %s19, 0
    %s22 = sadd.s32 %s21, 1
    %s23 = scalar_select %p20, %s21, %s22
    %p26 = pneg %p20
    %p27 = scmp.eq.s32.totalorder %s11, 1
    %p28 = por %p26, %p27
    %p29 = scmp.ne.s32.totalorder %s21, %s24
    %p30 = scmp.eq.s32.totalorder %s11, 0
    %p31 = por %p29, %p30
    %p32 = scmp.ne.s32.totalorder %s21, %s24
    %p33 = scmp.eq.s32.totalorder %s16, 1
    %p34 = por %p32, %p33
    %p35 = scmp.ne.s32.totalorder %s24, %s25
    %p36 = scmp.eq.s32.totalorder %s16, 0
    %p37 = por %p35, %p36
    %p38 = scmp.ne.s32.totalorder %s24, %s25
    %p39 = scmp.eq.s32.totalorder %s17, 1
    %p40 = por %p38, %p39
    %p42 = scmp.ne.s32.totalorder %s25, %s41
    %p43 = scmp.eq.s32.totalorder %s17, 0
    %p44 = por %p42, %p43
    %s45 = ssub.s32 %s11, %s18
    %p46 = scmp.eq.s32.totalorder %s45, 0
    %s48 = sadd.s32 %s47, 1
    %s49 = scalar_select %p46, %s47, %s48
    %p52 = pneg %p46
    %p53 = scmp.eq.s32.totalorder %s11, 1
    %p54 = por %p52, %p53
    %p55 = scmp.ne.s32.totalorder %s47, %s50
    %p56 = scmp.eq.s32.totalorder %s11, 0
    %p57 = por %p55, %p56
    %p58 = scmp.ne.s32.totalorder %s47, %s50
    %p59 = scmp.eq.s32.totalorder %s16, 1
    %p60 = por %p58, %p59
    %p61 = scmp.ne.s32.totalorder %s50, %s51
    %p62 = scmp.eq.s32.totalorder %s16, 0
    %p63 = por %p61, %p62
    %p64 = scmp.ne.s32.totalorder %s50, %s51
    %p65 = scmp.eq.s32.totalorder %s17, 1
    %p66 = por %p64, %p65
    %p68 = scmp.ne.s32.totalorder %s51, %s67
    %p69 = scmp.eq.s32.totalorder %s17, 0
    %p70 = por %p68, %p69
    %s72 = sadd.s32 %s71, 1
    %p75 = scmp.eq.s32.totalorder %s11, 1
    %p76 = scmp.ne.s32.totalorder %s71, %s73
    %p77 = scmp.eq.s32.totalorder %s11, 0
    %p78 = por %p76, %p77
    %p79 = scmp.ne.s32.totalorder %s71, %s73
    %p80 = scmp.eq.s32.totalorder %s16, 1
    %p81 = por %p79, %p80
    %p82 = scmp.ne.s32.totalorder %s73, %s74
    %p83 = scmp.eq.s32.totalorder %s16, 0
    %p84 = por %p82, %p83
    %p85 = scmp.ne.s32.totalorder %s73, %s74
    %p86 = scmp.eq.s32.totalorder %s17, 1
    %p87 = por %p85, %p86
    %p89 = scmp.ne.s32.totalorder %s74, %s88
    %p90 = scmp.eq.s32.totalorder %s17, 0
    %p91 = por %p89, %p90
    %s93 = sadd.s32 %s92, 1
    %p96 = scmp.eq.s32.totalorder %s11, 1
    %p97 = scmp.ne.s32.totalorder %s92, %s94
    %p98 = scmp.eq.s32.totalorder %s11, 0
    %p99 = por %p97, %p98
    %p100 = scmp.ne.s32.totalorder %s92, %s94
    %p101 = scmp.eq.s32.totalorder %s16, 1
    %p102 = por %p100, %p101
    %p103 = scmp.ne.s32.totalorder %s94, %s95
    %p104 = scmp.eq.s32.totalorder %s16, 0
    %p105 = por %p103, %p104
    %p106 = scmp.ne.s32.totalorder %s94, %s95
    %p107 = scmp.eq.s32.totalorder %s17, 1
    %p108 = por %p106, %p107
    %p110 = scmp.ne.s32.totalorder %s95, %s109
    %p111 = scmp.eq.s32.totalorder %s17, 0
    %p112 = por %p110, %p111
    %s114 = sadd.s32 %s113, 1
    %p117 = scmp.eq.s32.totalorder %s11, 1
    %p118 = scmp.ne.s32.totalorder %s113, %s115
    %p119 = scmp.eq.s32.totalorder %s11, 0
    %p120 = por %p118, %p119
    %p121 = scmp.ne.s32.totalorder %s113, %s115
    %p122 = scmp.eq.s32.totalorder %s16, 1
    %p123 = por %p121, %p122
    %p124 = scmp.ne.s32.totalorder %s115, %s116
    %p125 = scmp.eq.s32.totalorder %s16, 0
    %p126 = por %p124, %p125
    %p127 = scmp.ne.s32.totalorder %s115, %s116
    %p128 = scmp.eq.s32.totalorder %s17, 1
    %p129 = por %p127, %p128
    %p131 = scmp.ne.s32.totalorder %s116, %s130
    %p132 = scmp.eq.s32.totalorder %s17, 0
    %p133 = por %p131, %p132
    %s134 = ssub.s32 %s11, %s18
    %p135 = scmp.eq.s32.totalorder %s134, 0
    %s137 = sadd.s32 %s136, 1
    %s138 = scalar_select %p135, %s136, %s137
    %p141 = pneg %p135
    %p142 = scmp.eq.s32.totalorder %s11, 1
    %p143 = por %p141, %p142
    %p144 = scmp.ne.s32.totalorder %s136, %s139
    %p145 = scmp.eq.s32.totalorder %s11, 0
    %p146 = por %p144, %p145
    %p147 = scmp.ne.s32.totalorder %s136, %s139
    %p148 = scmp.eq.s32.totalorder %s16, 1
    %p149 = por %p147, %p148
    %p150 = scmp.ne.s32.totalorder %s139, %s140
    %p151 = scmp.eq.s32.totalorder %s16, 0
    %p152 = por %p150, %p151
    %p153 = scmp.ne.s32.totalorder %s139, %s140
    %p154 = scmp.eq.s32.totalorder %s17, 1
    %p155 = por %p153, %p154
    %p157 = scmp.ne.s32.totalorder %s140, %s156
    %p158 = scmp.eq.s32.totalorder %s17, 0
    %p159 = por %p157, %p158
    %p160 = scmp.le.s32.totalorder 1, %s11
    %p161 = scmp.lt.s32.totalorder %s11, 3
    %p162 = pnand %p160, %p161
    %p163 = pneg %p162
    // Predicated region
    $region9: #{tpu_custom_call.1} parent=5 // pred_check
      _
    $region10: #{tpu_custom_call.1} parent=5 // pred_check_branch
      %165 = sbr.rel (%p162) target = $region12
    $region11: #{tpu_custom_call.1} parent=5 // pred_region
      %s166 = ssub.s32 %s11, 1
      // Predicated region
      $region13: #{tpu_custom_call.1} parent=11 // pred_check
        %p167 = pneg %p84
      $region14: #{tpu_custom_call.1} parent=11 // pred_check_branch
        %169 = sbr.rel (%p167) target = $region16
      $region15: #{tpu_custom_call.1} parent=11 // pred_region
        _
      $region16: #{tpu_custom_call.1} parent=11 // pred_fallthru
        _
      // Predicated region
      $region17: #{tpu_custom_call.1} parent=11 // pred_check
        %p170 = pneg %p105
      $region18: #{tpu_custom_call.1} parent=11 // pred_check_branch
        %172 = sbr.rel (%p170) target = $region20
      $region19: #{tpu_custom_call.1} parent=11 // pred_region
        _
      $region20: #{tpu_custom_call.1} parent=11 // pred_fallthru
        _
      // Predicated region
      $region21: #{tpu_custom_call.1} parent=11 // pred_check
        %p173 = pneg %p126
      $region22: #{tpu_custom_call.1} parent=11 // pred_check_branch
        %175 = sbr.rel (%p173) target = $region24
      $region23: #{tpu_custom_call.1} parent=11 // pred_region
        _
      $region24: #{tpu_custom_call.1} parent=11 // pred_fallthru
        _
    $region12: #{tpu_custom_call.1} parent=5 // pred_fallthru
      _
    %p176 = scmp.lt.s32.totalorder %s11, 2
    // Predicated region
    $region25: #{tpu_custom_call.1} parent=5 // pred_check
      %p177 = pneg %p176
    $region26: #{tpu_custom_call.1} parent=5 // pred_check_branch
      %179 = sbr.rel (%p177) target = $region28
    $region27: #{tpu_custom_call.1} parent=5 // pred_region
      // Predicated region
      $region29: #{tpu_custom_call.1} parent=27 // pred_check
        %p180 = pneg %p31
      $region30: #{tpu_custom_call.1} parent=27 // pred_check_branch
        %182 = sbr.rel (%p180) target = $region32
      $region31: #{tpu_custom_call.1} parent=27 // pred_region
        %p183 = scmp.lt.s32.totalorder %s11, 1
        %s184 = scalar_select %p183, %s11, 1
        %s185 = smul.addr %s184, 32
        %s186 = smul.addr %s185, 8
        %s187 = scalar_lea.vmem %s0, %s186
      $region32: #{tpu_custom_call.1} parent=27 // pred_fallthru
        _
      // Predicated region
      $region33: #{tpu_custom_call.1} parent=27 // pred_check
        %p188 = pneg %p57
      $region34: #{tpu_custom_call.1} parent=27 // pred_check_branch
        %190 = sbr.rel (%p188) target = $region36
      $region35: #{tpu_custom_call.1} parent=27 // pred_region
        %p191 = scmp.lt.s32.totalorder %s11, 1
        %s192 = scalar_select %p191, %s11, 1
        %s193 = smul.addr %s192, 32
        %s194 = smul.addr %s193, 8
        %s195 = scalar_lea.vmem %s1, %s194
      $region36: #{tpu_custom_call.1} parent=27 // pred_fallthru
        _
    $region28: #{tpu_custom_call.1} parent=5 // pred_fallthru
      _
    %p196 = scmp.le.s32.totalorder 1, %s11
    %p197 = scmp.lt.s32.totalorder %s11, 3
    %p198 = pnand %p196, %p197
    %p199 = pneg %p198
    // Predicated region
    $region37: #{tpu_custom_call.1} parent=5 // pred_check
      _
    $region38: #{tpu_custom_call.1} parent=5 // pred_check_branch
      %201 = sbr.rel (%p198) target = $region40
    $region39: #{tpu_custom_call.1} parent=5 // pred_region
      %s202 = ssub.s32 %s11, 1
      %p203 = scmp.lt.s32.totalorder %s16, 1
      %s204 = scalar_select %p203, %s16, 1
      %s205 = smul.addr %s204, 32
      %s206 = smul.addr %s205, 8
      %s207 = scalar_lea.vmem %s0, %s206
      %p208 = pneg %p37
      %p209 = pneg %p34
      %p210 = scmp.lt.s32.totalorder %s16, 1
      %s211 = scalar_select %p210, %s16, 1
      %s212 = smul.addr %s211, 32
      %s213 = smul.addr %s212, 8
      %s214 = scalar_lea.vmem %s1, %s213
      %p215 = pneg %p63
      %p216 = pneg %p60
      %p217 = pneg %p84
      %p218 = pneg %p81
      %p219 = pneg %p105
      %p220 = pneg %p102
      %p221 = pneg %p126
      %p222 = pneg %p123
      %p223 = pneg %p152
      %p224 = pneg %p149
      %p225 = scmp.lt.s32.totalorder %s16, 1
      %s226 = scalar_select %p225, %s16, 1
      %s227 = smul.addr %s226, 32
      %s228 = smul.addr %s227, 8
      %s229 = scalar_lea.vmem %s5, %s228
      %p230 = scmp.lt.s32.totalorder %s16, 1
      %s231 = scalar_select %p230, %s16, 1
      %s232 = smul.addr %s231, 32
      %s233 = smul.addr %s232, 8
      %s234 = scalar_lea.vmem %s0, %s233
      %p235 = scmp.lt.s32.totalorder %s16, 1
      %s236 = scalar_select %p235, %s16, 1
      %s237 = smul.addr %s236, 32
      %s238 = smul.addr %s237, 8
      %s239 = scalar_lea.vmem %s1, %s238
      %p240 = scmp.lt.s32.totalorder %s16, 1
      %s241 = scalar_select %p240, %s16, 1
      %s242 = smul.addr %s241, 32
      %s243 = smul.addr %s242, 8
      %s244 = scalar_lea.vmem %s5, %s243
      %v245 = vld [vmem:[%s234] sm:$0xff]
      %v246 = vld [vmem:[%s234 + $0x8] sm:$0xff]
      %v247 = vld [vmem:[%s234 + $0x10] sm:$0xff]
      %v248 = vld [vmem:[%s234 + $0x18] sm:$0xff]
      %v249 = vld [vmem:[%s234 + $0x20] sm:$0xff]
      %v250 = vld [vmem:[%s234 + $0x28] sm:$0xff]
      %v251 = vld [vmem:[%s234 + $0x30] sm:$0xff]
      %v252 = vld [vmem:[%s234 + $0x38] sm:$0xff]
      %v253 = vld [vmem:[%s234 + $0x40] sm:$0xff]
      %v254 = vld [vmem:[%s234 + $0x48] sm:$0xff]
      %v255 = vld [vmem:[%s234 + $0x50] sm:$0xff]
      %v256 = vld [vmem:[%s234 + $0x58] sm:$0xff]
      %v257 = vld [vmem:[%s234 + $0x60] sm:$0xff]
      %v258 = vld [vmem:[%s234 + $0x68] sm:$0xff]
      %v259 = vld [vmem:[%s234 + $0x70] sm:$0xff]
      %v260 = vld [vmem:[%s234 + $0x78] sm:$0xff]
      %v261 = vld [vmem:[%s234 + $0x80] sm:$0xff]
      %v262 = vld [vmem:[%s234 + $0x88] sm:$0xff]
      %v263 = vld [vmem:[%s234 + $0x90] sm:$0xff]
      %v264 = vld [vmem:[%s234 + $0x98] sm:$0xff]
      %v265 = vld [vmem:[%s234 + $0xa0] sm:$0xff]
      %v266 = vld [vmem:[%s234 + $0xa8] sm:$0xff]
      %v267 = vld [vmem:[%s234 + $0xb0] sm:$0xff]
      %v268 = vld [vmem:[%s234 + $0xb8] sm:$0xff]
      %v269 = vld [vmem:[%s234 + $0xc0] sm:$0xff]
      %v270 = vld [vmem:[%s234 + $0xc8] sm:$0xff]
      %v271 = vld [vmem:[%s234 + $0xd0] sm:$0xff]
      %v272 = vld [vmem:[%s234 + $0xd8] sm:$0xff]
      %v273 = vld [vmem:[%s234 + $0xe0] sm:$0xff]
      %v274 = vld [vmem:[%s234 + $0xe8] sm:$0xff]
      %v275 = vld [vmem:[%s234 + $0xf0] sm:$0xff]
      %v276 = vld [vmem:[%s234 + $0xf8] sm:$0xff]
      %vm277 = vcmask 130048
      %278 = vst.msk [vmem:[#allocation2] sm:$0xff] %vm277, %v245
      %279 = vst.msk [vmem:[#allocation2 + $0x8] sm:$0xff] %vm277, %v246
      %280 = vst.msk [vmem:[#allocation2 + $0x10] sm:$0xff] %vm277, %v247
      %281 = vst.msk [vmem:[#allocation2 + $0x18] sm:$0xff] %vm277, %v248
      %282 = vst.msk [vmem:[#allocation2 + $0xe0] sm:$0xff] %vm277, %v249
      %283 = vst.msk [vmem:[#allocation2 + $0xe8] sm:$0xff] %vm277, %v250
      %284 = vst.msk [vmem:[#allocation2 + $0xf0] sm:$0xff] %vm277, %v251
      %285 = vst.msk [vmem:[#allocation2 + $0xf8] sm:$0xff] %vm277, %v252
      %286 = vst.msk [vmem:[#allocation2 + $0x1c0] sm:$0xff] %vm277, %v253
      %287 = vst.msk [vmem:[#allocation2 + $0x1c8] sm:$0xff] %vm277, %v254
      %288 = vst.msk [vmem:[#allocation2 + $0x1d0] sm:$0xff] %vm277, %v255
      %289 = vst.msk [vmem:[#allocation2 + $0x1d8] sm:$0xff] %vm277, %v256
      %290 = vst.msk [vmem:[#allocation2 + $0x2a0] sm:$0xff] %vm277, %v257
      %291 = vst.msk [vmem:[#allocation2 + $0x2a8] sm:$0xff] %vm277, %v258
      %292 = vst.msk [vmem:[#allocation2 + $0x2b0] sm:$0xff] %vm277, %v259
      %293 = vst.msk [vmem:[#allocation2 + $0x2b8] sm:$0xff] %vm277, %v260
      %294 = vst.msk [vmem:[#allocation2 + $0x380] sm:$0xff] %vm277, %v261
      %295 = vst.msk [vmem:[#allocation2 + $0x388] sm:$0xff] %vm277, %v262
      %296 = vst.msk [vmem:[#allocation2 + $0x390] sm:$0xff] %vm277, %v263
      %297 = vst.msk [vmem:[#allocation2 + $0x398] sm:$0xff] %vm277, %v264
      %298 = vst.msk [vmem:[#allocation2 + $0x460] sm:$0xff] %vm277, %v265
      %299 = vst.msk [vmem:[#allocation2 + $0x468] sm:$0xff] %vm277, %v266
      %300 = vst.msk [vmem:[#allocation2 + $0x470] sm:$0xff] %vm277, %v267
      %301 = vst.msk [vmem:[#allocation2 + $0x478] sm:$0xff] %vm277, %v268
      %302 = vst.msk [vmem:[#allocation2 + $0x540] sm:$0xff] %vm277, %v269
      %303 = vst.msk [vmem:[#allocation2 + $0x548] sm:$0xff] %vm277, %v270
      %304 = vst.msk [vmem:[#allocation2 + $0x550] sm:$0xff] %vm277, %v271
      %305 = vst.msk [vmem:[#allocation2 + $0x558] sm:$0xff] %vm277, %v272
      %306 = vst.msk [vmem:[#allocation2 + $0x620] sm:$0xff] %vm277, %v273
      %307 = vst.msk [vmem:[#allocation2 + $0x628] sm:$0xff] %vm277, %v274
      %308 = vst.msk [vmem:[#allocation2 + $0x630] sm:$0xff] %vm277, %v275
      %309 = vst.msk [vmem:[#allocation2 + $0x638] sm:$0xff] %vm277, %v276
      %v310 = vld [vmem:[%s239] sm:$0xff]
      %v311 = vld [vmem:[%s239 + $0x8] sm:$0xff]
      %v312 = vld [vmem:[%s239 + $0x10] sm:$0xff]
      %v313 = vld [vmem:[%s239 + $0x18] sm:$0xff]
      %v314 = vld [vmem:[%s239 + $0x20] sm:$0xff]
      %v315 = vld [vmem:[%s239 + $0x28] sm:$0xff]
      %v316 = vld [vmem:[%s239 + $0x30] sm:$0xff]
      %v317 = vld [vmem:[%s239 + $0x38] sm:$0xff]
      %v318 = vld [vmem:[%s239 + $0x40] sm:$0xff]
      %v319 = vld [vmem:[%s239 + $0x48] sm:$0xff]
      %v320 = vld [vmem:[%s239 + $0x50] sm:$0xff]
      %v321 = vld [vmem:[%s239 + $0x58] sm:$0xff]
      %v322 = vld [vmem:[%s239 + $0x60] sm:$0xff]
      %v323 = vld [vmem:[%s239 + $0x68] sm:$0xff]
      %v324 = vld [vmem:[%s239 + $0x70] sm:$0xff]
      %v325 = vld [vmem:[%s239 + $0x78] sm:$0xff]
      %v327 = vsel %vm277, %v245, 0
      %v330 = vsel %vm277, %v246, 0
      %v333 = vsel %vm277, %v247, 0
      %v336 = vsel %vm277, %v248, 0
      %338 = vmatprep.subr.mxu0 0.0
      %339 = vmatpush1.msra.mxu0 %v310
      %340 = vmatprep.subr.mxu0 0.0
      %341 = vmatpush1.msra.mxu0 %v311
      %342 = vmatprep.subr.mxu0 0.0
      %343 = vmatpush1.msra.mxu0 0.0
      %344 = vmatprep.subr.mxu0 0.0
      %345 = vmatpush1.msra.mxu0 0.0
      %346 = vmatprep.subr.mxu0 0.0
      %347 = vmatpush1.msra.mxu0 0.0
      %348 = vmatprep.subr.mxu0 0.0
      %349 = vmatpush1.msra.mxu0 0.0
      %350 = vmatprep.subr.mxu0 0.0
      %351 = vmatpush1.msra.mxu0 0.0
      %352 = vmatprep.subr.mxu0 0.0
      %353 = vmatpush1.msra.mxu0 0.0
      %354 = vmatprep.subr.mxu0 0.0
      %355 = vmatpush1.msra.mxu0 0.0
      %356 = vmatprep.subr.mxu0 0.0
      %357 = vmatpush1.msra.mxu0 0.0
      %358 = vmatprep.subr.mxu0 0.0
      %359 = vmatpush1.msra.mxu0 0.0
      %360 = vmatprep.subr.mxu0 0.0
      %361 = vmatpush1.msra.mxu0 0.0
      %362 = vmatprep.subr.mxu0 0.0
      %363 = vmatpush1.msra.mxu0 0.0
      %364 = vmatprep.subr.mxu0 0.0
      %365 = vmatpush1.msra.mxu0 0.0
      %366 = vmatprep.subr.mxu0 0.0
      %367 = vmatpush1.msra.mxu0 0.0
      %368 = vmatprep.subr.mxu0 0.0
      %369 = vmatpush1.msra.mxu0 0.0
      %370 = vmatprep.subr.mxu0 0.0
      %371 = vmatpush1.msra.mxu0 0.0
      %372 = vmatprep.subr.mxu0 0.0
      %373 = vmatpush1.msra.mxu0 0.0
      %374 = vmatprep.subr.mxu0 0.0
      %375 = vmatpush1.msra.mxu0 0.0
      %376 = vmatprep.subr.mxu0 0.0
      %377 = vmatpush1.msra.mxu0 0.0
      %378 = vmatprep.subr.mxu0 0.0
      %379 = vmatpush1.msra.mxu0 0.0
      %380 = vmatprep.subr.mxu0 0.0
      %381 = vmatpush1.msra.mxu0 0.0
      %382 = vmatprep.subr.mxu0 0.0
      %383 = vmatpush1.msra.mxu0 0.0
      %384 = vmatprep.subr.mxu0 0.0
      %385 = vmatpush1.msra.mxu0 0.0
      %386 = vmatprep.subr.mxu0 0.0
      %387 = vmatpush1.msra.mxu0 0.0
      %388 = vmatprep.subr.mxu0 0.0
      %389 = vmatpush1.msra.mxu0 0.0
      %390 = vmatprep.subr.mxu0 0.0
      %391 = vmatpush1.msra.mxu0 0.0
      %392 = vmatprep.subr.mxu0 0.0
      %393 = vmatpush1.msra.mxu0 0.0
      %394 = vmatprep.subr.mxu0 0.0
      %395 = vmatpush1.msra.mxu0 0.0
      %396 = vmatprep.subr.mxu0 0.0
      %397 = vmatpush1.msra.mxu0 0.0
      %398 = vmatprep.subr.mxu0 0.0
      %399 = vmatpush1.msra.mxu0 0.0
      %400 = vmatprep.subr.mxu0 0.0
      %401 = vmatpush1.msra.mxu0 0.0
      %402 = vmatprep.mubr.f32.mxu0 0.0
      %403 = vmatmul.mubr.f32.gmra.mrb[0].mxu0 %v327
      %v404 = vpop.f32.mrb[0].mxu0
      %v405 = vadd.f32 0.0, %v404
      %v406 = vpop.f32.mrb[0].mxu0
      %407 = vmatprep.mubr.f32.mxu0 0.0
      %408 = vmatmul.mubr.f32.gmra.mrb[0].mxu0 %v330
      %v409 = vpop.f32.mrb[0].mxu0
      %v410 = vadd.f32 0.0, %v409
      %v411 = vpop.f32.mrb[0].mxu0
      %412 = vmatprep.mubr.f32.mxu0 0.0
      %413 = vmatmul.mubr.f32.gmra.mrb[0].mxu0 %v333
      %v414 = vpop.f32.mrb[0].mxu0
      %v415 = vadd.f32 0.0, %v414
      %v416 = vpop.f32.mrb[0].mxu0
      %417 = vmatprep.mubr.f32.mxu0 0.0
      %418 = vmatmul.mubr.f32.gmra.mrb[0].mxu0 %v336
      %v419 = vpop.f32.mrb[0].mxu0
      %v420 = vadd.f32 0.0, %v419
      %v421 = vpop.f32.mrb[0].mxu0
      %422 = vdwg.mxu0
      %v424 = vsel %vm277, %v249, 0
      %v427 = vsel %vm277, %v250, 0
      %v430 = vsel %vm277, %v251, 0
      %v433 = vsel %vm277, %v252, 0
      %435 = vmatprep.subr.mxu0 0.0
      %436 = vmatpush1.msra.mxu0 %v312
      %437 = vmatprep.subr.mxu0 0.0
      %438 = vmatpush1.msra.mxu0 %v313
      %439 = vmatprep.subr.mxu0 0.0
      %440 = vmatpush1.msra.mxu0 0.0
      %441 = vmatprep.subr.mxu0 0.0
      %442 = vmatpush1.msra.mxu0 0.0
      %443 = vmatprep.subr.mxu0 0.0
      %444 = vmatpush1.msra.mxu0 0.0
      %445 = vmatprep.subr.mxu0 0.0
      %446 = vmatpush1.msra.mxu0 0.0
      %447 = vmatprep.subr.mxu0 0.0
      %448 = vmatpush1.msra.mxu0 0.0
      %449 = vmatprep.subr.mxu0 0.0
      %450 = vmatpush1.msra.mxu0 0.0
      %451 = vmatprep.subr.mxu0 0.0
      %452 = vmatpush1.msra.mxu0 0.0
      %453 = vmatprep.subr.mxu0 0.0
      %454 = vmatpush1.msra.mxu0 0.0
      %455 = vmatprep.subr.mxu0 0.0
      %456 = vmatpush1.msra.mxu0 0.0
      %457 = vmatprep.subr.mxu0 0.0
      %458 = vmatpush1.msra.mxu0 0.0
      %459 = vmatprep.subr.mxu0 0.0
      %460 = vmatpush1.msra.mxu0 0.0
      %461 = vmatprep.subr.mxu0 0.0
      %462 = vmatpush1.msra.mxu0 0.0
      %463 = vmatprep.subr.mxu0 0.0
      %464 = vmatpush1.msra.mxu0 0.0
      %465 = vmatprep.subr.mxu0 0.0
      %466 = vmatpush1.msra.mxu0 0.0
      %467 = vmatprep.subr.mxu0 0.0
      %468 = vmatpush1.msra.mxu0 0.0
      %469 = vmatprep.subr.mxu0 0.0
      %470 = vmatpush1.msra.mxu0 0.0
      %471 = vmatprep.subr.mxu0 0.0
      %472 = vmatpush1.msra.mxu0 0.0
      %473 = vmatprep.subr.mxu0 0.0
      %474 = vmatpush1.msra.mxu0 0.0
      %475 = vmatprep.subr.mxu0 0.0
      %476 = vmatpush1.msra.mxu0 0.0
      %477 = vmatprep.subr.mxu0 0.0
      %478 = vmatpush1.msra.mxu0 0.0
      %479 = vmatprep.subr.mxu0 0.0
      %480 = vmatpush1.msra.mxu0 0.0
      %481 = vmatprep.subr.mxu0 0.0
      %482 = vmatpush1.msra.mxu0 0.0
      %483 = vmatprep.subr.mxu0 0.0
      %484 = vmatpush1.msra.mxu0 0.0
      %485 = vmatprep.subr.mxu0 0.0
      %486 = vmatpush1.msra.mxu0 0.0
      %487 = vmatprep.subr.mxu0 0.0
      %488 = vmatpush1.msra.mxu0 0.0
      %489 = vmatprep.subr.mxu0 0.0
      %490 = vmatpush1.msra.mxu0 0.0
      %491 = vmatprep.subr.mxu0 0.0
      %492 = vmatpush1.msra.mxu0 0.0
      %493 = vmatprep.subr.mxu0 0.0
      %494 = vmatpush1.msra.mxu0 0.0
      %495 = vmatprep.subr.mxu0 0.0
      %496 = vmatpush1.msra.mxu0 0.0
      %497 = vmatprep.subr.mxu0 0.0
      %498 = vmatpush1.msra.mxu0 0.0
      %499 = vmatprep.mubr.f32.mxu0 0.0
      %500 = vmatmul.mubr.f32.gmra.mrb[0].mxu0 %v424
      %v501 = vpop.f32.mrb[0].mxu0
      %v502 = vadd.f32 0.0, %v501
      %v503 = vpop.f32.mrb[0].mxu0
      %504 = vmatprep.mubr.f32.mxu0 0.0
      %505 = vmatmul.mubr.f32.gmra.mrb[0].mxu0 %v427
      %v506 = vpop.f32.mrb[0].mxu0
      %v507 = vadd.f32 0.0, %v506
      %v508 = vpop.f32.mrb[0].mxu0
      %509 = vmatprep.mubr.f32.mxu0 0.0
      %510 = vmatmul.mubr.f32.gmra.mrb[0].mxu0 %v430
      %v511 = vpop.f32.mrb[0].mxu0
      %v512 = vadd.f32 0.0, %v511
      %v513 = vpop.f32.mrb[0].mxu0
      %514 = vmatprep.mubr.f32.mxu0 0.0
      %515 = vmatmul.mubr.f32.gmra.mrb[0].mxu0 %v433
      %v516 = vpop.f32.mrb[0].mxu0
      %v517 = vadd.f32 0.0, %v516
      %v518 = vpop.f32.mrb[0].mxu0
      %519 = vdwg.mxu0
      %v521 = vsel %vm277, %v253, 0
      %v524 = vsel %vm277, %v254, 0
      %v527 = vsel %vm277, %v255, 0
      %v530 = vsel %vm277, %v256, 0
      %532 = vmatprep.subr.mxu0 0.0
      %533 = vmatpush1.msra.mxu0 %v314
      %534 = vmatprep.subr.mxu0 0.0
      %535 = vmatpush1.msra.mxu0 %v315
      %536 = vmatprep.subr.mxu0 0.0
      %537 = vmatpush1.msra.mxu0 0.0
      %538 = vmatprep.subr.mxu0 0.0
      %539 = vmatpush1.msra.mxu0 0.0
      %540 = vmatprep.subr.mxu0 0.0
      %541 = vmatpush1.msra.mxu0 0.0
      %542 = vmatprep.subr.mxu0 0.0
      %543 = vmatpush1.msra.mxu0 0.0
      %544 = vmatprep.subr.mxu0 0.0
      %545 = vmatpush1.msra.mxu0 0.0
      %546 = vmatprep.subr.mxu0 0.0
      %547 = vmatpush1.msra.mxu0 0.0
      %548 = vmatprep.subr.mxu0 0.0
      %549 = vmatpush1.msra.mxu0 0.0
      %550 = vmatprep.subr.mxu0 0.0
      %551 = vmatpush1.msra.mxu0 0.0
      %552 = vmatprep.subr.mxu0 0.0
      %553 = vmatpush1.msra.mxu0 0.0
      %554 = vmatprep.subr.mxu0 0.0
      %555 = vmatpush1.msra.mxu0 0.0
      %556 = vmatprep.subr.mxu0 0.0
      %557 = vmatpush1.msra.mxu0 0.0
      %558 = vmatprep.subr.mxu0 0.0
      %559 = vmatpush1.msra.mxu0 0.0
      %560 = vmatprep.subr.mxu0 0.0
      %561 = vmatpush1.msra.mxu0 0.0
      %562 = vmatprep.subr.mxu0 0.0
      %563 = vmatpush1.msra.mxu0 0.0
      %564 = vmatprep.subr.mxu0 0.0
      %565 = vmatpush1.msra.mxu0 0.0
      %566 = vmatprep.subr.mxu0 0.0
      %567 = vmatpush1.msra.mxu0 0.0
      %568 = vmatprep.subr.mxu0 0.0
      %569 = vmatpush1.msra.mxu0 0.0
      %570 = vmatprep.subr.mxu0 0.0
      %571 = vmatpush1.msra.mxu0 0.0
      %572 = vmatprep.subr.mxu0 0.0
      %573 = vmatpush1.msra.mxu0 0.0
      %574 = vmatprep.subr.mxu0 0.0
      %575 = vmatpush1.msra.mxu0 0.0
      %576 = vmatprep.subr.mxu0 0.0
      %577 = vmatpush1.msra.mxu0 0.0
      %578 = vmatprep.subr.mxu0 0.0
      %579 = vmatpush1.msra.mxu0 0.0
      %580 = vmatprep.subr.mxu0 0.0
      %581 = vmatpush1.msra.mxu0 0.0
      %582 = vmatprep.subr.mxu0 0.0
      %583 = vmatpush1.msra.mxu0 0.0
      %584 = vmatprep.subr.mxu0 0.0
      %585 = vmatpush1.msra.mxu0 0.0
      %586 = vmatprep.subr.mxu0 0.0
      %587 = vmatpush1.msra.mxu0 0.0
      %588 = vmatprep.subr.mxu0 0.0
      %589 = vmatpush1.msra.mxu0 0.0
      %590 = vmatprep.subr.mxu0 0.0
      %591 = vmatpush1.msra.mxu0 0.0
      %592 = vmatprep.subr.mxu0 0.0
      %593 = vmatpush1.msra.mxu0 0.0
      %594 = vmatprep.subr.mxu0 0.0
      %595 = vmatpush1.msra.mxu0 0.0
      %596 = vmatprep.mubr.f32.mxu0 0.0
      %597 = vmatmul.mubr.f32.gmra.mrb[0].mxu0 %v521
      %v598 = vpop.f32.mrb[0].mxu0
      %v599 = vadd.f32 0.0, %v598
      %v600 = vpop.f32.mrb[0].mxu0
      %601 = vmatprep.mubr.f32.mxu0 0.0
      %602 = vmatmul.mubr.f32.gmra.mrb[0].mxu0 %v524
      %v603 = vpop.f32.mrb[0].mxu0
      %v604 = vadd.f32 0.0, %v603
      %v605 = vpop.f32.mrb[0].mxu0
      %606 = vmatprep.mubr.f32.mxu0 0.0
      %607 = vmatmul.mubr.f32.gmra.mrb[0].mxu0 %v527
      %v608 = vpop.f32.mrb[0].mxu0
      %v609 = vadd.f32 0.0, %v608
      %v610 = vpop.f32.mrb[0].mxu0
      %611 = vmatprep.mubr.f32.mxu0 0.0
      %612 = vmatmul.mubr.f32.gmra.mrb[0].mxu0 %v530
      %v613 = vpop.f32.mrb[0].mxu0
      %v614 = vadd.f32 0.0, %v613
      %v615 = vpop.f32.mrb[0].mxu0
      %616 = vdwg.mxu0
      %v618 = vsel %vm277, %v257, 0
      %v621 = vsel %vm277, %v258, 0
      %v624 = vsel %vm277, %v259, 0
      %v627 = vsel %vm277, %v260, 0
      %629 = vmatprep.subr.mxu0 0.0
      %630 = vmatpush1.msra.mxu0 %v316
      %631 = vmatprep.subr.mxu0 0.0
      %632 = vmatpush1.msra.mxu0 %v317
      %633 = vmatprep.subr.mxu0 0.0
      %634 = vmatpush1.msra.mxu0 0.0
      %635 = vmatprep.subr.mxu0 0.0
      %636 = vmatpush1.msra.mxu0 0.0
      %637 = vmatprep.subr.mxu0 0.0
      %638 = vmatpush1.msra.mxu0 0.0
      %639 = vmatprep.subr.mxu0 0.0
      %640 = vmatpush1.msra.mxu0 0.0
      %641 = vmatprep.subr.mxu0 0.0
      %642 = vmatpush1.msra.mxu0 0.0
      %643 = vmatprep.subr.mxu0 0.0
      %644 = vmatpush1.msra.mxu0 0.0
      %645 = vmatprep.subr.mxu0 0.0
      %646 = vmatpush1.msra.mxu0 0.0
      %647 = vmatprep.subr.mxu0 0.0
      %648 = vmatpush1.msra.mxu0 0.0
      %649 = vmatprep.subr.mxu0 0.0
      %650 = vmatpush1.msra.mxu0 0.0
      %651 = vmatprep.subr.mxu0 0.0
      %652 = vmatpush1.msra.mxu0 0.0
      %653 = vmatprep.subr.mxu0 0.0
      %654 = vmatpush1.msra.mxu0 0.0
      %655 = vmatprep.subr.mxu0 0.0
      %656 = vmatpush1.msra.mxu0 0.0
      %657 = vmatprep.subr.mxu0 0.0
      %658 = vmatpush1.msra.mxu0 0.0
      %659 = vmatprep.subr.mxu0 0.0
      %660 = vmatpush1.msra.mxu0 0.0
      %661 = vmatprep.subr.mxu0 0.0
      %662 = vmatpush1.msra.mxu0 0.0
      %663 = vmatprep.subr.mxu0 0.0
      %664 = vmatpush1.msra.mxu0 0.0
      %665 = vmatprep.subr.mxu0 0.0
      %666 = vmatpush1.msra.mxu0 0.0
      %667 = vmatprep.subr.mxu0 0.0
      %668 = vmatpush1.msra.mxu0 0.0
      %669 = vmatprep.subr.mxu0 0.0
      %670 = vmatpush1.msra.mxu0 0.0
      %671 = vmatprep.subr.mxu0 0.0
      %672 = vmatpush1.msra.mxu0 0.0
      %673 = vmatprep.subr.mxu0 0.0
      %674 = vmatpush1.msra.mxu0 0.0
      %675 = vmatprep.subr.mxu0 0.0
      %676 = vmatpush1.msra.mxu0 0.0
      %677 = vmatprep.subr.mxu0 0.0
      %678 = vmatpush1.msra.mxu0 0.0
      %679 = vmatprep.subr.mxu0 0.0
      %680 = vmatpush1.msra.mxu0 0.0
      %681 = vmatprep.subr.mxu0 0.0
      %682 = vmatpush1.msra.mxu0 0.0
      %683 = vmatprep.subr.mxu0 0.0
      %684 = vmatpush1.msra.mxu0 0.0
      %685 = vmatprep.subr.mxu0 0.0
      %686 = vmatpush1.msra.mxu0 0.0
      %687 = vmatprep.subr.mxu0 0.0
      %688 = vmatpush1.msra.mxu0 0.0
      %689 = vmatprep.subr.mxu0 0.0
      %690 = vmatpush1.msra.mxu0 0.0
      %691 = vmatprep.subr.mxu0 0.0
      %692 = vmatpush1.msra.mxu0 0.0
      %693 = vmatprep.mubr.f32.mxu0 0.0
      %694 = vmatmul.mubr.f32.gmra.mrb[0].mxu0 %v618
      %v695 = vpop.f32.mrb[0].mxu0
      %v696 = vadd.f32 0.0, %v695
      %v697 = vpop.f32.mrb[0].mxu0
      %698 = vmatprep.mubr.f32.mxu0 0.0
      %699 = vmatmul.mubr.f32.gmra.mrb[0].mxu0 %v621
      %v700 = vpop.f32.mrb[0].mxu0
      %v701 = vadd.f32 0.0, %v700
      %v702 = vpop.f32.mrb[0].mxu0
      %703 = vmatprep.mubr.f32.mxu0 0.0
      %704 = vmatmul.mubr.f32.gmra.mrb[0].mxu0 %v624
      %v705 = vpop.f32.mrb[0].mxu0
      %v706 = vadd.f32 0.0, %v705
      %v707 = vpop.f32.mrb[0].mxu0
      %708 = vmatprep.mubr.f32.mxu0 0.0
      %709 = vmatmul.mubr.f32.gmra.mrb[0].mxu0 %v627
      %v710 = vpop.f32.mrb[0].mxu0
      %v711 = vadd.f32 0.0, %v710
      %v712 = vpop.f32.mrb[0].mxu0
      %713 = vdwg.mxu0
      %v715 = vsel %vm277, %v261, 0
      %v718 = vsel %vm277, %v262, 0
      %v721 = vsel %vm277, %v263, 0
      %v724 = vsel %vm277, %v264, 0
      %726 = vmatprep.subr.mxu0 0.0
      %727 = vmatpush1.msra.mxu0 %v318
      %728 = vmatprep.subr.mxu0 0.0
      %729 = vmatpush1.msra.mxu0 %v319
      %730 = vmatprep.subr.mxu0 0.0
      %731 = vmatpush1.msra.mxu0 0.0
      %732 = vmatprep.subr.mxu0 0.0
      %733 = vmatpush1.msra.mxu0 0.0
      %734 = vmatprep.subr.mxu0 0.0
      %735 = vmatpush1.msra.mxu0 0.0
      %736 = vmatprep.subr.mxu0 0.0
      %737 = vmatpush1.msra.mxu0 0.0
      %738 = vmatprep.subr.mxu0 0.0
      %739 = vmatpush1.msra.mxu0 0.0
      %740 = vmatprep.subr.mxu0 0.0
      %741 = vmatpush1.msra.mxu0 0.0
      %742 = vmatprep.subr.mxu0 0.0
      %743 = vmatpush1.msra.mxu0 0.0
      %744 = vmatprep.subr.mxu0 0.0
      %745 = vmatpush1.msra.mxu0 0.0
      %746 = vmatprep.subr.mxu0 0.0
      %747 = vmatpush1.msra.mxu0 0.0
      %748 = vmatprep.subr.mxu0 0.0
      %749 = vmatpush1.msra.mxu0 0.0
      %750 = vmatprep.subr.mxu0 0.0
      %751 = vmatpush1.msra.mxu0 0.0
      %752 = vmatprep.subr.mxu0 0.0
      %753 = vmatpush1.msra.mxu0 0.0
      %754 = vmatprep.subr.mxu0 0.0
      %755 = vmatpush1.msra.mxu0 0.0
      %756 = vmatprep.subr.mxu0 0.0
      %757 = vmatpush1.msra.mxu0 0.0
      %758 = vmatprep.subr.mxu0 0.0
      %759 = vmatpush1.msra.mxu0 0.0
      %760 = vmatprep.subr.mxu0 0.0
      %761 = vmatpush1.msra.mxu0 0.0
      %762 = vmatprep.subr.mxu0 0.0
      %763 = vmatpush1.msra.mxu0 0.0
      %764 = vmatprep.subr.mxu0 0.0
      %765 = vmatpush1.msra.mxu0 0.0
      %766 = vmatprep.subr.mxu0 0.0
      %767 = vmatpush1.msra.mxu0 0.0
      %768 = vmatprep.subr.mxu0 0.0
      %769 = vmatpush1.msra.mxu0 0.0
      %770 = vmatprep.subr.mxu0 0.0
      %771 = vmatpush1.msra.mxu0 0.0
      %772 = vmatprep.subr.mxu0 0.0
      %773 = vmatpush1.msra.mxu0 0.0
      %774 = vmatprep.subr.mxu0 0.0
      %775 = vmatpush1.msra.mxu0 0.0
      %776 = vmatprep.subr.mxu0 0.0
      %777 = vmatpush1.msra.mxu0 0.0
      %778 = vmatprep.subr.mxu0 0.0
      %779 = vmatpush1.msra.mxu0 0.0
      %780 = vmatprep.subr.mxu0 0.0
      %781 = vmatpush1.msra.mxu0 0.0
      %782 = vmatprep.subr.mxu0 0.0
      %783 = vmatpush1.msra.mxu0 0.0
      %784 = vmatprep.subr.mxu0 0.0
      %785 = vmatpush1.msra.mxu0 0.0
      %786 = vmatprep.subr.mxu0 0.0
      %787 = vmatpush1.msra.mxu0 0.0
      %788 = vmatprep.subr.mxu0 0.0
      %789 = vmatpush1.msra.mxu0 0.0
      %790 = vmatprep.mubr.f32.mxu0 0.0
      %791 = vmatmul.mubr.f32.gmra.mrb[0].mxu0 %v715
      %v792 = vpop.f32.mrb[0].mxu0
      %v793 = vadd.f32 0.0, %v792
      %v794 = vpop.f32.mrb[0].mxu0
      %795 = vmatprep.mubr.f32.mxu0 0.0
      %796 = vmatmul.mubr.f32.gmra.mrb[0].mxu0 %v718
      %v797 = vpop.f32.mrb[0].mxu0
      %v798 = vadd.f32 0.0, %v797
      %v799 = vpop.f32.mrb[0].mxu0
      %800 = vmatprep.mubr.f32.mxu0 0.0
      %801 = vmatmul.mubr.f32.gmra.mrb[0].mxu0 %v721
      %v802 = vpop.f32.mrb[0].mxu0
      %v803 = vadd.f32 0.0, %v802
      %v804 = vpop.f32.mrb[0].mxu0
      %805 = vmatprep.mubr.f32.mxu0 0.0
      %806 = vmatmul.mubr.f32.gmra.mrb[0].mxu0 %v724
      %v807 = vpop.f32.mrb[0].mxu0
      %v808 = vadd.f32 0.0, %v807
      %v809 = vpop.f32.mrb[0].mxu0
      %810 = vdwg.mxu0
      %v812 = vsel %vm277, %v265, 0
      %v815 = vsel %vm277, %v266, 0
      %v818 = vsel %vm277, %v267, 0
      %v821 = vsel %vm277, %v268, 0
      %823 = vmatprep.subr.mxu0 0.0
      %824 = vmatpush1.msra.mxu0 %v320
      %825 = vmatprep.subr.mxu0 0.0
      %826 = vmatpush1.msra.mxu0 %v321
      %827 = vmatprep.subr.mxu0 0.0
      %828 = vmatpush1.msra.mxu0 0.0
      %829 = vmatprep.subr.mxu0 0.0
      %830 = vmatpush1.msra.mxu0 0.0
      %831 = vmatprep.subr.mxu0 0.0
      %832 = vmatpush1.msra.mxu0 0.0
      %833 = vmatprep.subr.mxu0 0.0
      %834 = vmatpush1.msra.mxu0 0.0
      %835 = vmatprep.subr.mxu0 0.0
      %836 = vmatpush1.msra.mxu0 0.0
      %837 = vmatprep.subr.mxu0 0.0
      %838 = vmatpush1.msra.mxu0 0.0
      %839 = vmatprep.subr.mxu0 0.0
      %840 = vmatpush1.msra.mxu0 0.0
      %841 = vmatprep.subr.mxu0 0.0
      %842 = vmatpush1.msra.mxu0 0.0
      %843 = vmatprep.subr.mxu0 0.0
      %844 = vmatpush1.msra.mxu0 0.0
      %845 = vmatprep.subr.mxu0 0.0
      %846 = vmatpush1.msra.mxu0 0.0
      %847 = vmatprep.subr.mxu0 0.0
      %848 = vmatpush1.msra.mxu0 0.0
      %849 = vmatprep.subr.mxu0 0.0
      %850 = vmatpush1.msra.mxu0 0.0
      %851 = vmatprep.subr.mxu0 0.0
      %852 = vmatpush1.msra.mxu0 0.0
      %853 = vmatprep.subr.mxu0 0.0
      %854 = vmatpush1.msra.mxu0 0.0
      %855 = vmatprep.subr.mxu0 0.0
      %856 = vmatpush1.msra.mxu0 0.0
      %857 = vmatprep.subr.mxu0 0.0
      %858 = vmatpush1.msra.mxu0 0.0
      %859 = vmatprep.subr.mxu0 0.0
      %860 = vmatpush1.msra.mxu0 0.0
      %861 = vmatprep.subr.mxu0 0.0
      %862 = vmatpush1.msra.mxu0 0.0
      %863 = vmatprep.subr.mxu0 0.0
      %864 = vmatpush1.msra.mxu0 0.0
      %865 = vmatprep.subr.mxu0 0.0
      %866 = vmatpush1.msra.mxu0 0.0
      %867 = vmatprep.subr.mxu0 0.0
      %868 = vmatpush1.msra.mxu0 0.0
      %869 = vmatprep.subr.mxu0 0.0
      %870 = vmatpush1.msra.mxu0 0.0
      %871 = vmatprep.subr.mxu0 0.0
      %872 = vmatpush1.msra.mxu0 0.0
      %873 = vmatprep.subr.mxu0 0.0
      %874 = vmatpush1.msra.mxu0 0.0
      %875 = vmatprep.subr.mxu0 0.0
      %876 = vmatpush1.msra.mxu0 0.0
      %877 = vmatprep.subr.mxu0 0.0
      %878 = vmatpush1.msra.mxu0 0.0
      %879 = vmatprep.subr.mxu0 0.0
      %880 = vmatpush1.msra.mxu0 0.0
      %881 = vmatprep.subr.mxu0 0.0
      %882 = vmatpush1.msra.mxu0 0.0
      %883 = vmatprep.subr.mxu0 0.0
      %884 = vmatpush1.msra.mxu0 0.0
      %885 = vmatprep.subr.mxu0 0.0
      %886 = vmatpush1.msra.mxu0 0.0
      %887 = vmatprep.mubr.f32.mxu0 0.0
      %888 = vmatmul.mubr.f32.gmra.mrb[0].mxu0 %v812
      %v889 = vpop.f32.mrb[0].mxu0
      %v890 = vadd.f32 0.0, %v889
      %v891 = vpop.f32.mrb[0].mxu0
      %892 = vmatprep.mubr.f32.mxu0 0.0
      %893 = vmatmul.mubr.f32.gmra.mrb[0].mxu0 %v815
      %v894 = vpop.f32.mrb[0].mxu0
      %v895 = vadd.f32 0.0, %v894
      %v896 = vpop.f32.mrb[0].mxu0
      %897 = vmatprep.mubr.f32.mxu0 0.0
      %898 = vmatmul.mubr.f32.gmra.mrb[0].mxu0 %v818
      %v899 = vpop.f32.mrb[0].mxu0
      %v900 = vadd.f32 0.0, %v899
      %v901 = vpop.f32.mrb[0].mxu0
      %902 = vmatprep.mubr.f32.mxu0 0.0
      %903 = vmatmul.mubr.f32.gmra.mrb[0].mxu0 %v821
      %v904 = vpop.f32.mrb[0].mxu0
      %v905 = vadd.f32 0.0, %v904
      %v906 = vpop.f32.mrb[0].mxu0
      %907 = vdwg.mxu0
      %v909 = vsel %vm277, %v269, 0
      %v912 = vsel %vm277, %v270, 0
      %v915 = vsel %vm277, %v271, 0
      %v918 = vsel %vm277, %v272, 0
      %920 = vmatprep.subr.mxu0 0.0
      %921 = vmatpush1.msra.mxu0 %v322
      %922 = vmatprep.subr.mxu0 0.0
      %923 = vmatpush1.msra.mxu0 %v323
      %924 = vmatprep.subr.mxu0 0.0
      %925 = vmatpush1.msra.mxu0 0.0
      %926 = vmatprep.subr.mxu0 0.0
      %927 = vmatpush1.msra.mxu0 0.0
      %928 = vmatprep.subr.mxu0 0.0
      %929 = vmatpush1.msra.mxu0 0.0
      %930 = vmatprep.subr.mxu0 0.0
      %931 = vmatpush1.msra.mxu0 0.0
      %932 = vmatprep.subr.mxu0 0.0
      %933 = vmatpush1.msra.mxu0 0.0
      %934 = vmatprep.subr.mxu0 0.0
      %935 = vmatpush1.msra.mxu0 0.0
      %936 = vmatprep.subr.mxu0 0.0
      %937 = vmatpush1.msra.mxu0 0.0
      %938 = vmatprep.subr.mxu0 0.0
      %939 = vmatpush1.msra.mxu0 0.0
      %940 = vmatprep.subr.mxu0 0.0
      %941 = vmatpush1.msra.mxu0 0.0
      %942 = vmatprep.subr.mxu0 0.0
      %943 = vmatpush1.msra.mxu0 0.0
      %944 = vmatprep.subr.mxu0 0.0
      %945 = vmatpush1.msra.mxu0 0.0
      %946 = vmatprep.subr.mxu0 0.0
      %947 = vmatpush1.msra.mxu0 0.0
      %948 = vmatprep.subr.mxu0 0.0
      %949 = vmatpush1.msra.mxu0 0.0
      %950 = vmatprep.subr.mxu0 0.0
      %951 = vmatpush1.msra.mxu0 0.0
      %952 = vmatprep.subr.mxu0 0.0
      %953 = vmatpush1.msra.mxu0 0.0
      %954 = vmatprep.subr.mxu0 0.0
      %955 = vmatpush1.msra.mxu0 0.0
      %956 = vmatprep.subr.mxu0 0.0
      %957 = vmatpush1.msra.mxu0 0.0
      %958 = vmatprep.subr.mxu0 0.0
      %959 = vmatpush1.msra.mxu0 0.0
      %960 = vmatprep.subr.mxu0 0.0
      %961 = vmatpush1.msra.mxu0 0.0
      %962 = vmatprep.subr.mxu0 0.0
      %963 = vmatpush1.msra.mxu0 0.0
      %964 = vmatprep.subr.mxu0 0.0
      %965 = vmatpush1.msra.mxu0 0.0
      %966 = vmatprep.subr.mxu0 0.0
      %967 = vmatpush1.msra.mxu0 0.0
      %968 = vmatprep.subr.mxu0 0.0
      %969 = vmatpush1.msra.mxu0 0.0
      %970 = vmatprep.subr.mxu0 0.0
      %971 = vmatpush1.msra.mxu0 0.0
      %972 = vmatprep.subr.mxu0 0.0
      %973 = vmatpush1.msra.mxu0 0.0
      %974 = vmatprep.subr.mxu0 0.0
      %975 = vmatpush1.msra.mxu0 0.0
      %976 = vmatprep.subr.mxu0 0.0
      %977 = vmatpush1.msra.mxu0 0.0
      %978 = vmatprep.subr.mxu0 0.0
      %979 = vmatpush1.msra.mxu0 0.0
      %980 = vmatprep.subr.mxu0 0.0
      %981 = vmatpush1.msra.mxu0 0.0
      %982 = vmatprep.subr.mxu0 0.0
      %983 = vmatpush1.msra.mxu0 0.0
      %984 = vmatprep.mubr.f32.mxu0 0.0
      %985 = vmatmul.mubr.f32.gmra.mrb[0].mxu0 %v909
      %v986 = vpop.f32.mrb[0].mxu0
      %v987 = vadd.f32 0.0, %v986
      %v988 = vpop.f32.mrb[0].mxu0
      %989 = vmatprep.mubr.f32.mxu0 0.0
      %990 = vmatmul.mubr.f32.gmra.mrb[0].mxu0 %v912
      %v991 = vpop.f32.mrb[0].mxu0
      %v992 = vadd.f32 0.0, %v991
      %v993 = vpop.f32.mrb[0].mxu0
      %994 = vmatprep.mubr.f32.mxu0 0.0
      %995 = vmatmul.mubr.f32.gmra.mrb[0].mxu0 %v915
      %v996 = vpop.f32.mrb[0].mxu0
      %v997 = vadd.f32 0.0, %v996
      %v998 = vpop.f32.mrb[0].mxu0
      %999 = vmatprep.mubr.f32.mxu0 0.0
      %1000 = vmatmul.mubr.f32.gmra.mrb[0].mxu0 %v918
      %v1001 = vpop.f32.mrb[0].mxu0
      %v1002 = vadd.f32 0.0, %v1001
      %v1003 = vpop.f32.mrb[0].mxu0
      %1004 = vdwg.mxu0
      %v1006 = vsel %vm277, %v273, 0
      %v1009 = vsel %vm277, %v274, 0
      %v1012 = vsel %vm277, %v275, 0
      %v1015 = vsel %vm277, %v276, 0
      %1017 = vmatprep.subr.mxu0 0.0
      %1018 = vmatpush1.msra.mxu0 %v324
      %1019 = vmatprep.subr.mxu0 0.0
      %1020 = vmatpush1.msra.mxu0 %v325
      %1021 = vmatprep.subr.mxu0 0.0
      %1022 = vmatpush1.msra.mxu0 0.0
      %1023 = vmatprep.subr.mxu0 0.0
      %1024 = vmatpush1.msra.mxu0 0.0
      %1025 = vmatprep.subr.mxu0 0.0
      %1026 = vmatpush1.msra.mxu0 0.0
      %1027 = vmatprep.subr.mxu0 0.0
      %1028 = vmatpush1.msra.mxu0 0.0
      %1029 = vmatprep.subr.mxu0 0.0
      %1030 = vmatpush1.msra.mxu0 0.0
      %1031 = vmatprep.subr.mxu0 0.0
      %1032 = vmatpush1.msra.mxu0 0.0
      %1033 = vmatprep.subr.mxu0 0.0
      %1034 = vmatpush1.msra.mxu0 0.0
      %1035 = vmatprep.subr.mxu0 0.0
      %1036 = vmatpush1.msra.mxu0 0.0
      %1037 = vmatprep.subr.mxu0 0.0
      %1038 = vmatpush1.msra.mxu0 0.0
      %1039 = vmatprep.subr.mxu0 0.0
      %1040 = vmatpush1.msra.mxu0 0.0
      %1041 = vmatprep.subr.mxu0 0.0
      %1042 = vmatpush1.msra.mxu0 0.0
      %1043 = vmatprep.subr.mxu0 0.0
      %1044 = vmatpush1.msra.mxu0 0.0
      %1045 = vmatprep.subr.mxu0 0.0
      %1046 = vmatpush1.msra.mxu0 0.0
      %1047 = vmatprep.subr.mxu0 0.0
      %1048 = vmatpush1.msra.mxu0 0.0
      %1049 = vmatprep.subr.mxu0 0.0
      %1050 = vmatpush1.msra.mxu0 0.0
      %1051 = vmatprep.subr.mxu0 0.0
      %1052 = vmatpush1.msra.mxu0 0.0
      %1053 = vmatprep.subr.mxu0 0.0
      %1054 = vmatpush1.msra.mxu0 0.0
      %1055 = vmatprep.subr.mxu0 0.0
      %1056 = vmatpush1.msra.mxu0 0.0
      %1057 = vmatprep.subr.mxu0 0.0
      %1058 = vmatpush1.msra.mxu0 0.0
      %1059 = vmatprep.subr.mxu0 0.0
      %1060 = vmatpush1.msra.mxu0 0.0
      %1061 = vmatprep.subr.mxu0 0.0
      %1062 = vmatpush1.msra.mxu0 0.0
      %1063 = vmatprep.subr.mxu0 0.0
      %1064 = vmatpush1.msra.mxu0 0.0
      %1065 = vmatprep.subr.mxu0 0.0
      %1066 = vmatpush1.msra.mxu0 0.0
      %1067 = vmatprep.subr.mxu0 0.0
      %1068 = vmatpush1.msra.mxu0 0.0
      %1069 = vmatprep.subr.mxu0 0.0
      %1070 = vmatpush1.msra.mxu0 0.0
      %1071 = vmatprep.subr.mxu0 0.0
      %1072 = vmatpush1.msra.mxu0 0.0
      %1073 = vmatprep.subr.mxu0 0.0
      %1074 = vmatpush1.msra.mxu0 0.0
      %1075 = vmatprep.subr.mxu0 0.0
      %1076 = vmatpush1.msra.mxu0 0.0
      %1077 = vmatprep.subr.mxu0 0.0
      %1078 = vmatpush1.msra.mxu0 0.0
      %1079 = vmatprep.subr.mxu0 0.0
      %1080 = vmatpush1.msra.mxu0 0.0
      %1081 = vmatprep.mubr.f32.mxu0 0.0
      %1082 = vmatmul.mubr.f32.gmra.mrb[0].mxu0 %v1006
      %v1083 = vpop.f32.mrb[0].mxu0
      %v1084 = vadd.f32 0.0, %v1083
      %v1085 = vpop.f32.mrb[0].mxu0
      %1086 = vmatprep.mubr.f32.mxu0 0.0
      %1087 = vmatmul.mubr.f32.gmra.mrb[0].mxu0 %v1009
      %v1088 = vpop.f32.mrb[0].mxu0
      %v1089 = vadd.f32 0.0, %v1088
      %v1090 = vpop.f32.mrb[0].mxu0
      %1091 = vmatprep.mubr.f32.mxu0 0.0
      %1092 = vmatmul.mubr.f32.gmra.mrb[0].mxu0 %v1012
      %v1093 = vpop.f32.mrb[0].mxu0
      %v1094 = vadd.f32 0.0, %v1093
      %v1095 = vpop.f32.mrb[0].mxu0
      %1096 = vmatprep.mubr.f32.mxu0 0.0
      %1097 = vmatmul.mubr.f32.gmra.mrb[0].mxu0 %v1015
      %v1098 = vpop.f32.mrb[0].mxu0
      %v1099 = vadd.f32 0.0, %v1098
      %v1100 = vpop.f32.mrb[0].mxu0
      %1101 = vdwg.mxu0
      %1102 = vst.msk [vmem:[#allocation2 + $0x20] sm:$0xff] %vm277, %v405
      %1103 = vst.msk [vmem:[#allocation2 + $0x28] sm:$0xff] %vm277, %v410
      %1104 = vst.msk [vmem:[#allocation2 + $0x30] sm:$0xff] %vm277, %v415
      %1105 = vst.msk [vmem:[#allocation2 + $0x38] sm:$0xff] %vm277, %v420
      %1106 = vst.msk [vmem:[#allocation2 + $0x100] sm:$0xff] %vm277, %v502
      %1107 = vst.msk [vmem:[#allocation2 + $0x108] sm:$0xff] %vm277, %v507
      %1108 = vst.msk [vmem:[#allocation2 + $0x110] sm:$0xff] %vm277, %v512
      %1109 = vst.msk [vmem:[#allocation2 + $0x118] sm:$0xff] %vm277, %v517
      %1110 = vst.msk [vmem:[#allocation2 + $0x1e0] sm:$0xff] %vm277, %v599
      %1111 = vst.msk [vmem:[#allocation2 + $0x1e8] sm:$0xff] %vm277, %v604
      %1112 = vst.msk [vmem:[#allocation2 + $0x1f0] sm:$0xff] %vm277, %v609
      %1113 = vst.msk [vmem:[#allocation2 + $0x1f8] sm:$0xff] %vm277, %v614
      %1114 = vst.msk [vmem:[#allocation2 + $0x2c0] sm:$0xff] %vm277, %v696
      %1115 = vst.msk [vmem:[#allocation2 + $0x2c8] sm:$0xff] %vm277, %v701
      %1116 = vst.msk [vmem:[#allocation2 + $0x2d0] sm:$0xff] %vm277, %v706
      %1117 = vst.msk [vmem:[#allocation2 + $0x2d8] sm:$0xff] %vm277, %v711
      %1118 = vst.msk [vmem:[#allocation2 + $0x3a0] sm:$0xff] %vm277, %v793
      %1119 = vst.msk [vmem:[#allocation2 + $0x3a8] sm:$0xff] %vm277, %v798
      %1120 = vst.msk [vmem:[#allocation2 + $0x3b0] sm:$0xff] %vm277, %v803
      %1121 = vst.msk [vmem:[#allocation2 + $0x3b8] sm:$0xff] %vm277, %v808
      %1122 = vst.msk [vmem:[#allocation2 + $0x480] sm:$0xff] %vm277, %v890
      %1123 = vst.msk [vmem:[#allocation2 + $0x488] sm:$0xff] %vm277, %v895
      %1124 = vst.msk [vmem:[#allocation2 + $0x490] sm:$0xff] %vm277, %v900
      %1125 = vst.msk [vmem:[#allocation2 + $0x498] sm:$0xff] %vm277, %v905
      %1126 = vst.msk [vmem:[#allocation2 + $0x560] sm:$0xff] %vm277, %v987
      %1127 = vst.msk [vmem:[#allocation2 + $0x568] sm:$0xff] %vm277, %v992
      %1128 = vst.msk [vmem:[#allocation2 + $0x570] sm:$0xff] %vm277, %v997
      %1129 = vst.msk [vmem:[#allocation2 + $0x578] sm:$0xff] %vm277, %v1002
      %1130 = vst.msk [vmem:[#allocation2 + $0x640] sm:$0xff] %vm277, %v1084
      %1131 = vst.msk [vmem:[#allocation2 + $0x648] sm:$0xff] %vm277, %v1089
      %1132 = vst.msk [vmem:[#allocation2 + $0x650] sm:$0xff] %vm277, %v1094
      %1133 = vst.msk [vmem:[#allocation2 + $0x658] sm:$0xff] %vm277, %v1099
      %v1135 = vsel %vm277, %v405, 0
      %v1138 = vsel %vm277, %v410, 0
      %v1141 = vsel %vm277, %v415, 0
      %v1144 = vsel %vm277, %v420, 0
      %1146 = vmatprep.subr.mxu0 0.0
      %1147 = vmatpush1.msra.mxu0 %v310
      %1148 = vmatprep.subr.mxu0 0.0
      %1149 = vmatpush1.msra.mxu0 %v311
      %1150 = vmatprep.subr.mxu0 0.0
      %1151 = vmatpush1.msra.mxu0 0.0
      %1152 = vmatprep.subr.mxu0 0.0
      %1153 = vmatpush1.msra.mxu0 0.0
      %1154 = vmatprep.subr.mxu0 0.0
      %1155 = vmatpush1.msra.mxu0 0.0
      %1156 = vmatprep.subr.mxu0 0.0
      %1157 = vmatpush1.msra.mxu0 0.0
      %1158 = vmatprep.subr.mxu0 0.0
      %1159 = vmatpush1.msra.mxu0 0.0
      %1160 = vmatprep.subr.mxu0 0.0
      %1161 = vmatpush1.msra.mxu0 0.0
      %1162 = vmatprep.subr.mxu0 0.0
      %1163 = vmatpush1.msra.mxu0 0.0
      %1164 = vmatprep.subr.mxu0 0.0
      %1165 = vmatpush1.msra.mxu0 0.0
      %1166 = vmatprep.subr.mxu0 0.0
      %1167 = vmatpush1.msra.mxu0 0.0
      %1168 = vmatprep.subr.mxu0 0.0
      %1169 = vmatpush1.msra.mxu0 0.0
      %1170 = vmatprep.subr.mxu0 0.0
      %1171 = vmatpush1.msra.mxu0 0.0
      %1172 = vmatprep.subr.mxu0 0.0
      %1173 = vmatpush1.msra.mxu0 0.0
      %1174 = vmatprep.subr.mxu0 0.0
      %1175 = vmatpush1.msra.mxu0 0.0
      %1176 = vmatprep.subr.mxu0 0.0
      %1177 = vmatpush1.msra.mxu0 0.0
      %1178 = vmatprep.subr.mxu0 0.0
      %1179 = vmatpush1.msra.mxu0 0.0
      %1180 = vmatprep.subr.mxu0 0.0
      %1181 = vmatpush1.msra.mxu0 0.0
      %1182 = vmatprep.subr.mxu0 0.0
      %1183 = vmatpush1.msra.mxu0 0.0
      %1184 = vmatprep.subr.mxu0 0.0
      %1185 = vmatpush1.msra.mxu0 0.0
      %1186 = vmatprep.subr.mxu0 0.0
      %1187 = vmatpush1.msra.mxu0 0.0
      %1188 = vmatprep.subr.mxu0 0.0
      %1189 = vmatpush1.msra.mxu0 0.0
      %1190 = vmatprep.subr.mxu0 0.0
      %1191 = vmatpush1.msra.mxu0 0.0
      %1192 = vmatprep.subr.mxu0 0.0
      %1193 = vmatpush1.msra.mxu0 0.0
      %1194 = vmatprep.subr.mxu0 0.0
      %1195 = vmatpush1.msra.mxu0 0.0
      %1196 = vmatprep.subr.mxu0 0.0
      %1197 = vmatpush1.msra.mxu0 0.0
      %1198 = vmatprep.subr.mxu0 0.0
      %1199 = vmatpush1.msra.mxu0 0.0
      %1200 = vmatprep.subr.mxu0 0.0
      %1201 = vmatpush1.msra.mxu0 0.0
      %1202 = vmatprep.subr.mxu0 0.0
      %1203 = vmatpush1.msra.mxu0 0.0
      %1204 = vmatprep.subr.mxu0 0.0
      %1205 = vmatpush1.msra.mxu0 0.0
      %1206 = vmatprep.subr.mxu0 0.0
      %1207 = vmatpush1.msra.mxu0 0.0
      %1208 = vmatprep.subr.mxu0 0.0
      %1209 = vmatpush1.msra.mxu0 0.0
      %1210 = vmatprep.mubr.f32.mxu0 0.0
      %1211 = vmatmul.mubr.f32.gmra.mrb[0].mxu0 %v1135
      %v1212 = vpop.f32.mrb[0].mxu0
      %v1213 = vadd.f32 0.0, %v1212
      %v1214 = vpop.f32.mrb[0].mxu0
      %1215 = vmatprep.mubr.f32.mxu0 0.0
      %1216 = vmatmul.mubr.f32.gmra.mrb[0].mxu0 %v1138
      %v1217 = vpop.f32.mrb[0].mxu0
      %v1218 = vadd.f32 0.0, %v1217
      %v1219 = vpop.f32.mrb[0].mxu0
      %1220 = vmatprep.mubr.f32.mxu0 0.0
      %1221 = vmatmul.mubr.f32.gmra.mrb[0].mxu0 %v1141
      %v1222 = vpop.f32.mrb[0].mxu0
      %v1223 = vadd.f32 0.0, %v1222
      %v1224 = vpop.f32.mrb[0].mxu0
      %1225 = vmatprep.mubr.f32.mxu0 0.0
      %1226 = vmatmul.mubr.f32.gmra.mrb[0].mxu0 %v1144
      %v1227 = vpop.f32.mrb[0].mxu0
      %v1228 = vadd.f32 0.0, %v1227
      %v1229 = vpop.f32.mrb[0].mxu0
      %1230 = vdwg.mxu0
      %v1232 = vsel %vm277, %v502, 0
      %v1235 = vsel %vm277, %v507, 0
      %v1238 = vsel %vm277, %v512, 0
      %v1241 = vsel %vm277, %v517, 0
      %1243 = vmatprep.subr.mxu0 0.0
      %1244 = vmatpush1.msra.mxu0 %v312
      %1245 = vmatprep.subr.mxu0 0.0
      %1246 = vmatpush1.msra.mxu0 %v313
      %1247 = vmatprep.subr.mxu0 0.0
      %1248 = vmatpush1.msra.mxu0 0.0
      %1249 = vmatprep.subr.mxu0 0.0
      %1250 = vmatpush1.msra.mxu0 0.0
      %1251 = vmatprep.subr.mxu0 0.0
      %1252 = vmatpush1.msra.mxu0 0.0
      %1253 = vmatprep.subr.mxu0 0.0
      %1254 = vmatpush1.msra.mxu0 0.0
      %1255 = vmatprep.subr.mxu0 0.0
      %1256 = vmatpush1.msra.mxu0 0.0
      %1257 = vmatprep.subr.mxu0 0.0
      %1258 = vmatpush1.msra.mxu0 0.0
      %1259 = vmatprep.subr.mxu0 0.0
      %1260 = vmatpush1.msra.mxu0 0.0
      %1261 = vmatprep.subr.mxu0 0.0
      %1262 = vmatpush1.msra.mxu0 0.0
      %1263 = vmatprep.subr.mxu0 0.0
      %1264 = vmatpush1.msra.mxu0 0.0
      %1265 = vmatprep.subr.mxu0 0.0
      %1266 = vmatpush1.msra.mxu0 0.0
      %1267 = vmatprep.subr.mxu0 0.0
      %1268 = vmatpush1.msra.mxu0 0.0
      %1269 = vmatprep.subr.mxu0 0.0
      %1270 = vmatpush1.msra.mxu0 0.0
      %1271 = vmatprep.subr.mxu0 0.0
      %1272 = vmatpush1.msra.mxu0 0.0
      %1273 = vmatprep.subr.mxu0 0.0
      %1274 = vmatpush1.msra.mxu0 0.0
      %1275 = vmatprep.subr.mxu0 0.0
      %1276 = vmatpush1.msra.mxu0 0.0
      %1277 = vmatprep.subr.mxu0 0.0
      %1278 = vmatpush1.msra.mxu0 0.0
      %1279 = vmatprep.subr.mxu0 0.0
      %1280 = vmatpush1.msra.mxu0 0.0
      %1281 = vmatprep.subr.mxu0 0.0
      %1282 = vmatpush1.msra.mxu0 0.0
      %1283 = vmatprep.subr.mxu0 0.0
      %1284 = vmatpush1.msra.mxu0 0.0
      %1285 = vmatprep.subr.mxu0 0.0
      %1286 = vmatpush1.msra.mxu0 0.0
      %1287 = vmatprep.subr.mxu0 0.0
      %1288 = vmatpush1.msra.mxu0 0.0
      %1289 = vmatprep.subr.mxu0 0.0
      %1290 = vmatpush1.msra.mxu0 0.0
      %1291 = vmatprep.subr.mxu0 0.0
      %1292 = vmatpush1.msra.mxu0 0.0
      %1293 = vmatprep.subr.mxu0 0.0
      %1294 = vmatpush1.msra.mxu0 0.0
      %1295 = vmatprep.subr.mxu0 0.0
      %1296 = vmatpush1.msra.mxu0 0.0
      %1297 = vmatprep.subr.mxu0 0.0
      %1298 = vmatpush1.msra.mxu0 0.0
      %1299 = vmatprep.subr.mxu0 0.0
      %1300 = vmatpush1.msra.mxu0 0.0
      %1301 = vmatprep.subr.mxu0 0.0
      %1302 = vmatpush1.msra.mxu0 0.0
      %1303 = vmatprep.subr.mxu0 0.0
      %1304 = vmatpush1.msra.mxu0 0.0
      %1305 = vmatprep.subr.mxu0 0.0
      %1306 = vmatpush1.msra.mxu0 0.0
      %1307 = vmatprep.mubr.f32.mxu0 0.0
      %1308 = vmatmul.mubr.f32.gmra.mrb[0].mxu0 %v1232
      %v1309 = vpop.f32.mrb[0].mxu0
      %v1310 = vadd.f32 0.0, %v1309
      %v1311 = vpop.f32.mrb[0].mxu0
      %1312 = vmatprep.mubr.f32.mxu0 0.0
      %1313 = vmatmul.mubr.f32.gmra.mrb[0].mxu0 %v1235
      %v1314 = vpop.f32.mrb[0].mxu0
      %v1315 = vadd.f32 0.0, %v1314
      %v1316 = vpop.f32.mrb[0].mxu0
      %1317 = vmatprep.mubr.f32.mxu0 0.0
      %1318 = vmatmul.mubr.f32.gmra.mrb[0].mxu0 %v1238
      %v1319 = vpop.f32.mrb[0].mxu0
      %v1320 = vadd.f32 0.0, %v1319
      %v1321 = vpop.f32.mrb[0].mxu0
      %1322 = vmatprep.mubr.f32.mxu0 0.0
      %1323 = vmatmul.mubr.f32.gmra.mrb[0].mxu0 %v1241
      %v1324 = vpop.f32.mrb[0].mxu0
      %v1325 = vadd.f32 0.0, %v1324
      %v1326 = vpop.f32.mrb[0].mxu0
      %1327 = vdwg.mxu0
      %v1329 = vsel %vm277, %v599, 0
      %v1332 = vsel %vm277, %v604, 0
      %v1335 = vsel %vm277, %v609, 0
      %v1338 = vsel %vm277, %v614, 0
      %1340 = vmatprep.subr.mxu0 0.0
      %1341 = vmatpush1.msra.mxu0 %v314
      %1342 = vmatprep.subr.mxu0 0.0
      %1343 = vmatpush1.msra.mxu0 %v315
      %1344 = vmatprep.subr.mxu0 0.0
      %1345 = vmatpush1.msra.mxu0 0.0
      %1346 = vmatprep.subr.mxu0 0.0
      %1347 = vmatpush1.msra.mxu0 0.0
      %1348 = vmatprep.subr.mxu0 0.0
      %1349 = vmatpush1.msra.mxu0 0.0
      %1350 = vmatprep.subr.mxu0 0.0
      %1351 = vmatpush1.msra.mxu0 0.0
      %1352 = vmatprep.subr.mxu0 0.0
      %1353 = vmatpush1.msra.mxu0 0.0
      %1354 = vmatprep.subr.mxu0 0.0
      %1355 = vmatpush1.msra.mxu0 0.0
      %1356 = vmatprep.subr.mxu0 0.0
      %1357 = vmatpush1.msra.mxu0 0.0
      %1358 = vmatprep.subr.mxu0 0.0
      %1359 = vmatpush1.msra.mxu0 0.0
      %1360 = vmatprep.subr.mxu0 0.0
      %1361 = vmatpush1.msra.mxu0 0.0
      %1362 = vmatprep.subr.mxu0 0.0
      %1363 = vmatpush1.msra.mxu0 0.0
      %1364 = vmatprep.subr.mxu0 0.0
      %1365 = vmatpush1.msra.mxu0 0.0
      %1366 = vmatprep.subr.mxu0 0.0
      %1367 = vmatpush1.msra.mxu0 0.0
      %1368 = vmatprep.subr.mxu0 0.0
      %1369 = vmatpush1.msra.mxu0 0.0
      %1370 = vmatprep.subr.mxu0 0.0
      %1371 = vmatpush1.msra.mxu0 0.0
      %1372 = vmatprep.subr.mxu0 0.0
      %1373 = vmatpush1.msra.mxu0 0.0
      %1374 = vmatprep.subr.mxu0 0.0
      %1375 = vmatpush1.msra.mxu0 0.0
      %1376 = vmatprep.subr.mxu0 0.0
      %1377 = vmatpush1.msra.mxu0 0.0
      %1378 = vmatprep.subr.mxu0 0.0
      %1379 = vmatpush1.msra.mxu0 0.0
      %1380 = vmatprep.subr.mxu0 0.0
      %1381 = vmatpush1.msra.mxu0 0.0
      %1382 = vmatprep.subr.mxu0 0.0
      %1383 = vmatpush1.msra.mxu0 0.0
      %1384 = vmatprep.subr.mxu0 0.0
      %1385 = vmatpush1.msra.mxu0 0.0
      %1386 = vmatprep.subr.mxu0 0.0
      %1387 = vmatpush1.msra.mxu0 0.0
      %1388 = vmatprep.subr.mxu0 0.0
      %1389 = vmatpush1.msra.mxu0 0.0
      %1390 = vmatprep.subr.mxu0 0.0
      %1391 = vmatpush1.msra.mxu0 0.0
      %1392 = vmatprep.subr.mxu0 0.0
      %1393 = vmatpush1.msra.mxu0 0.0
      %1394 = vmatprep.subr.mxu0 0.0
      %1395 = vmatpush1.msra.mxu0 0.0
      %1396 = vmatprep.subr.mxu0 0.0
      %1397 = vmatpush1.msra.mxu0 0.0
      %1398 = vmatprep.subr.mxu0 0.0
      %1399 = vmatpush1.msra.mxu0 0.0
      %1400 = vmatprep.subr.mxu0 0.0
      %1401 = vmatpush1.msra.mxu0 0.0
      %1402 = vmatprep.subr.mxu0 0.0
      %1403 = vmatpush1.msra.mxu0 0.0
      %1404 = vmatprep.mubr.f32.mxu0 0.0
      %1405 = vmatmul.mubr.f32.gmra.mrb[0].mxu0 %v1329
      %v1406 = vpop.f32.mrb[0].mxu0
      %v1407 = vadd.f32 0.0, %v1406
      %v1408 = vpop.f32.mrb[0].mxu0
      %1409 = vmatprep.mubr.f32.mxu0 0.0
      %1410 = vmatmul.mubr.f32.gmra.mrb[0].mxu0 %v1332
      %v1411 = vpop.f32.mrb[0].mxu0
      %v1412 = vadd.f32 0.0, %v1411
      %v1413 = vpop.f32.mrb[0].mxu0
      %1414 = vmatprep.mubr.f32.mxu0 0.0
      %1415 = vmatmul.mubr.f32.gmra.mrb[0].mxu0 %v1335
      %v1416 = vpop.f32.mrb[0].mxu0
      %v1417 = vadd.f32 0.0, %v1416
      %v1418 = vpop.f32.mrb[0].mxu0
      %1419 = vmatprep.mubr.f32.mxu0 0.0
      %1420 = vmatmul.mubr.f32.gmra.mrb[0].mxu0 %v1338
      %v1421 = vpop.f32.mrb[0].mxu0
      %v1422 = vadd.f32 0.0, %v1421
      %v1423 = vpop.f32.mrb[0].mxu0
      %1424 = vdwg.mxu0
      %v1426 = vsel %vm277, %v696, 0
      %v1429 = vsel %vm277, %v701, 0
      %v1432 = vsel %vm277, %v706, 0
      %v1435 = vsel %vm277, %v711, 0
      %1437 = vmatprep.subr.mxu0 0.0
      %1438 = vmatpush1.msra.mxu0 %v316
      %1439 = vmatprep.subr.mxu0 0.0
      %1440 = vmatpush1.msra.mxu0 %v317
      %1441 = vmatprep.subr.mxu0 0.0
      %1442 = vmatpush1.msra.mxu0 0.0
      %1443 = vmatprep.subr.mxu0 0.0
      %1444 = vmatpush1.msra.mxu0 0.0
      %1445 = vmatprep.subr.mxu0 0.0
      %1446 = vmatpush1.msra.mxu0 0.0
      %1447 = vmatprep.subr.mxu0 0.0
      %1448 = vmatpush1.msra.mxu0 0.0
      %1449 = vmatprep.subr.mxu0 0.0
      %1450 = vmatpush1.msra.mxu0 0.0
      %1451 = vmatprep.subr.mxu0 0.0
      %1452 = vmatpush1.msra.mxu0 0.0
      %1453 = vmatprep.subr.mxu0 0.0
      %1454 = vmatpush1.msra.mxu0 0.0
      %1455 = vmatprep.subr.mxu0 0.0
      %1456 = vmatpush1.msra.mxu0 0.0
      %1457 = vmatprep.subr.mxu0 0.0
      %1458 = vmatpush1.msra.mxu0 0.0
      %1459 = vmatprep.subr.mxu0 0.0
      %1460 = vmatpush1.msra.mxu0 0.0
      %1461 = vmatprep.subr.mxu0 0.0
      %1462 = vmatpush1.msra.mxu0 0.0
      %1463 = vmatprep.subr.mxu0 0.0
      %1464 = vmatpush1.msra.mxu0 0.0
      %1465 = vmatprep.subr.mxu0 0.0
      %1466 = vmatpush1.msra.mxu0 0.0
      %1467 = vmatprep.subr.mxu0 0.0
      %1468 = vmatpush1.msra.mxu0 0.0
      %1469 = vmatprep.subr.mxu0 0.0
      %1470 = vmatpush1.msra.mxu0 0.0
      %1471 = vmatprep.subr.mxu0 0.0
      %1472 = vmatpush1.msra.mxu0 0.0
      %1473 = vmatprep.subr.mxu0 0.0
      %1474 = vmatpush1.msra.mxu0 0.0
      %1475 = vmatprep.subr.mxu0 0.0
      %1476 = vmatpush1.msra.mxu0 0.0
      %1477 = vmatprep.subr.mxu0 0.0
      %1478 = vmatpush1.msra.mxu0 0.0
      %1479 = vmatprep.subr.mxu0 0.0
      %1480 = vmatpush1.msra.mxu0 0.0
      %1481 = vmatprep.subr.mxu0 0.0
      %1482 = vmatpush1.msra.mxu0 0.0
      %1483 = vmatprep.subr.mxu0 0.0
      %1484 = vmatpush1.msra.mxu0 0.0
      %1485 = vmatprep.subr.mxu0 0.0
      %1486 = vmatpush1.msra.mxu0 0.0
      %1487 = vmatprep.subr.mxu0 0.0
      %1488 = vmatpush1.msra.mxu0 0.0
      %1489 = vmatprep.subr.mxu0 0.0
      %1490 = vmatpush1.msra.mxu0 0.0
      %1491 = vmatprep.subr.mxu0 0.0
      %1492 = vmatpush1.msra.mxu0 0.0
      %1493 = vmatprep.subr.mxu0 0.0
      %1494 = vmatpush1.msra.mxu0 0.0
      %1495 = vmatprep.subr.mxu0 0.0
      %1496 = vmatpush1.msra.mxu0 0.0
      %1497 = vmatprep.subr.mxu0 0.0
      %1498 = vmatpush1.msra.mxu0 0.0
      %1499 = vmatprep.subr.mxu0 0.0
      %1500 = vmatpush1.msra.mxu0 0.0
      %1501 = vmatprep.mubr.f32.mxu0 0.0
      %1502 = vmatmul.mubr.f32.gmra.mrb[0].mxu0 %v1426
      %v1503 = vpop.f32.mrb[0].mxu0
      %v1504 = vadd.f32 0.0, %v1503
      %v1505 = vpop.f32.mrb[0].mxu0
      %1506 = vmatprep.mubr.f32.mxu0 0.0
      %1507 = vmatmul.mubr.f32.gmra.mrb[0].mxu0 %v1429
      %v1508 = vpop.f32.mrb[0].mxu0
      %v1509 = vadd.f32 0.0, %v1508
      %v1510 = vpop.f32.mrb[0].mxu0
      %1511 = vmatprep.mubr.f32.mxu0 0.0
      %1512 = vmatmul.mubr.f32.gmra.mrb[0].mxu0 %v1432
      %v1513 = vpop.f32.mrb[0].mxu0
      %v1514 = vadd.f32 0.0, %v1513
      %v1515 = vpop.f32.mrb[0].mxu0
      %1516 = vmatprep.mubr.f32.mxu0 0.0
      %1517 = vmatmul.mubr.f32.gmra.mrb[0].mxu0 %v1435
      %v1518 = vpop.f32.mrb[0].mxu0
      %v1519 = vadd.f32 0.0, %v1518
      %v1520 = vpop.f32.mrb[0].mxu0
      %1521 = vdwg.mxu0
      %v1523 = vsel %vm277, %v793, 0
      %v1526 = vsel %vm277, %v798, 0
      %v1529 = vsel %vm277, %v803, 0
      %v1532 = vsel %vm277, %v808, 0
      %1534 = vmatprep.subr.mxu0 0.0
      %1535 = vmatpush1.msra.mxu0 %v318
      %1536 = vmatprep.subr.mxu0 0.0
      %1537 = vmatpush1.msra.mxu0 %v319
      %1538 = vmatprep.subr.mxu0 0.0
      %1539 = vmatpush1.msra.mxu0 0.0
      %1540 = vmatprep.subr.mxu0 0.0
      %1541 = vmatpush1.msra.mxu0 0.0
      %1542 = vmatprep.subr.mxu0 0.0
      %1543 = vmatpush1.msra.mxu0 0.0
      %1544 = vmatprep.subr.mxu0 0.0
      %1545 = vmatpush1.msra.mxu0 0.0
      %1546 = vmatprep.subr.mxu0 0.0
      %1547 = vmatpush1.msra.mxu0 0.0
      %1548 = vmatprep.subr.mxu0 0.0
      %1549 = vmatpush1.msra.mxu0 0.0
      %1550 = vmatprep.subr.mxu0 0.0
      %1551 = vmatpush1.msra.mxu0 0.0
      %1552 = vmatprep.subr.mxu0 0.0
      %1553 = vmatpush1.msra.mxu0 0.0
      %1554 = vmatprep.subr.mxu0 0.0
      %1555 = vmatpush1.msra.mxu0 0.0
      %1556 = vmatprep.subr.mxu0 0.0
      %1557 = vmatpush1.msra.mxu0 0.0
      %1558 = vmatprep.subr.mxu0 0.0
      %1559 = vmatpush1.msra.mxu0 0.0
      %1560 = vmatprep.subr.mxu0 0.0
      %1561 = vmatpush1.msra.mxu0 0.0
      %1562 = vmatprep.subr.mxu0 0.0
      %1563 = vmatpush1.msra.mxu0 0.0
      %1564 = vmatprep.subr.mxu0 0.0
      %1565 = vmatpush1.msra.mxu0 0.0
      %1566 = vmatprep.subr.mxu0 0.0
      %1567 = vmatpush1.msra.mxu0 0.0
      %1568 = vmatprep.subr.mxu0 0.0
      %1569 = vmatpush1.msra.mxu0 0.0
      %1570 = vmatprep.subr.mxu0 0.0
      %1571 = vmatpush1.msra.mxu0 0.0
      %1572 = vmatprep.subr.mxu0 0.0
      %1573 = vmatpush1.msra.mxu0 0.0
      %1574 = vmatprep.subr.mxu0 0.0
      %1575 = vmatpush1.msra.mxu0 0.0
      %1576 = vmatprep.subr.mxu0 0.0
      %1577 = vmatpush1.msra.mxu0 0.0
      %1578 = vmatprep.subr.mxu0 0.0
      %1579 = vmatpush1.msra.mxu0 0.0
      %1580 = vmatprep.subr.mxu0 0.0
      %1581 = vmatpush1.msra.mxu0 0.0
      %1582 = vmatprep.subr.mxu0 0.0
      %1583 = vmatpush1.msra.mxu0 0.0
      %1584 = vmatprep.subr.mxu0 0.0
      %1585 = vmatpush1.msra.mxu0 0.0
      %1586 = vmatprep.subr.mxu0 0.0
      %1587 = vmatpush1.msra.mxu0 0.0
      %1588 = vmatprep.subr.mxu0 0.0
      %1589 = vmatpush1.msra.mxu0 0.0
      %1590 = vmatprep.subr.mxu0 0.0
      %1591 = vmatpush1.msra.mxu0 0.0
      %1592 = vmatprep.subr.mxu0 0.0
      %1593 = vmatpush1.msra.mxu0 0.0
      %1594 = vmatprep.subr.mxu0 0.0
      %1595 = vmatpush1.msra.mxu0 0.0
      %1596 = vmatprep.subr.mxu0 0.0
      %1597 = vmatpush1.msra.mxu0 0.0
      %1598 = vmatprep.mubr.f32.mxu0 0.0
      %1599 = vmatmul.mubr.f32.gmra.mrb[0].mxu0 %v1523
      %v1600 = vpop.f32.mrb[0].mxu0
      %v1601 = vadd.f32 0.0, %v1600
      %v1602 = vpop.f32.mrb[0].mxu0
      %1603 = vmatprep.mubr.f32.mxu0 0.0
      %1604 = vmatmul.mubr.f32.gmra.mrb[0].mxu0 %v1526
      %v1605 = vpop.f32.mrb[0].mxu0
      %v1606 = vadd.f32 0.0, %v1605
      %v1607 = vpop.f32.mrb[0].mxu0
      %1608 = vmatprep.mubr.f32.mxu0 0.0
      %1609 = vmatmul.mubr.f32.gmra.mrb[0].mxu0 %v1529
      %v1610 = vpop.f32.mrb[0].mxu0
      %v1611 = vadd.f32 0.0, %v1610
      %v1612 = vpop.f32.mrb[0].mxu0
      %1613 = vmatprep.mubr.f32.mxu0 0.0
      %1614 = vmatmul.mubr.f32.gmra.mrb[0].mxu0 %v1532
      %v1615 = vpop.f32.mrb[0].mxu0
      %v1616 = vadd.f32 0.0, %v1615
      %v1617 = vpop.f32.mrb[0].mxu0
      %1618 = vdwg.mxu0
      %v1620 = vsel %vm277, %v890, 0
      %v1623 = vsel %vm277, %v895, 0
      %v1626 = vsel %vm277, %v900, 0
      %v1629 = vsel %vm277, %v905, 0
      %1631 = vmatprep.subr.mxu0 0.0
      %1632 = vmatpush1.msra.mxu0 %v320
      %1633 = vmatprep.subr.mxu0 0.0
      %1634 = vmatpush1.msra.mxu0 %v321
      %1635 = vmatprep.subr.mxu0 0.0
      %1636 = vmatpush1.msra.mxu0 0.0
      %1637 = vmatprep.subr.mxu0 0.0
      %1638 = vmatpush1.msra.mxu0 0.0
      %1639 = vmatprep.subr.mxu0 0.0
      %1640 = vmatpush1.msra.mxu0 0.0
      %1641 = vmatprep.subr.mxu0 0.0
      %1642 = vmatpush1.msra.mxu0 0.0
      %1643 = vmatprep.subr.mxu0 0.0
      %1644 = vmatpush1.msra.mxu0 0.0
      %1645 = vmatprep.subr.mxu0 0.0
      %1646 = vmatpush1.msra.mxu0 0.0
      %1647 = vmatprep.subr.mxu0 0.0
      %1648 = vmatpush1.msra.mxu0 0.0
      %1649 = vmatprep.subr.mxu0 0.0
      %1650 = vmatpush1.msra.mxu0 0.0
      %1651 = vmatprep.subr.mxu0 0.0
      %1652 = vmatpush1.msra.mxu0 0.0
      %1653 = vmatprep.subr.mxu0 0.0
      %1654 = vmatpush1.msra.mxu0 0.0
      %1655 = vmatprep.subr.mxu0 0.0
      %1656 = vmatpush1.msra.mxu0 0.0
      %1657 = vmatprep.subr.mxu0 0.0
      %1658 = vmatpush1.msra.mxu0 0.0
      %1659 = vmatprep.subr.mxu0 0.0
      %1660 = vmatpush1.msra.mxu0 0.0
      %1661 = vmatprep.subr.mxu0 0.0
      %1662 = vmatpush1.msra.mxu0 0.0
      %1663 = vmatprep.subr.mxu0 0.0
      %1664 = vmatpush1.msra.mxu0 0.0
      %1665 = vmatprep.subr.mxu0 0.0
      %1666 = vmatpush1.msra.mxu0 0.0
      %1667 = vmatprep.subr.mxu0 0.0
      %1668 = vmatpush1.msra.mxu0 0.0
      %1669 = vmatprep.subr.mxu0 0.0
      %1670 = vmatpush1.msra.mxu0 0.0
      %1671 = vmatprep.subr.mxu0 0.0
      %1672 = vmatpush1.msra.mxu0 0.0
      %1673 = vmatprep.subr.mxu0 0.0
      %1674 = vmatpush1.msra.mxu0 0.0
      %1675 = vmatprep.subr.mxu0 0.0
      %1676 = vmatpush1.msra.mxu0 0.0
      %1677 = vmatprep.subr.mxu0 0.0
      %1678 = vmatpush1.msra.mxu0 0.0
      %1679 = vmatprep.subr.mxu0 0.0
      %1680 = vmatpush1.msra.mxu0 0.0
      %1681 = vmatprep.subr.mxu0 0.0
      %1682 = vmatpush1.msra.mxu0 0.0
      %1683 = vmatprep.subr.mxu0 0.0
      %1684 = vmatpush1.msra.mxu0 0.0
      %1685 = vmatprep.subr.mxu0 0.0
      %1686 = vmatpush1.msra.mxu0 0.0
      %1687 = vmatprep.subr.mxu0 0.0
      %1688 = vmatpush1.msra.mxu0 0.0
      %1689 = vmatprep.subr.mxu0 0.0
      %1690 = vmatpush1.msra.mxu0 0.0
      %1691 = vmatprep.subr.mxu0 0.0
      %1692 = vmatpush1.msra.mxu0 0.0
      %1693 = vmatprep.subr.mxu0 0.0
      %1694 = vmatpush1.msra.mxu0 0.0
      %1695 = vmatprep.mubr.f32.mxu0 0.0
      %1696 = vmatmul.mubr.f32.gmra.mrb[0].mxu0 %v1620
      %v1697 = vpop.f32.mrb[0].mxu0
      %v1698 = vadd.f32 0.0, %v1697
      %v1699 = vpop.f32.mrb[0].mxu0
      %1700 = vmatprep.mubr.f32.mxu0 0.0
      %1701 = vmatmul.mubr.f32.gmra.mrb[0].mxu0 %v1623
      %v1702 = vpop.f32.mrb[0].mxu0
      %v1703 = vadd.f32 0.0, %v1702
      %v1704 = vpop.f32.mrb[0].mxu0
      %1705 = vmatprep.mubr.f32.mxu0 0.0
      %1706 = vmatmul.mubr.f32.gmra.mrb[0].mxu0 %v1626
      %v1707 = vpop.f32.mrb[0].mxu0
      %v1708 = vadd.f32 0.0, %v1707
      %v1709 = vpop.f32.mrb[0].mxu0
      %1710 = vmatprep.mubr.f32.mxu0 0.0
      %1711 = vmatmul.mubr.f32.gmra.mrb[0].mxu0 %v1629
      %v1712 = vpop.f32.mrb[0].mxu0
      %v1713 = vadd.f32 0.0, %v1712
      %v1714 = vpop.f32.mrb[0].mxu0
      %1715 = vdwg.mxu0
      %v1717 = vsel %vm277, %v987, 0
      %v1720 = vsel %vm277, %v992, 0
      %v1723 = vsel %vm277, %v997, 0
      %v1726 = vsel %vm277, %v1002, 0
      %1728 = vmatprep.subr.mxu0 0.0
      %1729 = vmatpush1.msra.mxu0 %v322
      %1730 = vmatprep.subr.mxu0 0.0
      %1731 = vmatpush1.msra.mxu0 %v323
      %1732 = vmatprep.subr.mxu0 0.0
      %1733 = vmatpush1.msra.mxu0 0.0
      %1734 = vmatprep.subr.mxu0 0.0
      %1735 = vmatpush1.msra.mxu0 0.0
      %1736 = vmatprep.subr.mxu0 0.0
      %1737 = vmatpush1.msra.mxu0 0.0
      %1738 = vmatprep.subr.mxu0 0.0
      %1739 = vmatpush1.msra.mxu0 0.0
      %1740 = vmatprep.subr.mxu0 0.0
      %1741 = vmatpush1.msra.mxu0 0.0
      %1742 = vmatprep.subr.mxu0 0.0
      %1743 = vmatpush1.msra.mxu0 0.0
      %1744 = vmatprep.subr.mxu0 0.0
      %1745 = vmatpush1.msra.mxu0 0.0
      %1746 = vmatprep.subr.mxu0 0.0
      %1747 = vmatpush1.msra.mxu0 0.0
      %1748 = vmatprep.subr.mxu0 0.0
      %1749 = vmatpush1.msra.mxu0 0.0
      %1750 = vmatprep.subr.mxu0 0.0
      %1751 = vmatpush1.msra.mxu0 0.0
      %1752 = vmatprep.subr.mxu0 0.0
      %1753 = vmatpush1.msra.mxu0 0.0
      %1754 = vmatprep.subr.mxu0 0.0
      %1755 = vmatpush1.msra.mxu0 0.0
      %1756 = vmatprep.subr.mxu0 0.0
      %1757 = vmatpush1.msra.mxu0 0.0
      %1758 = vmatprep.subr.mxu0 0.0
      %1759 = vmatpush1.msra.mxu0 0.0
      %1760 = vmatprep.subr.mxu0 0.0
      %1761 = vmatpush1.msra.mxu0 0.0
      %1762 = vmatprep.subr.mxu0 0.0
      %1763 = vmatpush1.msra.mxu0 0.0
      %1764 = vmatprep.subr.mxu0 0.0
      %1765 = vmatpush1.msra.mxu0 0.0
      %1766 = vmatprep.subr.mxu0 0.0
      %1767 = vmatpush1.msra.mxu0 0.0
      %1768 = vmatprep.subr.mxu0 0.0
      %1769 = vmatpush1.msra.mxu0 0.0
      %1770 = vmatprep.subr.mxu0 0.0
      %1771 = vmatpush1.msra.mxu0 0.0
      %1772 = vmatprep.subr.mxu0 0.0
      %1773 = vmatpush1.msra.mxu0 0.0
      %1774 = vmatprep.subr.mxu0 0.0
      %1775 = vmatpush1.msra.mxu0 0.0
      %1776 = vmatprep.subr.mxu0 0.0
      %1777 = vmatpush1.msra.mxu0 0.0
      %1778 = vmatprep.subr.mxu0 0.0
      %1779 = vmatpush1.msra.mxu0 0.0
      %1780 = vmatprep.subr.mxu0 0.0
      %1781 = vmatpush1.msra.mxu0 0.0
      %1782 = vmatprep.subr.mxu0 0.0
      %1783 = vmatpush1.msra.mxu0 0.0
      %1784 = vmatprep.subr.mxu0 0.0
      %1785 = vmatpush1.msra.mxu0 0.0
      %1786 = vmatprep.subr.mxu0 0.0
      %1787 = vmatpush1.msra.mxu0 0.0
      %1788 = vmatprep.subr.mxu0 0.0
      %1789 = vmatpush1.msra.mxu0 0.0
      %1790 = vmatprep.subr.mxu0 0.0
      %1791 = vmatpush1.msra.mxu0 0.0
      %1792 = vmatprep.mubr.f32.mxu0 0.0
      %1793 = vmatmul.mubr.f32.gmra.mrb[0].mxu0 %v1717
      %v1794 = vpop.f32.mrb[0].mxu0
      %v1795 = vadd.f32 0.0, %v1794
      %v1796 = vpop.f32.mrb[0].mxu0
      %1797 = vmatprep.mubr.f32.mxu0 0.0
      %1798 = vmatmul.mubr.f32.gmra.mrb[0].mxu0 %v1720
      %v1799 = vpop.f32.mrb[0].mxu0
      %v1800 = vadd.f32 0.0, %v1799
      %v1801 = vpop.f32.mrb[0].mxu0
      %1802 = vmatprep.mubr.f32.mxu0 0.0
      %1803 = vmatmul.mubr.f32.gmra.mrb[0].mxu0 %v1723
      %v1804 = vpop.f32.mrb[0].mxu0
      %v1805 = vadd.f32 0.0, %v1804
      %v1806 = vpop.f32.mrb[0].mxu0
      %1807 = vmatprep.mubr.f32.mxu0 0.0
      %1808 = vmatmul.mubr.f32.gmra.mrb[0].mxu0 %v1726
      %v1809 = vpop.f32.mrb[0].mxu0
      %v1810 = vadd.f32 0.0, %v1809
      %v1811 = vpop.f32.mrb[0].mxu0
      %1812 = vdwg.mxu0
      %v1814 = vsel %vm277, %v1084, 0
      %v1817 = vsel %vm277, %v1089, 0
      %v1820 = vsel %vm277, %v1094, 0
      %v1823 = vsel %vm277, %v1099, 0
      %1825 = vmatprep.subr.mxu0 0.0
      %1826 = vmatpush1.msra.mxu0 %v324
      %1827 = vmatprep.subr.mxu0 0.0
      %1828 = vmatpush1.msra.mxu0 %v325
      %1829 = vmatprep.subr.mxu0 0.0
      %1830 = vmatpush1.msra.mxu0 0.0
      %1831 = vmatprep.subr.mxu0 0.0
      %1832 = vmatpush1.msra.mxu0 0.0
      %1833 = vmatprep.subr.mxu0 0.0
      %1834 = vmatpush1.msra.mxu0 0.0
      %1835 = vmatprep.subr.mxu0 0.0
      %1836 = vmatpush1.msra.mxu0 0.0
      %1837 = vmatprep.subr.mxu0 0.0
      %1838 = vmatpush1.msra.mxu0 0.0
      %1839 = vmatprep.subr.mxu0 0.0
      %1840 = vmatpush1.msra.mxu0 0.0
      %1841 = vmatprep.subr.mxu0 0.0
      %1842 = vmatpush1.msra.mxu0 0.0
      %1843 = vmatprep.subr.mxu0 0.0
      %1844 = vmatpush1.msra.mxu0 0.0
      %1845 = vmatprep.subr.mxu0 0.0
      %1846 = vmatpush1.msra.mxu0 0.0
      %1847 = vmatprep.subr.mxu0 0.0
      %1848 = vmatpush1.msra.mxu0 0.0
      %1849 = vmatprep.subr.mxu0 0.0
      %1850 = vmatpush1.msra.mxu0 0.0
      %1851 = vmatprep.subr.mxu0 0.0
      %1852 = vmatpush1.msra.mxu0 0.0
      %1853 = vmatprep.subr.mxu0 0.0
      %1854 = vmatpush1.msra.mxu0 0.0
      %1855 = vmatprep.subr.mxu0 0.0
      %1856 = vmatpush1.msra.mxu0 0.0
      %1857 = vmatprep.subr.mxu0 0.0
      %1858 = vmatpush1.msra.mxu0 0.0
      %1859 = vmatprep.subr.mxu0 0.0
      %1860 = vmatpush1.msra.mxu0 0.0
      %1861 = vmatprep.subr.mxu0 0.0
      %1862 = vmatpush1.msra.mxu0 0.0
      %1863 = vmatprep.subr.mxu0 0.0
      %1864 = vmatpush1.msra.mxu0 0.0
      %1865 = vmatprep.subr.mxu0 0.0
      %1866 = vmatpush1.msra.mxu0 0.0
      %1867 = vmatprep.subr.mxu0 0.0
      %1868 = vmatpush1.msra.mxu0 0.0
      %1869 = vmatprep.subr.mxu0 0.0
      %1870 = vmatpush1.msra.mxu0 0.0
      %1871 = vmatprep.subr.mxu0 0.0
      %1872 = vmatpush1.msra.mxu0 0.0
      %1873 = vmatprep.subr.mxu0 0.0
      %1874 = vmatpush1.msra.mxu0 0.0
      %1875 = vmatprep.subr.mxu0 0.0
      %1876 = vmatpush1.msra.mxu0 0.0
      %1877 = vmatprep.subr.mxu0 0.0
      %1878 = vmatpush1.msra.mxu0 0.0
      %1879 = vmatprep.subr.mxu0 0.0
      %1880 = vmatpush1.msra.mxu0 0.0
      %1881 = vmatprep.subr.mxu0 0.0
      %1882 = vmatpush1.msra.mxu0 0.0
      %1883 = vmatprep.subr.mxu0 0.0
      %1884 = vmatpush1.msra.mxu0 0.0
      %1885 = vmatprep.subr.mxu0 0.0
      %1886 = vmatpush1.msra.mxu0 0.0
      %1887 = vmatprep.subr.mxu0 0.0
      %1888 = vmatpush1.msra.mxu0 0.0
      %1889 = vmatprep.mubr.f32.mxu0 0.0
      %1890 = vmatmul.mubr.f32.gmra.mrb[0].mxu0 %v1814
      %v1891 = vpop.f32.mrb[0].mxu0
      %v1892 = vadd.f32 0.0, %v1891
      %v1893 = vpop.f32.mrb[0].mxu0
      %1894 = vmatprep.mubr.f32.mxu0 0.0
      %1895 = vmatmul.mubr.f32.gmra.mrb[0].mxu0 %v1817
      %v1896 = vpop.f32.mrb[0].mxu0
      %v1897 = vadd.f32 0.0, %v1896
      %v1898 = vpop.f32.mrb[0].mxu0
      %1899 = vmatprep.mubr.f32.mxu0 0.0
      %1900 = vmatmul.mubr.f32.gmra.mrb[0].mxu0 %v1820
      %v1901 = vpop.f32.mrb[0].mxu0
      %v1902 = vadd.f32 0.0, %v1901
      %v1903 = vpop.f32.mrb[0].mxu0
      %1904 = vmatprep.mubr.f32.mxu0 0.0
      %1905 = vmatmul.mubr.f32.gmra.mrb[0].mxu0 %v1823
      %v1906 = vpop.f32.mrb[0].mxu0
      %v1907 = vadd.f32 0.0, %v1906
      %v1908 = vpop.f32.mrb[0].mxu0
      %1909 = vdwg.mxu0
      %1910 = vst.msk [vmem:[#allocation2 + $0x40] sm:$0xff] %vm277, %v1213
      %1911 = vst.msk [vmem:[#allocation2 + $0x48] sm:$0xff] %vm277, %v1218
      %1912 = vst.msk [vmem:[#allocation2 + $0x50] sm:$0xff] %vm277, %v1223
      %1913 = vst.msk [vmem:[#allocation2 + $0x58] sm:$0xff] %vm277, %v1228
      %1914 = vst.msk [vmem:[#allocation2 + $0x120] sm:$0xff] %vm277, %v1310
      %1915 = vst.msk [vmem:[#allocation2 + $0x128] sm:$0xff] %vm277, %v1315
      %1916 = vst.msk [vmem:[#allocation2 + $0x130] sm:$0xff] %vm277, %v1320
      %1917 = vst.msk [vmem:[#allocation2 + $0x138] sm:$0xff] %vm277, %v1325
      %1918 = vst.msk [vmem:[#allocation2 + $0x200] sm:$0xff] %vm277, %v1407
      %1919 = vst.msk [vmem:[#allocation2 + $0x208] sm:$0xff] %vm277, %v1412
      %1920 = vst.msk [vmem:[#allocation2 + $0x210] sm:$0xff] %vm277, %v1417
      %1921 = vst.msk [vmem:[#allocation2 + $0x218] sm:$0xff] %vm277, %v1422
      %1922 = vst.msk [vmem:[#allocation2 + $0x2e0] sm:$0xff] %vm277, %v1504
      %1923 = vst.msk [vmem:[#allocation2 + $0x2e8] sm:$0xff] %vm277, %v1509
      %1924 = vst.msk [vmem:[#allocation2 + $0x2f0] sm:$0xff] %vm277, %v1514
      %1925 = vst.msk [vmem:[#allocation2 + $0x2f8] sm:$0xff] %vm277, %v1519
      %1926 = vst.msk [vmem:[#allocation2 + $0x3c0] sm:$0xff] %vm277, %v1601
      %1927 = vst.msk [vmem:[#allocation2 + $0x3c8] sm:$0xff] %vm277, %v1606
      %1928 = vst.msk [vmem:[#allocation2 + $0x3d0] sm:$0xff] %vm277, %v1611
      %1929 = vst.msk [vmem:[#allocation2 + $0x3d8] sm:$0xff] %vm277, %v1616
      %1930 = vst.msk [vmem:[#allocation2 + $0x4a0] sm:$0xff] %vm277, %v1698
      %1931 = vst.msk [vmem:[#allocation2 + $0x4a8] sm:$0xff] %vm277, %v1703
      %1932 = vst.msk [vmem:[#allocation2 + $0x4b0] sm:$0xff] %vm277, %v1708
      %1933 = vst.msk [vmem:[#allocation2 + $0x4b8] sm:$0xff] %vm277, %v1713
      %1934 = vst.msk [vmem:[#allocation2 + $0x580] sm:$0xff] %vm277, %v1795
      %1935 = vst.msk [vmem:[#allocation2 + $0x588] sm:$0xff] %vm277, %v1800
      %1936 = vst.msk [vmem:[#allocation2 + $0x590] sm:$0xff] %vm277, %v1805
      %1937 = vst.msk [vmem:[#allocation2 + $0x598] sm:$0xff] %vm277, %v1810
      %1938 = vst.msk [vmem:[#allocation2 + $0x660] sm:$0xff] %vm277, %v1892
      %1939 = vst.msk [vmem:[#allocation2 + $0x668] sm:$0xff] %vm277, %v1897
      %1940 = vst.msk [vmem:[#allocation2 + $0x670] sm:$0xff] %vm277, %v1902
      %1941 = vst.msk [vmem:[#allocation2 + $0x678] sm:$0xff] %vm277, %v1907
      %s1942 = scalar_lea.vmem %s239, 128
      %v1943 = vld [vmem:[%s1942] sm:$0xff]
      %v1944 = vld [vmem:[%s1942 + $0x8] sm:$0xff]
      %v1945 = vld [vmem:[%s1942 + $0x10] sm:$0xff]
      %v1946 = vld [vmem:[%s1942 + $0x18] sm:$0xff]
      %v1947 = vld [vmem:[%s1942 + $0x20] sm:$0xff]
      %v1948 = vld [vmem:[%s1942 + $0x28] sm:$0xff]
      %v1949 = vld [vmem:[%s1942 + $0x30] sm:$0xff]
      %v1950 = vld [vmem:[%s1942 + $0x38] sm:$0xff]
      %v1951 = vld [vmem:[%s1942 + $0x40] sm:$0xff]
      %v1952 = vld [vmem:[%s1942 + $0x48] sm:$0xff]
      %v1953 = vld [vmem:[%s1942 + $0x50] sm:$0xff]
      %v1954 = vld [vmem:[%s1942 + $0x58] sm:$0xff]
      %v1955 = vld [vmem:[%s1942 + $0x60] sm:$0xff]
      %v1956 = vld [vmem:[%s1942 + $0x68] sm:$0xff]
      %v1957 = vld [vmem:[%s1942 + $0x70] sm:$0xff]
      %v1958 = vld [vmem:[%s1942 + $0x78] sm:$0xff]
      %1959 = vmatprep.subr.mxu0 0.0
      %1960 = vmatpush1.msra.mxu0 %v1943
      %1961 = vmatprep.subr.mxu0 0.0
      %1962 = vmatpush1.msra.mxu0 %v1944
      %1963 = vmatprep.subr.mxu0 0.0
      %1964 = vmatpush1.msra.mxu0 0.0
      %1965 = vmatprep.subr.mxu0 0.0
      %1966 = vmatpush1.msra.mxu0 0.0
      %1967 = vmatprep.subr.mxu0 0.0
      %1968 = vmatpush1.msra.mxu0 0.0
      %1969 = vmatprep.subr.mxu0 0.0
      %1970 = vmatpush1.msra.mxu0 0.0
      %1971 = vmatprep.subr.mxu0 0.0
      %1972 = vmatpush1.msra.mxu0 0.0
      %1973 = vmatprep.subr.mxu0 0.0
      %1974 = vmatpush1.msra.mxu0 0.0
      %1975 = vmatprep.subr.mxu0 0.0
      %1976 = vmatpush1.msra.mxu0 0.0
      %1977 = vmatprep.subr.mxu0 0.0
      %1978 = vmatpush1.msra.mxu0 0.0
      %1979 = vmatprep.subr.mxu0 0.0
      %1980 = vmatpush1.msra.mxu0 0.0
      %1981 = vmatprep.subr.mxu0 0.0
      %1982 = vmatpush1.msra.mxu0 0.0
      %1983 = vmatprep.subr.mxu0 0.0
      %1984 = vmatpush1.msra.mxu0 0.0
      %1985 = vmatprep.subr.mxu0 0.0
      %1986 = vmatpush1.msra.mxu0 0.0
      %1987 = vmatprep.subr.mxu0 0.0
      %1988 = vmatpush1.msra.mxu0 0.0
      %1989 = vmatprep.subr.mxu0 0.0
      %1990 = vmatpush1.msra.mxu0 0.0
      %1991 = vmatprep.subr.mxu0 0.0
      %1992 = vmatpush1.msra.mxu0 0.0
      %1993 = vmatprep.subr.mxu0 0.0
      %1994 = vmatpush1.msra.mxu0 0.0
      %1995 = vmatprep.subr.mxu0 0.0
      %1996 = vmatpush1.msra.mxu0 0.0
      %1997 = vmatprep.subr.mxu0 0.0
      %1998 = vmatpush1.msra.mxu0 0.0
      %1999 = vmatprep.subr.mxu0 0.0
      %2000 = vmatpush1.msra.mxu0 0.0
      %2001 = vmatprep.subr.mxu0 0.0
      %2002 = vmatpush1.msra.mxu0 0.0
      %2003 = vmatprep.subr.mxu0 0.0
      %2004 = vmatpush1.msra.mxu0 0.0
      %2005 = vmatprep.subr.mxu0 0.0
      %2006 = vmatpush1.msra.mxu0 0.0
      %2007 = vmatprep.subr.mxu0 0.0
      %2008 = vmatpush1.msra.mxu0 0.0
      %2009 = vmatprep.subr.mxu0 0.0
      %2010 = vmatpush1.msra.mxu0 0.0
      %2011 = vmatprep.subr.mxu0 0.0
      %2012 = vmatpush1.msra.mxu0 0.0
      %2013 = vmatprep.subr.mxu0 0.0
      %2014 = vmatpush1.msra.mxu0 0.0
      %2015 = vmatprep.subr.mxu0 0.0
      %2016 = vmatpush1.msra.mxu0 0.0
      %2017 = vmatprep.subr.mxu0 0.0
      %2018 = vmatpush1.msra.mxu0 0.0
      %2019 = vmatprep.subr.mxu0 0.0
      %2020 = vmatpush1.msra.mxu0 0.0
      %2021 = vmatprep.subr.mxu0 0.0
      %2022 = vmatpush1.msra.mxu0 0.0
      %2023 = vmatprep.mubr.f32.mxu0 0.0
      %2024 = vmatmul.mubr.f32.gmra.mrb[0].mxu0 %v327
      %v2025 = vpop.f32.mrb[0].mxu0
      %v2026 = vadd.f32 0.0, %v2025
      %v2027 = vpop.f32.mrb[0].mxu0
      %2028 = vmatprep.mubr.f32.mxu0 0.0
      %2029 = vmatmul.mubr.f32.gmra.mrb[0].mxu0 %v330
      %v2030 = vpop.f32.mrb[0].mxu0
      %v2031 = vadd.f32 0.0, %v2030
      %v2032 = vpop.f32.mrb[0].mxu0
      %2033 = vmatprep.mubr.f32.mxu0 0.0
      %2034 = vmatmul.mubr.f32.gmra.mrb[0].mxu0 %v333
      %v2035 = vpop.f32.mrb[0].mxu0
      %v2036 = vadd.f32 0.0, %v2035
      %v2037 = vpop.f32.mrb[0].mxu0
      %2038 = vmatprep.mubr.f32.mxu0 0.0
      %2039 = vmatmul.mubr.f32.gmra.mrb[0].mxu0 %v336
      %v2040 = vpop.f32.mrb[0].mxu0
      %v2041 = vadd.f32 0.0, %v2040
      %v2042 = vpop.f32.mrb[0].mxu0
      %2043 = vdwg.mxu0
      %2044 = vmatprep.subr.mxu0 0.0
      %2045 = vmatpush1.msra.mxu0 %v1945
      %2046 = vmatprep.subr.mxu0 0.0
      %2047 = vmatpush1.msra.mxu0 %v1946
      %2048 = vmatprep.subr.mxu0 0.0
      %2049 = vmatpush1.msra.mxu0 0.0
      %2050 = vmatprep.subr.mxu0 0.0
      %2051 = vmatpush1.msra.mxu0 0.0
      %2052 = vmatprep.subr.mxu0 0.0
      %2053 = vmatpush1.msra.mxu0 0.0
      %2054 = vmatprep.subr.mxu0 0.0
      %2055 = vmatpush1.msra.mxu0 0.0
      %2056 = vmatprep.subr.mxu0 0.0
      %2057 = vmatpush1.msra.mxu0 0.0
      %2058 = vmatprep.subr.mxu0 0.0
      %2059 = vmatpush1.msra.mxu0 0.0
      %2060 = vmatprep.subr.mxu0 0.0
      %2061 = vmatpush1.msra.mxu0 0.0
      %2062 = vmatprep.subr.mxu0 0.0
      %2063 = vmatpush1.msra.mxu0 0.0
      %2064 = vmatprep.subr.mxu0 0.0
      %2065 = vmatpush1.msra.mxu0 0.0
      %2066 = vmatprep.subr.mxu0 0.0
      %2067 = vmatpush1.msra.mxu0 0.0
      %2068 = vmatprep.subr.mxu0 0.0
      %2069 = vmatpush1.msra.mxu0 0.0
      %2070 = vmatprep.subr.mxu0 0.0
      %2071 = vmatpush1.msra.mxu0 0.0
      %2072 = vmatprep.subr.mxu0 0.0
      %2073 = vmatpush1.msra.mxu0 0.0
      %2074 = vmatprep.subr.mxu0 0.0
      %2075 = vmatpush1.msra.mxu0 0.0
      %2076 = vmatprep.subr.mxu0 0.0
      %2077 = vmatpush1.msra.mxu0 0.0
      %2078 = vmatprep.subr.mxu0 0.0
      %2079 = vmatpush1.msra.mxu0 0.0
      %2080 = vmatprep.subr.mxu0 0.0
      %2081 = vmatpush1.msra.mxu0 0.0
      %2082 = vmatprep.subr.mxu0 0.0
      %2083 = vmatpush1.msra.mxu0 0.0
      %2084 = vmatprep.subr.mxu0 0.0
      %2085 = vmatpush1.msra.mxu0 0.0
      %2086 = vmatprep.subr.mxu0 0.0
      %2087 = vmatpush1.msra.mxu0 0.0
      %2088 = vmatprep.subr.mxu0 0.0
      %2089 = vmatpush1.msra.mxu0 0.0
      %2090 = vmatprep.subr.mxu0 0.0
      %2091 = vmatpush1.msra.mxu0 0.0
      %2092 = vmatprep.subr.mxu0 0.0
      %2093 = vmatpush1.msra.mxu0 0.0
      %2094 = vmatprep.subr.mxu0 0.0
      %2095 = vmatpush1.msra.mxu0 0.0
      %2096 = vmatprep.subr.mxu0 0.0
      %2097 = vmatpush1.msra.mxu0 0.0
      %2098 = vmatprep.subr.mxu0 0.0
      %2099 = vmatpush1.msra.mxu0 0.0
      %2100 = vmatprep.subr.mxu0 0.0
      %2101 = vmatpush1.msra.mxu0 0.0
      %2102 = vmatprep.subr.mxu0 0.0
      %2103 = vmatpush1.msra.mxu0 0.0
      %2104 = vmatprep.subr.mxu0 0.0
      %2105 = vmatpush1.msra.mxu0 0.0
      %2106 = vmatprep.subr.mxu0 0.0
      %2107 = vmatpush1.msra.mxu0 0.0
      %2108 = vmatprep.mubr.f32.mxu0 0.0
      %2109 = vmatmul.mubr.f32.gmra.mrb[0].mxu0 %v424
      %v2110 = vpop.f32.mrb[0].mxu0
      %v2111 = vadd.f32 0.0, %v2110
      %v2112 = vpop.f32.mrb[0].mxu0
      %2113 = vmatprep.mubr.f32.mxu0 0.0
      %2114 = vmatmul.mubr.f32.gmra.mrb[0].mxu0 %v427
      %v2115 = vpop.f32.mrb[0].mxu0
      %v2116 = vadd.f32 0.0, %v2115
      %v2117 = vpop.f32.mrb[0].mxu0
      %2118 = vmatprep.mubr.f32.mxu0 0.0
      %2119 = vmatmul.mubr.f32.gmra.mrb[0].mxu0 %v430
      %v2120 = vpop.f32.mrb[0].mxu0
      %v2121 = vadd.f32 0.0, %v2120
      %v2122 = vpop.f32.mrb[0].mxu0
      %2123 = vmatprep.mubr.f32.mxu0 0.0
      %2124 = vmatmul.mubr.f32.gmra.mrb[0].mxu0 %v433
      %v2125 = vpop.f32.mrb[0].mxu0
      %v2126 = vadd.f32 0.0, %v2125
      %v2127 = vpop.f32.mrb[0].mxu0
      %2128 = vdwg.mxu0
      %2129 = vmatprep.subr.mxu0 0.0
      %2130 = vmatpush1.msra.mxu0 %v1947
      %2131 = vmatprep.subr.mxu0 0.0
      %2132 = vmatpush1.msra.mxu0 %v1948
      %2133 = vmatprep.subr.mxu0 0.0
      %2134 = vmatpush1.msra.mxu0 0.0
      %2135 = vmatprep.subr.mxu0 0.0
      %2136 = vmatpush1.msra.mxu0 0.0
      %2137 = vmatprep.subr.mxu0 0.0
      %2138 = vmatpush1.msra.mxu0 0.0
      %2139 = vmatprep.subr.mxu0 0.0
      %2140 = vmatpush1.msra.mxu0 0.0
      %2141 = vmatprep.subr.mxu0 0.0
      %2142 = vmatpush1.msra.mxu0 0.0
      %2143 = vmatprep.subr.mxu0 0.0
      %2144 = vmatpush1.msra.mxu0 0.0
      %2145 = vmatprep.subr.mxu0 0.0
      %2146 = vmatpush1.msra.mxu0 0.0
      %2147 = vmatprep.subr.mxu0 0.0
      %2148 = vmatpush1.msra.mxu0 0.0
      %2149 = vmatprep.subr.mxu0 0.0
      %2150 = vmatpush1.msra.mxu0 0.0
      %2151 = vmatprep.subr.mxu0 0.0
      %2152 = vmatpush1.msra.mxu0 0.0
      %2153 = vmatprep.subr.mxu0 0.0
      %2154 = vmatpush1.msra.mxu0 0.0
      %2155 = vmatprep.subr.mxu0 0.0
      %2156 = vmatpush1.msra.mxu0 0.0
      %2157 = vmatprep.subr.mxu0 0.0
      %2158 = vmatpush1.msra.mxu0 0.0
      %2159 = vmatprep.subr.mxu0 0.0
      %2160 = vmatpush1.msra.mxu0 0.0
      %2161 = vmatprep.subr.mxu0 0.0
      %2162 = vmatpush1.msra.mxu0 0.0
      %2163 = vmatprep.subr.mxu0 0.0
      %2164 = vmatpush1.msra.mxu0 0.0
      %2165 = vmatprep.subr.mxu0 0.0
      %2166 = vmatpush1.msra.mxu0 0.0
      %2167 = vmatprep.subr.mxu0 0.0
      %2168 = vmatpush1.msra.mxu0 0.0
      %2169 = vmatprep.subr.mxu0 0.0
      %2170 = vmatpush1.msra.mxu0 0.0
      %2171 = vmatprep.subr.mxu0 0.0
      %2172 = vmatpush1.msra.mxu0 0.0
      %2173 = vmatprep.subr.mxu0 0.0
      %2174 = vmatpush1.msra.mxu0 0.0
      %2175 = vmatprep.subr.mxu0 0.0
      %2176 = vmatpush1.msra.mxu0 0.0
      %2177 = vmatprep.subr.mxu0 0.0
      %2178 = vmatpush1.msra.mxu0 0.0
      %2179 = vmatprep.subr.mxu0 0.0
      %2180 = vmatpush1.msra.mxu0 0.0
      %2181 = vmatprep.subr.mxu0 0.0
      %2182 = vmatpush1.msra.mxu0 0.0
      %2183 = vmatprep.subr.mxu0 0.0
      %2184 = vmatpush1.msra.mxu0 0.0
      %2185 = vmatprep.subr.mxu0 0.0
      %2186 = vmatpush1.msra.mxu0 0.0
      %2187 = vmatprep.subr.mxu0 0.0
      %2188 = vmatpush1.msra.mxu0 0.0
      %2189 = vmatprep.subr.mxu0 0.0
      %2190 = vmatpush1.msra.mxu0 0.0
      %2191 = vmatprep.subr.mxu0 0.0
      %2192 = vmatpush1.msra.mxu0 0.0
      %2193 = vmatprep.mubr.f32.mxu0 0.0
      %2194 = vmatmul.mubr.f32.gmra.mrb[0].mxu0 %v521
      %v2195 = vpop.f32.mrb[0].mxu0
      %v2196 = vadd.f32 0.0, %v2195
      %v2197 = vpop.f32.mrb[0].mxu0
      %2198 = vmatprep.mubr.f32.mxu0 0.0
      %2199 = vmatmul.mubr.f32.gmra.mrb[0].mxu0 %v524
      %v2200 = vpop.f32.mrb[0].mxu0
      %v2201 = vadd.f32 0.0, %v2200
      %v2202 = vpop.f32.mrb[0].mxu0
      %2203 = vmatprep.mubr.f32.mxu0 0.0
      %2204 = vmatmul.mubr.f32.gmra.mrb[0].mxu0 %v527
      %v2205 = vpop.f32.mrb[0].mxu0
      %v2206 = vadd.f32 0.0, %v2205
      %v2207 = vpop.f32.mrb[0].mxu0
      %2208 = vmatprep.mubr.f32.mxu0 0.0
      %2209 = vmatmul.mubr.f32.gmra.mrb[0].mxu0 %v530
      %v2210 = vpop.f32.mrb[0].mxu0
      %v2211 = vadd.f32 0.0, %v2210
      %v2212 = vpop.f32.mrb[0].mxu0
      %2213 = vdwg.mxu0
      %2214 = vmatprep.subr.mxu0 0.0
      %2215 = vmatpush1.msra.mxu0 %v1949
      %2216 = vmatprep.subr.mxu0 0.0
      %2217 = vmatpush1.msra.mxu0 %v1950
      %2218 = vmatprep.subr.mxu0 0.0
      %2219 = vmatpush1.msra.mxu0 0.0
      %2220 = vmatprep.subr.mxu0 0.0
      %2221 = vmatpush1.msra.mxu0 0.0
      %2222 = vmatprep.subr.mxu0 0.0
      %2223 = vmatpush1.msra.mxu0 0.0
      %2224 = vmatprep.subr.mxu0 0.0
      %2225 = vmatpush1.msra.mxu0 0.0
      %2226 = vmatprep.subr.mxu0 0.0
      %2227 = vmatpush1.msra.mxu0 0.0
      %2228 = vmatprep.subr.mxu0 0.0
      %2229 = vmatpush1.msra.mxu0 0.0
      %2230 = vmatprep.subr.mxu0 0.0
      %2231 = vmatpush1.msra.mxu0 0.0
      %2232 = vmatprep.subr.mxu0 0.0
      %2233 = vmatpush1.msra.mxu0 0.0
      %2234 = vmatprep.subr.mxu0 0.0
      %2235 = vmatpush1.msra.mxu0 0.0
      %2236 = vmatprep.subr.mxu0 0.0
      %2237 = vmatpush1.msra.mxu0 0.0
      %2238 = vmatprep.subr.mxu0 0.0
      %2239 = vmatpush1.msra.mxu0 0.0
      %2240 = vmatprep.subr.mxu0 0.0
      %2241 = vmatpush1.msra.mxu0 0.0
      %2242 = vmatprep.subr.mxu0 0.0
      %2243 = vmatpush1.msra.mxu0 0.0
      %2244 = vmatprep.subr.mxu0 0.0
      %2245 = vmatpush1.msra.mxu0 0.0
      %2246 = vmatprep.subr.mxu0 0.0
      %2247 = vmatpush1.msra.mxu0 0.0
      %2248 = vmatprep.subr.mxu0 0.0
      %2249 = vmatpush1.msra.mxu0 0.0
      %2250 = vmatprep.subr.mxu0 0.0
      %2251 = vmatpush1.msra.mxu0 0.0
      %2252 = vmatprep.subr.mxu0 0.0
      %2253 = vmatpush1.msra.mxu0 0.0
      %2254 = vmatprep.subr.mxu0 0.0
      %2255 = vmatpush1.msra.mxu0 0.0
      %2256 = vmatprep.subr.mxu0 0.0
      %2257 = vmatpush1.msra.mxu0 0.0
      %2258 = vmatprep.subr.mxu0 0.0
      %2259 = vmatpush1.msra.mxu0 0.0
      %2260 = vmatprep.subr.mxu0 0.0
      %2261 = vmatpush1.msra.mxu0 0.0
      %2262 = vmatprep.subr.mxu0 0.0
      %2263 = vmatpush1.msra.mxu0 0.0
      %2264 = vmatprep.subr.mxu0 0.0
      %2265 = vmatpush1.msra.mxu0 0.0
      %2266 = vmatprep.subr.mxu0 0.0
      %2267 = vmatpush1.msra.mxu0 0.0
      %2268 = vmatprep.subr.mxu0 0.0
      %2269 = vmatpush1.msra.mxu0 0.0
      %2270 = vmatprep.subr.mxu0 0.0
      %2271 = vmatpush1.msra.mxu0 0.0
      %2272 = vmatprep.subr.mxu0 0.0
      %2273 = vmatpush1.msra.mxu0 0.0
      %2274 = vmatprep.subr.mxu0 0.0
      %2275 = vmatpush1.msra.mxu0 0.0
      %2276 = vmatprep.subr.mxu0 0.0
      %2277 = vmatpush1.msra.mxu0 0.0
      %2278 = vmatprep.mubr.f32.mxu0 0.0
      %2279 = vmatmul.mubr.f32.gmra.mrb[0].mxu0 %v618
      %v2280 = vpop.f32.mrb[0].mxu0
      %v2281 = vadd.f32 0.0, %v2280
      %v2282 = vpop.f32.mrb[0].mxu0
      %2283 = vmatprep.mubr.f32.mxu0 0.0
      %2284 = vmatmul.mubr.f32.gmra.mrb[0].mxu0 %v621
      %v2285 = vpop.f32.mrb[0].mxu0
      %v2286 = vadd.f32 0.0, %v2285
      %v2287 = vpop.f32.mrb[0].mxu0
      %2288 = vmatprep.mubr.f32.mxu0 0.0
      %2289 = vmatmul.mubr.f32.gmra.mrb[0].mxu0 %v624
      %v2290 = vpop.f32.mrb[0].mxu0
      %v2291 = vadd.f32 0.0, %v2290
      %v2292 = vpop.f32.mrb[0].mxu0
      %2293 = vmatprep.mubr.f32.mxu0 0.0
      %2294 = vmatmul.mubr.f32.gmra.mrb[0].mxu0 %v627
      %v2295 = vpop.f32.mrb[0].mxu0
      %v2296 = vadd.f32 0.0, %v2295
      %v2297 = vpop.f32.mrb[0].mxu0
      %2298 = vdwg.mxu0
      %2299 = vmatprep.subr.mxu0 0.0
      %2300 = vmatpush1.msra.mxu0 %v1951
      %2301 = vmatprep.subr.mxu0 0.0
      %2302 = vmatpush1.msra.mxu0 %v1952
      %2303 = vmatprep.subr.mxu0 0.0
      %2304 = vmatpush1.msra.mxu0 0.0
      %2305 = vmatprep.subr.mxu0 0.0
      %2306 = vmatpush1.msra.mxu0 0.0
      %2307 = vmatprep.subr.mxu0 0.0
      %2308 = vmatpush1.msra.mxu0 0.0
      %2309 = vmatprep.subr.mxu0 0.0
      %2310 = vmatpush1.msra.mxu0 0.0
      %2311 = vmatprep.subr.mxu0 0.0
      %2312 = vmatpush1.msra.mxu0 0.0
      %2313 = vmatprep.subr.mxu0 0.0
      %2314 = vmatpush1.msra.mxu0 0.0
      %2315 = vmatprep.subr.mxu0 0.0
      %2316 = vmatpush1.msra.mxu0 0.0
      %2317 = vmatprep.subr.mxu0 0.0
      %2318 = vmatpush1.msra.mxu0 0.0
      %2319 = vmatprep.subr.mxu0 0.0
      %2320 = vmatpush1.msra.mxu0 0.0
      %2321 = vmatprep.subr.mxu0 0.0
      %2322 = vmatpush1.msra.mxu0 0.0
      %2323 = vmatprep.subr.mxu0 0.0
      %2324 = vmatpush1.msra.mxu0 0.0
      %2325 = vmatprep.subr.mxu0 0.0
      %2326 = vmatpush1.msra.mxu0 0.0
      %2327 = vmatprep.subr.mxu0 0.0
      %2328 = vmatpush1.msra.mxu0 0.0
      %2329 = vmatprep.subr.mxu0 0.0
      %2330 = vmatpush1.msra.mxu0 0.0
      %2331 = vmatprep.subr.mxu0 0.0
      %2332 = vmatpush1.msra.mxu0 0.0
      %2333 = vmatprep.subr.mxu0 0.0
      %2334 = vmatpush1.msra.mxu0 0.0
      %2335 = vmatprep.subr.mxu0 0.0
      %2336 = vmatpush1.msra.mxu0 0.0
      %2337 = vmatprep.subr.mxu0 0.0
      %2338 = vmatpush1.msra.mxu0 0.0
      %2339 = vmatprep.subr.mxu0 0.0
      %2340 = vmatpush1.msra.mxu0 0.0
      %2341 = vmatprep.subr.mxu0 0.0
      %2342 = vmatpush1.msra.mxu0 0.0
      %2343 = vmatprep.subr.mxu0 0.0
      %2344 = vmatpush1.msra.mxu0 0.0
      %2345 = vmatprep.subr.mxu0 0.0
      %2346 = vmatpush1.msra.mxu0 0.0
      %2347 = vmatprep.subr.mxu0 0.0
      %2348 = vmatpush1.msra.mxu0 0.0
      %2349 = vmatprep.subr.mxu0 0.0
      %2350 = vmatpush1.msra.mxu0 0.0
      %2351 = vmatprep.subr.mxu0 0.0
      %2352 = vmatpush1.msra.mxu0 0.0
      %2353 = vmatprep.subr.mxu0 0.0
      %2354 = vmatpush1.msra.mxu0 0.0
      %2355 = vmatprep.subr.mxu0 0.0
      %2356 = vmatpush1.msra.mxu0 0.0
      %2357 = vmatprep.subr.mxu0 0.0
      %2358 = vmatpush1.msra.mxu0 0.0
      %2359 = vmatprep.subr.mxu0 0.0
      %2360 = vmatpush1.msra.mxu0 0.0
      %2361 = vmatprep.subr.mxu0 0.0
      %2362 = vmatpush1.msra.mxu0 0.0
      %2363 = vmatprep.mubr.f32.mxu0 0.0
      %2364 = vmatmul.mubr.f32.gmra.mrb[0].mxu0 %v715
      %v2365 = vpop.f32.mrb[0].mxu0
      %v2366 = vadd.f32 0.0, %v2365
      %v2367 = vpop.f32.mrb[0].mxu0
      %2368 = vmatprep.mubr.f32.mxu0 0.0
      %2369 = vmatmul.mubr.f32.gmra.mrb[0].mxu0 %v718
      %v2370 = vpop.f32.mrb[0].mxu0
      %v2371 = vadd.f32 0.0, %v2370
      %v2372 = vpop.f32.mrb[0].mxu0
      %2373 = vmatprep.mubr.f32.mxu0 0.0
      %2374 = vmatmul.mubr.f32.gmra.mrb[0].mxu0 %v721
      %v2375 = vpop.f32.mrb[0].mxu0
      %v2376 = vadd.f32 0.0, %v2375
      %v2377 = vpop.f32.mrb[0].mxu0
      %2378 = vmatprep.mubr.f32.mxu0 0.0
      %2379 = vmatmul.mubr.f32.gmra.mrb[0].mxu0 %v724
      %v2380 = vpop.f32.mrb[0].mxu0
      %v2381 = vadd.f32 0.0, %v2380
      %v2382 = vpop.f32.mrb[0].mxu0
      %2383 = vdwg.mxu0
      %2384 = vmatprep.subr.mxu0 0.0
      %2385 = vmatpush1.msra.mxu0 %v1953
      %2386 = vmatprep.subr.mxu0 0.0
      %2387 = vmatpush1.msra.mxu0 %v1954
      %2388 = vmatprep.subr.mxu0 0.0
      %2389 = vmatpush1.msra.mxu0 0.0
      %2390 = vmatprep.subr.mxu0 0.0
      %2391 = vmatpush1.msra.mxu0 0.0
      %2392 = vmatprep.subr.mxu0 0.0
      %2393 = vmatpush1.msra.mxu0 0.0
      %2394 = vmatprep.subr.mxu0 0.0
      %2395 = vmatpush1.msra.mxu0 0.0
      %2396 = vmatprep.subr.mxu0 0.0
      %2397 = vmatpush1.msra.mxu0 0.0
      %2398 = vmatprep.subr.mxu0 0.0
      %2399 = vmatpush1.msra.mxu0 0.0
      %2400 = vmatprep.subr.mxu0 0.0
      %2401 = vmatpush1.msra.mxu0 0.0
      %2402 = vmatprep.subr.mxu0 0.0
      %2403 = vmatpush1.msra.mxu0 0.0
      %2404 = vmatprep.subr.mxu0 0.0
      %2405 = vmatpush1.msra.mxu0 0.0
      %2406 = vmatprep.subr.mxu0 0.0
      %2407 = vmatpush1.msra.mxu0 0.0
      %2408 = vmatprep.subr.mxu0 0.0
      %2409 = vmatpush1.msra.mxu0 0.0
      %2410 = vmatprep.subr.mxu0 0.0
      %2411 = vmatpush1.msra.mxu0 0.0
      %2412 = vmatprep.subr.mxu0 0.0
      %2413 = vmatpush1.msra.mxu0 0.0
      %2414 = vmatprep.subr.mxu0 0.0
      %2415 = vmatpush1.msra.mxu0 0.0
      %2416 = vmatprep.subr.mxu0 0.0
      %2417 = vmatpush1.msra.mxu0 0.0
      %2418 = vmatprep.subr.mxu0 0.0
      %2419 = vmatpush1.msra.mxu0 0.0
      %2420 = vmatprep.subr.mxu0 0.0
      %2421 = vmatpush1.msra.mxu0 0.0
      %2422 = vmatprep.subr.mxu0 0.0
      %2423 = vmatpush1.msra.mxu0 0.0
      %2424 = vmatprep.subr.mxu0 0.0
      %2425 = vmatpush1.msra.mxu0 0.0
      %2426 = vmatprep.subr.mxu0 0.0
      %2427 = vmatpush1.msra.mxu0 0.0
      %2428 = vmatprep.subr.mxu0 0.0
      %2429 = vmatpush1.msra.mxu0 0.0
      %2430 = vmatprep.subr.mxu0 0.0
      %2431 = vmatpush1.msra.mxu0 0.0
      %2432 = vmatprep.subr.mxu0 0.0
      %2433 = vmatpush1.msra.mxu0 0.0
      %2434 = vmatprep.subr.mxu0 0.0
      %2435 = vmatpush1.msra.mxu0 0.0
      %2436 = vmatprep.subr.mxu0 0.0
      %2437 = vmatpush1.msra.mxu0 0.0
      %2438 = vmatprep.subr.mxu0 0.0
      %2439 = vmatpush1.msra.mxu0 0.0
      %2440 = vmatprep.subr.mxu0 0.0
      %2441 = vmatpush1.msra.mxu0 0.0
      %2442 = vmatprep.subr.mxu0 0.0
      %2443 = vmatpush1.msra.mxu0 0.0
      %2444 = vmatprep.subr.mxu0 0.0
      %2445 = vmatpush1.msra.mxu0 0.0
      %2446 = vmatprep.subr.mxu0 0.0
      %2447 = vmatpush1.msra.mxu0 0.0
      %2448 = vmatprep.mubr.f32.mxu0 0.0
      %2449 = vmatmul.mubr.f32.gmra.mrb[0].mxu0 %v812
      %v2450 = vpop.f32.mrb[0].mxu0
      %v2451 = vadd.f32 0.0, %v2450
      %v2452 = vpop.f32.mrb[0].mxu0
      %2453 = vmatprep.mubr.f32.mxu0 0.0
      %2454 = vmatmul.mubr.f32.gmra.mrb[0].mxu0 %v815
      %v2455 = vpop.f32.mrb[0].mxu0
      %v2456 = vadd.f32 0.0, %v2455
      %v2457 = vpop.f32.mrb[0].mxu0
      %2458 = vmatprep.mubr.f32.mxu0 0.0
      %2459 = vmatmul.mubr.f32.gmra.mrb[0].mxu0 %v818
      %v2460 = vpop.f32.mrb[0].mxu0
      %v2461 = vadd.f32 0.0, %v2460
      %v2462 = vpop.f32.mrb[0].mxu0
      %2463 = vmatprep.mubr.f32.mxu0 0.0
      %2464 = vmatmul.mubr.f32.gmra.mrb[0].mxu0 %v821
      %v2465 = vpop.f32.mrb[0].mxu0
      %v2466 = vadd.f32 0.0, %v2465
      %v2467 = vpop.f32.mrb[0].mxu0
      %2468 = vdwg.mxu0
      %2469 = vmatprep.subr.mxu0 0.0
      %2470 = vmatpush1.msra.mxu0 %v1955
      %2471 = vmatprep.subr.mxu0 0.0
      %2472 = vmatpush1.msra.mxu0 %v1956
      %2473 = vmatprep.subr.mxu0 0.0
      %2474 = vmatpush1.msra.mxu0 0.0
      %2475 = vmatprep.subr.mxu0 0.0
      %2476 = vmatpush1.msra.mxu0 0.0
      %2477 = vmatprep.subr.mxu0 0.0
      %2478 = vmatpush1.msra.mxu0 0.0
      %2479 = vmatprep.subr.mxu0 0.0
      %2480 = vmatpush1.msra.mxu0 0.0
      %2481 = vmatprep.subr.mxu0 0.0
      %2482 = vmatpush1.msra.mxu0 0.0
      %2483 = vmatprep.subr.mxu0 0.0
      %2484 = vmatpush1.msra.mxu0 0.0
      %2485 = vmatprep.subr.mxu0 0.0
      %2486 = vmatpush1.msra.mxu0 0.0
      %2487 = vmatprep.subr.mxu0 0.0
      %2488 = vmatpush1.msra.mxu0 0.0
      %2489 = vmatprep.subr.mxu0 0.0
      %2490 = vmatpush1.msra.mxu0 0.0
      %2491 = vmatprep.subr.mxu0 0.0
      %2492 = vmatpush1.msra.mxu0 0.0
      %2493 = vmatprep.subr.mxu0 0.0
      %2494 = vmatpush1.msra.mxu0 0.0
      %2495 = vmatprep.subr.mxu0 0.0
      %2496 = vmatpush1.msra.mxu0 0.0
      %2497 = vmatprep.subr.mxu0 0.0
      %2498 = vmatpush1.msra.mxu0 0.0
      %2499 = vmatprep.subr.mxu0 0.0
      %2500 = vmatpush1.msra.mxu0 0.0
      %2501 = vmatprep.subr.mxu0 0.0
      %2502 = vmatpush1.msra.mxu0 0.0
      %2503 = vmatprep.subr.mxu0 0.0
      %2504 = vmatpush1.msra.mxu0 0.0
      %2505 = vmatprep.subr.mxu0 0.0
      %2506 = vmatpush1.msra.mxu0 0.0
      %2507 = vmatprep.subr.mxu0 0.0
      %2508 = vmatpush1.msra.mxu0 0.0
      %2509 = vmatprep.subr.mxu0 0.0
      %2510 = vmatpush1.msra.mxu0 0.0
      %2511 = vmatprep.subr.mxu0 0.0
      %2512 = vmatpush1.msra.mxu0 0.0
      %2513 = vmatprep.subr.mxu0 0.0
      %2514 = vmatpush1.msra.mxu0 0.0
      %2515 = vmatprep.subr.mxu0 0.0
      %2516 = vmatpush1.msra.mxu0 0.0
      %2517 = vmatprep.subr.mxu0 0.0
      %2518 = vmatpush1.msra.mxu0 0.0
      %2519 = vmatprep.subr.mxu0 0.0
      %2520 = vmatpush1.msra.mxu0 0.0
      %2521 = vmatprep.subr.mxu0 0.0
      %2522 = vmatpush1.msra.mxu0 0.0
      %2523 = vmatprep.subr.mxu0 0.0
      %2524 = vmatpush1.msra.mxu0 0.0
      %2525 = vmatprep.subr.mxu0 0.0
      %2526 = vmatpush1.msra.mxu0 0.0
      %2527 = vmatprep.subr.mxu0 0.0
      %2528 = vmatpush1.msra.mxu0 0.0
      %2529 = vmatprep.subr.mxu0 0.0
      %2530 = vmatpush1.msra.mxu0 0.0
      %2531 = vmatprep.subr.mxu0 0.0
      %2532 = vmatpush1.msra.mxu0 0.0
      %2533 = vmatprep.mubr.f32.mxu0 0.0
      %2534 = vmatmul.mubr.f32.gmra.mrb[0].mxu0 %v909
      %v2535 = vpop.f32.mrb[0].mxu0
      %v2536 = vadd.f32 0.0, %v2535
      %v2537 = vpop.f32.mrb[0].mxu0
      %2538 = vmatprep.mubr.f32.mxu0 0.0
      %2539 = vmatmul.mubr.f32.gmra.mrb[0].mxu0 %v912
      %v2540 = vpop.f32.mrb[0].mxu0
      %v2541 = vadd.f32 0.0, %v2540
      %v2542 = vpop.f32.mrb[0].mxu0
      %2543 = vmatprep.mubr.f32.mxu0 0.0
      %2544 = vmatmul.mubr.f32.gmra.mrb[0].mxu0 %v915
      %v2545 = vpop.f32.mrb[0].mxu0
      %v2546 = vadd.f32 0.0, %v2545
      %v2547 = vpop.f32.mrb[0].mxu0
      %2548 = vmatprep.mubr.f32.mxu0 0.0
      %2549 = vmatmul.mubr.f32.gmra.mrb[0].mxu0 %v918
      %v2550 = vpop.f32.mrb[0].mxu0
      %v2551 = vadd.f32 0.0, %v2550
      %v2552 = vpop.f32.mrb[0].mxu0
      %2553 = vdwg.mxu0
      %2554 = vmatprep.subr.mxu0 0.0
      %2555 = vmatpush1.msra.mxu0 %v1957
      %2556 = vmatprep.subr.mxu0 0.0
      %2557 = vmatpush1.msra.mxu0 %v1958
      %2558 = vmatprep.subr.mxu0 0.0
      %2559 = vmatpush1.msra.mxu0 0.0
      %2560 = vmatprep.subr.mxu0 0.0
      %2561 = vmatpush1.msra.mxu0 0.0
      %2562 = vmatprep.subr.mxu0 0.0
      %2563 = vmatpush1.msra.mxu0 0.0
      %2564 = vmatprep.subr.mxu0 0.0
      %2565 = vmatpush1.msra.mxu0 0.0
      %2566 = vmatprep.subr.mxu0 0.0
      %2567 = vmatpush1.msra.mxu0 0.0
      %2568 = vmatprep.subr.mxu0 0.0
      %2569 = vmatpush1.msra.mxu0 0.0
      %2570 = vmatprep.subr.mxu0 0.0
      %2571 = vmatpush1.msra.mxu0 0.0
      %2572 = vmatprep.subr.mxu0 0.0
      %2573 = vmatpush1.msra.mxu0 0.0
      %2574 = vmatprep.subr.mxu0 0.0
      %2575 = vmatpush1.msra.mxu0 0.0
      %2576 = vmatprep.subr.mxu0 0.0
      %2577 = vmatpush1.msra.mxu0 0.0
      %2578 = vmatprep.subr.mxu0 0.0
      %2579 = vmatpush1.msra.mxu0 0.0
      %2580 = vmatprep.subr.mxu0 0.0
      %2581 = vmatpush1.msra.mxu0 0.0
      %2582 = vmatprep.subr.mxu0 0.0
      %2583 = vmatpush1.msra.mxu0 0.0
      %2584 = vmatprep.subr.mxu0 0.0
      %2585 = vmatpush1.msra.mxu0 0.0
      %2586 = vmatprep.subr.mxu0 0.0
      %2587 = vmatpush1.msra.mxu0 0.0
      %2588 = vmatprep.subr.mxu0 0.0
      %2589 = vmatpush1.msra.mxu0 0.0
      %2590 = vmatprep.subr.mxu0 0.0
      %2591 = vmatpush1.msra.mxu0 0.0
      %2592 = vmatprep.subr.mxu0 0.0
      %2593 = vmatpush1.msra.mxu0 0.0
      %2594 = vmatprep.subr.mxu0 0.0
      %2595 = vmatpush1.msra.mxu0 0.0
      %2596 = vmatprep.subr.mxu0 0.0
      %2597 = vmatpush1.msra.mxu0 0.0
      %2598 = vmatprep.subr.mxu0 0.0
      %2599 = vmatpush1.msra.mxu0 0.0
      %2600 = vmatprep.subr.mxu0 0.0
      %2601 = vmatpush1.msra.mxu0 0.0
      %2602 = vmatprep.subr.mxu0 0.0
      %2603 = vmatpush1.msra.mxu0 0.0
      %2604 = vmatprep.subr.mxu0 0.0
      %2605 = vmatpush1.msra.mxu0 0.0
      %2606 = vmatprep.subr.mxu0 0.0
      %2607 = vmatpush1.msra.mxu0 0.0
      %2608 = vmatprep.subr.mxu0 0.0
      %2609 = vmatpush1.msra.mxu0 0.0
      %2610 = vmatprep.subr.mxu0 0.0
      %2611 = vmatpush1.msra.mxu0 0.0
      %2612 = vmatprep.subr.mxu0 0.0
      %2613 = vmatpush1.msra.mxu0 0.0
      %2614 = vmatprep.subr.mxu0 0.0
      %2615 = vmatpush1.msra.mxu0 0.0
      %2616 = vmatprep.subr.mxu0 0.0
      %2617 = vmatpush1.msra.mxu0 0.0
      %2618 = vmatprep.mubr.f32.mxu0 0.0
      %2619 = vmatmul.mubr.f32.gmra.mrb[0].mxu0 %v1006
      %v2620 = vpop.f32.mrb[0].mxu0
      %v2621 = vadd.f32 0.0, %v2620
      %v2622 = vpop.f32.mrb[0].mxu0
      %2623 = vmatprep.mubr.f32.mxu0 0.0
      %2624 = vmatmul.mubr.f32.gmra.mrb[0].mxu0 %v1009
      %v2625 = vpop.f32.mrb[0].mxu0
      %v2626 = vadd.f32 0.0, %v2625
      %v2627 = vpop.f32.mrb[0].mxu0
      %2628 = vmatprep.mubr.f32.mxu0 0.0
      %2629 = vmatmul.mubr.f32.gmra.mrb[0].mxu0 %v1012
      %v2630 = vpop.f32.mrb[0].mxu0
      %v2631 = vadd.f32 0.0, %v2630
      %v2632 = vpop.f32.mrb[0].mxu0
      %2633 = vmatprep.mubr.f32.mxu0 0.0
      %2634 = vmatmul.mubr.f32.gmra.mrb[0].mxu0 %v1015
      %v2635 = vpop.f32.mrb[0].mxu0
      %v2636 = vadd.f32 0.0, %v2635
      %v2637 = vpop.f32.mrb[0].mxu0
      %2638 = vdwg.mxu0
      %2639 = vst.msk [vmem:[#allocation2 + $0x60] sm:$0xff] %vm277, %v2026
      %2640 = vst.msk [vmem:[#allocation2 + $0x68] sm:$0xff] %vm277, %v2031
      %2641 = vst.msk [vmem:[#allocation2 + $0x70] sm:$0xff] %vm277, %v2036
      %2642 = vst.msk [vmem:[#allocation2 + $0x78] sm:$0xff] %vm277, %v2041
      %2643 = vst.msk [vmem:[#allocation2 + $0x140] sm:$0xff] %vm277, %v2111
      %2644 = vst.msk [vmem:[#allocation2 + $0x148] sm:$0xff] %vm277, %v2116
      %2645 = vst.msk [vmem:[#allocation2 + $0x150] sm:$0xff] %vm277, %v2121
      %2646 = vst.msk [vmem:[#allocation2 + $0x158] sm:$0xff] %vm277, %v2126
      %2647 = vst.msk [vmem:[#allocation2 + $0x220] sm:$0xff] %vm277, %v2196
      %2648 = vst.msk [vmem:[#allocation2 + $0x228] sm:$0xff] %vm277, %v2201
      %2649 = vst.msk [vmem:[#allocation2 + $0x230] sm:$0xff] %vm277, %v2206
      %2650 = vst.msk [vmem:[#allocation2 + $0x238] sm:$0xff] %vm277, %v2211
      %2651 = vst.msk [vmem:[#allocation2 + $0x300] sm:$0xff] %vm277, %v2281
      %2652 = vst.msk [vmem:[#allocation2 + $0x308] sm:$0xff] %vm277, %v2286
      %2653 = vst.msk [vmem:[#allocation2 + $0x310] sm:$0xff] %vm277, %v2291
      %2654 = vst.msk [vmem:[#allocation2 + $0x318] sm:$0xff] %vm277, %v2296
      %2655 = vst.msk [vmem:[#allocation2 + $0x3e0] sm:$0xff] %vm277, %v2366
      %2656 = vst.msk [vmem:[#allocation2 + $0x3e8] sm:$0xff] %vm277, %v2371
      %2657 = vst.msk [vmem:[#allocation2 + $0x3f0] sm:$0xff] %vm277, %v2376
      %2658 = vst.msk [vmem:[#allocation2 + $0x3f8] sm:$0xff] %vm277, %v2381
      %2659 = vst.msk [vmem:[#allocation2 + $0x4c0] sm:$0xff] %vm277, %v2451
      %2660 = vst.msk [vmem:[#allocation2 + $0x4c8] sm:$0xff] %vm277, %v2456
      %2661 = vst.msk [vmem:[#allocation2 + $0x4d0] sm:$0xff] %vm277, %v2461
      %2662 = vst.msk [vmem:[#allocation2 + $0x4d8] sm:$0xff] %vm277, %v2466
      %2663 = vst.msk [vmem:[#allocation2 + $0x5a0] sm:$0xff] %vm277, %v2536
      %2664 = vst.msk [vmem:[#allocation2 + $0x5a8] sm:$0xff] %vm277, %v2541
      %2665 = vst.msk [vmem:[#allocation2 + $0x5b0] sm:$0xff] %vm277, %v2546
      %2666 = vst.msk [vmem:[#allocation2 + $0x5b8] sm:$0xff] %vm277, %v2551
      %2667 = vst.msk [vmem:[#allocation2 + $0x680] sm:$0xff] %vm277, %v2621
      %2668 = vst.msk [vmem:[#allocation2 + $0x688] sm:$0xff] %vm277, %v2626
      %2669 = vst.msk [vmem:[#allocation2 + $0x690] sm:$0xff] %vm277, %v2631
      %2670 = vst.msk [vmem:[#allocation2 + $0x698] sm:$0xff] %vm277, %v2636
      %v2672 = vsel %vm277, %v2026, 0
      %v2675 = vsel %vm277, %v2031, 0
      %v2678 = vsel %vm277, %v2036, 0
      %v2681 = vsel %vm277, %v2041, 0
      %2683 = vmatprep.subr.mxu0 0.0
      %2684 = vmatpush1.msra.mxu0 %v1943
      %2685 = vmatprep.subr.mxu0 0.0
      %2686 = vmatpush1.msra.mxu0 %v1944
      %2687 = vmatprep.subr.mxu0 0.0
      %2688 = vmatpush1.msra.mxu0 0.0
      %2689 = vmatprep.subr.mxu0 0.0
      %2690 = vmatpush1.msra.mxu0 0.0
      %2691 = vmatprep.subr.mxu0 0.0
      %2692 = vmatpush1.msra.mxu0 0.0
      %2693 = vmatprep.subr.mxu0 0.0
      %2694 = vmatpush1.msra.mxu0 0.0
      %2695 = vmatprep.subr.mxu0 0.0
      %2696 = vmatpush1.msra.mxu0 0.0
      %2697 = vmatprep.subr.mxu0 0.0
      %2698 = vmatpush1.msra.mxu0 0.0
      %2699 = vmatprep.subr.mxu0 0.0
      %2700 = vmatpush1.msra.mxu0 0.0
      %2701 = vmatprep.subr.mxu0 0.0
      %2702 = vmatpush1.msra.mxu0 0.0
      %2703 = vmatprep.subr.mxu0 0.0
      %2704 = vmatpush1.msra.mxu0 0.0
      %2705 = vmatprep.subr.mxu0 0.0
      %2706 = vmatpush1.msra.mxu0 0.0
      %2707 = vmatprep.subr.mxu0 0.0
      %2708 = vmatpush1.msra.mxu0 0.0
      %2709 = vmatprep.subr.mxu0 0.0
      %2710 = vmatpush1.msra.mxu0 0.0
      %2711 = vmatprep.subr.mxu0 0.0
      %2712 = vmatpush1.msra.mxu0 0.0
      %2713 = vmatprep.subr.mxu0 0.0
      %2714 = vmatpush1.msra.mxu0 0.0
      %2715 = vmatprep.subr.mxu0 0.0
      %2716 = vmatpush1.msra.mxu0 0.0
      %2717 = vmatprep.subr.mxu0 0.0
      %2718 = vmatpush1.msra.mxu0 0.0
      %2719 = vmatprep.subr.mxu0 0.0
      %2720 = vmatpush1.msra.mxu0 0.0
      %2721 = vmatprep.subr.mxu0 0.0
      %2722 = vmatpush1.msra.mxu0 0.0
      %2723 = vmatprep.subr.mxu0 0.0
      %2724 = vmatpush1.msra.mxu0 0.0
      %2725 = vmatprep.subr.mxu0 0.0
      %2726 = vmatpush1.msra.mxu0 0.0
      %2727 = vmatprep.subr.mxu0 0.0
      %2728 = vmatpush1.msra.mxu0 0.0
      %2729 = vmatprep.subr.mxu0 0.0
      %2730 = vmatpush1.msra.mxu0 0.0
      %2731 = vmatprep.subr.mxu0 0.0
      %2732 = vmatpush1.msra.mxu0 0.0
      %2733 = vmatprep.subr.mxu0 0.0
      %2734 = vmatpush1.msra.mxu0 0.0
      %2735 = vmatprep.subr.mxu0 0.0
      %2736 = vmatpush1.msra.mxu0 0.0
      %2737 = vmatprep.subr.mxu0 0.0
      %2738 = vmatpush1.msra.mxu0 0.0
      %2739 = vmatprep.subr.mxu0 0.0
      %2740 = vmatpush1.msra.mxu0 0.0
      %2741 = vmatprep.subr.mxu0 0.0
      %2742 = vmatpush1.msra.mxu0 0.0
      %2743 = vmatprep.subr.mxu0 0.0
      %2744 = vmatpush1.msra.mxu0 0.0
      %2745 = vmatprep.subr.mxu0 0.0
      %2746 = vmatpush1.msra.mxu0 0.0
      %2747 = vmatprep.mubr.f32.mxu0 0.0
      %2748 = vmatmul.mubr.f32.gmra.mrb[0].mxu0 %v2672
      %v2749 = vpop.f32.mrb[0].mxu0
      %v2750 = vadd.f32 0.0, %v2749
      %v2751 = vpop.f32.mrb[0].mxu0
      %2752 = vmatprep.mubr.f32.mxu0 0.0
      %2753 = vmatmul.mubr.f32.gmra.mrb[0].mxu0 %v2675
      %v2754 = vpop.f32.mrb[0].mxu0
      %v2755 = vadd.f32 0.0, %v2754
      %v2756 = vpop.f32.mrb[0].mxu0
      %2757 = vmatprep.mubr.f32.mxu0 0.0
      %2758 = vmatmul.mubr.f32.gmra.mrb[0].mxu0 %v2678
      %v2759 = vpop.f32.mrb[0].mxu0
      %v2760 = vadd.f32 0.0, %v2759
      %v2761 = vpop.f32.mrb[0].mxu0
      %2762 = vmatprep.mubr.f32.mxu0 0.0
      %2763 = vmatmul.mubr.f32.gmra.mrb[0].mxu0 %v2681
      %v2764 = vpop.f32.mrb[0].mxu0
      %v2765 = vadd.f32 0.0, %v2764
      %v2766 = vpop.f32.mrb[0].mxu0
      %2767 = vdwg.mxu0
      %v2769 = vsel %vm277, %v2111, 0
      %v2772 = vsel %vm277, %v2116, 0
      %v2775 = vsel %vm277, %v2121, 0
      %v2778 = vsel %vm277, %v2126, 0
      %2780 = vmatprep.subr.mxu0 0.0
      %2781 = vmatpush1.msra.mxu0 %v1945
      %2782 = vmatprep.subr.mxu0 0.0
      %2783 = vmatpush1.msra.mxu0 %v1946
      %2784 = vmatprep.subr.mxu0 0.0
      %2785 = vmatpush1.msra.mxu0 0.0
      %2786 = vmatprep.subr.mxu0 0.0
      %2787 = vmatpush1.msra.mxu0 0.0
      %2788 = vmatprep.subr.mxu0 0.0
      %2789 = vmatpush1.msra.mxu0 0.0
      %2790 = vmatprep.subr.mxu0 0.0
      %2791 = vmatpush1.msra.mxu0 0.0
      %2792 = vmatprep.subr.mxu0 0.0
      %2793 = vmatpush1.msra.mxu0 0.0
      %2794 = vmatprep.subr.mxu0 0.0
      %2795 = vmatpush1.msra.mxu0 0.0
      %2796 = vmatprep.subr.mxu0 0.0
      %2797 = vmatpush1.msra.mxu0 0.0
      %2798 = vmatprep.subr.mxu0 0.0
      %2799 = vmatpush1.msra.mxu0 0.0
      %2800 = vmatprep.subr.mxu0 0.0
      %2801 = vmatpush1.msra.mxu0 0.0
      %2802 = vmatprep.subr.mxu0 0.0
      %2803 = vmatpush1.msra.mxu0 0.0
      %2804 = vmatprep.subr.mxu0 0.0
      %2805 = vmatpush1.msra.mxu0 0.0
      %2806 = vmatprep.subr.mxu0 0.0
      %2807 = vmatpush1.msra.mxu0 0.0
      %2808 = vmatprep.subr.mxu0 0.0
      %2809 = vmatpush1.msra.mxu0 0.0
      %2810 = vmatprep.subr.mxu0 0.0
      %2811 = vmatpush1.msra.mxu0 0.0
      %2812 = vmatprep.subr.mxu0 0.0
      %2813 = vmatpush1.msra.mxu0 0.0
      %2814 = vmatprep.subr.mxu0 0.0
      %2815 = vmatpush1.msra.mxu0 0.0
      %2816 = vmatprep.subr.mxu0 0.0
      %2817 = vmatpush1.msra.mxu0 0.0
      %2818 = vmatprep.subr.mxu0 0.0
      %2819 = vmatpush1.msra.mxu0 0.0
      %2820 = vmatprep.subr.mxu0 0.0
      %2821 = vmatpush1.msra.mxu0 0.0
      %2822 = vmatprep.subr.mxu0 0.0
      %2823 = vmatpush1.msra.mxu0 0.0
      %2824 = vmatprep.subr.mxu0 0.0
      %2825 = vmatpush1.msra.mxu0 0.0
      %2826 = vmatprep.subr.mxu0 0.0
      %2827 = vmatpush1.msra.mxu0 0.0
      %2828 = vmatprep.subr.mxu0 0.0
      %2829 = vmatpush1.msra.mxu0 0.0
      %2830 = vmatprep.subr.mxu0 0.0
      %2831 = vmatpush1.msra.mxu0 0.0
      %2832 = vmatprep.subr.mxu0 0.0
      %2833 = vmatpush1.msra.mxu0 0.0
      %2834 = vmatprep.subr.mxu0 0.0
      %2835 = vmatpush1.msra.mxu0 0.0
      %2836 = vmatprep.subr.mxu0 0.0
      %2837 = vmatpush1.msra.mxu0 0.0
      %2838 = vmatprep.subr.mxu0 0.0
      %2839 = vmatpush1.msra.mxu0 0.0
      %2840 = vmatprep.subr.mxu0 0.0
      %2841 = vmatpush1.msra.mxu0 0.0
      %2842 = vmatprep.subr.mxu0 0.0
      %2843 = vmatpush1.msra.mxu0 0.0
      %2844 = vmatprep.mubr.f32.mxu0 0.0
      %2845 = vmatmul.mubr.f32.gmra.mrb[0].mxu0 %v2769
      %v2846 = vpop.f32.mrb[0].mxu0
      %v2847 = vadd.f32 0.0, %v2846
      %v2848 = vpop.f32.mrb[0].mxu0
      %2849 = vmatprep.mubr.f32.mxu0 0.0
      %2850 = vmatmul.mubr.f32.gmra.mrb[0].mxu0 %v2772
      %v2851 = vpop.f32.mrb[0].mxu0
      %v2852 = vadd.f32 0.0, %v2851
      %v2853 = vpop.f32.mrb[0].mxu0
      %2854 = vmatprep.mubr.f32.mxu0 0.0
      %2855 = vmatmul.mubr.f32.gmra.mrb[0].mxu0 %v2775
      %v2856 = vpop.f32.mrb[0].mxu0
      %v2857 = vadd.f32 0.0, %v2856
      %v2858 = vpop.f32.mrb[0].mxu0
      %2859 = vmatprep.mubr.f32.mxu0 0.0
      %2860 = vmatmul.mubr.f32.gmra.mrb[0].mxu0 %v2778
      %v2861 = vpop.f32.mrb[0].mxu0
      %v2862 = vadd.f32 0.0, %v2861
      %v2863 = vpop.f32.mrb[0].mxu0
      %2864 = vdwg.mxu0
      %v2866 = vsel %vm277, %v2196, 0
      %v2869 = vsel %vm277, %v2201, 0
      %v2872 = vsel %vm277, %v2206, 0
      %v2875 = vsel %vm277, %v2211, 0
      %2877 = vmatprep.subr.mxu0 0.0
      %2878 = vmatpush1.msra.mxu0 %v1947
      %2879 = vmatprep.subr.mxu0 0.0
      %2880 = vmatpush1.msra.mxu0 %v1948
      %2881 = vmatprep.subr.mxu0 0.0
      %2882 = vmatpush1.msra.mxu0 0.0
      %2883 = vmatprep.subr.mxu0 0.0
      %2884 = vmatpush1.msra.mxu0 0.0
      %2885 = vmatprep.subr.mxu0 0.0
      %2886 = vmatpush1.msra.mxu0 0.0
      %2887 = vmatprep.subr.mxu0 0.0
      %2888 = vmatpush1.msra.mxu0 0.0
      %2889 = vmatprep.subr.mxu0 0.0
      %2890 = vmatpush1.msra.mxu0 0.0
      %2891 = vmatprep.subr.mxu0 0.0
      %2892 = vmatpush1.msra.mxu0 0.0
      %2893 = vmatprep.subr.mxu0 0.0
      %2894 = vmatpush1.msra.mxu0 0.0
      %2895 = vmatprep.subr.mxu0 0.0
      %2896 = vmatpush1.msra.mxu0 0.0
      %2897 = vmatprep.subr.mxu0 0.0
      %2898 = vmatpush1.msra.mxu0 0.0
      %2899 = vmatprep.subr.mxu0 0.0
      %2900 = vmatpush1.msra.mxu0 0.0
      %2901 = vmatprep.subr.mxu0 0.0
      %2902 = vmatpush1.msra.mxu0 0.0
      %2903 = vmatprep.subr.mxu0 0.0
      %2904 = vmatpush1.msra.mxu0 0.0
      %2905 = vmatprep.subr.mxu0 0.0
      %2906 = vmatpush1.msra.mxu0 0.0
      %2907 = vmatprep.subr.mxu0 0.0
      %2908 = vmatpush1.msra.mxu0 0.0
      %2909 = vmatprep.subr.mxu0 0.0
      %2910 = vmatpush1.msra.mxu0 0.0
      %2911 = vmatprep.subr.mxu0 0.0
      %2912 = vmatpush1.msra.mxu0 0.0
      %2913 = vmatprep.subr.mxu0 0.0
      %2914 = vmatpush1.msra.mxu0 0.0
      %2915 = vmatprep.subr.mxu0 0.0
      %2916 = vmatpush1.msra.mxu0 0.0
      %2917 = vmatprep.subr.mxu0 0.0
      %2918 = vmatpush1.msra.mxu0 0.0
      %2919 = vmatprep.subr.mxu0 0.0
      %2920 = vmatpush1.msra.mxu0 0.0
      %2921 = vmatprep.subr.mxu0 0.0
      %2922 = vmatpush1.msra.mxu0 0.0
      %2923 = vmatprep.subr.mxu0 0.0
      %2924 = vmatpush1.msra.mxu0 0.0
      %2925 = vmatprep.subr.mxu0 0.0
      %2926 = vmatpush1.msra.mxu0 0.0
      %2927 = vmatprep.subr.mxu0 0.0
      %2928 = vmatpush1.msra.mxu0 0.0
      %2929 = vmatprep.subr.mxu0 0.0
      %2930 = vmatpush1.msra.mxu0 0.0
      %2931 = vmatprep.subr.mxu0 0.0
      %2932 = vmatpush1.msra.mxu0 0.0
      %2933 = vmatprep.subr.mxu0 0.0
      %2934 = vmatpush1.msra.mxu0 0.0
      %2935 = vmatprep.subr.mxu0 0.0
      %2936 = vmatpush1.msra.mxu0 0.0
      %2937 = vmatprep.subr.mxu0 0.0
      %2938 = vmatpush1.msra.mxu0 0.0
      %2939 = vmatprep.subr.mxu0 0.0
      %2940 = vmatpush1.msra.mxu0 0.0
      %2941 = vmatprep.mubr.f32.mxu0 0.0
      %2942 = vmatmul.mubr.f32.gmra.mrb[0].mxu0 %v2866
      %v2943 = vpop.f32.mrb[0].mxu0
      %v2944 = vadd.f32 0.0, %v2943
      %v2945 = vpop.f32.mrb[0].mxu0
      %2946 = vmatprep.mubr.f32.mxu0 0.0
      %2947 = vmatmul.mubr.f32.gmra.mrb[0].mxu0 %v2869
      %v2948 = vpop.f32.mrb[0].mxu0
      %v2949 = vadd.f32 0.0, %v2948
      %v2950 = vpop.f32.mrb[0].mxu0
      %2951 = vmatprep.mubr.f32.mxu0 0.0
      %2952 = vmatmul.mubr.f32.gmra.mrb[0].mxu0 %v2872
      %v2953 = vpop.f32.mrb[0].mxu0
      %v2954 = vadd.f32 0.0, %v2953
      %v2955 = vpop.f32.mrb[0].mxu0
      %2956 = vmatprep.mubr.f32.mxu0 0.0
      %2957 = vmatmul.mubr.f32.gmra.mrb[0].mxu0 %v2875
      %v2958 = vpop.f32.mrb[0].mxu0
      %v2959 = vadd.f32 0.0, %v2958
      %v2960 = vpop.f32.mrb[0].mxu0
      %2961 = vdwg.mxu0
      %v2963 = vsel %vm277, %v2281, 0
      %v2966 = vsel %vm277, %v2286, 0
      %v2969 = vsel %vm277, %v2291, 0
      %v2972 = vsel %vm277, %v2296, 0
      %2974 = vmatprep.subr.mxu0 0.0
      %2975 = vmatpush1.msra.mxu0 %v1949
      %2976 = vmatprep.subr.mxu0 0.0
      %2977 = vmatpush1.msra.mxu0 %v1950
      %2978 = vmatprep.subr.mxu0 0.0
      %2979 = vmatpush1.msra.mxu0 0.0
      %2980 = vmatprep.subr.mxu0 0.0
      %2981 = vmatpush1.msra.mxu0 0.0
      %2982 = vmatprep.subr.mxu0 0.0
      %2983 = vmatpush1.msra.mxu0 0.0
      %2984 = vmatprep.subr.mxu0 0.0
      %2985 = vmatpush1.msra.mxu0 0.0
      %2986 = vmatprep.subr.mxu0 0.0
      %2987 = vmatpush1.msra.mxu0 0.0
      %2988 = vmatprep.subr.mxu0 0.0
      %2989 = vmatpush1.msra.mxu0 0.0
      %2990 = vmatprep.subr.mxu0 0.0
      %2991 = vmatpush1.msra.mxu0 0.0
      %2992 = vmatprep.subr.mxu0 0.0
      %2993 = vmatpush1.msra.mxu0 0.0
      %2994 = vmatprep.subr.mxu0 0.0
      %2995 = vmatpush1.msra.mxu0 0.0
      %2996 = vmatprep.subr.mxu0 0.0
      %2997 = vmatpush1.msra.mxu0 0.0
      %2998 = vmatprep.subr.mxu0 0.0
      %2999 = vmatpush1.msra.mxu0 0.0
      %3000 = vmatprep.subr.mxu0 0.0
      %3001 = vmatpush1.msra.mxu0 0.0
      %3002 = vmatprep.subr.mxu0 0.0
      %3003 = vmatpush1.msra.mxu0 0.0
      %3004 = vmatprep.subr.mxu0 0.0
      %3005 = vmatpush1.msra.mxu0 0.0
      %3006 = vmatprep.subr.mxu0 0.0
      %3007 = vmatpush1.msra.mxu0 0.0
      %3008 = vmatprep.subr.mxu0 0.0
      %3009 = vmatpush1.msra.mxu0 0.0
      %3010 = vmatprep.subr.mxu0 0.0
      %3011 = vmatpush1.msra.mxu0 0.0
      %3012 = vmatprep.subr.mxu0 0.0
      %3013 = vmatpush1.msra.mxu0 0.0
      %3014 = vmatprep.subr.mxu0 0.0
      %3015 = vmatpush1.msra.mxu0 0.0
      %3016 = vmatprep.subr.mxu0 0.0
      %3017 = vmatpush1.msra.mxu0 0.0
      %3018 = vmatprep.subr.mxu0 0.0
      %3019 = vmatpush1.msra.mxu0 0.0
      %3020 = vmatprep.subr.mxu0 0.0
      %3021 = vmatpush1.msra.mxu0 0.0
      %3022 = vmatprep.subr.mxu0 0.0
      %3023 = vmatpush1.msra.mxu0 0.0
      %3024 = vmatprep.subr.mxu0 0.0
      %3025 = vmatpush1.msra.mxu0 0.0
      %3026 = vmatprep.subr.mxu0 0.0
      %3027 = vmatpush1.msra.mxu0 0.0
      %3028 = vmatprep.subr.mxu0 0.0
      %3029 = vmatpush1.msra.mxu0 0.0
      %3030 = vmatprep.subr.mxu0 0.0
      %3031 = vmatpush1.msra.mxu0 0.0
      %3032 = vmatprep.subr.mxu0 0.0
      %3033 = vmatpush1.msra.mxu0 0.0
      %3034 = vmatprep.subr.mxu0 0.0
      %3035 = vmatpush1.msra.mxu0 0.0
      %3036 = vmatprep.subr.mxu0 0.0
      %3037 = vmatpush1.msra.mxu0 0.0
      %3038 = vmatprep.mubr.f32.mxu0 0.0
      %3039 = vmatmul.mubr.f32.gmra.mrb[0].mxu0 %v2963
      %v3040 = vpop.f32.mrb[0].mxu0
      %v3041 = vadd.f32 0.0, %v3040
      %v3042 = vpop.f32.mrb[0].mxu0
      %3043 = vmatprep.mubr.f32.mxu0 0.0
      %3044 = vmatmul.mubr.f32.gmra.mrb[0].mxu0 %v2966
      %v3045 = vpop.f32.mrb[0].mxu0
      %v3046 = vadd.f32 0.0, %v3045
      %v3047 = vpop.f32.mrb[0].mxu0
      %3048 = vmatprep.mubr.f32.mxu0 0.0
      %3049 = vmatmul.mubr.f32.gmra.mrb[0].mxu0 %v2969
      %v3050 = vpop.f32.mrb[0].mxu0
      %v3051 = vadd.f32 0.0, %v3050
      %v3052 = vpop.f32.mrb[0].mxu0
      %3053 = vmatprep.mubr.f32.mxu0 0.0
      %3054 = vmatmul.mubr.f32.gmra.mrb[0].mxu0 %v2972
      %v3055 = vpop.f32.mrb[0].mxu0
      %v3056 = vadd.f32 0.0, %v3055
      %v3057 = vpop.f32.mrb[0].mxu0
      %3058 = vdwg.mxu0
      %v3060 = vsel %vm277, %v2366, 0
      %v3063 = vsel %vm277, %v2371, 0
      %v3066 = vsel %vm277, %v2376, 0
      %v3069 = vsel %vm277, %v2381, 0
      %3071 = vmatprep.subr.mxu0 0.0
      %3072 = vmatpush1.msra.mxu0 %v1951
      %3073 = vmatprep.subr.mxu0 0.0
      %3074 = vmatpush1.msra.mxu0 %v1952
      %3075 = vmatprep.subr.mxu0 0.0
      %3076 = vmatpush1.msra.mxu0 0.0
      %3077 = vmatprep.subr.mxu0 0.0
      %3078 = vmatpush1.msra.mxu0 0.0
      %3079 = vmatprep.subr.mxu0 0.0
      %3080 = vmatpush1.msra.mxu0 0.0
      %3081 = vmatprep.subr.mxu0 0.0
      %3082 = vmatpush1.msra.mxu0 0.0
      %3083 = vmatprep.subr.mxu0 0.0
      %3084 = vmatpush1.msra.mxu0 0.0
      %3085 = vmatprep.subr.mxu0 0.0
      %3086 = vmatpush1.msra.mxu0 0.0
      %3087 = vmatprep.subr.mxu0 0.0
      %3088 = vmatpush1.msra.mxu0 0.0
      %3089 = vmatprep.subr.mxu0 0.0
      %3090 = vmatpush1.msra.mxu0 0.0
      %3091 = vmatprep.subr.mxu0 0.0
      %3092 = vmatpush1.msra.mxu0 0.0
      %3093 = vmatprep.subr.mxu0 0.0
      %3094 = vmatpush1.msra.mxu0 0.0
      %3095 = vmatprep.subr.mxu0 0.0
      %3096 = vmatpush1.msra.mxu0 0.0
      %3097 = vmatprep.subr.mxu0 0.0
      %3098 = vmatpush1.msra.mxu0 0.0
      %3099 = vmatprep.subr.mxu0 0.0
      %3100 = vmatpush1.msra.mxu0 0.0
      %3101 = vmatprep.subr.mxu0 0.0
      %3102 = vmatpush1.msra.mxu0 0.0
      %3103 = vmatprep.subr.mxu0 0.0
      %3104 = vmatpush1.msra.mxu0 0.0
      %3105 = vmatprep.subr.mxu0 0.0
      %3106 = vmatpush1.msra.mxu0 0.0
      %3107 = vmatprep.subr.mxu0 0.0
      %3108 = vmatpush1.msra.mxu0 0.0
      %3109 = vmatprep.subr.mxu0 0.0
      %3110 = vmatpush1.msra.mxu0 0.0
      %3111 = vmatprep.subr.mxu0 0.0
      %3112 = vmatpush1.msra.mxu0 0.0
      %3113 = vmatprep.subr.mxu0 0.0
      %3114 = vmatpush1.msra.mxu0 0.0
      %3115 = vmatprep.subr.mxu0 0.0
      %3116 = vmatpush1.msra.mxu0 0.0
      %3117 = vmatprep.subr.mxu0 0.0
      %3118 = vmatpush1.msra.mxu0 0.0
      %3119 = vmatprep.subr.mxu0 0.0
      %3120 = vmatpush1.msra.mxu0 0.0
      %3121 = vmatprep.subr.mxu0 0.0
      %3122 = vmatpush1.msra.mxu0 0.0
      %3123 = vmatprep.subr.mxu0 0.0
      %3124 = vmatpush1.msra.mxu0 0.0
      %3125 = vmatprep.subr.mxu0 0.0
      %3126 = vmatpush1.msra.mxu0 0.0
      %3127 = vmatprep.subr.mxu0 0.0
      %3128 = vmatpush1.msra.mxu0 0.0
      %3129 = vmatprep.subr.mxu0 0.0
      %3130 = vmatpush1.msra.mxu0 0.0
      %3131 = vmatprep.subr.mxu0 0.0
      %3132 = vmatpush1.msra.mxu0 0.0
      %3133 = vmatprep.subr.mxu0 0.0
      %3134 = vmatpush1.msra.mxu0 0.0
      %3135 = vmatprep.mubr.f32.mxu0 0.0
      %3136 = vmatmul.mubr.f32.gmra.mrb[0].mxu0 %v3060
      %v3137 = vpop.f32.mrb[0].mxu0
      %v3138 = vadd.f32 0.0, %v3137
      %v3139 = vpop.f32.mrb[0].mxu0
      %3140 = vmatprep.mubr.f32.mxu0 0.0
      %3141 = vmatmul.mubr.f32.gmra.mrb[0].mxu0 %v3063
      %v3142 = vpop.f32.mrb[0].mxu0
      %v3143 = vadd.f32 0.0, %v3142
      %v3144 = vpop.f32.mrb[0].mxu0
      %3145 = vmatprep.mubr.f32.mxu0 0.0
      %3146 = vmatmul.mubr.f32.gmra.mrb[0].mxu0 %v3066
      %v3147 = vpop.f32.mrb[0].mxu0
      %v3148 = vadd.f32 0.0, %v3147
      %v3149 = vpop.f32.mrb[0].mxu0
      %3150 = vmatprep.mubr.f32.mxu0 0.0
      %3151 = vmatmul.mubr.f32.gmra.mrb[0].mxu0 %v3069
      %v3152 = vpop.f32.mrb[0].mxu0
      %v3153 = vadd.f32 0.0, %v3152
      %v3154 = vpop.f32.mrb[0].mxu0
      %3155 = vdwg.mxu0
      %v3157 = vsel %vm277, %v2451, 0
      %v3160 = vsel %vm277, %v2456, 0
      %v3163 = vsel %vm277, %v2461, 0
      %v3166 = vsel %vm277, %v2466, 0
      %3168 = vmatprep.subr.mxu0 0.0
      %3169 = vmatpush1.msra.mxu0 %v1953
      %3170 = vmatprep.subr.mxu0 0.0
      %3171 = vmatpush1.msra.mxu0 %v1954
      %3172 = vmatprep.subr.mxu0 0.0
      %3173 = vmatpush1.msra.mxu0 0.0
      %3174 = vmatprep.subr.mxu0 0.0
      %3175 = vmatpush1.msra.mxu0 0.0
      %3176 = vmatprep.subr.mxu0 0.0
      %3177 = vmatpush1.msra.mxu0 0.0
      %3178 = vmatprep.subr.mxu0 0.0
      %3179 = vmatpush1.msra.mxu0 0.0
      %3180 = vmatprep.subr.mxu0 0.0
      %3181 = vmatpush1.msra.mxu0 0.0
      %3182 = vmatprep.subr.mxu0 0.0
      %3183 = vmatpush1.msra.mxu0 0.0
      %3184 = vmatprep.subr.mxu0 0.0
      %3185 = vmatpush1.msra.mxu0 0.0
      %3186 = vmatprep.subr.mxu0 0.0
      %3187 = vmatpush1.msra.mxu0 0.0
      %3188 = vmatprep.subr.mxu0 0.0
      %3189 = vmatpush1.msra.mxu0 0.0
      %3190 = vmatprep.subr.mxu0 0.0
      %3191 = vmatpush1.msra.mxu0 0.0
      %3192 = vmatprep.subr.mxu0 0.0
      %3193 = vmatpush1.msra.mxu0 0.0
      %3194 = vmatprep.subr.mxu0 0.0
      %3195 = vmatpush1.msra.mxu0 0.0
      %3196 = vmatprep.subr.mxu0 0.0
      %3197 = vmatpush1.msra.mxu0 0.0
      %3198 = vmatprep.subr.mxu0 0.0
      %3199 = vmatpush1.msra.mxu0 0.0
      %3200 = vmatprep.subr.mxu0 0.0
      %3201 = vmatpush1.msra.mxu0 0.0
      %3202 = vmatprep.subr.mxu0 0.0
      %3203 = vmatpush1.msra.mxu0 0.0
      %3204 = vmatprep.subr.mxu0 0.0
      %3205 = vmatpush1.msra.mxu0 0.0
      %3206 = vmatprep.subr.mxu0 0.0
      %3207 = vmatpush1.msra.mxu0 0.0
      %3208 = vmatprep.subr.mxu0 0.0
      %3209 = vmatpush1.msra.mxu0 0.0
      %3210 = vmatprep.subr.mxu0 0.0
      %3211 = vmatpush1.msra.mxu0 0.0
      %3212 = vmatprep.subr.mxu0 0.0
      %3213 = vmatpush1.msra.mxu0 0.0
      %3214 = vmatprep.subr.mxu0 0.0
      %3215 = vmatpush1.msra.mxu0 0.0
      %3216 = vmatprep.subr.mxu0 0.0
      %3217 = vmatpush1.msra.mxu0 0.0
      %3218 = vmatprep.subr.mxu0 0.0
      %3219 = vmatpush1.msra.mxu0 0.0
      %3220 = vmatprep.subr.mxu0 0.0
      %3221 = vmatpush1.msra.mxu0 0.0
      %3222 = vmatprep.subr.mxu0 0.0
      %3223 = vmatpush1.msra.mxu0 0.0
      %3224 = vmatprep.subr.mxu0 0.0
      %3225 = vmatpush1.msra.mxu0 0.0
      %3226 = vmatprep.subr.mxu0 0.0
      %3227 = vmatpush1.msra.mxu0 0.0
      %3228 = vmatprep.subr.mxu0 0.0
      %3229 = vmatpush1.msra.mxu0 0.0
      %3230 = vmatprep.subr.mxu0 0.0
      %3231 = vmatpush1.msra.mxu0 0.0
      %3232 = vmatprep.mubr.f32.mxu0 0.0
      %3233 = vmatmul.mubr.f32.gmra.mrb[0].mxu0 %v3157
      %v3234 = vpop.f32.mrb[0].mxu0
      %v3235 = vadd.f32 0.0, %v3234
      %v3236 = vpop.f32.mrb[0].mxu0
      %3237 = vmatprep.mubr.f32.mxu0 0.0
      %3238 = vmatmul.mubr.f32.gmra.mrb[0].mxu0 %v3160
      %v3239 = vpop.f32.mrb[0].mxu0
      %v3240 = vadd.f32 0.0, %v3239
      %v3241 = vpop.f32.mrb[0].mxu0
      %3242 = vmatprep.mubr.f32.mxu0 0.0
      %3243 = vmatmul.mubr.f32.gmra.mrb[0].mxu0 %v3163
      %v3244 = vpop.f32.mrb[0].mxu0
      %v3245 = vadd.f32 0.0, %v3244
      %v3246 = vpop.f32.mrb[0].mxu0
      %3247 = vmatprep.mubr.f32.mxu0 0.0
      %3248 = vmatmul.mubr.f32.gmra.mrb[0].mxu0 %v3166
      %v3249 = vpop.f32.mrb[0].mxu0
      %v3250 = vadd.f32 0.0, %v3249
      %v3251 = vpop.f32.mrb[0].mxu0
      %3252 = vdwg.mxu0
      %v3254 = vsel %vm277, %v2536, 0
      %v3257 = vsel %vm277, %v2541, 0
      %v3260 = vsel %vm277, %v2546, 0
      %v3263 = vsel %vm277, %v2551, 0
      %3265 = vmatprep.subr.mxu0 0.0
      %3266 = vmatpush1.msra.mxu0 %v1955
      %3267 = vmatprep.subr.mxu0 0.0
      %3268 = vmatpush1.msra.mxu0 %v1956
      %3269 = vmatprep.subr.mxu0 0.0
      %3270 = vmatpush1.msra.mxu0 0.0
      %3271 = vmatprep.subr.mxu0 0.0
      %3272 = vmatpush1.msra.mxu0 0.0
      %3273 = vmatprep.subr.mxu0 0.0
      %3274 = vmatpush1.msra.mxu0 0.0
      %3275 = vmatprep.subr.mxu0 0.0
      %3276 = vmatpush1.msra.mxu0 0.0
      %3277 = vmatprep.subr.mxu0 0.0
      %3278 = vmatpush1.msra.mxu0 0.0
      %3279 = vmatprep.subr.mxu0 0.0
      %3280 = vmatpush1.msra.mxu0 0.0
      %3281 = vmatprep.subr.mxu0 0.0
      %3282 = vmatpush1.msra.mxu0 0.0
      %3283 = vmatprep.subr.mxu0 0.0
      %3284 = vmatpush1.msra.mxu0 0.0
      %3285 = vmatprep.subr.mxu0 0.0
      %3286 = vmatpush1.msra.mxu0 0.0
      %3287 = vmatprep.subr.mxu0 0.0
      %3288 = vmatpush1.msra.mxu0 0.0
      %3289 = vmatprep.subr.mxu0 0.0
      %3290 = vmatpush1.msra.mxu0 0.0
      %3291 = vmatprep.subr.mxu0 0.0
      %3292 = vmatpush1.msra.mxu0 0.0
      %3293 = vmatprep.subr.mxu0 0.0
      %3294 = vmatpush1.msra.mxu0 0.0
      %3295 = vmatprep.subr.mxu0 0.0
      %3296 = vmatpush1.msra.mxu0 0.0
      %3297 = vmatprep.subr.mxu0 0.0
      %3298 = vmatpush1.msra.mxu0 0.0
      %3299 = vmatprep.subr.mxu0 0.0
      %3300 = vmatpush1.msra.mxu0 0.0
      %3301 = vmatprep.subr.mxu0 0.0
      %3302 = vmatpush1.msra.mxu0 0.0
      %3303 = vmatprep.subr.mxu0 0.0
      %3304 = vmatpush1.msra.mxu0 0.0
      %3305 = vmatprep.subr.mxu0 0.0
      %3306 = vmatpush1.msra.mxu0 0.0
      %3307 = vmatprep.subr.mxu0 0.0
      %3308 = vmatpush1.msra.mxu0 0.0
      %3309 = vmatprep.subr.mxu0 0.0
      %3310 = vmatpush1.msra.mxu0 0.0
      %3311 = vmatprep.subr.mxu0 0.0
      %3312 = vmatpush1.msra.mxu0 0.0
      %3313 = vmatprep.subr.mxu0 0.0
      %3314 = vmatpush1.msra.mxu0 0.0
      %3315 = vmatprep.subr.mxu0 0.0
      %3316 = vmatpush1.msra.mxu0 0.0
      %3317 = vmatprep.subr.mxu0 0.0
      %3318 = vmatpush1.msra.mxu0 0.0
      %3319 = vmatprep.subr.mxu0 0.0
      %3320 = vmatpush1.msra.mxu0 0.0
      %3321 = vmatprep.subr.mxu0 0.0
      %3322 = vmatpush1.msra.mxu0 0.0
      %3323 = vmatprep.subr.mxu0 0.0
      %3324 = vmatpush1.msra.mxu0 0.0
      %3325 = vmatprep.subr.mxu0 0.0
      %3326 = vmatpush1.msra.mxu0 0.0
      %3327 = vmatprep.subr.mxu0 0.0
      %3328 = vmatpush1.msra.mxu0 0.0
      %3329 = vmatprep.mubr.f32.mxu0 0.0
      %3330 = vmatmul.mubr.f32.gmra.mrb[0].mxu0 %v3254
      %v3331 = vpop.f32.mrb[0].mxu0
      %v3332 = vadd.f32 0.0, %v3331
      %v3333 = vpop.f32.mrb[0].mxu0
      %3334 = vmatprep.mubr.f32.mxu0 0.0
      %3335 = vmatmul.mubr.f32.gmra.mrb[0].mxu0 %v3257
      %v3336 = vpop.f32.mrb[0].mxu0
      %v3337 = vadd.f32 0.0, %v3336
      %v3338 = vpop.f32.mrb[0].mxu0
      %3339 = vmatprep.mubr.f32.mxu0 0.0
      %3340 = vmatmul.mubr.f32.gmra.mrb[0].mxu0 %v3260
      %v3341 = vpop.f32.mrb[0].mxu0
      %v3342 = vadd.f32 0.0, %v3341
      %v3343 = vpop.f32.mrb[0].mxu0
      %3344 = vmatprep.mubr.f32.mxu0 0.0
      %3345 = vmatmul.mubr.f32.gmra.mrb[0].mxu0 %v3263
      %v3346 = vpop.f32.mrb[0].mxu0
      %v3347 = vadd.f32 0.0, %v3346
      %v3348 = vpop.f32.mrb[0].mxu0
      %3349 = vdwg.mxu0
      %v3351 = vsel %vm277, %v2621, 0
      %v3354 = vsel %vm277, %v2626, 0
      %v3357 = vsel %vm277, %v2631, 0
      %v3360 = vsel %vm277, %v2636, 0
      %3362 = vmatprep.subr.mxu0 0.0
      %3363 = vmatpush1.msra.mxu0 %v1957
      %3364 = vmatprep.subr.mxu0 0.0
      %3365 = vmatpush1.msra.mxu0 %v1958
      %3366 = vmatprep.subr.mxu0 0.0
      %3367 = vmatpush1.msra.mxu0 0.0
      %3368 = vmatprep.subr.mxu0 0.0
      %3369 = vmatpush1.msra.mxu0 0.0
      %3370 = vmatprep.subr.mxu0 0.0
      %3371 = vmatpush1.msra.mxu0 0.0
      %3372 = vmatprep.subr.mxu0 0.0
      %3373 = vmatpush1.msra.mxu0 0.0
      %3374 = vmatprep.subr.mxu0 0.0
      %3375 = vmatpush1.msra.mxu0 0.0
      %3376 = vmatprep.subr.mxu0 0.0
      %3377 = vmatpush1.msra.mxu0 0.0
      %3378 = vmatprep.subr.mxu0 0.0
      %3379 = vmatpush1.msra.mxu0 0.0
      %3380 = vmatprep.subr.mxu0 0.0
      %3381 = vmatpush1.msra.mxu0 0.0
      %3382 = vmatprep.subr.mxu0 0.0
      %3383 = vmatpush1.msra.mxu0 0.0
      %3384 = vmatprep.subr.mxu0 0.0
      %3385 = vmatpush1.msra.mxu0 0.0
      %3386 = vmatprep.subr.mxu0 0.0
      %3387 = vmatpush1.msra.mxu0 0.0
      %3388 = vmatprep.subr.mxu0 0.0
      %3389 = vmatpush1.msra.mxu0 0.0
      %3390 = vmatprep.subr.mxu0 0.0
      %3391 = vmatpush1.msra.mxu0 0.0
      %3392 = vmatprep.subr.mxu0 0.0
      %3393 = vmatpush1.msra.mxu0 0.0
      %3394 = vmatprep.subr.mxu0 0.0
      %3395 = vmatpush1.msra.mxu0 0.0
      %3396 = vmatprep.subr.mxu0 0.0
      %3397 = vmatpush1.msra.mxu0 0.0
      %3398 = vmatprep.subr.mxu0 0.0
      %3399 = vmatpush1.msra.mxu0 0.0
      %3400 = vmatprep.subr.mxu0 0.0
      %3401 = vmatpush1.msra.mxu0 0.0
      %3402 = vmatprep.subr.mxu0 0.0
      %3403 = vmatpush1.msra.mxu0 0.0
      %3404 = vmatprep.subr.mxu0 0.0
      %3405 = vmatpush1.msra.mxu0 0.0
      %3406 = vmatprep.subr.mxu0 0.0
      %3407 = vmatpush1.msra.mxu0 0.0
      %3408 = vmatprep.subr.mxu0 0.0
      %3409 = vmatpush1.msra.mxu0 0.0
      %3410 = vmatprep.subr.mxu0 0.0
      %3411 = vmatpush1.msra.mxu0 0.0
      %3412 = vmatprep.subr.mxu0 0.0
      %3413 = vmatpush1.msra.mxu0 0.0
      %3414 = vmatprep.subr.mxu0 0.0
      %3415 = vmatpush1.msra.mxu0 0.0
      %3416 = vmatprep.subr.mxu0 0.0
      %3417 = vmatpush1.msra.mxu0 0.0
      %3418 = vmatprep.subr.mxu0 0.0
      %3419 = vmatpush1.msra.mxu0 0.0
      %3420 = vmatprep.subr.mxu0 0.0
      %3421 = vmatpush1.msra.mxu0 0.0
      %3422 = vmatprep.subr.mxu0 0.0
      %3423 = vmatpush1.msra.mxu0 0.0
      %3424 = vmatprep.subr.mxu0 0.0
      %3425 = vmatpush1.msra.mxu0 0.0
      %3426 = vmatprep.mubr.f32.mxu0 0.0
      %3427 = vmatmul.mubr.f32.gmra.mrb[0].mxu0 %v3351
      %v3428 = vpop.f32.mrb[0].mxu0
      %v3429 = vadd.f32 0.0, %v3428
      %v3430 = vpop.f32.mrb[0].mxu0
      %3431 = vmatprep.mubr.f32.mxu0 0.0
      %3432 = vmatmul.mubr.f32.gmra.mrb[0].mxu0 %v3354
      %v3433 = vpop.f32.mrb[0].mxu0
      %v3434 = vadd.f32 0.0, %v3433
      %v3435 = vpop.f32.mrb[0].mxu0
      %3436 = vmatprep.mubr.f32.mxu0 0.0
      %3437 = vmatmul.mubr.f32.gmra.mrb[0].mxu0 %v3357
      %v3438 = vpop.f32.mrb[0].mxu0
      %v3439 = vadd.f32 0.0, %v3438
      %v3440 = vpop.f32.mrb[0].mxu0
      %3441 = vmatprep.mubr.f32.mxu0 0.0
      %3442 = vmatmul.mubr.f32.gmra.mrb[0].mxu0 %v3360
      %v3443 = vpop.f32.mrb[0].mxu0
      %v3444 = vadd.f32 0.0, %v3443
      %v3445 = vpop.f32.mrb[0].mxu0
      %3446 = vdwg.mxu0
      %3447 = vst.msk [vmem:[#allocation2 + $0x80] sm:$0xff] %vm277, %v2750
      %3448 = vst.msk [vmem:[#allocation2 + $0x88] sm:$0xff] %vm277, %v2755
      %3449 = vst.msk [vmem:[#allocation2 + $0x90] sm:$0xff] %vm277, %v2760
      %3450 = vst.msk [vmem:[#allocation2 + $0x98] sm:$0xff] %vm277, %v2765
      %3451 = vst.msk [vmem:[#allocation2 + $0x160] sm:$0xff] %vm277, %v2847
      %3452 = vst.msk [vmem:[#allocation2 + $0x168] sm:$0xff] %vm277, %v2852
      %3453 = vst.msk [vmem:[#allocation2 + $0x170] sm:$0xff] %vm277, %v2857
      %3454 = vst.msk [vmem:[#allocation2 + $0x178] sm:$0xff] %vm277, %v2862
      %3455 = vst.msk [vmem:[#allocation2 + $0x240] sm:$0xff] %vm277, %v2944
      %3456 = vst.msk [vmem:[#allocation2 + $0x248] sm:$0xff] %vm277, %v2949
      %3457 = vst.msk [vmem:[#allocation2 + $0x250] sm:$0xff] %vm277, %v2954
      %3458 = vst.msk [vmem:[#allocation2 + $0x258] sm:$0xff] %vm277, %v2959
      %3459 = vst.msk [vmem:[#allocation2 + $0x320] sm:$0xff] %vm277, %v3041
      %3460 = vst.msk [vmem:[#allocation2 + $0x328] sm:$0xff] %vm277, %v3046
      %3461 = vst.msk [vmem:[#allocation2 + $0x330] sm:$0xff] %vm277, %v3051
      %3462 = vst.msk [vmem:[#allocation2 + $0x338] sm:$0xff] %vm277, %v3056
      %3463 = vst.msk [vmem:[#allocation2 + $0x400] sm:$0xff] %vm277, %v3138
      %3464 = vst.msk [vmem:[#allocation2 + $0x408] sm:$0xff] %vm277, %v3143
      %3465 = vst.msk [vmem:[#allocation2 + $0x410] sm:$0xff] %vm277, %v3148
      %3466 = vst.msk [vmem:[#allocation2 + $0x418] sm:$0xff] %vm277, %v3153
      %3467 = vst.msk [vmem:[#allocation2 + $0x4e0] sm:$0xff] %vm277, %v3235
      %3468 = vst.msk [vmem:[#allocation2 + $0x4e8] sm:$0xff] %vm277, %v3240
      %3469 = vst.msk [vmem:[#allocation2 + $0x4f0] sm:$0xff] %vm277, %v3245
      %3470 = vst.msk [vmem:[#allocation2 + $0x4f8] sm:$0xff] %vm277, %v3250
      %3471 = vst.msk [vmem:[#allocation2 + $0x5c0] sm:$0xff] %vm277, %v3332
      %3472 = vst.msk [vmem:[#allocation2 + $0x5c8] sm:$0xff] %vm277, %v3337
      %3473 = vst.msk [vmem:[#allocation2 + $0x5d0] sm:$0xff] %vm277, %v3342
      %3474 = vst.msk [vmem:[#allocation2 + $0x5d8] sm:$0xff] %vm277, %v3347
      %3475 = vst.msk [vmem:[#allocation2 + $0x6a0] sm:$0xff] %vm277, %v3429
      %3476 = vst.msk [vmem:[#allocation2 + $0x6a8] sm:$0xff] %vm277, %v3434
      %3477 = vst.msk [vmem:[#allocation2 + $0x6b0] sm:$0xff] %vm277, %v3439
      %3478 = vst.msk [vmem:[#allocation2 + $0x6b8] sm:$0xff] %vm277, %v3444
      %v3479 = vld [vmem:[%s2] sm:$0xff]
      %v3480 = vld [vmem:[%s2 + $0x8] sm:$0xff]
      %3481 = vmatprep.subr.mxu0 0.0
      %3482 = vmatpush1.msra.mxu0 %v3479
      %3483 = vmatprep.subr.mxu0 0.0
      %3484 = vmatpush1.msra.mxu0 %v3480
      %3485 = vmatprep.subr.mxu0 0.0
      %3486 = vmatpush1.msra.mxu0 0.0
      %3487 = vmatprep.subr.mxu0 0.0
      %3488 = vmatpush1.msra.mxu0 0.0
      %3489 = vmatprep.subr.mxu0 0.0
      %3490 = vmatpush1.msra.mxu0 0.0
      %3491 = vmatprep.subr.mxu0 0.0
      %3492 = vmatpush1.msra.mxu0 0.0
      %3493 = vmatprep.subr.mxu0 0.0
      %3494 = vmatpush1.msra.mxu0 0.0
      %3495 = vmatprep.subr.mxu0 0.0
      %3496 = vmatpush1.msra.mxu0 0.0
      %3497 = vmatprep.subr.mxu0 0.0
      %3498 = vmatpush1.msra.mxu0 0.0
      %3499 = vmatprep.subr.mxu0 0.0
      %3500 = vmatpush1.msra.mxu0 0.0
      %3501 = vmatprep.subr.mxu0 0.0
      %3502 = vmatpush1.msra.mxu0 0.0
      %3503 = vmatprep.subr.mxu0 0.0
      %3504 = vmatpush1.msra.mxu0 0.0
      %3505 = vmatprep.subr.mxu0 0.0
      %3506 = vmatpush1.msra.mxu0 0.0
      %3507 = vmatprep.subr.mxu0 0.0
      %3508 = vmatpush1.msra.mxu0 0.0
      %3509 = vmatprep.subr.mxu0 0.0
      %3510 = vmatpush1.msra.mxu0 0.0
      %3511 = vmatprep.subr.mxu0 0.0
      %3512 = vmatpush1.msra.mxu0 0.0
      %3513 = vmatprep.subr.mxu0 0.0
      %3514 = vmatpush1.msra.mxu0 0.0
      %3515 = vmatprep.subr.mxu0 0.0
      %3516 = vmatpush1.msra.mxu0 0.0
      %3517 = vmatprep.subr.mxu0 0.0
      %3518 = vmatpush1.msra.mxu0 0.0
      %3519 = vmatprep.subr.mxu0 0.0
      %3520 = vmatpush1.msra.mxu0 0.0
      %3521 = vmatprep.subr.mxu0 0.0
      %3522 = vmatpush1.msra.mxu0 0.0
      %3523 = vmatprep.subr.mxu0 0.0
      %3524 = vmatpush1.msra.mxu0 0.0
      %3525 = vmatprep.subr.mxu0 0.0
      %3526 = vmatpush1.msra.mxu0 0.0
      %3527 = vmatprep.subr.mxu0 0.0
      %3528 = vmatpush1.msra.mxu0 0.0
      %3529 = vmatprep.subr.mxu0 0.0
      %3530 = vmatpush1.msra.mxu0 0.0
      %3531 = vmatprep.subr.mxu0 0.0
      %3532 = vmatpush1.msra.mxu0 0.0
      %3533 = vmatprep.subr.mxu0 0.0
      %3534 = vmatpush1.msra.mxu0 0.0
      %3535 = vmatprep.subr.mxu0 0.0
      %3536 = vmatpush1.msra.mxu0 0.0
      %3537 = vmatprep.subr.mxu0 0.0
      %3538 = vmatpush1.msra.mxu0 0.0
      %3539 = vmatprep.subr.mxu0 0.0
      %3540 = vmatpush1.msra.mxu0 0.0
      %3541 = vmatprep.subr.mxu0 0.0
      %3542 = vmatpush1.msra.mxu0 0.0
      %3543 = vmatprep.subr.mxu0 0.0
      %3544 = vmatpush1.msra.mxu0 0.0
      %3545 = vmatprep.mubr.f32.mxu0 0.0
      %3546 = vmatmul.mubr.f32.gmra.mrb[0].mxu0 %v327
      %v3547 = vpop.f32.mrb[0].mxu0
      %v3548 = vadd.f32 0.0, %v3547
      %v3549 = vpop.f32.mrb[0].mxu0
      %3550 = vmatprep.mubr.f32.mxu0 0.0
      %3551 = vmatmul.mubr.f32.gmra.mrb[0].mxu0 %v330
      %v3552 = vpop.f32.mrb[0].mxu0
      %v3553 = vadd.f32 0.0, %v3552
      %v3554 = vpop.f32.mrb[0].mxu0
      %3555 = vmatprep.mubr.f32.mxu0 0.0
      %3556 = vmatmul.mubr.f32.gmra.mrb[0].mxu0 %v333
      %v3557 = vpop.f32.mrb[0].mxu0
      %v3558 = vadd.f32 0.0, %v3557
      %v3559 = vpop.f32.mrb[0].mxu0
      %3560 = vmatprep.mubr.f32.mxu0 0.0
      %3561 = vmatmul.mubr.f32.gmra.mrb[0].mxu0 %v336
      %v3562 = vpop.f32.mrb[0].mxu0
      %v3563 = vadd.f32 0.0, %v3562
      %v3564 = vpop.f32.mrb[0].mxu0
      %3565 = vmatprep.mubr.f32.mxu0 0.0
      %3566 = vmatmul.mubr.f32.gmra.mrb[0].mxu0 %v424
      %v3567 = vpop.f32.mrb[0].mxu0
      %v3568 = vadd.f32 0.0, %v3567
      %v3569 = vpop.f32.mrb[0].mxu0
      %3570 = vmatprep.mubr.f32.mxu0 0.0
      %3571 = vmatmul.mubr.f32.gmra.mrb[0].mxu0 %v427
      %v3572 = vpop.f32.mrb[0].mxu0
      %v3573 = vadd.f32 0.0, %v3572
      %v3574 = vpop.f32.mrb[0].mxu0
      %3575 = vmatprep.mubr.f32.mxu0 0.0
      %3576 = vmatmul.mubr.f32.gmra.mrb[0].mxu0 %v430
      %v3577 = vpop.f32.mrb[0].mxu0
      %v3578 = vadd.f32 0.0, %v3577
      %v3579 = vpop.f32.mrb[0].mxu0
      %3580 = vmatprep.mubr.f32.mxu0 0.0
      %3581 = vmatmul.mubr.f32.gmra.mrb[0].mxu0 %v433
      %v3582 = vpop.f32.mrb[0].mxu0
      %v3583 = vadd.f32 0.0, %v3582
      %v3584 = vpop.f32.mrb[0].mxu0
      %3585 = vmatprep.mubr.f32.mxu0 0.0
      %3586 = vmatmul.mubr.f32.gmra.mrb[0].mxu0 %v521
      %v3587 = vpop.f32.mrb[0].mxu0
      %v3588 = vadd.f32 0.0, %v3587
      %v3589 = vpop.f32.mrb[0].mxu0
      %3590 = vmatprep.mubr.f32.mxu0 0.0
      %3591 = vmatmul.mubr.f32.gmra.mrb[0].mxu0 %v524
      %v3592 = vpop.f32.mrb[0].mxu0
      %v3593 = vadd.f32 0.0, %v3592
      %v3594 = vpop.f32.mrb[0].mxu0
      %3595 = vmatprep.mubr.f32.mxu0 0.0
      %3596 = vmatmul.mubr.f32.gmra.mrb[0].mxu0 %v527
      %v3597 = vpop.f32.mrb[0].mxu0
      %v3598 = vadd.f32 0.0, %v3597
      %v3599 = vpop.f32.mrb[0].mxu0
      %3600 = vmatprep.mubr.f32.mxu0 0.0
      %3601 = vmatmul.mubr.f32.gmra.mrb[0].mxu0 %v530
      %v3602 = vpop.f32.mrb[0].mxu0
      %v3603 = vadd.f32 0.0, %v3602
      %v3604 = vpop.f32.mrb[0].mxu0
      %3605 = vmatprep.mubr.f32.mxu0 0.0
      %3606 = vmatmul.mubr.f32.gmra.mrb[0].mxu0 %v618
      %v3607 = vpop.f32.mrb[0].mxu0
      %v3608 = vadd.f32 0.0, %v3607
      %v3609 = vpop.f32.mrb[0].mxu0
      %3610 = vmatprep.mubr.f32.mxu0 0.0
      %3611 = vmatmul.mubr.f32.gmra.mrb[0].mxu0 %v621
      %v3612 = vpop.f32.mrb[0].mxu0
      %v3613 = vadd.f32 0.0, %v3612
      %v3614 = vpop.f32.mrb[0].mxu0
      %3615 = vmatprep.mubr.f32.mxu0 0.0
      %3616 = vmatmul.mubr.f32.gmra.mrb[0].mxu0 %v624
      %v3617 = vpop.f32.mrb[0].mxu0
      %v3618 = vadd.f32 0.0, %v3617
      %v3619 = vpop.f32.mrb[0].mxu0
      %3620 = vmatprep.mubr.f32.mxu0 0.0
      %3621 = vmatmul.mubr.f32.gmra.mrb[0].mxu0 %v627
      %v3622 = vpop.f32.mrb[0].mxu0
      %v3623 = vadd.f32 0.0, %v3622
      %v3624 = vpop.f32.mrb[0].mxu0
      %3625 = vmatprep.mubr.f32.mxu0 0.0
      %3626 = vmatmul.mubr.f32.gmra.mrb[0].mxu0 %v715
      %v3627 = vpop.f32.mrb[0].mxu0
      %v3628 = vadd.f32 0.0, %v3627
      %v3629 = vpop.f32.mrb[0].mxu0
      %3630 = vmatprep.mubr.f32.mxu0 0.0
      %3631 = vmatmul.mubr.f32.gmra.mrb[0].mxu0 %v718
      %v3632 = vpop.f32.mrb[0].mxu0
      %v3633 = vadd.f32 0.0, %v3632
      %v3634 = vpop.f32.mrb[0].mxu0
      %3635 = vmatprep.mubr.f32.mxu0 0.0
      %3636 = vmatmul.mubr.f32.gmra.mrb[0].mxu0 %v721
      %v3637 = vpop.f32.mrb[0].mxu0
      %v3638 = vadd.f32 0.0, %v3637
      %v3639 = vpop.f32.mrb[0].mxu0
      %3640 = vmatprep.mubr.f32.mxu0 0.0
      %3641 = vmatmul.mubr.f32.gmra.mrb[0].mxu0 %v724
      %v3642 = vpop.f32.mrb[0].mxu0
      %v3643 = vadd.f32 0.0, %v3642
      %v3644 = vpop.f32.mrb[0].mxu0
      %3645 = vmatprep.mubr.f32.mxu0 0.0
      %3646 = vmatmul.mubr.f32.gmra.mrb[0].mxu0 %v812
      %v3647 = vpop.f32.mrb[0].mxu0
      %v3648 = vadd.f32 0.0, %v3647
      %v3649 = vpop.f32.mrb[0].mxu0
      %3650 = vmatprep.mubr.f32.mxu0 0.0
      %3651 = vmatmul.mubr.f32.gmra.mrb[0].mxu0 %v815
      %v3652 = vpop.f32.mrb[0].mxu0
      %v3653 = vadd.f32 0.0, %v3652
      %v3654 = vpop.f32.mrb[0].mxu0
      %3655 = vmatprep.mubr.f32.mxu0 0.0
      %3656 = vmatmul.mubr.f32.gmra.mrb[0].mxu0 %v818
      %v3657 = vpop.f32.mrb[0].mxu0
      %v3658 = vadd.f32 0.0, %v3657
      %v3659 = vpop.f32.mrb[0].mxu0
      %3660 = vmatprep.mubr.f32.mxu0 0.0
      %3661 = vmatmul.mubr.f32.gmra.mrb[0].mxu0 %v821
      %v3662 = vpop.f32.mrb[0].mxu0
      %v3663 = vadd.f32 0.0, %v3662
      %v3664 = vpop.f32.mrb[0].mxu0
      %3665 = vmatprep.mubr.f32.mxu0 0.0
      %3666 = vmatmul.mubr.f32.gmra.mrb[0].mxu0 %v909
      %v3667 = vpop.f32.mrb[0].mxu0
      %v3668 = vadd.f32 0.0, %v3667
      %v3669 = vpop.f32.mrb[0].mxu0
      %3670 = vmatprep.mubr.f32.mxu0 0.0
      %3671 = vmatmul.mubr.f32.gmra.mrb[0].mxu0 %v912
      %v3672 = vpop.f32.mrb[0].mxu0
      %v3673 = vadd.f32 0.0, %v3672
      %v3674 = vpop.f32.mrb[0].mxu0
      %3675 = vmatprep.mubr.f32.mxu0 0.0
      %3676 = vmatmul.mubr.f32.gmra.mrb[0].mxu0 %v915
      %v3677 = vpop.f32.mrb[0].mxu0
      %v3678 = vadd.f32 0.0, %v3677
      %v3679 = vpop.f32.mrb[0].mxu0
      %3680 = vmatprep.mubr.f32.mxu0 0.0
      %3681 = vmatmul.mubr.f32.gmra.mrb[0].mxu0 %v918
      %v3682 = vpop.f32.mrb[0].mxu0
      %v3683 = vadd.f32 0.0, %v3682
      %v3684 = vpop.f32.mrb[0].mxu0
      %3685 = vmatprep.mubr.f32.mxu0 0.0
      %3686 = vmatmul.mubr.f32.gmra.mrb[0].mxu0 %v1006
      %v3687 = vpop.f32.mrb[0].mxu0
      %v3688 = vadd.f32 0.0, %v3687
      %v3689 = vpop.f32.mrb[0].mxu0
      %3690 = vmatprep.mubr.f32.mxu0 0.0
      %3691 = vmatmul.mubr.f32.gmra.mrb[0].mxu0 %v1009
      %v3692 = vpop.f32.mrb[0].mxu0
      %v3693 = vadd.f32 0.0, %v3692
      %v3694 = vpop.f32.mrb[0].mxu0
      %3695 = vmatprep.mubr.f32.mxu0 0.0
      %3696 = vmatmul.mubr.f32.gmra.mrb[0].mxu0 %v1012
      %v3697 = vpop.f32.mrb[0].mxu0
      %v3698 = vadd.f32 0.0, %v3697
      %v3699 = vpop.f32.mrb[0].mxu0
      %3700 = vmatprep.mubr.f32.mxu0 0.0
      %3701 = vmatmul.mubr.f32.gmra.mrb[0].mxu0 %v1015
      %v3702 = vpop.f32.mrb[0].mxu0
      %v3703 = vadd.f32 0.0, %v3702
      %v3704 = vpop.f32.mrb[0].mxu0
      %3705 = vdwg.mxu0
      %3706 = vst.msk [vmem:[#allocation2 + $0xa0] sm:$0xff] %vm277, %v3548
      %3707 = vst.msk [vmem:[#allocation2 + $0xa8] sm:$0xff] %vm277, %v3553
      %3708 = vst.msk [vmem:[#allocation2 + $0xb0] sm:$0xff] %vm277, %v3558
      %3709 = vst.msk [vmem:[#allocation2 + $0xb8] sm:$0xff] %vm277, %v3563
      %3710 = vst.msk [vmem:[#allocation2 + $0x180] sm:$0xff] %vm277, %v3568
      %3711 = vst.msk [vmem:[#allocation2 + $0x188] sm:$0xff] %vm277, %v3573
      %3712 = vst.msk [vmem:[#allocation2 + $0x190] sm:$0xff] %vm277, %v3578
      %3713 = vst.msk [vmem:[#allocation2 + $0x198] sm:$0xff] %vm277, %v3583
      %3714 = vst.msk [vmem:[#allocation2 + $0x260] sm:$0xff] %vm277, %v3588
      %3715 = vst.msk [vmem:[#allocation2 + $0x268] sm:$0xff] %vm277, %v3593
      %3716 = vst.msk [vmem:[#allocation2 + $0x270] sm:$0xff] %vm277, %v3598
      %3717 = vst.msk [vmem:[#allocation2 + $0x278] sm:$0xff] %vm277, %v3603
      %3718 = vst.msk [vmem:[#allocation2 + $0x340] sm:$0xff] %vm277, %v3608
      %3719 = vst.msk [vmem:[#allocation2 + $0x348] sm:$0xff] %vm277, %v3613
      %3720 = vst.msk [vmem:[#allocation2 + $0x350] sm:$0xff] %vm277, %v3618
      %3721 = vst.msk [vmem:[#allocation2 + $0x358] sm:$0xff] %vm277, %v3623
      %3722 = vst.msk [vmem:[#allocation2 + $0x420] sm:$0xff] %vm277, %v3628
      %3723 = vst.msk [vmem:[#allocation2 + $0x428] sm:$0xff] %vm277, %v3633
      %3724 = vst.msk [vmem:[#allocation2 + $0x430] sm:$0xff] %vm277, %v3638
      %3725 = vst.msk [vmem:[#allocation2 + $0x438] sm:$0xff] %vm277, %v3643
      %3726 = vst.msk [vmem:[#allocation2 + $0x500] sm:$0xff] %vm277, %v3648
      %3727 = vst.msk [vmem:[#allocation2 + $0x508] sm:$0xff] %vm277, %v3653
      %3728 = vst.msk [vmem:[#allocation2 + $0x510] sm:$0xff] %vm277, %v3658
      %3729 = vst.msk [vmem:[#allocation2 + $0x518] sm:$0xff] %vm277, %v3663
      %3730 = vst.msk [vmem:[#allocation2 + $0x5e0] sm:$0xff] %vm277, %v3668
      %3731 = vst.msk [vmem:[#allocation2 + $0x5e8] sm:$0xff] %vm277, %v3673
      %3732 = vst.msk [vmem:[#allocation2 + $0x5f0] sm:$0xff] %vm277, %v3678
      %3733 = vst.msk [vmem:[#allocation2 + $0x5f8] sm:$0xff] %vm277, %v3683
      %3734 = vst.msk [vmem:[#allocation2 + $0x6c0] sm:$0xff] %vm277, %v3688
      %3735 = vst.msk [vmem:[#allocation2 + $0x6c8] sm:$0xff] %vm277, %v3693
      %3736 = vst.msk [vmem:[#allocation2 + $0x6d0] sm:$0xff] %vm277, %v3698
      %3737 = vst.msk [vmem:[#allocation2 + $0x6d8] sm:$0xff] %vm277, %v3703
      %v3739 = vsel %vm277, %v3548, 0
      %v3742 = vsel %vm277, %v3553, 0
      %v3745 = vsel %vm277, %v3558, 0
      %v3748 = vsel %vm277, %v3563, 0
      %v3751 = vsel %vm277, %v3568, 0
      %v3754 = vsel %vm277, %v3573, 0
      %v3757 = vsel %vm277, %v3578, 0
      %v3760 = vsel %vm277, %v3583, 0
      %v3763 = vsel %vm277, %v3588, 0
      %v3766 = vsel %vm277, %v3593, 0
      %v3769 = vsel %vm277, %v3598, 0
      %v3772 = vsel %vm277, %v3603, 0
      %v3775 = vsel %vm277, %v3608, 0
      %v3778 = vsel %vm277, %v3613, 0
      %v3781 = vsel %vm277, %v3618, 0
      %v3784 = vsel %vm277, %v3623, 0
      %v3787 = vsel %vm277, %v3628, 0
      %v3790 = vsel %vm277, %v3633, 0
      %v3793 = vsel %vm277, %v3638, 0
      %v3796 = vsel %vm277, %v3643, 0
      %v3799 = vsel %vm277, %v3648, 0
      %v3802 = vsel %vm277, %v3653, 0
      %v3805 = vsel %vm277, %v3658, 0
      %v3808 = vsel %vm277, %v3663, 0
      %v3811 = vsel %vm277, %v3668, 0
      %v3814 = vsel %vm277, %v3673, 0
      %v3817 = vsel %vm277, %v3678, 0
      %v3820 = vsel %vm277, %v3683, 0
      %v3823 = vsel %vm277, %v3688, 0
      %v3826 = vsel %vm277, %v3693, 0
      %v3829 = vsel %vm277, %v3698, 0
      %v3832 = vsel %vm277, %v3703, 0
      %3834 = vmatprep.subr.mxu0 0.0
      %3835 = vmatpush1.msra.mxu0 %v3479
      %3836 = vmatprep.subr.mxu0 0.0
      %3837 = vmatpush1.msra.mxu0 %v3480
      %3838 = vmatprep.subr.mxu0 0.0
      %3839 = vmatpush1.msra.mxu0 0.0
      %3840 = vmatprep.subr.mxu0 0.0
      %3841 = vmatpush1.msra.mxu0 0.0
      %3842 = vmatprep.subr.mxu0 0.0
      %3843 = vmatpush1.msra.mxu0 0.0
      %3844 = vmatprep.subr.mxu0 0.0
      %3845 = vmatpush1.msra.mxu0 0.0
      %3846 = vmatprep.subr.mxu0 0.0
      %3847 = vmatpush1.msra.mxu0 0.0
      %3848 = vmatprep.subr.mxu0 0.0
      %3849 = vmatpush1.msra.mxu0 0.0
      %3850 = vmatprep.subr.mxu0 0.0
      %3851 = vmatpush1.msra.mxu0 0.0
      %3852 = vmatprep.subr.mxu0 0.0
      %3853 = vmatpush1.msra.mxu0 0.0
      %3854 = vmatprep.subr.mxu0 0.0
      %3855 = vmatpush1.msra.mxu0 0.0
      %3856 = vmatprep.subr.mxu0 0.0
      %3857 = vmatpush1.msra.mxu0 0.0
      %3858 = vmatprep.subr.mxu0 0.0
      %3859 = vmatpush1.msra.mxu0 0.0
      %3860 = vmatprep.subr.mxu0 0.0
      %3861 = vmatpush1.msra.mxu0 0.0
      %3862 = vmatprep.subr.mxu0 0.0
      %3863 = vmatpush1.msra.mxu0 0.0
      %3864 = vmatprep.subr.mxu0 0.0
      %3865 = vmatpush1.msra.mxu0 0.0
      %3866 = vmatprep.subr.mxu0 0.0
      %3867 = vmatpush1.msra.mxu0 0.0
      %3868 = vmatprep.subr.mxu0 0.0
      %3869 = vmatpush1.msra.mxu0 0.0
      %3870 = vmatprep.subr.mxu0 0.0
      %3871 = vmatpush1.msra.mxu0 0.0
      %3872 = vmatprep.subr.mxu0 0.0
      %3873 = vmatpush1.msra.mxu0 0.0
      %3874 = vmatprep.subr.mxu0 0.0
      %3875 = vmatpush1.msra.mxu0 0.0
      %3876 = vmatprep.subr.mxu0 0.0
      %3877 = vmatpush1.msra.mxu0 0.0
      %3878 = vmatprep.subr.mxu0 0.0
      %3879 = vmatpush1.msra.mxu0 0.0
      %3880 = vmatprep.subr.mxu0 0.0
      %3881 = vmatpush1.msra.mxu0 0.0
      %3882 = vmatprep.subr.mxu0 0.0
      %3883 = vmatpush1.msra.mxu0 0.0
      %3884 = vmatprep.subr.mxu0 0.0
      %3885 = vmatpush1.msra.mxu0 0.0
      %3886 = vmatprep.subr.mxu0 0.0
      %3887 = vmatpush1.msra.mxu0 0.0
      %3888 = vmatprep.subr.mxu0 0.0
      %3889 = vmatpush1.msra.mxu0 0.0
      %3890 = vmatprep.subr.mxu0 0.0
      %3891 = vmatpush1.msra.mxu0 0.0
      %3892 = vmatprep.subr.mxu0 0.0
      %3893 = vmatpush1.msra.mxu0 0.0
      %3894 = vmatprep.subr.mxu0 0.0
      %3895 = vmatpush1.msra.mxu0 0.0
      %3896 = vmatprep.subr.mxu0 0.0
      %3897 = vmatpush1.msra.mxu0 0.0
      %3898 = vmatprep.mubr.f32.mxu0 0.0
      %3899 = vmatmul.mubr.f32.gmra.mrb[0].mxu0 %v3739
      %v3900 = vpop.f32.mrb[0].mxu0
      %v3901 = vadd.f32 0.0, %v3900
      %v3902 = vpop.f32.mrb[0].mxu0
      %3903 = vmatprep.mubr.f32.mxu0 0.0
      %3904 = vmatmul.mubr.f32.gmra.mrb[0].mxu0 %v3742
      %v3905 = vpop.f32.mrb[0].mxu0
      %v3906 = vadd.f32 0.0, %v3905
      %v3907 = vpop.f32.mrb[0].mxu0
      %3908 = vmatprep.mubr.f32.mxu0 0.0
      %3909 = vmatmul.mubr.f32.gmra.mrb[0].mxu0 %v3745
      %v3910 = vpop.f32.mrb[0].mxu0
      %v3911 = vadd.f32 0.0, %v3910
      %v3912 = vpop.f32.mrb[0].mxu0
      %3913 = vmatprep.mubr.f32.mxu0 0.0
      %3914 = vmatmul.mubr.f32.gmra.mrb[0].mxu0 %v3748
      %v3915 = vpop.f32.mrb[0].mxu0
      %v3916 = vadd.f32 0.0, %v3915
      %v3917 = vpop.f32.mrb[0].mxu0
      %3918 = vmatprep.mubr.f32.mxu0 0.0
      %3919 = vmatmul.mubr.f32.gmra.mrb[0].mxu0 %v3751
      %v3920 = vpop.f32.mrb[0].mxu0
      %v3921 = vadd.f32 0.0, %v3920
      %v3922 = vpop.f32.mrb[0].mxu0
      %3923 = vmatprep.mubr.f32.mxu0 0.0
      %3924 = vmatmul.mubr.f32.gmra.mrb[0].mxu0 %v3754
      %v3925 = vpop.f32.mrb[0].mxu0
      %v3926 = vadd.f32 0.0, %v3925
      %v3927 = vpop.f32.mrb[0].mxu0
      %3928 = vmatprep.mubr.f32.mxu0 0.0
      %3929 = vmatmul.mubr.f32.gmra.mrb[0].mxu0 %v3757
      %v3930 = vpop.f32.mrb[0].mxu0
      %v3931 = vadd.f32 0.0, %v3930
      %v3932 = vpop.f32.mrb[0].mxu0
      %3933 = vmatprep.mubr.f32.mxu0 0.0
      %3934 = vmatmul.mubr.f32.gmra.mrb[0].mxu0 %v3760
      %v3935 = vpop.f32.mrb[0].mxu0
      %v3936 = vadd.f32 0.0, %v3935
      %v3937 = vpop.f32.mrb[0].mxu0
      %3938 = vmatprep.mubr.f32.mxu0 0.0
      %3939 = vmatmul.mubr.f32.gmra.mrb[0].mxu0 %v3763
      %v3940 = vpop.f32.mrb[0].mxu0
      %v3941 = vadd.f32 0.0, %v3940
      %v3942 = vpop.f32.mrb[0].mxu0
      %3943 = vmatprep.mubr.f32.mxu0 0.0
      %3944 = vmatmul.mubr.f32.gmra.mrb[0].mxu0 %v3766
      %v3945 = vpop.f32.mrb[0].mxu0
      %v3946 = vadd.f32 0.0, %v3945
      %v3947 = vpop.f32.mrb[0].mxu0
      %3948 = vmatprep.mubr.f32.mxu0 0.0
      %3949 = vmatmul.mubr.f32.gmra.mrb[0].mxu0 %v3769
      %v3950 = vpop.f32.mrb[0].mxu0
      %v3951 = vadd.f32 0.0, %v3950
      %v3952 = vpop.f32.mrb[0].mxu0
      %3953 = vmatprep.mubr.f32.mxu0 0.0
      %3954 = vmatmul.mubr.f32.gmra.mrb[0].mxu0 %v3772
      %v3955 = vpop.f32.mrb[0].mxu0
      %v3956 = vadd.f32 0.0, %v3955
      %v3957 = vpop.f32.mrb[0].mxu0
      %3958 = vmatprep.mubr.f32.mxu0 0.0
      %3959 = vmatmul.mubr.f32.gmra.mrb[0].mxu0 %v3775
      %v3960 = vpop.f32.mrb[0].mxu0
      %v3961 = vadd.f32 0.0, %v3960
      %v3962 = vpop.f32.mrb[0].mxu0
      %3963 = vmatprep.mubr.f32.mxu0 0.0
      %3964 = vmatmul.mubr.f32.gmra.mrb[0].mxu0 %v3778
      %v3965 = vpop.f32.mrb[0].mxu0
      %v3966 = vadd.f32 0.0, %v3965
      %v3967 = vpop.f32.mrb[0].mxu0
      %3968 = vmatprep.mubr.f32.mxu0 0.0
      %3969 = vmatmul.mubr.f32.gmra.mrb[0].mxu0 %v3781
      %v3970 = vpop.f32.mrb[0].mxu0
      %v3971 = vadd.f32 0.0, %v3970
      %v3972 = vpop.f32.mrb[0].mxu0
      %3973 = vmatprep.mubr.f32.mxu0 0.0
      %3974 = vmatmul.mubr.f32.gmra.mrb[0].mxu0 %v3784
      %v3975 = vpop.f32.mrb[0].mxu0
      %v3976 = vadd.f32 0.0, %v3975
      %v3977 = vpop.f32.mrb[0].mxu0
      %3978 = vmatprep.mubr.f32.mxu0 0.0
      %3979 = vmatmul.mubr.f32.gmra.mrb[0].mxu0 %v3787
      %v3980 = vpop.f32.mrb[0].mxu0
      %v3981 = vadd.f32 0.0, %v3980
      %v3982 = vpop.f32.mrb[0].mxu0
      %3983 = vmatprep.mubr.f32.mxu0 0.0
      %3984 = vmatmul.mubr.f32.gmra.mrb[0].mxu0 %v3790
      %v3985 = vpop.f32.mrb[0].mxu0
      %v3986 = vadd.f32 0.0, %v3985
      %v3987 = vpop.f32.mrb[0].mxu0
      %3988 = vmatprep.mubr.f32.mxu0 0.0
      %3989 = vmatmul.mubr.f32.gmra.mrb[0].mxu0 %v3793
      %v3990 = vpop.f32.mrb[0].mxu0
      %v3991 = vadd.f32 0.0, %v3990
      %v3992 = vpop.f32.mrb[0].mxu0
      %3993 = vmatprep.mubr.f32.mxu0 0.0
      %3994 = vmatmul.mubr.f32.gmra.mrb[0].mxu0 %v3796
      %v3995 = vpop.f32.mrb[0].mxu0
      %v3996 = vadd.f32 0.0, %v3995
      %v3997 = vpop.f32.mrb[0].mxu0
      %3998 = vmatprep.mubr.f32.mxu0 0.0
      %3999 = vmatmul.mubr.f32.gmra.mrb[0].mxu0 %v3799
      %v4000 = vpop.f32.mrb[0].mxu0
      %v4001 = vadd.f32 0.0, %v4000
      %v4002 = vpop.f32.mrb[0].mxu0
      %4003 = vmatprep.mubr.f32.mxu0 0.0
      %4004 = vmatmul.mubr.f32.gmra.mrb[0].mxu0 %v3802
      %v4005 = vpop.f32.mrb[0].mxu0
      %v4006 = vadd.f32 0.0, %v4005
      %v4007 = vpop.f32.mrb[0].mxu0
      %4008 = vmatprep.mubr.f32.mxu0 0.0
      %4009 = vmatmul.mubr.f32.gmra.mrb[0].mxu0 %v3805
      %v4010 = vpop.f32.mrb[0].mxu0
      %v4011 = vadd.f32 0.0, %v4010
      %v4012 = vpop.f32.mrb[0].mxu0
      %4013 = vmatprep.mubr.f32.mxu0 0.0
      %4014 = vmatmul.mubr.f32.gmra.mrb[0].mxu0 %v3808
      %v4015 = vpop.f32.mrb[0].mxu0
      %v4016 = vadd.f32 0.0, %v4015
      %v4017 = vpop.f32.mrb[0].mxu0
      %4018 = vmatprep.mubr.f32.mxu0 0.0
      %4019 = vmatmul.mubr.f32.gmra.mrb[0].mxu0 %v3811
      %v4020 = vpop.f32.mrb[0].mxu0
      %v4021 = vadd.f32 0.0, %v4020
      %v4022 = vpop.f32.mrb[0].mxu0
      %4023 = vmatprep.mubr.f32.mxu0 0.0
      %4024 = vmatmul.mubr.f32.gmra.mrb[0].mxu0 %v3814
      %v4025 = vpop.f32.mrb[0].mxu0
      %v4026 = vadd.f32 0.0, %v4025
      %v4027 = vpop.f32.mrb[0].mxu0
      %4028 = vmatprep.mubr.f32.mxu0 0.0
      %4029 = vmatmul.mubr.f32.gmra.mrb[0].mxu0 %v3817
      %v4030 = vpop.f32.mrb[0].mxu0
      %v4031 = vadd.f32 0.0, %v4030
      %v4032 = vpop.f32.mrb[0].mxu0
      %4033 = vmatprep.mubr.f32.mxu0 0.0
      %4034 = vmatmul.mubr.f32.gmra.mrb[0].mxu0 %v3820
      %v4035 = vpop.f32.mrb[0].mxu0
      %v4036 = vadd.f32 0.0, %v4035
      %v4037 = vpop.f32.mrb[0].mxu0
      %4038 = vmatprep.mubr.f32.mxu0 0.0
      %4039 = vmatmul.mubr.f32.gmra.mrb[0].mxu0 %v3823
      %v4040 = vpop.f32.mrb[0].mxu0
      %v4041 = vadd.f32 0.0, %v4040
      %v4042 = vpop.f32.mrb[0].mxu0
      %4043 = vmatprep.mubr.f32.mxu0 0.0
      %4044 = vmatmul.mubr.f32.gmra.mrb[0].mxu0 %v3826
      %v4045 = vpop.f32.mrb[0].mxu0
      %v4046 = vadd.f32 0.0, %v4045
      %v4047 = vpop.f32.mrb[0].mxu0
      %4048 = vmatprep.mubr.f32.mxu0 0.0
      %4049 = vmatmul.mubr.f32.gmra.mrb[0].mxu0 %v3829
      %v4050 = vpop.f32.mrb[0].mxu0
      %v4051 = vadd.f32 0.0, %v4050
      %v4052 = vpop.f32.mrb[0].mxu0
      %4053 = vmatprep.mubr.f32.mxu0 0.0
      %4054 = vmatmul.mubr.f32.gmra.mrb[0].mxu0 %v3832
      %v4055 = vpop.f32.mrb[0].mxu0
      %v4056 = vadd.f32 0.0, %v4055
      %v4057 = vpop.f32.mrb[0].mxu0
      %4058 = vdwg.mxu0
      %4059 = vst.msk [vmem:[#allocation2 + $0xc0] sm:$0xff] %vm277, %v3901
      %4060 = vst.msk [vmem:[#allocation2 + $0xc8] sm:$0xff] %vm277, %v3906
      %4061 = vst.msk [vmem:[#allocation2 + $0xd0] sm:$0xff] %vm277, %v3911
      %4062 = vst.msk [vmem:[#allocation2 + $0xd8] sm:$0xff] %vm277, %v3916
      %4063 = vst.msk [vmem:[#allocation2 + $0x1a0] sm:$0xff] %vm277, %v3921
      %4064 = vst.msk [vmem:[#allocation2 + $0x1a8] sm:$0xff] %vm277, %v3926
      %4065 = vst.msk [vmem:[#allocation2 + $0x1b0] sm:$0xff] %vm277, %v3931
      %4066 = vst.msk [vmem:[#allocation2 + $0x1b8] sm:$0xff] %vm277, %v3936
      %4067 = vst.msk [vmem:[#allocation2 + $0x280] sm:$0xff] %vm277, %v3941
      %4068 = vst.msk [vmem:[#allocation2 + $0x288] sm:$0xff] %vm277, %v3946
      %4069 = vst.msk [vmem:[#allocation2 + $0x290] sm:$0xff] %vm277, %v3951
      %4070 = vst.msk [vmem:[#allocation2 + $0x298] sm:$0xff] %vm277, %v3956
      %4071 = vst.msk [vmem:[#allocation2 + $0x360] sm:$0xff] %vm277, %v3961
      %4072 = vst.msk [vmem:[#allocation2 + $0x368] sm:$0xff] %vm277, %v3966
      %4073 = vst.msk [vmem:[#allocation2 + $0x370] sm:$0xff] %vm277, %v3971
      %4074 = vst.msk [vmem:[#allocation2 + $0x378] sm:$0xff] %vm277, %v3976
      %4075 = vst.msk [vmem:[#allocation2 + $0x440] sm:$0xff] %vm277, %v3981
      %4076 = vst.msk [vmem:[#allocation2 + $0x448] sm:$0xff] %vm277, %v3986
      %4077 = vst.msk [vmem:[#allocation2 + $0x450] sm:$0xff] %vm277, %v3991
      %4078 = vst.msk [vmem:[#allocation2 + $0x458] sm:$0xff] %vm277, %v3996
      %4079 = vst.msk [vmem:[#allocation2 + $0x520] sm:$0xff] %vm277, %v4001
      %4080 = vst.msk [vmem:[#allocation2 + $0x528] sm:$0xff] %vm277, %v4006
      %4081 = vst.msk [vmem:[#allocation2 + $0x530] sm:$0xff] %vm277, %v4011
      %4082 = vst.msk [vmem:[#allocation2 + $0x538] sm:$0xff] %vm277, %v4016
      %4083 = vst.msk [vmem:[#allocation2 + $0x600] sm:$0xff] %vm277, %v4021
      %4084 = vst.msk [vmem:[#allocation2 + $0x608] sm:$0xff] %vm277, %v4026
      %4085 = vst.msk [vmem:[#allocation2 + $0x610] sm:$0xff] %vm277, %v4031
      %4086 = vst.msk [vmem:[#allocation2 + $0x618] sm:$0xff] %vm277, %v4036
      %4087 = vst.msk [vmem:[#allocation2 + $0x6e0] sm:$0xff] %vm277, %v4041
      %4088 = vst.msk [vmem:[#allocation2 + $0x6e8] sm:$0xff] %vm277, %v4046
      %4089 = vst.msk [vmem:[#allocation2 + $0x6f0] sm:$0xff] %vm277, %v4051
      %4090 = vst.msk [vmem:[#allocation2 + $0x6f8] sm:$0xff] %vm277, %v4056
      %v4091 = vld [vmem:[%s3] sm:$0xff]
      %v4092 = vld [vmem:[%s3 + $0x8] sm:$0xff]
      %v4093 = vld [vmem:[%s3 + $0x10] sm:$0xff]
      %v4094 = vld [vmem:[%s3 + $0x18] sm:$0xff]
      %v4095 = vld [vmem:[%s3 + $0x20] sm:$0xff]
      %v4096 = vld [vmem:[%s3 + $0x28] sm:$0xff]
      %v4097 = vld [vmem:[%s3 + $0x30] sm:$0xff]
      %v4098 = vld [vmem:[%s3 + $0x38] sm:$0xff]
      %v4099 = vld [vmem:[#allocation2] sm:$0xff]
      %v4100 = vld [vmem:[#allocation2 + $0x8] sm:$0xff]
      %v4101 = vld [vmem:[#allocation2 + $0x10] sm:$0xff]
      %v4102 = vld [vmem:[#allocation2 + $0x18] sm:$0xff]
      %v4103 = vld [vmem:[#allocation2 + $0x20] sm:$0xff]
      %v4104 = vld [vmem:[#allocation2 + $0x28] sm:$0xff]
      %v4105 = vld [vmem:[#allocation2 + $0x30] sm:$0xff]
      %v4106 = vld [vmem:[#allocation2 + $0x38] sm:$0xff]
      %v4107 = vld [vmem:[#allocation2 + $0x40] sm:$0xff]
      %v4108 = vld [vmem:[#allocation2 + $0x48] sm:$0xff]
      %v4109 = vld [vmem:[#allocation2 + $0x50] sm:$0xff]
      %v4110 = vld [vmem:[#allocation2 + $0x58] sm:$0xff]
      %v4111 = vld [vmem:[#allocation2 + $0x60] sm:$0xff]
      %v4112 = vld [vmem:[#allocation2 + $0x68] sm:$0xff]
      %v4113 = vld [vmem:[#allocation2 + $0x70] sm:$0xff]
      %v4114 = vld [vmem:[#allocation2 + $0x78] sm:$0xff]
      %v4115 = vld [vmem:[#allocation2 + $0x80] sm:$0xff]
      %v4116 = vld [vmem:[#allocation2 + $0x88] sm:$0xff]
      %v4117 = vld [vmem:[#allocation2 + $0x90] sm:$0xff]
      %v4118 = vld [vmem:[#allocation2 + $0x98] sm:$0xff]
      %v4119 = vld [vmem:[#allocation2 + $0xa0] sm:$0xff]
      %v4120 = vld [vmem:[#allocation2 + $0xa8] sm:$0xff]
      %v4121 = vld [vmem:[#allocation2 + $0xb0] sm:$0xff]
      %v4122 = vld [vmem:[#allocation2 + $0xb8] sm:$0xff]
      %v4123 = vld [vmem:[#allocation2 + $0xc0] sm:$0xff]
      %v4124 = vld [vmem:[#allocation2 + $0xc8] sm:$0xff]
      %v4125 = vld [vmem:[#allocation2 + $0xd0] sm:$0xff]
      %v4126 = vld [vmem:[#allocation2 + $0xd8] sm:$0xff]
      %v4127 = vld [vmem:[#allocation2 + $0xe0] sm:$0xff]
      %v4128 = vld [vmem:[#allocation2 + $0xe8] sm:$0xff]
      %v4129 = vld [vmem:[#allocation2 + $0xf0] sm:$0xff]
      %v4130 = vld [vmem:[#allocation2 + $0xf8] sm:$0xff]
      %v4131 = vld [vmem:[#allocation2 + $0x100] sm:$0xff]
      %v4132 = vld [vmem:[#allocation2 + $0x108] sm:$0xff]
      %v4133 = vld [vmem:[#allocation2 + $0x110] sm:$0xff]
      %v4134 = vld [vmem:[#allocation2 + $0x118] sm:$0xff]
      %v4135 = vld [vmem:[#allocation2 + $0x120] sm:$0xff]
      %v4136 = vld [vmem:[#allocation2 + $0x128] sm:$0xff]
      %v4137 = vld [vmem:[#allocation2 + $0x130] sm:$0xff]
      %v4138 = vld [vmem:[#allocation2 + $0x138] sm:$0xff]
      %v4139 = vld [vmem:[#allocation2 + $0x140] sm:$0xff]
      %v4140 = vld [vmem:[#allocation2 + $0x148] sm:$0xff]
      %v4141 = vld [vmem:[#allocation2 + $0x150] sm:$0xff]
      %v4142 = vld [vmem:[#allocation2 + $0x158] sm:$0xff]
      %v4143 = vld [vmem:[#allocation2 + $0x160] sm:$0xff]
      %v4144 = vld [vmem:[#allocation2 + $0x168] sm:$0xff]
      %v4145 = vld [vmem:[#allocation2 + $0x170] sm:$0xff]
      %v4146 = vld [vmem:[#allocation2 + $0x178] sm:$0xff]
      %v4147 = vld [vmem:[#allocation2 + $0x180] sm:$0xff]
      %v4148 = vld [vmem:[#allocation2 + $0x188] sm:$0xff]
      %v4149 = vld [vmem:[#allocation2 + $0x190] sm:$0xff]
      %v4150 = vld [vmem:[#allocation2 + $0x198] sm:$0xff]
      %v4151 = vld [vmem:[#allocation2 + $0x1a0] sm:$0xff]
      %v4152 = vld [vmem:[#allocation2 + $0x1a8] sm:$0xff]
      %v4153 = vld [vmem:[#allocation2 + $0x1b0] sm:$0xff]
      %v4154 = vld [vmem:[#allocation2 + $0x1b8] sm:$0xff]
      %v4155 = vld [vmem:[#allocation2 + $0x1c0] sm:$0xff]
      %v4156 = vld [vmem:[#allocation2 + $0x1c8] sm:$0xff]
      %v4157 = vld [vmem:[#allocation2 + $0x1d0] sm:$0xff]
      %v4158 = vld [vmem:[#allocation2 + $0x1d8] sm:$0xff]
      %v4159 = vld [vmem:[#allocation2 + $0x1e0] sm:$0xff]
      %v4160 = vld [vmem:[#allocation2 + $0x1e8] sm:$0xff]
      %v4161 = vld [vmem:[#allocation2 + $0x1f0] sm:$0xff]
      %v4162 = vld [vmem:[#allocation2 + $0x1f8] sm:$0xff]
      %v4163 = vld [vmem:[#allocation2 + $0x200] sm:$0xff]
      %v4164 = vld [vmem:[#allocation2 + $0x208] sm:$0xff]
      %v4165 = vld [vmem:[#allocation2 + $0x210] sm:$0xff]
      %v4166 = vld [vmem:[#allocation2 + $0x218] sm:$0xff]
      %v4167 = vld [vmem:[#allocation2 + $0x220] sm:$0xff]
      %v4168 = vld [vmem:[#allocation2 + $0x228] sm:$0xff]
      %v4169 = vld [vmem:[#allocation2 + $0x230] sm:$0xff]
      %v4170 = vld [vmem:[#allocation2 + $0x238] sm:$0xff]
      %v4171 = vld [vmem:[#allocation2 + $0x240] sm:$0xff]
      %v4172 = vld [vmem:[#allocation2 + $0x248] sm:$0xff]
      %v4173 = vld [vmem:[#allocation2 + $0x250] sm:$0xff]
      %v4174 = vld [vmem:[#allocation2 + $0x258] sm:$0xff]
      %v4175 = vld [vmem:[#allocation2 + $0x260] sm:$0xff]
      %v4176 = vld [vmem:[#allocation2 + $0x268] sm:$0xff]
      %v4177 = vld [vmem:[#allocation2 + $0x270] sm:$0xff]
      %v4178 = vld [vmem:[#allocation2 + $0x278] sm:$0xff]
      %v4179 = vld [vmem:[#allocation2 + $0x280] sm:$0xff]
      %v4180 = vld [vmem:[#allocation2 + $0x288] sm:$0xff]
      %v4181 = vld [vmem:[#allocation2 + $0x290] sm:$0xff]
      %v4182 = vld [vmem:[#allocation2 + $0x298] sm:$0xff]
      %v4183 = vld [vmem:[#allocation2 + $0x2a0] sm:$0xff]
      %v4184 = vld [vmem:[#allocation2 + $0x2a8] sm:$0xff]
      %v4185 = vld [vmem:[#allocation2 + $0x2b0] sm:$0xff]
      %v4186 = vld [vmem:[#allocation2 + $0x2b8] sm:$0xff]
      %v4187 = vld [vmem:[#allocation2 + $0x2c0] sm:$0xff]
      %v4188 = vld [vmem:[#allocation2 + $0x2c8] sm:$0xff]
      %v4189 = vld [vmem:[#allocation2 + $0x2d0] sm:$0xff]
      %v4190 = vld [vmem:[#allocation2 + $0x2d8] sm:$0xff]
      %v4191 = vld [vmem:[#allocation2 + $0x2e0] sm:$0xff]
      %v4192 = vld [vmem:[#allocation2 + $0x2e8] sm:$0xff]
      %v4193 = vld [vmem:[#allocation2 + $0x2f0] sm:$0xff]
      %v4194 = vld [vmem:[#allocation2 + $0x2f8] sm:$0xff]
      %v4195 = vld [vmem:[#allocation2 + $0x300] sm:$0xff]
      %v4196 = vld [vmem:[#allocation2 + $0x308] sm:$0xff]
      %v4197 = vld [vmem:[#allocation2 + $0x310] sm:$0xff]
      %v4198 = vld [vmem:[#allocation2 + $0x318] sm:$0xff]
      %v4199 = vld [vmem:[#allocation2 + $0x320] sm:$0xff]
      %v4200 = vld [vmem:[#allocation2 + $0x328] sm:$0xff]
      %v4201 = vld [vmem:[#allocation2 + $0x330] sm:$0xff]
      %v4202 = vld [vmem:[#allocation2 + $0x338] sm:$0xff]
      %v4203 = vld [vmem:[#allocation2 + $0x340] sm:$0xff]
      %v4204 = vld [vmem:[#allocation2 + $0x348] sm:$0xff]
      %v4205 = vld [vmem:[#allocation2 + $0x350] sm:$0xff]
      %v4206 = vld [vmem:[#allocation2 + $0x358] sm:$0xff]
      %v4207 = vld [vmem:[#allocation2 + $0x360] sm:$0xff]
      %v4208 = vld [vmem:[#allocation2 + $0x368] sm:$0xff]
      %v4209 = vld [vmem:[#allocation2 + $0x370] sm:$0xff]
      %v4210 = vld [vmem:[#allocation2 + $0x378] sm:$0xff]
      %v4211 = vld [vmem:[#allocation2 + $0x380] sm:$0xff]
      %v4212 = vld [vmem:[#allocation2 + $0x388] sm:$0xff]
      %v4213 = vld [vmem:[#allocation2 + $0x390] sm:$0xff]
      %v4214 = vld [vmem:[#allocation2 + $0x398] sm:$0xff]
      %v4215 = vld [vmem:[#allocation2 + $0x3a0] sm:$0xff]
      %v4216 = vld [vmem:[#allocation2 + $0x3a8] sm:$0xff]
      %v4217 = vld [vmem:[#allocation2 + $0x3b0] sm:$0xff]
      %v4218 = vld [vmem:[#allocation2 + $0x3b8] sm:$0xff]
      %v4219 = vld [vmem:[#allocation2 + $0x3c0] sm:$0xff]
      %v4220 = vld [vmem:[#allocation2 + $0x3c8] sm:$0xff]
      %v4221 = vld [vmem:[#allocation2 + $0x3d0] sm:$0xff]
      %v4222 = vld [vmem:[#allocation2 + $0x3d8] sm:$0xff]
      %v4223 = vld [vmem:[#allocation2 + $0x3e0] sm:$0xff]
      %v4224 = vld [vmem:[#allocation2 + $0x3e8] sm:$0xff]
      %v4225 = vld [vmem:[#allocation2 + $0x3f0] sm:$0xff]
      %v4226 = vld [vmem:[#allocation2 + $0x3f8] sm:$0xff]
      %v4227 = vld [vmem:[#allocation2 + $0x400] sm:$0xff]
      %v4228 = vld [vmem:[#allocation2 + $0x408] sm:$0xff]
      %v4229 = vld [vmem:[#allocation2 + $0x410] sm:$0xff]
      %v4230 = vld [vmem:[#allocation2 + $0x418] sm:$0xff]
      %v4231 = vld [vmem:[#allocation2 + $0x420] sm:$0xff]
      %v4232 = vld [vmem:[#allocation2 + $0x428] sm:$0xff]
      %v4233 = vld [vmem:[#allocation2 + $0x430] sm:$0xff]
      %v4234 = vld [vmem:[#allocation2 + $0x438] sm:$0xff]
      %v4235 = vld [vmem:[#allocation2 + $0x440] sm:$0xff]
      %v4236 = vld [vmem:[#allocation2 + $0x448] sm:$0xff]
      %v4237 = vld [vmem:[#allocation2 + $0x450] sm:$0xff]
      %v4238 = vld [vmem:[#allocation2 + $0x458] sm:$0xff]
      %v4239 = vld [vmem:[#allocation2 + $0x460] sm:$0xff]
      %v4240 = vld [vmem:[#allocation2 + $0x468] sm:$0xff]
      %v4241 = vld [vmem:[#allocation2 + $0x470] sm:$0xff]
      %v4242 = vld [vmem:[#allocation2 + $0x478] sm:$0xff]
      %v4243 = vld [vmem:[#allocation2 + $0x480] sm:$0xff]
      %v4244 = vld [vmem:[#allocation2 + $0x488] sm:$0xff]
      %v4245 = vld [vmem:[#allocation2 + $0x490] sm:$0xff]
      %v4246 = vld [vmem:[#allocation2 + $0x498] sm:$0xff]
      %v4247 = vld [vmem:[#allocation2 + $0x4a0] sm:$0xff]
      %v4248 = vld [vmem:[#allocation2 + $0x4a8] sm:$0xff]
      %v4249 = vld [vmem:[#allocation2 + $0x4b0] sm:$0xff]
      %v4250 = vld [vmem:[#allocation2 + $0x4b8] sm:$0xff]
      %v4251 = vld [vmem:[#allocation2 + $0x4c0] sm:$0xff]
      %v4252 = vld [vmem:[#allocation2 + $0x4c8] sm:$0xff]
      %v4253 = vld [vmem:[#allocation2 + $0x4d0] sm:$0xff]
      %v4254 = vld [vmem:[#allocation2 + $0x4d8] sm:$0xff]
      %v4255 = vld [vmem:[#allocation2 + $0x4e0] sm:$0xff]
      %v4256 = vld [vmem:[#allocation2 + $0x4e8] sm:$0xff]
      %v4257 = vld [vmem:[#allocation2 + $0x4f0] sm:$0xff]
      %v4258 = vld [vmem:[#allocation2 + $0x4f8] sm:$0xff]
      %v4259 = vld [vmem:[#allocation2 + $0x500] sm:$0xff]
      %v4260 = vld [vmem:[#allocation2 + $0x508] sm:$0xff]
      %v4261 = vld [vmem:[#allocation2 + $0x510] sm:$0xff]
      %v4262 = vld [vmem:[#allocation2 + $0x518] sm:$0xff]
      %v4263 = vld [vmem:[#allocation2 + $0x520] sm:$0xff]
      %v4264 = vld [vmem:[#allocation2 + $0x528] sm:$0xff]
      %v4265 = vld [vmem:[#allocation2 + $0x530] sm:$0xff]
      %v4266 = vld [vmem:[#allocation2 + $0x538] sm:$0xff]
      %v4267 = vld [vmem:[#allocation2 + $0x540] sm:$0xff]
      %v4268 = vld [vmem:[#allocation2 + $0x548] sm:$0xff]
      %v4269 = vld [vmem:[#allocation2 + $0x550] sm:$0xff]
      %v4270 = vld [vmem:[#allocation2 + $0x558] sm:$0xff]
      %v4271 = vld [vmem:[#allocation2 + $0x560] sm:$0xff]
      %v4272 = vld [vmem:[#allocation2 + $0x568] sm:$0xff]
      %v4273 = vld [vmem:[#allocation2 + $0x570] sm:$0xff]
      %v4274 = vld [vmem:[#allocation2 + $0x578] sm:$0xff]
      %v4275 = vld [vmem:[#allocation2 + $0x580] sm:$0xff]
      %v4276 = vld [vmem:[#allocation2 + $0x588] sm:$0xff]
      %v4277 = vld [vmem:[#allocation2 + $0x590] sm:$0xff]
      %v4278 = vld [vmem:[#allocation2 + $0x598] sm:$0xff]
      %v4279 = vld [vmem:[#allocation2 + $0x5a0] sm:$0xff]
      %v4280 = vld [vmem:[#allocation2 + $0x5a8] sm:$0xff]
      %v4281 = vld [vmem:[#allocation2 + $0x5b0] sm:$0xff]
      %v4282 = vld [vmem:[#allocation2 + $0x5b8] sm:$0xff]
      %v4283 = vld [vmem:[#allocation2 + $0x5c0] sm:$0xff]
      %v4284 = vld [vmem:[#allocation2 + $0x5c8] sm:$0xff]
      %v4285 = vld [vmem:[#allocation2 + $0x5d0] sm:$0xff]
      %v4286 = vld [vmem:[#allocation2 + $0x5d8] sm:$0xff]
      %v4287 = vld [vmem:[#allocation2 + $0x5e0] sm:$0xff]
      %v4288 = vld [vmem:[#allocation2 + $0x5e8] sm:$0xff]
      %v4289 = vld [vmem:[#allocation2 + $0x5f0] sm:$0xff]
      %v4290 = vld [vmem:[#allocation2 + $0x5f8] sm:$0xff]
      %v4291 = vld [vmem:[#allocation2 + $0x600] sm:$0xff]
      %v4292 = vld [vmem:[#allocation2 + $0x608] sm:$0xff]
      %v4293 = vld [vmem:[#allocation2 + $0x610] sm:$0xff]
      %v4294 = vld [vmem:[#allocation2 + $0x618] sm:$0xff]
      %v4295 = vld [vmem:[#allocation2 + $0x620] sm:$0xff]
      %v4296 = vld [vmem:[#allocation2 + $0x628] sm:$0xff]
      %v4297 = vld [vmem:[#allocation2 + $0x630] sm:$0xff]
      %v4298 = vld [vmem:[#allocation2 + $0x638] sm:$0xff]
      %v4299 = vld [vmem:[#allocation2 + $0x640] sm:$0xff]
      %v4300 = vld [vmem:[#allocation2 + $0x648] sm:$0xff]
      %v4301 = vld [vmem:[#allocation2 + $0x650] sm:$0xff]
      %v4302 = vld [vmem:[#allocation2 + $0x658] sm:$0xff]
      %v4303 = vld [vmem:[#allocation2 + $0x660] sm:$0xff]
      %v4304 = vld [vmem:[#allocation2 + $0x668] sm:$0xff]
      %v4305 = vld [vmem:[#allocation2 + $0x670] sm:$0xff]
      %v4306 = vld [vmem:[#allocation2 + $0x678] sm:$0xff]
      %v4307 = vld [vmem:[#allocation2 + $0x680] sm:$0xff]
      %v4308 = vld [vmem:[#allocation2 + $0x688] sm:$0xff]
      %v4309 = vld [vmem:[#allocation2 + $0x690] sm:$0xff]
      %v4310 = vld [vmem:[#allocation2 + $0x698] sm:$0xff]
      %v4311 = vld [vmem:[#allocation2 + $0x6a0] sm:$0xff]
      %v4312 = vld [vmem:[#allocation2 + $0x6a8] sm:$0xff]
      %v4313 = vld [vmem:[#allocation2 + $0x6b0] sm:$0xff]
      %v4314 = vld [vmem:[#allocation2 + $0x6b8] sm:$0xff]
      %v4315 = vld [vmem:[#allocation2 + $0x6c0] sm:$0xff]
      %v4316 = vld [vmem:[#allocation2 + $0x6c8] sm:$0xff]
      %v4317 = vld [vmem:[#allocation2 + $0x6d0] sm:$0xff]
      %v4318 = vld [vmem:[#allocation2 + $0x6d8] sm:$0xff]
      %v4319 = vld [vmem:[#allocation2 + $0x6e0] sm:$0xff]
      %v4320 = vld [vmem:[#allocation2 + $0x6e8] sm:$0xff]
      %v4321 = vld [vmem:[#allocation2 + $0x6f0] sm:$0xff]
      %v4322 = vld [vmem:[#allocation2 + $0x6f8] sm:$0xff]
      %v4323 = vld [vmem:[%s4] sm:$0xff]
      %v4324 = vld [vmem:[%s4 + $0x8] sm:$0xff]
      %v4325 = vld [vmem:[%s4 + $0x10] sm:$0xff]
      %v4326 = vld [vmem:[%s4 + $0x18] sm:$0xff]
      %4328 = vset.pattern.permute.xlu0 0
      %4329 = vperm.xlu0 %4328, %v4323
      %v4330 = vpop.permute.xlu0 %4329
      %4333 = vset.pattern.permute.xlu0 0
      %4334 = vperm.xlu0 %4333, %v4324
      %v4335 = vpop.permute.xlu0 %4334
      %4338 = vset.pattern.permute.xlu0 0
      %4339 = vperm.xlu0 %4338, %v4325
      %v4340 = vpop.permute.xlu0 %4339
      %4343 = vset.pattern.permute.xlu0 0
      %4344 = vperm.xlu0 %4343, %v4326
      %v4345 = vpop.permute.xlu0 %4344
      %vm4347 = vcmask 785408
      %v4349 = vsel %vm4347, %v4092, 0
      %v4352 = vsel %vm4347, %v4094, 0
      %v4355 = vsel %vm4347, %v4096, 0
      %v4358 = vsel %vm4347, %v4098, 0
      %4360 = vmatprep.subr.mxu0 0.0
      %4361 = vmatpush1.msra.mxu0 %v4099
      %4362 = vmatprep.subr.mxu0 0.0
      %4363 = vmatpush1.msra.mxu0 %v4100
      %4364 = vmatprep.subr.mxu0 0.0
      %4365 = vmatpush1.msra.mxu0 %v4101
      %4366 = vmatprep.subr.mxu0 0.0
      %4367 = vmatpush1.msra.mxu0 %v4102
      %4368 = vmatprep.subr.mxu0 0.0
      %4369 = vmatpush1.msra.mxu0 %v4103
      %4370 = vmatprep.subr.mxu0 0.0
      %4371 = vmatpush1.msra.mxu0 %v4104
      %4372 = vmatprep.subr.mxu0 0.0
      %4373 = vmatpush1.msra.mxu0 %v4105
      %4374 = vmatprep.subr.mxu0 0.0
      %4375 = vmatpush1.msra.mxu0 %v4106
      %4376 = vmatprep.subr.mxu0 0.0
      %4377 = vmatpush1.msra.mxu0 %v4107
      %4378 = vmatprep.subr.mxu0 0.0
      %4379 = vmatpush1.msra.mxu0 %v4108
      %4380 = vmatprep.subr.mxu0 0.0
      %4381 = vmatpush1.msra.mxu0 %v4109
      %4382 = vmatprep.subr.mxu0 0.0
      %4383 = vmatpush1.msra.mxu0 %v4110
      %4384 = vmatprep.subr.mxu0 0.0
      %4385 = vmatpush1.msra.mxu0 %v4111
      %4386 = vmatprep.subr.mxu0 0.0
      %4387 = vmatpush1.msra.mxu0 %v4112
      %4388 = vmatprep.subr.mxu0 0.0
      %4389 = vmatpush1.msra.mxu0 %v4113
      %4390 = vmatprep.subr.mxu0 0.0
      %4391 = vmatpush1.msra.mxu0 %v4114
      %4392 = vmatprep.subr.mxu0 0.0
      %4393 = vmatpush1.msra.mxu0 %v4115
      %4394 = vmatprep.subr.mxu0 0.0
      %4395 = vmatpush1.msra.mxu0 %v4116
      %4396 = vmatprep.subr.mxu0 0.0
      %4397 = vmatpush1.msra.mxu0 %v4117
      %4398 = vmatprep.subr.mxu0 0.0
      %4399 = vmatpush1.msra.mxu0 %v4118
      %4400 = vmatprep.subr.mxu0 0.0
      %4401 = vmatpush1.msra.mxu0 %v4119
      %4402 = vmatprep.subr.mxu0 0.0
      %4403 = vmatpush1.msra.mxu0 %v4120
      %4404 = vmatprep.subr.mxu0 0.0
      %4405 = vmatpush1.msra.mxu0 %v4121
      %4406 = vmatprep.subr.mxu0 0.0
      %4407 = vmatpush1.msra.mxu0 %v4122
      %4408 = vmatprep.subr.mxu0 0.0
      %4409 = vmatpush1.msra.mxu0 %v4123
      %4410 = vmatprep.subr.mxu0 0.0
      %4411 = vmatpush1.msra.mxu0 %v4124
      %4412 = vmatprep.subr.mxu0 0.0
      %4413 = vmatpush1.msra.mxu0 %v4125
      %4414 = vmatprep.subr.mxu0 0.0
      %4415 = vmatpush1.msra.mxu0 %v4126
      %4416 = vmatprep.subr.mxu0 0.0
      %4417 = vmatpush1.msra.mxu0 0.0
      %4418 = vmatprep.subr.mxu0 0.0
      %4419 = vmatpush1.msra.mxu0 0.0
      %4420 = vmatprep.subr.mxu0 0.0
      %4421 = vmatpush1.msra.mxu0 0.0
      %4422 = vmatprep.subr.mxu0 0.0
      %4423 = vmatpush1.msra.mxu0 0.0
      %4424 = vmatprep.mubr.f32.mxu0 %v4349
      %4425 = vmatmul.mubr.f32.gmra.mrb[0].mxu0 %v4091
      %v4426 = vpop.f32.mrb[0].mxu0
      %v4427 = vadd.f32 %v4330, %v4426
      %v4428 = vpop.f32.mrb[0].mxu0
      %4429 = vmatprep.mubr.f32.mxu0 %v4352
      %4430 = vmatmul.mubr.f32.gmra.mrb[0].mxu0 %v4093
      %v4431 = vpop.f32.mrb[0].mxu0
      %v4432 = vadd.f32 %v4335, %v4431
      %v4433 = vpop.f32.mrb[0].mxu0
      %4434 = vmatprep.mubr.f32.mxu0 %v4355
      %4435 = vmatmul.mubr.f32.gmra.mrb[0].mxu0 %v4095
      %v4436 = vpop.f32.mrb[0].mxu0
      %v4437 = vadd.f32 %v4340, %v4436
      %v4438 = vpop.f32.mrb[0].mxu0
      %4439 = vmatprep.mubr.f32.mxu0 %v4358
      %4440 = vmatmul.mubr.f32.gmra.mrb[0].mxu0 %v4097
      %v4441 = vpop.f32.mrb[0].mxu0
      %v4442 = vadd.f32 %v4345, %v4441
      %v4443 = vpop.f32.mrb[0].mxu0
      %4444 = vdwg.mxu0
      %4445 = vmatprep.subr.mxu0 0.0
      %4446 = vmatpush1.msra.mxu0 %v4127
      %4447 = vmatprep.subr.mxu0 0.0
      %4448 = vmatpush1.msra.mxu0 %v4128
      %4449 = vmatprep.subr.mxu0 0.0
      %4450 = vmatpush1.msra.mxu0 %v4129
      %4451 = vmatprep.subr.mxu0 0.0
      %4452 = vmatpush1.msra.mxu0 %v4130
      %4453 = vmatprep.subr.mxu0 0.0
      %4454 = vmatpush1.msra.mxu0 %v4131
      %4455 = vmatprep.subr.mxu0 0.0
      %4456 = vmatpush1.msra.mxu0 %v4132
      %4457 = vmatprep.subr.mxu0 0.0
      %4458 = vmatpush1.msra.mxu0 %v4133
      %4459 = vmatprep.subr.mxu0 0.0
      %4460 = vmatpush1.msra.mxu0 %v4134
      %4461 = vmatprep.subr.mxu0 0.0
      %4462 = vmatpush1.msra.mxu0 %v4135
      %4463 = vmatprep.subr.mxu0 0.0
      %4464 = vmatpush1.msra.mxu0 %v4136
      %4465 = vmatprep.subr.mxu0 0.0
      %4466 = vmatpush1.msra.mxu0 %v4137
      %4467 = vmatprep.subr.mxu0 0.0
      %4468 = vmatpush1.msra.mxu0 %v4138
      %4469 = vmatprep.subr.mxu0 0.0
      %4470 = vmatpush1.msra.mxu0 %v4139
      %4471 = vmatprep.subr.mxu0 0.0
      %4472 = vmatpush1.msra.mxu0 %v4140
      %4473 = vmatprep.subr.mxu0 0.0
      %4474 = vmatpush1.msra.mxu0 %v4141
      %4475 = vmatprep.subr.mxu0 0.0
      %4476 = vmatpush1.msra.mxu0 %v4142
      %4477 = vmatprep.subr.mxu0 0.0
      %4478 = vmatpush1.msra.mxu0 %v4143
      %4479 = vmatprep.subr.mxu0 0.0
      %4480 = vmatpush1.msra.mxu0 %v4144
      %4481 = vmatprep.subr.mxu0 0.0
      %4482 = vmatpush1.msra.mxu0 %v4145
      %4483 = vmatprep.subr.mxu0 0.0
      %4484 = vmatpush1.msra.mxu0 %v4146
      %4485 = vmatprep.subr.mxu0 0.0
      %4486 = vmatpush1.msra.mxu0 %v4147
      %4487 = vmatprep.subr.mxu0 0.0
      %4488 = vmatpush1.msra.mxu0 %v4148
      %4489 = vmatprep.subr.mxu0 0.0
      %4490 = vmatpush1.msra.mxu0 %v4149
      %4491 = vmatprep.subr.mxu0 0.0
      %4492 = vmatpush1.msra.mxu0 %v4150
      %4493 = vmatprep.subr.mxu0 0.0
      %4494 = vmatpush1.msra.mxu0 %v4151
      %4495 = vmatprep.subr.mxu0 0.0
      %4496 = vmatpush1.msra.mxu0 %v4152
      %4497 = vmatprep.subr.mxu0 0.0
      %4498 = vmatpush1.msra.mxu0 %v4153
      %4499 = vmatprep.subr.mxu0 0.0
      %4500 = vmatpush1.msra.mxu0 %v4154
      %4501 = vmatprep.subr.mxu0 0.0
      %4502 = vmatpush1.msra.mxu0 0.0
      %4503 = vmatprep.subr.mxu0 0.0
      %4504 = vmatpush1.msra.mxu0 0.0
      %4505 = vmatprep.subr.mxu0 0.0
      %4506 = vmatpush1.msra.mxu0 0.0
      %4507 = vmatprep.subr.mxu0 0.0
      %4508 = vmatpush1.msra.mxu0 0.0
      %4509 = vmatprep.mubr.f32.mxu0 %v4349
      %4510 = vmatmul.mubr.f32.gmra.mrb[0].mxu0 %v4091
      %v4511 = vpop.f32.mrb[0].mxu0
      %v4512 = vadd.f32 %v4330, %v4511
      %v4513 = vpop.f32.mrb[0].mxu0
      %4514 = vmatprep.mubr.f32.mxu0 %v4352
      %4515 = vmatmul.mubr.f32.gmra.mrb[0].mxu0 %v4093
      %v4516 = vpop.f32.mrb[0].mxu0
      %v4517 = vadd.f32 %v4335, %v4516
      %v4518 = vpop.f32.mrb[0].mxu0
      %4519 = vmatprep.mubr.f32.mxu0 %v4355
      %4520 = vmatmul.mubr.f32.gmra.mrb[0].mxu0 %v4095
      %v4521 = vpop.f32.mrb[0].mxu0
      %v4522 = vadd.f32 %v4340, %v4521
      %v4523 = vpop.f32.mrb[0].mxu0
      %4524 = vmatprep.mubr.f32.mxu0 %v4358
      %4525 = vmatmul.mubr.f32.gmra.mrb[0].mxu0 %v4097
      %v4526 = vpop.f32.mrb[0].mxu0
      %v4527 = vadd.f32 %v4345, %v4526
      %v4528 = vpop.f32.mrb[0].mxu0
      %4529 = vdwg.mxu0
      %4530 = vmatprep.subr.mxu0 0.0
      %4531 = vmatpush1.msra.mxu0 %v4155
      %4532 = vmatprep.subr.mxu0 0.0
      %4533 = vmatpush1.msra.mxu0 %v4156
      %4534 = vmatprep.subr.mxu0 0.0
      %4535 = vmatpush1.msra.mxu0 %v4157
      %4536 = vmatprep.subr.mxu0 0.0
      %4537 = vmatpush1.msra.mxu0 %v4158
      %4538 = vmatprep.subr.mxu0 0.0
      %4539 = vmatpush1.msra.mxu0 %v4159
      %4540 = vmatprep.subr.mxu0 0.0
      %4541 = vmatpush1.msra.mxu0 %v4160
      %4542 = vmatprep.subr.mxu0 0.0
      %4543 = vmatpush1.msra.mxu0 %v4161
      %4544 = vmatprep.subr.mxu0 0.0
      %4545 = vmatpush1.msra.mxu0 %v4162
      %4546 = vmatprep.subr.mxu0 0.0
      %4547 = vmatpush1.msra.mxu0 %v4163
      %4548 = vmatprep.subr.mxu0 0.0
      %4549 = vmatpush1.msra.mxu0 %v4164
      %4550 = vmatprep.subr.mxu0 0.0
      %4551 = vmatpush1.msra.mxu0 %v4165
      %4552 = vmatprep.subr.mxu0 0.0
      %4553 = vmatpush1.msra.mxu0 %v4166
      %4554 = vmatprep.subr.mxu0 0.0
      %4555 = vmatpush1.msra.mxu0 %v4167
      %4556 = vmatprep.subr.mxu0 0.0
      %4557 = vmatpush1.msra.mxu0 %v4168
      %4558 = vmatprep.subr.mxu0 0.0
      %4559 = vmatpush1.msra.mxu0 %v4169
      %4560 = vmatprep.subr.mxu0 0.0
      %4561 = vmatpush1.msra.mxu0 %v4170
      %4562 = vmatprep.subr.mxu0 0.0
      %4563 = vmatpush1.msra.mxu0 %v4171
      %4564 = vmatprep.subr.mxu0 0.0
      %4565 = vmatpush1.msra.mxu0 %v4172
      %4566 = vmatprep.subr.mxu0 0.0
      %4567 = vmatpush1.msra.mxu0 %v4173
      %4568 = vmatprep.subr.mxu0 0.0
      %4569 = vmatpush1.msra.mxu0 %v4174
      %4570 = vmatprep.subr.mxu0 0.0
      %4571 = vmatpush1.msra.mxu0 %v4175
      %4572 = vmatprep.subr.mxu0 0.0
      %4573 = vmatpush1.msra.mxu0 %v4176
      %4574 = vmatprep.subr.mxu0 0.0
      %4575 = vmatpush1.msra.mxu0 %v4177
      %4576 = vmatprep.subr.mxu0 0.0
      %4577 = vmatpush1.msra.mxu0 %v4178
      %4578 = vmatprep.subr.mxu0 0.0
      %4579 = vmatpush1.msra.mxu0 %v4179
      %4580 = vmatprep.subr.mxu0 0.0
      %4581 = vmatpush1.msra.mxu0 %v4180
      %4582 = vmatprep.subr.mxu0 0.0
      %4583 = vmatpush1.msra.mxu0 %v4181
      %4584 = vmatprep.subr.mxu0 0.0
      %4585 = vmatpush1.msra.mxu0 %v4182
      %4586 = vmatprep.subr.mxu0 0.0
      %4587 = vmatpush1.msra.mxu0 0.0
      %4588 = vmatprep.subr.mxu0 0.0
      %4589 = vmatpush1.msra.mxu0 0.0
      %4590 = vmatprep.subr.mxu0 0.0
      %4591 = vmatpush1.msra.mxu0 0.0
      %4592 = vmatprep.subr.mxu0 0.0
      %4593 = vmatpush1.msra.mxu0 0.0
      %4594 = vmatprep.mubr.f32.mxu0 %v4349
      %4595 = vmatmul.mubr.f32.gmra.mrb[0].mxu0 %v4091
      %v4596 = vpop.f32.mrb[0].mxu0
      %v4597 = vadd.f32 %v4330, %v4596
      %v4598 = vpop.f32.mrb[0].mxu0
      %4599 = vmatprep.mubr.f32.mxu0 %v4352
      %4600 = vmatmul.mubr.f32.gmra.mrb[0].mxu0 %v4093
      %v4601 = vpop.f32.mrb[0].mxu0
      %v4602 = vadd.f32 %v4335, %v4601
      %v4603 = vpop.f32.mrb[0].mxu0
      %4604 = vmatprep.mubr.f32.mxu0 %v4355
      %4605 = vmatmul.mubr.f32.gmra.mrb[0].mxu0 %v4095
      %v4606 = vpop.f32.mrb[0].mxu0
      %v4607 = vadd.f32 %v4340, %v4606
      %v4608 = vpop.f32.mrb[0].mxu0
      %4609 = vmatprep.mubr.f32.mxu0 %v4358
      %4610 = vmatmul.mubr.f32.gmra.mrb[0].mxu0 %v4097
      %v4611 = vpop.f32.mrb[0].mxu0
      %v4612 = vadd.f32 %v4345, %v4611
      %v4613 = vpop.f32.mrb[0].mxu0
      %4614 = vdwg.mxu0
      %4615 = vmatprep.subr.mxu0 0.0
      %4616 = vmatpush1.msra.mxu0 %v4183
      %4617 = vmatprep.subr.mxu0 0.0
      %4618 = vmatpush1.msra.mxu0 %v4184
      %4619 = vmatprep.subr.mxu0 0.0
      %4620 = vmatpush1.msra.mxu0 %v4185
      %4621 = vmatprep.subr.mxu0 0.0
      %4622 = vmatpush1.msra.mxu0 %v4186
      %4623 = vmatprep.subr.mxu0 0.0
      %4624 = vmatpush1.msra.mxu0 %v4187
      %4625 = vmatprep.subr.mxu0 0.0
      %4626 = vmatpush1.msra.mxu0 %v4188
      %4627 = vmatprep.subr.mxu0 0.0
      %4628 = vmatpush1.msra.mxu0 %v4189
      %4629 = vmatprep.subr.mxu0 0.0
      %4630 = vmatpush1.msra.mxu0 %v4190
      %4631 = vmatprep.subr.mxu0 0.0
      %4632 = vmatpush1.msra.mxu0 %v4191
      %4633 = vmatprep.subr.mxu0 0.0
      %4634 = vmatpush1.msra.mxu0 %v4192
      %4635 = vmatprep.subr.mxu0 0.0
      %4636 = vmatpush1.msra.mxu0 %v4193
      %4637 = vmatprep.subr.mxu0 0.0
      %4638 = vmatpush1.msra.mxu0 %v4194
      %4639 = vmatprep.subr.mxu0 0.0
      %4640 = vmatpush1.msra.mxu0 %v4195
      %4641 = vmatprep.subr.mxu0 0.0
      %4642 = vmatpush1.msra.mxu0 %v4196
      %4643 = vmatprep.subr.mxu0 0.0
      %4644 = vmatpush1.msra.mxu0 %v4197
      %4645 = vmatprep.subr.mxu0 0.0
      %4646 = vmatpush1.msra.mxu0 %v4198
      %4647 = vmatprep.subr.mxu0 0.0
      %4648 = vmatpush1.msra.mxu0 %v4199
      %4649 = vmatprep.subr.mxu0 0.0
      %4650 = vmatpush1.msra.mxu0 %v4200
      %4651 = vmatprep.subr.mxu0 0.0
      %4652 = vmatpush1.msra.mxu0 %v4201
      %4653 = vmatprep.subr.mxu0 0.0
      %4654 = vmatpush1.msra.mxu0 %v4202
      %4655 = vmatprep.subr.mxu0 0.0
      %4656 = vmatpush1.msra.mxu0 %v4203
      %4657 = vmatprep.subr.mxu0 0.0
      %4658 = vmatpush1.msra.mxu0 %v4204
      %4659 = vmatprep.subr.mxu0 0.0
      %4660 = vmatpush1.msra.mxu0 %v4205
      %4661 = vmatprep.subr.mxu0 0.0
      %4662 = vmatpush1.msra.mxu0 %v4206
      %4663 = vmatprep.subr.mxu0 0.0
      %4664 = vmatpush1.msra.mxu0 %v4207
      %4665 = vmatprep.subr.mxu0 0.0
      %4666 = vmatpush1.msra.mxu0 %v4208
      %4667 = vmatprep.subr.mxu0 0.0
      %4668 = vmatpush1.msra.mxu0 %v4209
      %4669 = vmatprep.subr.mxu0 0.0
      %4670 = vmatpush1.msra.mxu0 %v4210
      %4671 = vmatprep.subr.mxu0 0.0
      %4672 = vmatpush1.msra.mxu0 0.0
      %4673 = vmatprep.subr.mxu0 0.0
      %4674 = vmatpush1.msra.mxu0 0.0
      %4675 = vmatprep.subr.mxu0 0.0
      %4676 = vmatpush1.msra.mxu0 0.0
      %4677 = vmatprep.subr.mxu0 0.0
      %4678 = vmatpush1.msra.mxu0 0.0
      %4679 = vmatprep.mubr.f32.mxu0 %v4349
      %4680 = vmatmul.mubr.f32.gmra.mrb[0].mxu0 %v4091
      %v4681 = vpop.f32.mrb[0].mxu0
      %v4682 = vadd.f32 %v4330, %v4681
      %v4683 = vpop.f32.mrb[0].mxu0
      %4684 = vmatprep.mubr.f32.mxu0 %v4352
      %4685 = vmatmul.mubr.f32.gmra.mrb[0].mxu0 %v4093
      %v4686 = vpop.f32.mrb[0].mxu0
      %v4687 = vadd.f32 %v4335, %v4686
      %v4688 = vpop.f32.mrb[0].mxu0
      %4689 = vmatprep.mubr.f32.mxu0 %v4355
      %4690 = vmatmul.mubr.f32.gmra.mrb[0].mxu0 %v4095
      %v4691 = vpop.f32.mrb[0].mxu0
      %v4692 = vadd.f32 %v4340, %v4691
      %v4693 = vpop.f32.mrb[0].mxu0
      %4694 = vmatprep.mubr.f32.mxu0 %v4358
      %4695 = vmatmul.mubr.f32.gmra.mrb[0].mxu0 %v4097
      %v4696 = vpop.f32.mrb[0].mxu0
      %v4697 = vadd.f32 %v4345, %v4696
      %v4698 = vpop.f32.mrb[0].mxu0
      %4699 = vdwg.mxu0
      %4700 = vmatprep.subr.mxu0 0.0
      %4701 = vmatpush1.msra.mxu0 %v4211
      %4702 = vmatprep.subr.mxu0 0.0
      %4703 = vmatpush1.msra.mxu0 %v4212
      %4704 = vmatprep.subr.mxu0 0.0
      %4705 = vmatpush1.msra.mxu0 %v4213
      %4706 = vmatprep.subr.mxu0 0.0
      %4707 = vmatpush1.msra.mxu0 %v4214
      %4708 = vmatprep.subr.mxu0 0.0
      %4709 = vmatpush1.msra.mxu0 %v4215
      %4710 = vmatprep.subr.mxu0 0.0
      %4711 = vmatpush1.msra.mxu0 %v4216
      %4712 = vmatprep.subr.mxu0 0.0
      %4713 = vmatpush1.msra.mxu0 %v4217
      %4714 = vmatprep.subr.mxu0 0.0
      %4715 = vmatpush1.msra.mxu0 %v4218
      %4716 = vmatprep.subr.mxu0 0.0
      %4717 = vmatpush1.msra.mxu0 %v4219
      %4718 = vmatprep.subr.mxu0 0.0
      %4719 = vmatpush1.msra.mxu0 %v4220
      %4720 = vmatprep.subr.mxu0 0.0
      %4721 = vmatpush1.msra.mxu0 %v4221
      %4722 = vmatprep.subr.mxu0 0.0
      %4723 = vmatpush1.msra.mxu0 %v4222
      %4724 = vmatprep.subr.mxu0 0.0
      %4725 = vmatpush1.msra.mxu0 %v4223
      %4726 = vmatprep.subr.mxu0 0.0
      %4727 = vmatpush1.msra.mxu0 %v4224
      %4728 = vmatprep.subr.mxu0 0.0
      %4729 = vmatpush1.msra.mxu0 %v4225
      %4730 = vmatprep.subr.mxu0 0.0
      %4731 = vmatpush1.msra.mxu0 %v4226
      %4732 = vmatprep.subr.mxu0 0.0
      %4733 = vmatpush1.msra.mxu0 %v4227
      %4734 = vmatprep.subr.mxu0 0.0
      %4735 = vmatpush1.msra.mxu0 %v4228
      %4736 = vmatprep.subr.mxu0 0.0
      %4737 = vmatpush1.msra.mxu0 %v4229
      %4738 = vmatprep.subr.mxu0 0.0
      %4739 = vmatpush1.msra.mxu0 %v4230
      %4740 = vmatprep.subr.mxu0 0.0
      %4741 = vmatpush1.msra.mxu0 %v4231
      %4742 = vmatprep.subr.mxu0 0.0
      %4743 = vmatpush1.msra.mxu0 %v4232
      %4744 = vmatprep.subr.mxu0 0.0
      %4745 = vmatpush1.msra.mxu0 %v4233
      %4746 = vmatprep.subr.mxu0 0.0
      %4747 = vmatpush1.msra.mxu0 %v4234
      %4748 = vmatprep.subr.mxu0 0.0
      %4749 = vmatpush1.msra.mxu0 %v4235
      %4750 = vmatprep.subr.mxu0 0.0
      %4751 = vmatpush1.msra.mxu0 %v4236
      %4752 = vmatprep.subr.mxu0 0.0
      %4753 = vmatpush1.msra.mxu0 %v4237
      %4754 = vmatprep.subr.mxu0 0.0
      %4755 = vmatpush1.msra.mxu0 %v4238
      %4756 = vmatprep.subr.mxu0 0.0
      %4757 = vmatpush1.msra.mxu0 0.0
      %4758 = vmatprep.subr.mxu0 0.0
      %4759 = vmatpush1.msra.mxu0 0.0
      %4760 = vmatprep.subr.mxu0 0.0
      %4761 = vmatpush1.msra.mxu0 0.0
      %4762 = vmatprep.subr.mxu0 0.0
      %4763 = vmatpush1.msra.mxu0 0.0
      %4764 = vmatprep.mubr.f32.mxu0 %v4349
      %4765 = vmatmul.mubr.f32.gmra.mrb[0].mxu0 %v4091
      %v4766 = vpop.f32.mrb[0].mxu0
      %v4767 = vadd.f32 %v4330, %v4766
      %v4768 = vpop.f32.mrb[0].mxu0
      %4769 = vmatprep.mubr.f32.mxu0 %v4352
      %4770 = vmatmul.mubr.f32.gmra.mrb[0].mxu0 %v4093
      %v4771 = vpop.f32.mrb[0].mxu0
      %v4772 = vadd.f32 %v4335, %v4771
      %v4773 = vpop.f32.mrb[0].mxu0
      %4774 = vmatprep.mubr.f32.mxu0 %v4355
      %4775 = vmatmul.mubr.f32.gmra.mrb[0].mxu0 %v4095
      %v4776 = vpop.f32.mrb[0].mxu0
      %v4777 = vadd.f32 %v4340, %v4776
      %v4778 = vpop.f32.mrb[0].mxu0
      %4779 = vmatprep.mubr.f32.mxu0 %v4358
      %4780 = vmatmul.mubr.f32.gmra.mrb[0].mxu0 %v4097
      %v4781 = vpop.f32.mrb[0].mxu0
      %v4782 = vadd.f32 %v4345, %v4781
      %v4783 = vpop.f32.mrb[0].mxu0
      %4784 = vdwg.mxu0
      %4785 = vmatprep.subr.mxu0 0.0
      %4786 = vmatpush1.msra.mxu0 %v4239
      %4787 = vmatprep.subr.mxu0 0.0
      %4788 = vmatpush1.msra.mxu0 %v4240
      %4789 = vmatprep.subr.mxu0 0.0
      %4790 = vmatpush1.msra.mxu0 %v4241
      %4791 = vmatprep.subr.mxu0 0.0
      %4792 = vmatpush1.msra.mxu0 %v4242
      %4793 = vmatprep.subr.mxu0 0.0
      %4794 = vmatpush1.msra.mxu0 %v4243
      %4795 = vmatprep.subr.mxu0 0.0
      %4796 = vmatpush1.msra.mxu0 %v4244
      %4797 = vmatprep.subr.mxu0 0.0
      %4798 = vmatpush1.msra.mxu0 %v4245
      %4799 = vmatprep.subr.mxu0 0.0
      %4800 = vmatpush1.msra.mxu0 %v4246
      %4801 = vmatprep.subr.mxu0 0.0
      %4802 = vmatpush1.msra.mxu0 %v4247
      %4803 = vmatprep.subr.mxu0 0.0
      %4804 = vmatpush1.msra.mxu0 %v4248
      %4805 = vmatprep.subr.mxu0 0.0
      %4806 = vmatpush1.msra.mxu0 %v4249
      %4807 = vmatprep.subr.mxu0 0.0
      %4808 = vmatpush1.msra.mxu0 %v4250
      %4809 = vmatprep.subr.mxu0 0.0
      %4810 = vmatpush1.msra.mxu0 %v4251
      %4811 = vmatprep.subr.mxu0 0.0
      %4812 = vmatpush1.msra.mxu0 %v4252
      %4813 = vmatprep.subr.mxu0 0.0
      %4814 = vmatpush1.msra.mxu0 %v4253
      %4815 = vmatprep.subr.mxu0 0.0
      %4816 = vmatpush1.msra.mxu0 %v4254
      %4817 = vmatprep.subr.mxu0 0.0
      %4818 = vmatpush1.msra.mxu0 %v4255
      %4819 = vmatprep.subr.mxu0 0.0
      %4820 = vmatpush1.msra.mxu0 %v4256
      %4821 = vmatprep.subr.mxu0 0.0
      %4822 = vmatpush1.msra.mxu0 %v4257
      %4823 = vmatprep.subr.mxu0 0.0
      %4824 = vmatpush1.msra.mxu0 %v4258
      %4825 = vmatprep.subr.mxu0 0.0
      %4826 = vmatpush1.msra.mxu0 %v4259
      %4827 = vmatprep.subr.mxu0 0.0
      %4828 = vmatpush1.msra.mxu0 %v4260
      %4829 = vmatprep.subr.mxu0 0.0
      %4830 = vmatpush1.msra.mxu0 %v4261
      %4831 = vmatprep.subr.mxu0 0.0
      %4832 = vmatpush1.msra.mxu0 %v4262
      %4833 = vmatprep.subr.mxu0 0.0
      %4834 = vmatpush1.msra.mxu0 %v4263
      %4835 = vmatprep.subr.mxu0 0.0
      %4836 = vmatpush1.msra.mxu0 %v4264
      %4837 = vmatprep.subr.mxu0 0.0
      %4838 = vmatpush1.msra.mxu0 %v4265
      %4839 = vmatprep.subr.mxu0 0.0
      %4840 = vmatpush1.msra.mxu0 %v4266
      %4841 = vmatprep.subr.mxu0 0.0
      %4842 = vmatpush1.msra.mxu0 0.0
      %4843 = vmatprep.subr.mxu0 0.0
      %4844 = vmatpush1.msra.mxu0 0.0
      %4845 = vmatprep.subr.mxu0 0.0
      %4846 = vmatpush1.msra.mxu0 0.0
      %4847 = vmatprep.subr.mxu0 0.0
      %4848 = vmatpush1.msra.mxu0 0.0
      %4849 = vmatprep.mubr.f32.mxu0 %v4349
      %4850 = vmatmul.mubr.f32.gmra.mrb[0].mxu0 %v4091
      %v4851 = vpop.f32.mrb[0].mxu0
      %v4852 = vadd.f32 %v4330, %v4851
      %v4853 = vpop.f32.mrb[0].mxu0
      %4854 = vmatprep.mubr.f32.mxu0 %v4352
      %4855 = vmatmul.mubr.f32.gmra.mrb[0].mxu0 %v4093
      %v4856 = vpop.f32.mrb[0].mxu0
      %v4857 = vadd.f32 %v4335, %v4856
      %v4858 = vpop.f32.mrb[0].mxu0
      %4859 = vmatprep.mubr.f32.mxu0 %v4355
      %4860 = vmatmul.mubr.f32.gmra.mrb[0].mxu0 %v4095
      %v4861 = vpop.f32.mrb[0].mxu0
      %v4862 = vadd.f32 %v4340, %v4861
      %v4863 = vpop.f32.mrb[0].mxu0
      %4864 = vmatprep.mubr.f32.mxu0 %v4358
      %4865 = vmatmul.mubr.f32.gmra.mrb[0].mxu0 %v4097
      %v4866 = vpop.f32.mrb[0].mxu0
      %v4867 = vadd.f32 %v4345, %v4866
      %v4868 = vpop.f32.mrb[0].mxu0
      %4869 = vdwg.mxu0
      %4870 = vmatprep.subr.mxu0 0.0
      %4871 = vmatpush1.msra.mxu0 %v4267
      %4872 = vmatprep.subr.mxu0 0.0
      %4873 = vmatpush1.msra.mxu0 %v4268
      %4874 = vmatprep.subr.mxu0 0.0
      %4875 = vmatpush1.msra.mxu0 %v4269
      %4876 = vmatprep.subr.mxu0 0.0
      %4877 = vmatpush1.msra.mxu0 %v4270
      %4878 = vmatprep.subr.mxu0 0.0
      %4879 = vmatpush1.msra.mxu0 %v4271
      %4880 = vmatprep.subr.mxu0 0.0
      %4881 = vmatpush1.msra.mxu0 %v4272
      %4882 = vmatprep.subr.mxu0 0.0
      %4883 = vmatpush1.msra.mxu0 %v4273
      %4884 = vmatprep.subr.mxu0 0.0
      %4885 = vmatpush1.msra.mxu0 %v4274
      %4886 = vmatprep.subr.mxu0 0.0
      %4887 = vmatpush1.msra.mxu0 %v4275
      %4888 = vmatprep.subr.mxu0 0.0
      %4889 = vmatpush1.msra.mxu0 %v4276
      %4890 = vmatprep.subr.mxu0 0.0
      %4891 = vmatpush1.msra.mxu0 %v4277
      %4892 = vmatprep.subr.mxu0 0.0
      %4893 = vmatpush1.msra.mxu0 %v4278
      %4894 = vmatprep.subr.mxu0 0.0
      %4895 = vmatpush1.msra.mxu0 %v4279
      %4896 = vmatprep.subr.mxu0 0.0
      %4897 = vmatpush1.msra.mxu0 %v4280
      %4898 = vmatprep.subr.mxu0 0.0
      %4899 = vmatpush1.msra.mxu0 %v4281
      %4900 = vmatprep.subr.mxu0 0.0
      %4901 = vmatpush1.msra.mxu0 %v4282
      %4902 = vmatprep.subr.mxu0 0.0
      %4903 = vmatpush1.msra.mxu0 %v4283
      %4904 = vmatprep.subr.mxu0 0.0
      %4905 = vmatpush1.msra.mxu0 %v4284
      %4906 = vmatprep.subr.mxu0 0.0
      %4907 = vmatpush1.msra.mxu0 %v4285
      %4908 = vmatprep.subr.mxu0 0.0
      %4909 = vmatpush1.msra.mxu0 %v4286
      %4910 = vmatprep.subr.mxu0 0.0
      %4911 = vmatpush1.msra.mxu0 %v4287
      %4912 = vmatprep.subr.mxu0 0.0
      %4913 = vmatpush1.msra.mxu0 %v4288
      %4914 = vmatprep.subr.mxu0 0.0
      %4915 = vmatpush1.msra.mxu0 %v4289
      %4916 = vmatprep.subr.mxu0 0.0
      %4917 = vmatpush1.msra.mxu0 %v4290
      %4918 = vmatprep.subr.mxu0 0.0
      %4919 = vmatpush1.msra.mxu0 %v4291
      %4920 = vmatprep.subr.mxu0 0.0
      %4921 = vmatpush1.msra.mxu0 %v4292
      %4922 = vmatprep.subr.mxu0 0.0
      %4923 = vmatpush1.msra.mxu0 %v4293
      %4924 = vmatprep.subr.mxu0 0.0
      %4925 = vmatpush1.msra.mxu0 %v4294
      %4926 = vmatprep.subr.mxu0 0.0
      %4927 = vmatpush1.msra.mxu0 0.0
      %4928 = vmatprep.subr.mxu0 0.0
      %4929 = vmatpush1.msra.mxu0 0.0
      %4930 = vmatprep.subr.mxu0 0.0
      %4931 = vmatpush1.msra.mxu0 0.0
      %4932 = vmatprep.subr.mxu0 0.0
      %4933 = vmatpush1.msra.mxu0 0.0
      %4934 = vmatprep.mubr.f32.mxu0 %v4349
      %4935 = vmatmul.mubr.f32.gmra.mrb[0].mxu0 %v4091
      %v4936 = vpop.f32.mrb[0].mxu0
      %v4937 = vadd.f32 %v4330, %v4936
      %v4938 = vpop.f32.mrb[0].mxu0
      %4939 = vmatprep.mubr.f32.mxu0 %v4352
      %4940 = vmatmul.mubr.f32.gmra.mrb[0].mxu0 %v4093
      %v4941 = vpop.f32.mrb[0].mxu0
      %v4942 = vadd.f32 %v4335, %v4941
      %v4943 = vpop.f32.mrb[0].mxu0
      %4944 = vmatprep.mubr.f32.mxu0 %v4355
      %4945 = vmatmul.mubr.f32.gmra.mrb[0].mxu0 %v4095
      %v4946 = vpop.f32.mrb[0].mxu0
      %v4947 = vadd.f32 %v4340, %v4946
      %v4948 = vpop.f32.mrb[0].mxu0
      %4949 = vmatprep.mubr.f32.mxu0 %v4358
      %4950 = vmatmul.mubr.f32.gmra.mrb[0].mxu0 %v4097
      %v4951 = vpop.f32.mrb[0].mxu0
      %v4952 = vadd.f32 %v4345, %v4951
      %v4953 = vpop.f32.mrb[0].mxu0
      %4954 = vdwg.mxu0
      %4955 = vmatprep.subr.mxu0 0.0
      %4956 = vmatpush1.msra.mxu0 %v4295
      %4957 = vmatprep.subr.mxu0 0.0
      %4958 = vmatpush1.msra.mxu0 %v4296
      %4959 = vmatprep.subr.mxu0 0.0
      %4960 = vmatpush1.msra.mxu0 %v4297
      %4961 = vmatprep.subr.mxu0 0.0
      %4962 = vmatpush1.msra.mxu0 %v4298
      %4963 = vmatprep.subr.mxu0 0.0
      %4964 = vmatpush1.msra.mxu0 %v4299
      %4965 = vmatprep.subr.mxu0 0.0
      %4966 = vmatpush1.msra.mxu0 %v4300
      %4967 = vmatprep.subr.mxu0 0.0
      %4968 = vmatpush1.msra.mxu0 %v4301
      %4969 = vmatprep.subr.mxu0 0.0
      %4970 = vmatpush1.msra.mxu0 %v4302
      %4971 = vmatprep.subr.mxu0 0.0
      %4972 = vmatpush1.msra.mxu0 %v4303
      %4973 = vmatprep.subr.mxu0 0.0
      %4974 = vmatpush1.msra.mxu0 %v4304
      %4975 = vmatprep.subr.mxu0 0.0
      %4976 = vmatpush1.msra.mxu0 %v4305
      %4977 = vmatprep.subr.mxu0 0.0
      %4978 = vmatpush1.msra.mxu0 %v4306
      %4979 = vmatprep.subr.mxu0 0.0
      %4980 = vmatpush1.msra.mxu0 %v4307
      %4981 = vmatprep.subr.mxu0 0.0
      %4982 = vmatpush1.msra.mxu0 %v4308
      %4983 = vmatprep.subr.mxu0 0.0
      %4984 = vmatpush1.msra.mxu0 %v4309
      %4985 = vmatprep.subr.mxu0 0.0
      %4986 = vmatpush1.msra.mxu0 %v4310
      %4987 = vmatprep.subr.mxu0 0.0
      %4988 = vmatpush1.msra.mxu0 %v4311
      %4989 = vmatprep.subr.mxu0 0.0
      %4990 = vmatpush1.msra.mxu0 %v4312
      %4991 = vmatprep.subr.mxu0 0.0
      %4992 = vmatpush1.msra.mxu0 %v4313
      %4993 = vmatprep.subr.mxu0 0.0
      %4994 = vmatpush1.msra.mxu0 %v4314
      %4995 = vmatprep.subr.mxu0 0.0
      %4996 = vmatpush1.msra.mxu0 %v4315
      %4997 = vmatprep.subr.mxu0 0.0
      %4998 = vmatpush1.msra.mxu0 %v4316
      %4999 = vmatprep.subr.mxu0 0.0
      %5000 = vmatpush1.msra.mxu0 %v4317
      %5001 = vmatprep.subr.mxu0 0.0
      %5002 = vmatpush1.msra.mxu0 %v4318
      %5003 = vmatprep.subr.mxu0 0.0
      %5004 = vmatpush1.msra.mxu0 %v4319
      %5005 = vmatprep.subr.mxu0 0.0
      %5006 = vmatpush1.msra.mxu0 %v4320
      %5007 = vmatprep.subr.mxu0 0.0
      %5008 = vmatpush1.msra.mxu0 %v4321
      %5009 = vmatprep.subr.mxu0 0.0
      %5010 = vmatpush1.msra.mxu0 %v4322
      %5011 = vmatprep.subr.mxu0 0.0
      %5012 = vmatpush1.msra.mxu0 0.0
      %5013 = vmatprep.subr.mxu0 0.0
      %5014 = vmatpush1.msra.mxu0 0.0
      %5015 = vmatprep.subr.mxu0 0.0
      %5016 = vmatpush1.msra.mxu0 0.0
      %5017 = vmatprep.subr.mxu0 0.0
      %5018 = vmatpush1.msra.mxu0 0.0
      %5019 = vmatprep.mubr.f32.mxu0 %v4349
      %5020 = vmatmul.mubr.f32.gmra.mrb[0].mxu0 %v4091
      %v5021 = vpop.f32.mrb[0].mxu0
      %v5022 = vadd.f32 %v4330, %v5021
      %v5023 = vpop.f32.mrb[0].mxu0
      %5024 = vmatprep.mubr.f32.mxu0 %v4352
      %5025 = vmatmul.mubr.f32.gmra.mrb[0].mxu0 %v4093
      %v5026 = vpop.f32.mrb[0].mxu0
      %v5027 = vadd.f32 %v4335, %v5026
      %v5028 = vpop.f32.mrb[0].mxu0
      %5029 = vmatprep.mubr.f32.mxu0 %v4355
      %5030 = vmatmul.mubr.f32.gmra.mrb[0].mxu0 %v4095
      %v5031 = vpop.f32.mrb[0].mxu0
      %v5032 = vadd.f32 %v4340, %v5031
      %v5033 = vpop.f32.mrb[0].mxu0
      %5034 = vmatprep.mubr.f32.mxu0 %v4358
      %5035 = vmatmul.mubr.f32.gmra.mrb[0].mxu0 %v4097
      %v5036 = vpop.f32.mrb[0].mxu0
      %v5037 = vadd.f32 %v4345, %v5036
      %v5038 = vpop.f32.mrb[0].mxu0
      %5039 = vdwg.mxu0
      %5040 = vst.msk [vmem:[%s244] sm:$0xff] %vm277, %v4427
      %5041 = vst.msk [vmem:[%s244 + $0x8] sm:$0xff] %vm277, %v4432
      %5042 = vst.msk [vmem:[%s244 + $0x10] sm:$0xff] %vm277, %v4437
      %5043 = vst.msk [vmem:[%s244 + $0x18] sm:$0xff] %vm277, %v4442
      %5044 = vst.msk [vmem:[%s244 + $0x20] sm:$0xff] %vm277, %v4512
      %5045 = vst.msk [vmem:[%s244 + $0x28] sm:$0xff] %vm277, %v4517
      %5046 = vst.msk [vmem:[%s244 + $0x30] sm:$0xff] %vm277, %v4522
      %5047 = vst.msk [vmem:[%s244 + $0x38] sm:$0xff] %vm277, %v4527
      %5048 = vst.msk [vmem:[%s244 + $0x40] sm:$0xff] %vm277, %v4597
      %5049 = vst.msk [vmem:[%s244 + $0x48] sm:$0xff] %vm277, %v4602
      %5050 = vst.msk [vmem:[%s244 + $0x50] sm:$0xff] %vm277, %v4607
      %5051 = vst.msk [vmem:[%s244 + $0x58] sm:$0xff] %vm277, %v4612
      %5052 = vst.msk [vmem:[%s244 + $0x60] sm:$0xff] %vm277, %v4682
      %5053 = vst.msk [vmem:[%s244 + $0x68] sm:$0xff] %vm277, %v4687
      %5054 = vst.msk [vmem:[%s244 + $0x70] sm:$0xff] %vm277, %v4692
      %5055 = vst.msk [vmem:[%s244 + $0x78] sm:$0xff] %vm277, %v4697
      %5056 = vst.msk [vmem:[%s244 + $0x80] sm:$0xff] %vm277, %v4767
      %5057 = vst.msk [vmem:[%s244 + $0x88] sm:$0xff] %vm277, %v4772
      %5058 = vst.msk [vmem:[%s244 + $0x90] sm:$0xff] %vm277, %v4777
      %5059 = vst.msk [vmem:[%s244 + $0x98] sm:$0xff] %vm277, %v4782
      %5060 = vst.msk [vmem:[%s244 + $0xa0] sm:$0xff] %vm277, %v4852
      %5061 = vst.msk [vmem:[%s244 + $0xa8] sm:$0xff] %vm277, %v4857
      %5062 = vst.msk [vmem:[%s244 + $0xb0] sm:$0xff] %vm277, %v4862
      %5063 = vst.msk [vmem:[%s244 + $0xb8] sm:$0xff] %vm277, %v4867
      %5064 = vst.msk [vmem:[%s244 + $0xc0] sm:$0xff] %vm277, %v4937
      %5065 = vst.msk [vmem:[%s244 + $0xc8] sm:$0xff] %vm277, %v4942
      %5066 = vst.msk [vmem:[%s244 + $0xd0] sm:$0xff] %vm277, %v4947
      %5067 = vst.msk [vmem:[%s244 + $0xd8] sm:$0xff] %vm277, %v4952
      %5068 = vst.msk [vmem:[%s244 + $0xe0] sm:$0xff] %vm277, %v5022
      %5069 = vst.msk [vmem:[%s244 + $0xe8] sm:$0xff] %vm277, %v5027
      %5070 = vst.msk [vmem:[%s244 + $0xf0] sm:$0xff] %vm277, %v5032
      %5071 = vst.msk [vmem:[%s244 + $0xf8] sm:$0xff] %vm277, %v5037
      %p5072 = scmp.lt.s32.totalorder %s16, 1
      %s5073 = scalar_select %p5072, %s16, 1
      %s5074 = smul.addr %s5073, 32
      %s5075 = smul.addr %s5074, 8
      %s5076 = scalar_lea.vmem %s5, %s5075
      // Predicated region
      $region41: #{tpu_custom_call.1} parent=39 // pred_check
        %p5077 = pneg %p149
      $region42: #{tpu_custom_call.1} parent=39 // pred_check_branch
        %5079 = sbr.rel (%p5077) target = $region44
      $region43: #{tpu_custom_call.1} parent=39 // pred_region
        _
      $region44: #{tpu_custom_call.1} parent=39 // pred_fallthru
        _
    $region40: #{tpu_custom_call.1} parent=5 // pred_fallthru
      _
    %p5080 = scmp.le.s32.totalorder 2, %s11
    // Predicated region
    $region45: #{tpu_custom_call.1} parent=5 // pred_check
      %p5081 = pneg %p5080
    $region46: #{tpu_custom_call.1} parent=5 // pred_check_branch
      %5083 = sbr.rel (%p5081) target = $region48
    $region47: #{tpu_custom_call.1} parent=5 // pred_region
      %s5084 = ssub.s32 %s11, 2
      // Predicated region
      $region49: #{tpu_custom_call.1} parent=47 // pred_check
        %p5085 = pneg %p155
      $region50: #{tpu_custom_call.1} parent=47 // pred_check_branch
        %5087 = sbr.rel (%p5085) target = $region52
      $region51: #{tpu_custom_call.1} parent=47 // pred_region
        %p5088 = scmp.lt.s32.totalorder %s17, 1
        %s5089 = scalar_select %p5088, %s17, 1
        %s5090 = smul.addr %s5089, 32
        %s5091 = smul.addr %s5090, 8
        %s5092 = scalar_lea.vmem %s5, %s5091
      $region52: #{tpu_custom_call.1} parent=47 // pred_fallthru
        _
    $region48: #{tpu_custom_call.1} parent=5 // pred_fallthru
      _
  $region6: #{tpu_custom_call.1} parent=0 // loop_footer
    %s15 = sadd.s32 1, %s11
  $region7: #{tpu_custom_call.1} parent=0 // loop_footer_branch
    %10 = sbr.rel target = $region3
  $region8: #{tpu_custom_call.1} parent=0 // loop_exit
    _

// kernel: tpu_custom_call.1
$region0: #{tpu_custom_call.1}
  #allocation0 [shape = 'u32[]', space=smem, size = 0x4, offset = 0x4, fixed_abs, tag = 'smem constant byte address 0x4 - core index']
  #allocation1 [shape = 'u32[144,128]{1,0:T(1,128)}', space=vmem, size = 0x12000, scoped, tag = 'internal scratch']
  #allocation2 [shape = 'f32[8,224,16]{2,1,0:T(8,128)}', space=vmem, size = 0xe0000, scoped, tag = 'scratch operand']
  %s0 = inlined_call_operand.vmem [shape: f32[2,8,32,16], index: 0, kind: input, shape index: {}]
  %s1 = inlined_call_operand.vmem [shape: f32[2,2,8,16,16], index: 1, kind: input, shape index: {}]
  %s2 = inlined_call_operand.vmem [shape: f32[1,16,16], index: 2, kind: input, shape index: {}]
  %s3 = inlined_call_operand.vmem [shape: f32[32,224], index: 3, kind: input, shape index: {}]
  %s4 = inlined_call_operand.vmem [shape: f32[32,1], index: 4, kind: input, shape index: {}]
  %s5 = inlined_call_operand.vmem [shape: f32[2,8,32,16], index: 5, kind: output, shape index: {}]
  %s6 = sld [smem:[#allocation0]]
  $region53: #{tpu_custom_call.1} parent=0
    _
  %s8 = ssub.s32 1, %s6
  %s9 = scalar_select 0, %s8, %s6
  loop: start=0, step=1, limit=4
  $region2: #{tpu_custom_call.1} parent=0 // loop_pre_header
    _
  $region3: #{tpu_custom_call.1} parent=0 // loop_header
    %s11 = sphi 0, %s15
    %p12 = scmp.ge.s32.totalorder %s11, 4
    %s21 = sphi 0, %s23
    %s24 = sphi 0, %s21
    %s25 = sphi 0, %s24
    %s41 = sphi 0, %s25
    %s47 = sphi 0, %s49
    %s50 = sphi 0, %s47
    %s51 = sphi 0, %s50
    %s67 = sphi 0, %s51
    %s71 = sphi 0, %s71
    %s73 = sphi 0, %s71
    %s74 = sphi 0, %s73
    %s88 = sphi 0, %s74
    %s92 = sphi 0, %s92
    %s94 = sphi 0, %s92
    %s95 = sphi 0, %s94
    %s109 = sphi 0, %s95
    %s113 = sphi 0, %s113
    %s115 = sphi 0, %s113
    %s116 = sphi 0, %s115
    %s130 = sphi 0, %s116
    %s136 = sphi 0, %s138
    %s139 = sphi 0, %s136
    %s140 = sphi 0, %s139
    %s156 = sphi 0, %s140
  $region4: #{tpu_custom_call.1} parent=0 // loop_header_branch
    %14 = sbr.rel (%p12) target = $region8
  $region5: #{tpu_custom_call.1} parent=0 // loop_body
    %s16 = ssub.s32 %s11, 1
    %s17 = ssub.s32 %s11, 2
    %s18 = sadd.s32 %s11, 1
    %s19 = ssub.s32 %s11, %s18
    %p20 = scmp.eq.s32.totalorder %s19, 0
    %s22 = sadd.s32 %s21, 1
    %s23 = scalar_select %p20, %s21, %s22
    %p26 = pneg %p20
    %p27 = scmp.eq.s32.totalorder %s11, 1
    %p28 = por %p26, %p27
    %p29 = scmp.ne.s32.totalorder %s21, %s24
    %p30 = scmp.eq.s32.totalorder %s11, 0
    %p31 = por %p29, %p30
    %p32 = scmp.ne.s32.totalorder %s21, %s24
    %p33 = scmp.eq.s32.totalorder %s16, 1
    %p34 = por %p32, %p33
    %p35 = scmp.ne.s32.totalorder %s24, %s25
    %p36 = scmp.eq.s32.totalorder %s16, 0
    %p37 = por %p35, %p36
    %p38 = scmp.ne.s32.totalorder %s24, %s25
    %p39 = scmp.eq.s32.totalorder %s17, 1
    %p40 = por %p38, %p39
    %p42 = scmp.ne.s32.totalorder %s25, %s41
    %p43 = scmp.eq.s32.totalorder %s17, 0
    %p44 = por %p42, %p43
    %s45 = ssub.s32 %s11, %s18
    %p46 = scmp.eq.s32.totalorder %s45, 0
    %s48 = sadd.s32 %s47, 1
    %s49 = scalar_select %p46, %s47, %s48
    %p52 = pneg %p46
    %p53 = scmp.eq.s32.totalorder %s11, 1
    %p54 = por %p52, %p53
    %p55 = scmp.ne.s32.totalorder %s47, %s50
    %p56 = scmp.eq.s32.totalorder %s11, 0
    %p57 = por %p55, %p56
    %p58 = scmp.ne.s32.totalorder %s47, %s50
    %p59 = scmp.eq.s32.totalorder %s16, 1
    %p60 = por %p58, %p59
    %p61 = scmp.ne.s32.totalorder %s50, %s51
    %p62 = scmp.eq.s32.totalorder %s16, 0
    %p63 = por %p61, %p62
    %p64 = scmp.ne.s32.totalorder %s50, %s51
    %p65 = scmp.eq.s32.totalorder %s17, 1
    %p66 = por %p64, %p65
    %p68 = scmp.ne.s32.totalorder %s51, %s67
    %p69 = scmp.eq.s32.totalorder %s17, 0
    %p70 = por %p68, %p69
    %s72 = sadd.s32 %s71, 1
    %p75 = scmp.eq.s32.totalorder %s11, 1
    %p76 = scmp.ne.s32.totalorder %s71, %s73
    %p77 = scmp.eq.s32.totalorder %s11, 0
    %p78 = por %p76, %p77
    %p79 = scmp.ne.s32.totalorder %s71, %s73
    %p80 = scmp.eq.s32.totalorder %s16, 1
    %p81 = por %p79, %p80
    %p82 = scmp.ne.s32.totalorder %s73, %s74
    %p83 = scmp.eq.s32.totalorder %s16, 0
    %p84 = por %p82, %p83
    %p85 = scmp.ne.s32.totalorder %s73, %s74
    %p86 = scmp.eq.s32.totalorder %s17, 1
    %p87 = por %p85, %p86
    %p89 = scmp.ne.s32.totalorder %s74, %s88
    %p90 = scmp.eq.s32.totalorder %s17, 0
    %p91 = por %p89, %p90
    %s93 = sadd.s32 %s92, 1
    %p96 = scmp.eq.s32.totalorder %s11, 1
    %p97 = scmp.ne.s32.totalorder %s92, %s94
    %p98 = scmp.eq.s32.totalorder %s11, 0
    %p99 = por %p97, %p98
    %p100 = scmp.ne.s32.totalorder %s92, %s94
    %p101 = scmp.eq.s32.totalorder %s16, 1
    %p102 = por %p100, %p101
    %p103 = scmp.ne.s32.totalorder %s94, %s95
    %p104 = scmp.eq.s32.totalorder %s16, 0
    %p105 = por %p103, %p104
    %p106 = scmp.ne.s32.totalorder %s94, %s95
    %p107 = scmp.eq.s32.totalorder %s17, 1
    %p108 = por %p106, %p107
    %p110 = scmp.ne.s32.totalorder %s95, %s109
    %p111 = scmp.eq.s32.totalorder %s17, 0
    %p112 = por %p110, %p111
    %s114 = sadd.s32 %s113, 1
    %p117 = scmp.eq.s32.totalorder %s11, 1
    %p118 = scmp.ne.s32.totalorder %s113, %s115
    %p119 = scmp.eq.s32.totalorder %s11, 0
    %p120 = por %p118, %p119
    %p121 = scmp.ne.s32.totalorder %s113, %s115
    %p122 = scmp.eq.s32.totalorder %s16, 1
    %p123 = por %p121, %p122
    %p124 = scmp.ne.s32.totalorder %s115, %s116
    %p125 = scmp.eq.s32.totalorder %s16, 0
    %p126 = por %p124, %p125
    %p127 = scmp.ne.s32.totalorder %s115, %s116
    %p128 = scmp.eq.s32.totalorder %s17, 1
    %p129 = por %p127, %p128
    %p131 = scmp.ne.s32.totalorder %s116, %s130
    %p132 = scmp.eq.s32.totalorder %s17, 0
    %p133 = por %p131, %p132
    %s134 = ssub.s32 %s11, %s18
    %p135 = scmp.eq.s32.totalorder %s134, 0
    %s137 = sadd.s32 %s136, 1
    %s138 = scalar_select %p135, %s136, %s137
    %p141 = pneg %p135
    %p142 = scmp.eq.s32.totalorder %s11, 1
    %p143 = por %p141, %p142
    %p144 = scmp.ne.s32.totalorder %s136, %s139
    %p145 = scmp.eq.s32.totalorder %s11, 0
    %p146 = por %p144, %p145
    %p147 = scmp.ne.s32.totalorder %s136, %s139
    %p148 = scmp.eq.s32.totalorder %s16, 1
    %p149 = por %p147, %p148
    %p150 = scmp.ne.s32.totalorder %s139, %s140
    %p151 = scmp.eq.s32.totalorder %s16, 0
    %p152 = por %p150, %p151
    %p153 = scmp.ne.s32.totalorder %s139, %s140
    %p154 = scmp.eq.s32.totalorder %s17, 1
    %p155 = por %p153, %p154
    %p157 = scmp.ne.s32.totalorder %s140, %s156
    %p158 = scmp.eq.s32.totalorder %s17, 0
    %p159 = por %p157, %p158
    %p160 = scmp.le.s32.totalorder 1, %s11
    %p161 = scmp.lt.s32.totalorder %s11, 3
    %p162 = pnand %p160, %p161
    %p163 = pneg %p162
    // Predicated region
    $region9: #{tpu_custom_call.1} parent=5 // pred_check
      _
    $region10: #{tpu_custom_call.1} parent=5 // pred_check_branch
      %165 = sbr.rel (%p162) target = $region12
    $region11: #{tpu_custom_call.1} parent=5 // pred_region
      %s166 = ssub.s32 %s11, 1
      // Predicated region
      $region13: #{tpu_custom_call.1} parent=11 // pred_check
        %p167 = pneg %p84
      $region14: #{tpu_custom_call.1} parent=11 // pred_check_branch
        %169 = sbr.rel (%p167) target = $region16
      $region15: #{tpu_custom_call.1} parent=11 // pred_region
        _
      $region16: #{tpu_custom_call.1} parent=11 // pred_fallthru
        _
      // Predicated region
      $region17: #{tpu_custom_call.1} parent=11 // pred_check
        %p170 = pneg %p105
      $region18: #{tpu_custom_call.1} parent=11 // pred_check_branch
        %172 = sbr.rel (%p170) target = $region20
      $region19: #{tpu_custom_call.1} parent=11 // pred_region
        _
      $region20: #{tpu_custom_call.1} parent=11 // pred_fallthru
        _
      // Predicated region
      $region21: #{tpu_custom_call.1} parent=11 // pred_check
        %p173 = pneg %p126
      $region22: #{tpu_custom_call.1} parent=11 // pred_check_branch
        %175 = sbr.rel (%p173) target = $region24
      $region23: #{tpu_custom_call.1} parent=11 // pred_region
        _
      $region24: #{tpu_custom_call.1} parent=11 // pred_fallthru
        _
    $region12: #{tpu_custom_call.1} parent=5 // pred_fallthru
      _
    %p176 = scmp.lt.s32.totalorder %s11, 2
    // Predicated region
    $region25: #{tpu_custom_call.1} parent=5 // pred_check
      %p177 = pneg %p176
    $region26: #{tpu_custom_call.1} parent=5 // pred_check_branch
      %179 = sbr.rel (%p177) target = $region28
    $region27: #{tpu_custom_call.1} parent=5 // pred_region
      // Predicated region
      $region29: #{tpu_custom_call.1} parent=27 // pred_check
        %p180 = pneg %p31
      $region30: #{tpu_custom_call.1} parent=27 // pred_check_branch
        %182 = sbr.rel (%p180) target = $region32
      $region31: #{tpu_custom_call.1} parent=27 // pred_region
        %p183 = scmp.lt.s32.totalorder %s11, 1
        %s184 = scalar_select %p183, %s11, 1
        %s185 = smul.addr %s184, 32
        %s186 = smul.addr %s185, 8
        %s187 = scalar_lea.vmem %s0, %s186
      $region32: #{tpu_custom_call.1} parent=27 // pred_fallthru
        _
      // Predicated region
      $region33: #{tpu_custom_call.1} parent=27 // pred_check
        %p188 = pneg %p57
      $region34: #{tpu_custom_call.1} parent=27 // pred_check_branch
        %190 = sbr.rel (%p188) target = $region36
      $region35: #{tpu_custom_call.1} parent=27 // pred_region
        %p191 = scmp.lt.s32.totalorder %s11, 1
        %s192 = scalar_select %p191, %s11, 1
        %s193 = smul.addr %s192, 32
        %s194 = smul.addr %s193, 8
        %s195 = scalar_lea.vmem %s1, %s194
      $region36: #{tpu_custom_call.1} parent=27 // pred_fallthru
        _
    $region28: #{tpu_custom_call.1} parent=5 // pred_fallthru
      _
    %p196 = scmp.le.s32.totalorder 1, %s11
    %p197 = scmp.lt.s32.totalorder %s11, 3
    %p198 = pnand %p196, %p197
    %p199 = pneg %p198
    // Predicated region
    $region37: #{tpu_custom_call.1} parent=5 // pred_check
      _
    $region38: #{tpu_custom_call.1} parent=5 // pred_check_branch
      %201 = sbr.rel (%p198) target = $region40
    $region39: #{tpu_custom_call.1} parent=5 // pred_region
      %s202 = ssub.s32 %s11, 1
      %p203 = scmp.lt.s32.totalorder %s16, 1
      %s204 = scalar_select %p203, %s16, 1
      %s205 = smul.addr %s204, 32
      %s206 = smul.addr %s205, 8
      %s207 = scalar_lea.vmem %s0, %s206
      %p208 = pneg %p37
      %p209 = pneg %p34
      %p210 = scmp.lt.s32.totalorder %s16, 1
      %s211 = scalar_select %p210, %s16, 1
      %s212 = smul.addr %s211, 32
      %s213 = smul.addr %s212, 8
      %s214 = scalar_lea.vmem %s1, %s213
      %p215 = pneg %p63
      %p216 = pneg %p60
      %p217 = pneg %p84
      %p218 = pneg %p81
      %p219 = pneg %p105
      %p220 = pneg %p102
      %p221 = pneg %p126
      %p222 = pneg %p123
      %p223 = pneg %p152
      %p224 = pneg %p149
      %p225 = scmp.lt.s32.totalorder %s16, 1
      %s226 = scalar_select %p225, %s16, 1
      %s227 = smul.addr %s226, 32
      %s228 = smul.addr %s227, 8
      %s229 = scalar_lea.vmem %s5, %s228
      %p230 = scmp.lt.s32.totalorder %s16, 1
      %s231 = scalar_select %p230, %s16, 1
      %s232 = smul.addr %s231, 32
      %s233 = smul.addr %s232, 8
      %s234 = scalar_lea.vmem %s0, %s233
      %p235 = scmp.lt.s32.totalorder %s16, 1
      %s236 = scalar_select %p235, %s16, 1
      %s237 = smul.addr %s236, 32
      %s238 = smul.addr %s237, 8
      %s239 = scalar_lea.vmem %s1, %s238
      %p240 = scmp.lt.s32.totalorder %s16, 1
      %s241 = scalar_select %p240, %s16, 1
      %s242 = smul.addr %s241, 32
      %s243 = smul.addr %s242, 8
      %s244 = scalar_lea.vmem %s5, %s243
      %v245 = vld [vmem:[%s234] sm:$0xff]
      %v246 = vld [vmem:[%s234 + $0x8] sm:$0xff]
      %v247 = vld [vmem:[%s234 + $0x10] sm:$0xff]
      %v248 = vld [vmem:[%s234 + $0x18] sm:$0xff]
      %v249 = vld [vmem:[%s234 + $0x20] sm:$0xff]
      %v250 = vld [vmem:[%s234 + $0x28] sm:$0xff]
      %v251 = vld [vmem:[%s234 + $0x30] sm:$0xff]
      %v252 = vld [vmem:[%s234 + $0x38] sm:$0xff]
      %v253 = vld [vmem:[%s234 + $0x40] sm:$0xff]
      %v254 = vld [vmem:[%s234 + $0x48] sm:$0xff]
      %v255 = vld [vmem:[%s234 + $0x50] sm:$0xff]
      %v256 = vld [vmem:[%s234 + $0x58] sm:$0xff]
      %v257 = vld [vmem:[%s234 + $0x60] sm:$0xff]
      %v258 = vld [vmem:[%s234 + $0x68] sm:$0xff]
      %v259 = vld [vmem:[%s234 + $0x70] sm:$0xff]
      %v260 = vld [vmem:[%s234 + $0x78] sm:$0xff]
      %v261 = vld [vmem:[%s234 + $0x80] sm:$0xff]
      %v262 = vld [vmem:[%s234 + $0x88] sm:$0xff]
      %v263 = vld [vmem:[%s234 + $0x90] sm:$0xff]
      %v264 = vld [vmem:[%s234 + $0x98] sm:$0xff]
      %v265 = vld [vmem:[%s234 + $0xa0] sm:$0xff]
      %v266 = vld [vmem:[%s234 + $0xa8] sm:$0xff]
      %v267 = vld [vmem:[%s234 + $0xb0] sm:$0xff]
      %v268 = vld [vmem:[%s234 + $0xb8] sm:$0xff]
      %v269 = vld [vmem:[%s234 + $0xc0] sm:$0xff]
      %v270 = vld [vmem:[%s234 + $0xc8] sm:$0xff]
      %v271 = vld [vmem:[%s234 + $0xd0] sm:$0xff]
      %v272 = vld [vmem:[%s234 + $0xd8] sm:$0xff]
      %v273 = vld [vmem:[%s234 + $0xe0] sm:$0xff]
      %v274 = vld [vmem:[%s234 + $0xe8] sm:$0xff]
      %v275 = vld [vmem:[%s234 + $0xf0] sm:$0xff]
      %v276 = vld [vmem:[%s234 + $0xf8] sm:$0xff]
      %vm277 = vcmask 130048
      %278 = vst.msk [vmem:[#allocation2] sm:$0xff] %vm277, %v245
      %279 = vst.msk [vmem:[#allocation2 + $0x8] sm:$0xff] %vm277, %v246
      %280 = vst.msk [vmem:[#allocation2 + $0x10] sm:$0xff] %vm277, %v247
      %281 = vst.msk [vmem:[#allocation2 + $0x18] sm:$0xff] %vm277, %v248
      %282 = vst.msk [vmem:[#allocation2 + $0xe0] sm:$0xff] %vm277, %v249
      %283 = vst.msk [vmem:[#allocation2 + $0xe8] sm:$0xff] %vm277, %v250
      %284 = vst.msk [vmem:[#allocation2 + $0xf0] sm:$0xff] %vm277, %v251
      %285 = vst.msk [vmem:[#allocation2 + $0xf8] sm:$0xff] %vm277, %v252
      %286 = vst.msk [vmem:[#allocation2 + $0x1c0] sm:$0xff] %vm277, %v253
      %287 = vst.msk [vmem:[#allocation2 + $0x1c8] sm:$0xff] %vm277, %v254
      %288 = vst.msk [vmem:[#allocation2 + $0x1d0] sm:$0xff] %vm277, %v255
      %289 = vst.msk [vmem:[#allocation2 + $0x1d8] sm:$0xff] %vm277, %v256
      %290 = vst.msk [vmem:[#allocation2 + $0x2a0] sm:$0xff] %vm277, %v257
      %291 = vst.msk [vmem:[#allocation2 + $0x2a8] sm:$0xff] %vm277, %v258
      %292 = vst.msk [vmem:[#allocation2 + $0x2b0] sm:$0xff] %vm277, %v259
      %293 = vst.msk [vmem:[#allocation2 + $0x2b8] sm:$0xff] %vm277, %v260
      %294 = vst.msk [vmem:[#allocation2 + $0x380] sm:$0xff] %vm277, %v261
      %295 = vst.msk [vmem:[#allocation2 + $0x388] sm:$0xff] %vm277, %v262
      %296 = vst.msk [vmem:[#allocation2 + $0x390] sm:$0xff] %vm277, %v263
      %297 = vst.msk [vmem:[#allocation2 + $0x398] sm:$0xff] %vm277, %v264
      %298 = vst.msk [vmem:[#allocation2 + $0x460] sm:$0xff] %vm277, %v265
      %299 = vst.msk [vmem:[#allocation2 + $0x468] sm:$0xff] %vm277, %v266
      %300 = vst.msk [vmem:[#allocation2 + $0x470] sm:$0xff] %vm277, %v267
      %301 = vst.msk [vmem:[#allocation2 + $0x478] sm:$0xff] %vm277, %v268
      %302 = vst.msk [vmem:[#allocation2 + $0x540] sm:$0xff] %vm277, %v269
      %303 = vst.msk [vmem:[#allocation2 + $0x548] sm:$0xff] %vm277, %v270
      %304 = vst.msk [vmem:[#allocation2 + $0x550] sm:$0xff] %vm277, %v271
      %305 = vst.msk [vmem:[#allocation2 + $0x558] sm:$0xff] %vm277, %v272
      %306 = vst.msk [vmem:[#allocation2 + $0x620] sm:$0xff] %vm277, %v273
      %307 = vst.msk [vmem:[#allocation2 + $0x628] sm:$0xff] %vm277, %v274
      %308 = vst.msk [vmem:[#allocation2 + $0x630] sm:$0xff] %vm277, %v275
      %309 = vst.msk [vmem:[#allocation2 + $0x638] sm:$0xff] %vm277, %v276
      %v310 = vld [vmem:[%s239] sm:$0xff]
      %v311 = vld [vmem:[%s239 + $0x8] sm:$0xff]
      %v312 = vld [vmem:[%s239 + $0x10] sm:$0xff]
      %v313 = vld [vmem:[%s239 + $0x18] sm:$0xff]
      %v314 = vld [vmem:[%s239 + $0x20] sm:$0xff]
      %v315 = vld [vmem:[%s239 + $0x28] sm:$0xff]
      %v316 = vld [vmem:[%s239 + $0x30] sm:$0xff]
      %v317 = vld [vmem:[%s239 + $0x38] sm:$0xff]
      %v318 = vld [vmem:[%s239 + $0x40] sm:$0xff]
      %v319 = vld [vmem:[%s239 + $0x48] sm:$0xff]
      %v320 = vld [vmem:[%s239 + $0x50] sm:$0xff]
      %v321 = vld [vmem:[%s239 + $0x58] sm:$0xff]
      %v322 = vld [vmem:[%s239 + $0x60] sm:$0xff]
      %v323 = vld [vmem:[%s239 + $0x68] sm:$0xff]
      %v324 = vld [vmem:[%s239 + $0x70] sm:$0xff]
      %v325 = vld [vmem:[%s239 + $0x78] sm:$0xff]
      %v327 = vsel %vm277, %v245, 0
      %v330 = vsel %vm277, %v246, 0
      %v333 = vsel %vm277, %v247, 0
      %v336 = vsel %vm277, %v248, 0
      %338 = vmatprep.subr.mxu0 0.0
      %339 = vmatpush1.msra.mxu0 %v310
      %340 = vmatprep.subr.mxu0 0.0
      %341 = vmatpush1.msra.mxu0 %v311
      %342 = vmatprep.subr.mxu0 0.0
      %343 = vmatpush1.msra.mxu0 0.0
      %344 = vmatprep.subr.mxu0 0.0
      %345 = vmatpush1.msra.mxu0 0.0
      %346 = vmatprep.subr.mxu0 0.0
      %347 = vmatpush1.msra.mxu0 0.0
      %348 = vmatprep.subr.mxu0 0.0
      %349 = vmatpush1.msra.mxu0 0.0
      %350 = vmatprep.subr.mxu0 0.0
      %351 = vmatpush1.msra.mxu0 0.0
      %352 = vmatprep.subr.mxu0 0.0
      %353 = vmatpush1.msra.mxu0 0.0
      %354 = vmatprep.subr.mxu0 0.0
      %355 = vmatpush1.msra.mxu0 0.0
      %356 = vmatprep.subr.mxu0 0.0
      %357 = vmatpush1.msra.mxu0 0.0
      %358 = vmatprep.subr.mxu0 0.0
      %359 = vmatpush1.msra.mxu0 0.0
      %360 = vmatprep.subr.mxu0 0.0
      %361 = vmatpush1.msra.mxu0 0.0
      %362 = vmatprep.subr.mxu0 0.0
      %363 = vmatpush1.msra.mxu0 0.0
      %364 = vmatprep.subr.mxu0 0.0
      %365 = vmatpush1.msra.mxu0 0.0
      %366 = vmatprep.subr.mxu0 0.0
      %367 = vmatpush1.msra.mxu0 0.0
      %368 = vmatprep.subr.mxu0 0.0
      %369 = vmatpush1.msra.mxu0 0.0
      %370 = vmatprep.subr.mxu0 0.0
      %371 = vmatpush1.msra.mxu0 0.0
      %372 = vmatprep.subr.mxu0 0.0
      %373 = vmatpush1.msra.mxu0 0.0
      %374 = vmatprep.subr.mxu0 0.0
      %375 = vmatpush1.msra.mxu0 0.0
      %376 = vmatprep.subr.mxu0 0.0
      %377 = vmatpush1.msra.mxu0 0.0
      %378 = vmatprep.subr.mxu0 0.0
      %379 = vmatpush1.msra.mxu0 0.0
      %380 = vmatprep.subr.mxu0 0.0
      %381 = vmatpush1.msra.mxu0 0.0
      %382 = vmatprep.subr.mxu0 0.0
      %383 = vmatpush1.msra.mxu0 0.0
      %384 = vmatprep.subr.mxu0 0.0
      %385 = vmatpush1.msra.mxu0 0.0
      %386 = vmatprep.subr.mxu0 0.0
      %387 = vmatpush1.msra.mxu0 0.0
      %388 = vmatprep.subr.mxu0 0.0
      %389 = vmatpush1.msra.mxu0 0.0
      %390 = vmatprep.subr.mxu0 0.0
      %391 = vmatpush1.msra.mxu0 0.0
      %392 = vmatprep.subr.mxu0 0.0
      %393 = vmatpush1.msra.mxu0 0.0
      %394 = vmatprep.subr.mxu0 0.0
      %395 = vmatpush1.msra.mxu0 0.0
      %396 = vmatprep.subr.mxu0 0.0
      %397 = vmatpush1.msra.mxu0 0.0
      %398 = vmatprep.subr.mxu0 0.0
      %399 = vmatpush1.msra.mxu0 0.0
      %400 = vmatprep.subr.mxu0 0.0
      %401 = vmatpush1.msra.mxu0 0.0
      %402 = vmatprep.mubr.f32.mxu0 0.0
      %403 = vmatmul.mubr.f32.gmra.mrb[0].mxu0 %v327
      %v404 = vpop.f32.mrb[0].mxu0
      %v405 = vadd.f32 0.0, %v404
      %v406 = vpop.f32.mrb[0].mxu0
      %407 = vmatprep.mubr.f32.mxu0 0.0
      %408 = vmatmul.mubr.f32.gmra.mrb[0].mxu0 %v330
      %v409 = vpop.f32.mrb[0].mxu0
      %v410 = vadd.f32 0.0, %v409
      %v411 = vpop.f32.mrb[0].mxu0
      %412 = vmatprep.mubr.f32.mxu0 0.0
      %413 = vmatmul.mubr.f32.gmra.mrb[0].mxu0 %v333
      %v414 = vpop.f32.mrb[0].mxu0
      %v415 = vadd.f32 0.0, %v414
      %v416 = vpop.f32.mrb[0].mxu0
      %417 = vmatprep.mubr.f32.mxu0 0.0
      %418 = vmatmul.mubr.f32.gmra.mrb[0].mxu0 %v336
      %v419 = vpop.f32.mrb[0].mxu0
      %v420 = vadd.f32 0.0, %v419
      %v421 = vpop.f32.mrb[0].mxu0
      %422 = vdwg.mxu0
      %v424 = vsel %vm277, %v249, 0
      %v427 = vsel %vm277, %v250, 0
      %v430 = vsel %vm277, %v251, 0
      %v433 = vsel %vm277, %v252, 0
      %435 = vmatprep.subr.mxu0 0.0
      %436 = vmatpush1.msra.mxu0 %v312
      %437 = vmatprep.subr.mxu0 0.0
      %438 = vmatpush1.msra.mxu0 %v313
      %439 = vmatprep.subr.mxu0 0.0
      %440 = vmatpush1.msra.mxu0 0.0
      %441 = vmatprep.subr.mxu0 0.0
      %442 = vmatpush1.msra.mxu0 0.0
      %443 = vmatprep.subr.mxu0 0.0
      %444 = vmatpush1.msra.mxu0 0.0
      %445 = vmatprep.subr.mxu0 0.0
      %446 = vmatpush1.msra.mxu0 0.0
      %447 = vmatprep.subr.mxu0 0.0
      %448 = vmatpush1.msra.mxu0 0.0
      %449 = vmatprep.subr.mxu0 0.0
      %450 = vmatpush1.msra.mxu0 0.0
      %451 = vmatprep.subr.mxu0 0.0
      %452 = vmatpush1.msra.mxu0 0.0
      %453 = vmatprep.subr.mxu0 0.0
      %454 = vmatpush1.msra.mxu0 0.0
      %455 = vmatprep.subr.mxu0 0.0
      %456 = vmatpush1.msra.mxu0 0.0
      %457 = vmatprep.subr.mxu0 0.0
      %458 = vmatpush1.msra.mxu0 0.0
      %459 = vmatprep.subr.mxu0 0.0
      %460 = vmatpush1.msra.mxu0 0.0
      %461 = vmatprep.subr.mxu0 0.0
      %462 = vmatpush1.msra.mxu0 0.0
      %463 = vmatprep.subr.mxu0 0.0
      %464 = vmatpush1.msra.mxu0 0.0
      %465 = vmatprep.subr.mxu0 0.0
      %466 = vmatpush1.msra.mxu0 0.0
      %467 = vmatprep.subr.mxu0 0.0
      %468 = vmatpush1.msra.mxu0 0.0
      %469 = vmatprep.subr.mxu0 0.0
      %470 = vmatpush1.msra.mxu0 0.0
      %471 = vmatprep.subr.mxu0 0.0
      %472 = vmatpush1.msra.mxu0 0.0
      %473 = vmatprep.subr.mxu0 0.0
      %474 = vmatpush1.msra.mxu0 0.0
      %475 = vmatprep.subr.mxu0 0.0
      %476 = vmatpush1.msra.mxu0 0.0
      %477 = vmatprep.subr.mxu0 0.0
      %478 = vmatpush1.msra.mxu0 0.0
      %479 = vmatprep.subr.mxu0 0.0
      %480 = vmatpush1.msra.mxu0 0.0
      %481 = vmatprep.subr.mxu0 0.0
      %482 = vmatpush1.msra.mxu0 0.0
      %483 = vmatprep.subr.mxu0 0.0
      %484 = vmatpush1.msra.mxu0 0.0
      %485 = vmatprep.subr.mxu0 0.0
      %486 = vmatpush1.msra.mxu0 0.0
      %487 = vmatprep.subr.mxu0 0.0
      %488 = vmatpush1.msra.mxu0 0.0
      %489 = vmatprep.subr.mxu0 0.0
      %490 = vmatpush1.msra.mxu0 0.0
      %491 = vmatprep.subr.mxu0 0.0
      %492 = vmatpush1.msra.mxu0 0.0
      %493 = vmatprep.subr.mxu0 0.0
      %494 = vmatpush1.msra.mxu0 0.0
      %495 = vmatprep.subr.mxu0 0.0
      %496 = vmatpush1.msra.mxu0 0.0
      %497 = vmatprep.subr.mxu0 0.0
      %498 = vmatpush1.msra.mxu0 0.0
      %499 = vmatprep.mubr.f32.mxu0 0.0
      %500 = vmatmul.mubr.f32.gmra.mrb[0].mxu0 %v424
      %v501 = vpop.f32.mrb[0].mxu0
      %v502 = vadd.f32 0.0, %v501
      %v503 = vpop.f32.mrb[0].mxu0
      %504 = vmatprep.mubr.f32.mxu0 0.0
      %505 = vmatmul.mubr.f32.gmra.mrb[0].mxu0 %v427
      %v506 = vpop.f32.mrb[0].mxu0
      %v507 = vadd.f32 0.0, %v506
      %v508 = vpop.f32.mrb[0].mxu0
      %509 = vmatprep.mubr.f32.mxu0 0.0
      %510 = vmatmul.mubr.f32.gmra.mrb[0].mxu0 %v430
      %v511 = vpop.f32.mrb[0].mxu0
      %v512 = vadd.f32 0.0, %v511
      %v513 = vpop.f32.mrb[0].mxu0
      %514 = vmatprep.mubr.f32.mxu0 0.0
      %515 = vmatmul.mubr.f32.gmra.mrb[0].mxu0 %v433
      %v516 = vpop.f32.mrb[0].mxu0
      %v517 = vadd.f32 0.0, %v516
      %v518 = vpop.f32.mrb[0].mxu0
      %519 = vdwg.mxu0
      %v521 = vsel %vm277, %v253, 0
      %v524 = vsel %vm277, %v254, 0
      %v527 = vsel %vm277, %v255, 0
      %v530 = vsel %vm277, %v256, 0
      %532 = vmatprep.subr.mxu0 0.0
      %533 = vmatpush1.msra.mxu0 %v314
      %534 = vmatprep.subr.mxu0 0.0
      %535 = vmatpush1.msra.mxu0 %v315
      %536 = vmatprep.subr.mxu0 0.0
      %537 = vmatpush1.msra.mxu0 0.0
      %538 = vmatprep.subr.mxu0 0.0
      %539 = vmatpush1.msra.mxu0 0.0
      %540 = vmatprep.subr.mxu0 0.0
      %541 = vmatpush1.msra.mxu0 0.0
      %542 = vmatprep.subr.mxu0 0.0
      %543 = vmatpush1.msra.mxu0 0.0
      %544 = vmatprep.subr.mxu0 0.0
      %545 = vmatpush1.msra.mxu0 0.0
      %546 = vmatprep.subr.mxu0 0.0
      %547 = vmatpush1.msra.mxu0 0.0
      %548 = vmatprep.subr.mxu0 0.0
      %549 = vmatpush1.msra.mxu0 0.0
      %550 = vmatprep.subr.mxu0 0.0
      %551 = vmatpush1.msra.mxu0 0.0
      %552 = vmatprep.subr.mxu0 0.0
      %553 = vmatpush1.msra.mxu0 0.0
      %554 = vmatprep.subr.mxu0 0.0
      %555 = vmatpush1.msra.mxu0 0.0
      %556 = vmatprep.subr.mxu0 0.0
      %557 = vmatpush1.msra.mxu0 0.0
      %558 = vmatprep.subr.mxu0 0.0
      %559 = vmatpush1.msra.mxu0 0.0
      %560 = vmatprep.subr.mxu0 0.0
      %561 = vmatpush1.msra.mxu0 0.0
      %562 = vmatprep.subr.mxu0 0.0
      %563 = vmatpush1.msra.mxu0 0.0
      %564 = vmatprep.subr.mxu0 0.0
      %565 = vmatpush1.msra.mxu0 0.0
      %566 = vmatprep.subr.mxu0 0.0
      %567 = vmatpush1.msra.mxu0 0.0
      %568 = vmatprep.subr.mxu0 0.0
      %569 = vmatpush1.msra.mxu0 0.0
      %570 = vmatprep.subr.mxu0 0.0
      %571 = vmatpush1.msra.mxu0 0.0
      %572 = vmatprep.subr.mxu0 0.0
      %573 = vmatpush1.msra.mxu0 0.0
      %574 = vmatprep.subr.mxu0 0.0
      %575 = vmatpush1.msra.mxu0 0.0
      %576 = vmatprep.subr.mxu0 0.0
      %577 = vmatpush1.msra.mxu0 0.0
      %578 = vmatprep.subr.mxu0 0.0
      %579 = vmatpush1.msra.mxu0 0.0
      %580 = vmatprep.subr.mxu0 0.0
      %581 = vmatpush1.msra.mxu0 0.0
      %582 = vmatprep.subr.mxu0 0.0
      %583 = vmatpush1.msra.mxu0 0.0
      %584 = vmatprep.subr.mxu0 0.0
      %585 = vmatpush1.msra.mxu0 0.0
      %586 = vmatprep.subr.mxu0 0.0
      %587 = vmatpush1.msra.mxu0 0.0
      %588 = vmatprep.subr.mxu0 0.0
      %589 = vmatpush1.msra.mxu0 0.0
      %590 = vmatprep.subr.mxu0 0.0
      %591 = vmatpush1.msra.mxu0 0.0
      %592 = vmatprep.subr.mxu0 0.0
      %593 = vmatpush1.msra.mxu0 0.0
      %594 = vmatprep.subr.mxu0 0.0
      %595 = vmatpush1.msra.mxu0 0.0
      %596 = vmatprep.mubr.f32.mxu0 0.0
      %597 = vmatmul.mubr.f32.gmra.mrb[0].mxu0 %v521
      %v598 = vpop.f32.mrb[0].mxu0
      %v599 = vadd.f32 0.0, %v598
      %v600 = vpop.f32.mrb[0].mxu0
      %601 = vmatprep.mubr.f32.mxu0 0.0
      %602 = vmatmul.mubr.f32.gmra.mrb[0].mxu0 %v524
      %v603 = vpop.f32.mrb[0].mxu0
      %v604 = vadd.f32 0.0, %v603
      %v605 = vpop.f32.mrb[0].mxu0
      %606 = vmatprep.mubr.f32.mxu0 0.0
      %607 = vmatmul.mubr.f32.gmra.mrb[0].mxu0 %v527
      %v608 = vpop.f32.mrb[0].mxu0
      %v609 = vadd.f32 0.0, %v608
      %v610 = vpop.f32.mrb[0].mxu0
      %611 = vmatprep.mubr.f32.mxu0 0.0
      %612 = vmatmul.mubr.f32.gmra.mrb[0].mxu0 %v530
      %v613 = vpop.f32.mrb[0].mxu0
      %v614 = vadd.f32 0.0, %v613
      %v615 = vpop.f32.mrb[0].mxu0
      %616 = vdwg.mxu0
      %v618 = vsel %vm277, %v257, 0
      %v621 = vsel %vm277, %v258, 0
      %v624 = vsel %vm277, %v259, 0
      %v627 = vsel %vm277, %v260, 0
      %629 = vmatprep.subr.mxu0 0.0
      %630 = vmatpush1.msra.mxu0 %v316
      %631 = vmatprep.subr.mxu0 0.0
      %632 = vmatpush1.msra.mxu0 %v317
      %633 = vmatprep.subr.mxu0 0.0
      %634 = vmatpush1.msra.mxu0 0.0
      %635 = vmatprep.subr.mxu0 0.0
      %636 = vmatpush1.msra.mxu0 0.0
      %637 = vmatprep.subr.mxu0 0.0
      %638 = vmatpush1.msra.mxu0 0.0
      %639 = vmatprep.subr.mxu0 0.0
      %640 = vmatpush1.msra.mxu0 0.0
      %641 = vmatprep.subr.mxu0 0.0
      %642 = vmatpush1.msra.mxu0 0.0
      %643 = vmatprep.subr.mxu0 0.0
      %644 = vmatpush1.msra.mxu0 0.0
      %645 = vmatprep.subr.mxu0 0.0
      %646 = vmatpush1.msra.mxu0 0.0
      %647 = vmatprep.subr.mxu0 0.0
      %648 = vmatpush1.msra.mxu0 0.0
      %649 = vmatprep.subr.mxu0 0.0
      %650 = vmatpush1.msra.mxu0 0.0
      %651 = vmatprep.subr.mxu0 0.0
      %652 = vmatpush1.msra.mxu0 0.0
      %653 = vmatprep.subr.mxu0 0.0
      %654 = vmatpush1.msra.mxu0 0.0
      %655 = vmatprep.subr.mxu0 0.0
      %656 = vmatpush1.msra.mxu0 0.0
      %657 = vmatprep.subr.mxu0 0.0
      %658 = vmatpush1.msra.mxu0 0.0
      %659 = vmatprep.subr.mxu0 0.0
      %660 = vmatpush1.msra.mxu0 0.0
      %661 = vmatprep.subr.mxu0 0.0
      %662 = vmatpush1.msra.mxu0 0.0
      %663 = vmatprep.subr.mxu0 0.0
      %664 = vmatpush1.msra.mxu0 0.0
      %665 = vmatprep.subr.mxu0 0.0
      %666 = vmatpush1.msra.mxu0 0.0
      %667 = vmatprep.subr.mxu0 0.0
      %668 = vmatpush1.msra.mxu0 0.0
      %669 = vmatprep.subr.mxu0 0.0
      %670 = vmatpush1.msra.mxu0 0.0
      %671 = vmatprep.subr.mxu0 0.0
      %672 = vmatpush1.msra.mxu0 0.0
      %673 = vmatprep.subr.mxu0 0.0
      %674 = vmatpush1.msra.mxu0 0.0
      %675 = vmatprep.subr.mxu0 0.0
      %676 = vmatpush1.msra.mxu0 0.0
      %677 = vmatprep.subr.mxu0 0.0
      %678 = vmatpush1.msra.mxu0 0.0
      %679 = vmatprep.subr.mxu0 0.0
      %680 = vmatpush1.msra.mxu0 0.0
      %681 = vmatprep.subr.mxu0 0.0
      %682 = vmatpush1.msra.mxu0 0.0
      %683 = vmatprep.subr.mxu0 0.0
      %684 = vmatpush1.msra.mxu0 0.0
      %685 = vmatprep.subr.mxu0 0.0
      %686 = vmatpush1.msra.mxu0 0.0
      %687 = vmatprep.subr.mxu0 0.0
      %688 = vmatpush1.msra.mxu0 0.0
      %689 = vmatprep.subr.mxu0 0.0
      %690 = vmatpush1.msra.mxu0 0.0
      %691 = vmatprep.subr.mxu0 0.0
      %692 = vmatpush1.msra.mxu0 0.0
      %693 = vmatprep.mubr.f32.mxu0 0.0
      %694 = vmatmul.mubr.f32.gmra.mrb[0].mxu0 %v618
      %v695 = vpop.f32.mrb[0].mxu0
      %v696 = vadd.f32 0.0, %v695
      %v697 = vpop.f32.mrb[0].mxu0
      %698 = vmatprep.mubr.f32.mxu0 0.0
      %699 = vmatmul.mubr.f32.gmra.mrb[0].mxu0 %v621
      %v700 = vpop.f32.mrb[0].mxu0
      %v701 = vadd.f32 0.0, %v700
      %v702 = vpop.f32.mrb[0].mxu0
      %703 = vmatprep.mubr.f32.mxu0 0.0
      %704 = vmatmul.mubr.f32.gmra.mrb[0].mxu0 %v624
      %v705 = vpop.f32.mrb[0].mxu0
      %v706 = vadd.f32 0.0, %v705
      %v707 = vpop.f32.mrb[0].mxu0
      %708 = vmatprep.mubr.f32.mxu0 0.0
      %709 = vmatmul.mubr.f32.gmra.mrb[0].mxu0 %v627
      %v710 = vpop.f32.mrb[0].mxu0
      %v711 = vadd.f32 0.0, %v710
      %v712 = vpop.f32.mrb[0].mxu0
      %713 = vdwg.mxu0
      %v715 = vsel %vm277, %v261, 0
      %v718 = vsel %vm277, %v262, 0
      %v721 = vsel %vm277, %v263, 0
      %v724 = vsel %vm277, %v264, 0
      %726 = vmatprep.subr.mxu0 0.0
      %727 = vmatpush1.msra.mxu0 %v318
      %728 = vmatprep.subr.mxu0 0.0
      %729 = vmatpush1.msra.mxu0 %v319
      %730 = vmatprep.subr.mxu0 0.0
      %731 = vmatpush1.msra.mxu0 0.0
      %732 = vmatprep.subr.mxu0 0.0
      %733 = vmatpush1.msra.mxu0 0.0
      %734 = vmatprep.subr.mxu0 0.0
      %735 = vmatpush1.msra.mxu0 0.0
      %736 = vmatprep.subr.mxu0 0.0
      %737 = vmatpush1.msra.mxu0 0.0
      %738 = vmatprep.subr.mxu0 0.0
      %739 = vmatpush1.msra.mxu0 0.0
      %740 = vmatprep.subr.mxu0 0.0
      %741 = vmatpush1.msra.mxu0 0.0
      %742 = vmatprep.subr.mxu0 0.0
      %743 = vmatpush1.msra.mxu0 0.0
      %744 = vmatprep.subr.mxu0 0.0
      %745 = vmatpush1.msra.mxu0 0.0
      %746 = vmatprep.subr.mxu0 0.0
      %747 = vmatpush1.msra.mxu0 0.0
      %748 = vmatprep.subr.mxu0 0.0
      %749 = vmatpush1.msra.mxu0 0.0
      %750 = vmatprep.subr.mxu0 0.0
      %751 = vmatpush1.msra.mxu0 0.0
      %752 = vmatprep.subr.mxu0 0.0
      %753 = vmatpush1.msra.mxu0 0.0
      %754 = vmatprep.subr.mxu0 0.0
      %755 = vmatpush1.msra.mxu0 0.0
      %756 = vmatprep.subr.mxu0 0.0
      %757 = vmatpush1.msra.mxu0 0.0
      %758 = vmatprep.subr.mxu0 0.0
      %759 = vmatpush1.msra.mxu0 0.0
      %760 = vmatprep.subr.mxu0 0.0
      %761 = vmatpush1.msra.mxu0 0.0
      %762 = vmatprep.subr.mxu0 0.0
      %763 = vmatpush1.msra.mxu0 0.0
      %764 = vmatprep.subr.mxu0 0.0
      %765 = vmatpush1.msra.mxu0 0.0
      %766 = vmatprep.subr.mxu0 0.0
      %767 = vmatpush1.msra.mxu0 0.0
      %768 = vmatprep.subr.mxu0 0.0
      %769 = vmatpush1.msra.mxu0 0.0
      %770 = vmatprep.subr.mxu0 0.0
      %771 = vmatpush1.msra.mxu0 0.0
      %772 = vmatprep.subr.mxu0 0.0
      %773 = vmatpush1.msra.mxu0 0.0
      %774 = vmatprep.subr.mxu0 0.0
      %775 = vmatpush1.msra.mxu0 0.0
      %776 = vmatprep.subr.mxu0 0.0
      %777 = vmatpush1.msra.mxu0 0.0
      %778 = vmatprep.subr.mxu0 0.0
      %779 = vmatpush1.msra.mxu0 0.0
      %780 = vmatprep.subr.mxu0 0.0
      %781 = vmatpush1.msra.mxu0 0.0
      %782 = vmatprep.subr.mxu0 0.0
      %783 = vmatpush1.msra.mxu0 0.0
      %784 = vmatprep.subr.mxu0 0.0
      %785 = vmatpush1.msra.mxu0 0.0
      %786 = vmatprep.subr.mxu0 0.0
      %787 = vmatpush1.msra.mxu0 0.0
      %788 = vmatprep.subr.mxu0 0.0
      %789 = vmatpush1.msra.mxu0 0.0
      %790 = vmatprep.mubr.f32.mxu0 0.0
      %791 = vmatmul.mubr.f32.gmra.mrb[0].mxu0 %v715
      %v792 = vpop.f32.mrb[0].mxu0
      %v793 = vadd.f32 0.0, %v792
      %v794 = vpop.f32.mrb[0].mxu0
      %795 = vmatprep.mubr.f32.mxu0 0.0
      %796 = vmatmul.mubr.f32.gmra.mrb[0].mxu0 %v718
      %v797 = vpop.f32.mrb[0].mxu0
      %v798 = vadd.f32 0.0, %v797
      %v799 = vpop.f32.mrb[0].mxu0
      %800 = vmatprep.mubr.f32.mxu0 0.0
      %801 = vmatmul.mubr.f32.gmra.mrb[0].mxu0 %v721
      %v802 = vpop.f32.mrb[0].mxu0
      %v803 = vadd.f32 0.0, %v802
      %v804 = vpop.f32.mrb[0].mxu0
      %805 = vmatprep.mubr.f32.mxu0 0.0
      %806 = vmatmul.mubr.f32.gmra.mrb[0].mxu0 %v724
      %v807 = vpop.f32.mrb[0].mxu0
      %v808 = vadd.f32 0.0, %v807
      %v809 = vpop.f32.mrb[0].mxu0
      %810 = vdwg.mxu0
      %v812 = vsel %vm277, %v265, 0
      %v815 = vsel %vm277, %v266, 0
      %v818 = vsel %vm277, %v267, 0
      %v821 = vsel %vm277, %v268, 0
      %823 = vmatprep.subr.mxu0 0.0
      %824 = vmatpush1.msra.mxu0 %v320
      %825 = vmatprep.subr.mxu0 0.0
      %826 = vmatpush1.msra.mxu0 %v321
      %827 = vmatprep.subr.mxu0 0.0
      %828 = vmatpush1.msra.mxu0 0.0
      %829 = vmatprep.subr.mxu0 0.0
      %830 = vmatpush1.msra.mxu0 0.0
      %831 = vmatprep.subr.mxu0 0.0
      %832 = vmatpush1.msra.mxu0 0.0
      %833 = vmatprep.subr.mxu0 0.0
      %834 = vmatpush1.msra.mxu0 0.0
      %835 = vmatprep.subr.mxu0 0.0
      %836 = vmatpush1.msra.mxu0 0.0
      %837 = vmatprep.subr.mxu0 0.0
      %838 = vmatpush1.msra.mxu0 0.0
      %839 = vmatprep.subr.mxu0 0.0
      %840 = vmatpush1.msra.mxu0 0.0
      %841 = vmatprep.subr.mxu0 0.0
      %842 = vmatpush1.msra.mxu0 0.0
      %843 = vmatprep.subr.mxu0 0.0
      %844 = vmatpush1.msra.mxu0 0.0
      %845 = vmatprep.subr.mxu0 0.0
      %846 = vmatpush1.msra.mxu0 0.0
      %847 = vmatprep.subr.mxu0 0.0
      %848 = vmatpush1.msra.mxu0 0.0
      %849 = vmatprep.subr.mxu0 0.0
      %850 = vmatpush1.msra.mxu0 0.0
      %851 = vmatprep.subr.mxu0 0.0
      %852 = vmatpush1.msra.mxu0 0.0
      %853 = vmatprep.subr.mxu0 0.0
      %854 = vmatpush1.msra.mxu0 0.0
      %855 = vmatprep.subr.mxu0 0.0
      %856 = vmatpush1.msra.mxu0 0.0
      %857 = vmatprep.subr.mxu0 0.0
      %858 = vmatpush1.msra.mxu0 0.0
      %859 = vmatprep.subr.mxu0 0.0
      %860 = vmatpush1.msra.mxu0 0.0
      %861 = vmatprep.subr.mxu0 0.0
      %862 = vmatpush1.msra.mxu0 0.0
      %863 = vmatprep.subr.mxu0 0.0
      %864 = vmatpush1.msra.mxu0 0.0
      %865 = vmatprep.subr.mxu0 0.0
      %866 = vmatpush1.msra.mxu0 0.0
      %867 = vmatprep.subr.mxu0 0.0
      %868 = vmatpush1.msra.mxu0 0.0
      %869 = vmatprep.subr.mxu0 0.0
      %870 = vmatpush1.msra.mxu0 0.0
      %871 = vmatprep.subr.mxu0 0.0
      %872 = vmatpush1.msra.mxu0 0.0
      %873 = vmatprep.subr.mxu0 0.0
      %874 = vmatpush1.msra.mxu0 0.0
      %875 = vmatprep.subr.mxu0 0.0
      %876 = vmatpush1.msra.mxu0 0.0
      %877 = vmatprep.subr.mxu0 0.0
      %878 = vmatpush1.msra.mxu0 0.0
      %879 = vmatprep.subr.mxu0 0.0
      %880 = vmatpush1.msra.mxu0 0.0
      %881 = vmatprep.subr.mxu0 0.0
      %882 = vmatpush1.msra.mxu0 0.0
      %883 = vmatprep.subr.mxu0 0.0
      %884 = vmatpush1.msra.mxu0 0.0
      %885 = vmatprep.subr.mxu0 0.0
      %886 = vmatpush1.msra.mxu0 0.0
      %887 = vmatprep.mubr.f32.mxu0 0.0
      %888 = vmatmul.mubr.f32.gmra.mrb[0].mxu0 %v812
      %v889 = vpop.f32.mrb[0].mxu0
      %v890 = vadd.f32 0.0, %v889
      %v891 = vpop.f32.mrb[0].mxu0
      %892 = vmatprep.mubr.f32.mxu0 0.0
      %893 = vmatmul.mubr.f32.gmra.mrb[0].mxu0 %v815
      %v894 = vpop.f32.mrb[0].mxu0
      %v895 = vadd.f32 0.0, %v894
      %v896 = vpop.f32.mrb[0].mxu0
      %897 = vmatprep.mubr.f32.mxu0 0.0
      %898 = vmatmul.mubr.f32.gmra.mrb[0].mxu0 %v818
      %v899 = vpop.f32.mrb[0].mxu0
      %v900 = vadd.f32 0.0, %v899
      %v901 = vpop.f32.mrb[0].mxu0
      %902 = vmatprep.mubr.f32.mxu0 0.0
      %903 = vmatmul.mubr.f32.gmra.mrb[0].mxu0 %v821
      %v904 = vpop.f32.mrb[0].mxu0
      %v905 = vadd.f32 0.0, %v904
      %v906 = vpop.f32.mrb[0].mxu0
      %907 = vdwg.mxu0
      %v909 = vsel %vm277, %v269, 0
      %v912 = vsel %vm277, %v270, 0
      %v915 = vsel %vm277, %v271, 0
      %v918 = vsel %vm277, %v272, 0
      %920 = vmatprep.subr.mxu0 0.0
      %921 = vmatpush1.msra.mxu0 %v322
      %922 = vmatprep.subr.mxu0 0.0
      %923 = vmatpush1.msra.mxu0 %v323
      %924 = vmatprep.subr.mxu0 0.0
      %925 = vmatpush1.msra.mxu0 0.0
      %926 = vmatprep.subr.mxu0 0.0
      %927 = vmatpush1.msra.mxu0 0.0
      %928 = vmatprep.subr.mxu0 0.0
      %929 = vmatpush1.msra.mxu0 0.0
      %930 = vmatprep.subr.mxu0 0.0
      %931 = vmatpush1.msra.mxu0 0.0
      %932 = vmatprep.subr.mxu0 0.0
      %933 = vmatpush1.msra.mxu0 0.0
      %934 = vmatprep.subr.mxu0 0.0
      %935 = vmatpush1.msra.mxu0 0.0
      %936 = vmatprep.subr.mxu0 0.0
      %937 = vmatpush1.msra.mxu0 0.0
      %938 = vmatprep.subr.mxu0 0.0
      %939 = vmatpush1.msra.mxu0 0.0
      %940 = vmatprep.subr.mxu0 0.0
      %941 = vmatpush1.msra.mxu0 0.0
      %942 = vmatprep.subr.mxu0 0.0
      %943 = vmatpush1.msra.mxu0 0.0
      %944 = vmatprep.subr.mxu0 0.0
      %945 = vmatpush1.msra.mxu0 0.0
      %946 = vmatprep.subr.mxu0 0.0
      %947 = vmatpush1.msra.mxu0 0.0
      %948 = vmatprep.subr.mxu0 0.0
      %949 = vmatpush1.msra.mxu0 0.0
      %950 = vmatprep.subr.mxu0 0.0
      %951 = vmatpush1.msra.mxu0 0.0
      %952 = vmatprep.subr.mxu0 0.0
      %953 = vmatpush1.msra.mxu0 0.0
      %954 = vmatprep.subr.mxu0 0.0
      %955 = vmatpush1.msra.mxu0 0.0
      %956 = vmatprep.subr.mxu0 0.0
      %957 = vmatpush1.msra.mxu0 0.0
      %958 = vmatprep.subr.mxu0 0.0
      %959 = vmatpush1.msra.mxu0 0.0
      %960 = vmatprep.subr.mxu0 0.0
      %961 = vmatpush1.msra.mxu0 0.0
      %962 = vmatprep.subr.mxu0 0.0
      %963 = vmatpush1.msra.mxu0 0.0
      %964 = vmatprep.subr.mxu0 0.0
      %965 = vmatpush1.msra.mxu0 0.0
      %966 = vmatprep.subr.mxu0 0.0
      %967 = vmatpush1.msra.mxu0 0.0
      %968 = vmatprep.subr.mxu0 0.0
      %969 = vmatpush1.msra.mxu0 0.0
      %970 = vmatprep.subr.mxu0 0.0
      %971 = vmatpush1.msra.mxu0 0.0
      %972 = vmatprep.subr.mxu0 0.0
      %973 = vmatpush1.msra.mxu0 0.0
      %974 = vmatprep.subr.mxu0 0.0
      %975 = vmatpush1.msra.mxu0 0.0
      %976 = vmatprep.subr.mxu0 0.0
      %977 = vmatpush1.msra.mxu0 0.0
      %978 = vmatprep.subr.mxu0 0.0
      %979 = vmatpush1.msra.mxu0 0.0
      %980 = vmatprep.subr.mxu0 0.0
      %981 = vmatpush1.msra.mxu0 0.0
      %982 = vmatprep.subr.mxu0 0.0
      %983 = vmatpush1.msra.mxu0 0.0
      %984 = vmatprep.mubr.f32.mxu0 0.0
      %985 = vmatmul.mubr.f32.gmra.mrb[0].mxu0 %v909
      %v986 = vpop.f32.mrb[0].mxu0
      %v987 = vadd.f32 0.0, %v986
      %v988 = vpop.f32.mrb[0].mxu0
      %989 = vmatprep.mubr.f32.mxu0 0.0
      %990 = vmatmul.mubr.f32.gmra.mrb[0].mxu0 %v912
      %v991 = vpop.f32.mrb[0].mxu0
      %v992 = vadd.f32 0.0, %v991
      %v993 = vpop.f32.mrb[0].mxu0
      %994 = vmatprep.mubr.f32.mxu0 0.0
      %995 = vmatmul.mubr.f32.gmra.mrb[0].mxu0 %v915
      %v996 = vpop.f32.mrb[0].mxu0
      %v997 = vadd.f32 0.0, %v996
      %v998 = vpop.f32.mrb[0].mxu0
      %999 = vmatprep.mubr.f32.mxu0 0.0
      %1000 = vmatmul.mubr.f32.gmra.mrb[0].mxu0 %v918
      %v1001 = vpop.f32.mrb[0].mxu0
      %v1002 = vadd.f32 0.0, %v1001
      %v1003 = vpop.f32.mrb[0].mxu0
      %1004 = vdwg.mxu0
      %v1006 = vsel %vm277, %v273, 0
      %v1009 = vsel %vm277, %v274, 0
      %v1012 = vsel %vm277, %v275, 0
      %v1015 = vsel %vm277, %v276, 0
      %1017 = vmatprep.subr.mxu0 0.0
      %1018 = vmatpush1.msra.mxu0 %v324
      %1019 = vmatprep.subr.mxu0 0.0
      %1020 = vmatpush1.msra.mxu0 %v325
      %1021 = vmatprep.subr.mxu0 0.0
      %1022 = vmatpush1.msra.mxu0 0.0
      %1023 = vmatprep.subr.mxu0 0.0
      %1024 = vmatpush1.msra.mxu0 0.0
      %1025 = vmatprep.subr.mxu0 0.0
      %1026 = vmatpush1.msra.mxu0 0.0
      %1027 = vmatprep.subr.mxu0 0.0
      %1028 = vmatpush1.msra.mxu0 0.0
      %1029 = vmatprep.subr.mxu0 0.0
      %1030 = vmatpush1.msra.mxu0 0.0
      %1031 = vmatprep.subr.mxu0 0.0
      %1032 = vmatpush1.msra.mxu0 0.0
      %1033 = vmatprep.subr.mxu0 0.0
      %1034 = vmatpush1.msra.mxu0 0.0
      %1035 = vmatprep.subr.mxu0 0.0
      %1036 = vmatpush1.msra.mxu0 0.0
      %1037 = vmatprep.subr.mxu0 0.0
      %1038 = vmatpush1.msra.mxu0 0.0
      %1039 = vmatprep.subr.mxu0 0.0
      %1040 = vmatpush1.msra.mxu0 0.0
      %1041 = vmatprep.subr.mxu0 0.0
      %1042 = vmatpush1.msra.mxu0 0.0
      %1043 = vmatprep.subr.mxu0 0.0
      %1044 = vmatpush1.msra.mxu0 0.0
      %1045 = vmatprep.subr.mxu0 0.0
      %1046 = vmatpush1.msra.mxu0 0.0
      %1047 = vmatprep.subr.mxu0 0.0
      %1048 = vmatpush1.msra.mxu0 0.0
      %1049 = vmatprep.subr.mxu0 0.0
      %1050 = vmatpush1.msra.mxu0 0.0
      %1051 = vmatprep.subr.mxu0 0.0
      %1052 = vmatpush1.msra.mxu0 0.0
      %1053 = vmatprep.subr.mxu0 0.0
      %1054 = vmatpush1.msra.mxu0 0.0
      %1055 = vmatprep.subr.mxu0 0.0
      %1056 = vmatpush1.msra.mxu0 0.0
      %1057 = vmatprep.subr.mxu0 0.0
      %1058 = vmatpush1.msra.mxu0 0.0
      %1059 = vmatprep.subr.mxu0 0.0
      %1060 = vmatpush1.msra.mxu0 0.0
      %1061 = vmatprep.subr.mxu0 0.0
      %1062 = vmatpush1.msra.mxu0 0.0
      %1063 = vmatprep.subr.mxu0 0.0
      %1064 = vmatpush1.msra.mxu0 0.0
      %1065 = vmatprep.subr.mxu0 0.0
      %1066 = vmatpush1.msra.mxu0 0.0
      %1067 = vmatprep.subr.mxu0 0.0
      %1068 = vmatpush1.msra.mxu0 0.0
      %1069 = vmatprep.subr.mxu0 0.0
      %1070 = vmatpush1.msra.mxu0 0.0
      %1071 = vmatprep.subr.mxu0 0.0
      %1072 = vmatpush1.msra.mxu0 0.0
      %1073 = vmatprep.subr.mxu0 0.0
      %1074 = vmatpush1.msra.mxu0 0.0
      %1075 = vmatprep.subr.mxu0 0.0
      %1076 = vmatpush1.msra.mxu0 0.0
      %1077 = vmatprep.subr.mxu0 0.0
      %1078 = vmatpush1.msra.mxu0 0.0
      %1079 = vmatprep.subr.mxu0 0.0
      %1080 = vmatpush1.msra.mxu0 0.0
      %1081 = vmatprep.mubr.f32.mxu0 0.0
      %1082 = vmatmul.mubr.f32.gmra.mrb[0].mxu0 %v1006
      %v1083 = vpop.f32.mrb[0].mxu0
      %v1084 = vadd.f32 0.0, %v1083
      %v1085 = vpop.f32.mrb[0].mxu0
      %1086 = vmatprep.mubr.f32.mxu0 0.0
      %1087 = vmatmul.mubr.f32.gmra.mrb[0].mxu0 %v1009
      %v1088 = vpop.f32.mrb[0].mxu0
      %v1089 = vadd.f32 0.0, %v1088
      %v1090 = vpop.f32.mrb[0].mxu0
      %1091 = vmatprep.mubr.f32.mxu0 0.0
      %1092 = vmatmul.mubr.f32.gmra.mrb[0].mxu0 %v1012
      %v1093 = vpop.f32.mrb[0].mxu0
      %v1094 = vadd.f32 0.0, %v1093
      %v1095 = vpop.f32.mrb[0].mxu0
      %1096 = vmatprep.mubr.f32.mxu0 0.0
      %1097 = vmatmul.mubr.f32.gmra.mrb[0].mxu0 %v1015
      %v1098 = vpop.f32.mrb[0].mxu0
      %v1099 = vadd.f32 0.0, %v1098
      %v1100 = vpop.f32.mrb[0].mxu0
      %1101 = vdwg.mxu0
      %1102 = vst.msk [vmem:[#allocation2 + $0x20] sm:$0xff] %vm277, %v405
      %1103 = vst.msk [vmem:[#allocation2 + $0x28] sm:$0xff] %vm277, %v410
      %1104 = vst.msk [vmem:[#allocation2 + $0x30] sm:$0xff] %vm277, %v415
      %1105 = vst.msk [vmem:[#allocation2 + $0x38] sm:$0xff] %vm277, %v420
      %1106 = vst.msk [vmem:[#allocation2 + $0x100] sm:$0xff] %vm277, %v502
      %1107 = vst.msk [vmem:[#allocation2 + $0x108] sm:$0xff] %vm277, %v507
      %1108 = vst.msk [vmem:[#allocation2 + $0x110] sm:$0xff] %vm277, %v512
      %1109 = vst.msk [vmem:[#allocation2 + $0x118] sm:$0xff] %vm277, %v517
      %1110 = vst.msk [vmem:[#allocation2 + $0x1e0] sm:$0xff] %vm277, %v599
      %1111 = vst.msk [vmem:[#allocation2 + $0x1e8] sm:$0xff] %vm277, %v604
      %1112 = vst.msk [vmem:[#allocation2 + $0x1f0] sm:$0xff] %vm277, %v609
      %1113 = vst.msk [vmem:[#allocation2 + $0x1f8] sm:$0xff] %vm277, %v614
      %1114 = vst.msk [vmem:[#allocation2 + $0x2c0] sm:$0xff] %vm277, %v696
      %1115 = vst.msk [vmem:[#allocation2 + $0x2c8] sm:$0xff] %vm277, %v701
      %1116 = vst.msk [vmem:[#allocation2 + $0x2d0] sm:$0xff] %vm277, %v706
      %1117 = vst.msk [vmem:[#allocation2 + $0x2d8] sm:$0xff] %vm277, %v711
      %1118 = vst.msk [vmem:[#allocation2 + $0x3a0] sm:$0xff] %vm277, %v793
      %1119 = vst.msk [vmem:[#allocation2 + $0x3a8] sm:$0xff] %vm277, %v798
      %1120 = vst.msk [vmem:[#allocation2 + $0x3b0] sm:$0xff] %vm277, %v803
      %1121 = vst.msk [vmem:[#allocation2 + $0x3b8] sm:$0xff] %vm277, %v808
      %1122 = vst.msk [vmem:[#allocation2 + $0x480] sm:$0xff] %vm277, %v890
      %1123 = vst.msk [vmem:[#allocation2 + $0x488] sm:$0xff] %vm277, %v895
      %1124 = vst.msk [vmem:[#allocation2 + $0x490] sm:$0xff] %vm277, %v900
      %1125 = vst.msk [vmem:[#allocation2 + $0x498] sm:$0xff] %vm277, %v905
      %1126 = vst.msk [vmem:[#allocation2 + $0x560] sm:$0xff] %vm277, %v987
      %1127 = vst.msk [vmem:[#allocation2 + $0x568] sm:$0xff] %vm277, %v992
      %1128 = vst.msk [vmem:[#allocation2 + $0x570] sm:$0xff] %vm277, %v997
      %1129 = vst.msk [vmem:[#allocation2 + $0x578] sm:$0xff] %vm277, %v1002
      %1130 = vst.msk [vmem:[#allocation2 + $0x640] sm:$0xff] %vm277, %v1084
      %1131 = vst.msk [vmem:[#allocation2 + $0x648] sm:$0xff] %vm277, %v1089
      %1132 = vst.msk [vmem:[#allocation2 + $0x650] sm:$0xff] %vm277, %v1094
      %1133 = vst.msk [vmem:[#allocation2 + $0x658] sm:$0xff] %vm277, %v1099
      %v1135 = vsel %vm277, %v405, 0
      %v1138 = vsel %vm277, %v410, 0
      %v1141 = vsel %vm277, %v415, 0
      %v1144 = vsel %vm277, %v420, 0
      %1146 = vmatprep.subr.mxu0 0.0
      %1147 = vmatpush1.msra.mxu0 %v310
      %1148 = vmatprep.subr.mxu0 0.0
      %1149 = vmatpush1.msra.mxu0 %v311
      %1150 = vmatprep.subr.mxu0 0.0
      %1151 = vmatpush1.msra.mxu0 0.0
      %1152 = vmatprep.subr.mxu0 0.0
      %1153 = vmatpush1.msra.mxu0 0.0
      %1154 = vmatprep.subr.mxu0 0.0
      %1155 = vmatpush1.msra.mxu0 0.0
      %1156 = vmatprep.subr.mxu0 0.0
      %1157 = vmatpush1.msra.mxu0 0.0
      %1158 = vmatprep.subr.mxu0 0.0
      %1159 = vmatpush1.msra.mxu0 0.0
      %1160 = vmatprep.subr.mxu0 0.0
      %1161 = vmatpush1.msra.mxu0 0.0
      %1162 = vmatprep.subr.mxu0 0.0
      %1163 = vmatpush1.msra.mxu0 0.0
      %1164 = vmatprep.subr.mxu0 0.0
      %1165 = vmatpush1.msra.mxu0 0.0
      %1166 = vmatprep.subr.mxu0 0.0
      %1167 = vmatpush1.msra.mxu0 0.0
      %1168 = vmatprep.subr.mxu0 0.0
      %1169 = vmatpush1.msra.mxu0 0.0
      %1170 = vmatprep.subr.mxu0 0.0
      %1171 = vmatpush1.msra.mxu0 0.0
      %1172 = vmatprep.subr.mxu0 0.0
      %1173 = vmatpush1.msra.mxu0 0.0
      %1174 = vmatprep.subr.mxu0 0.0
      %1175 = vmatpush1.msra.mxu0 0.0
      %1176 = vmatprep.subr.mxu0 0.0
      %1177 = vmatpush1.msra.mxu0 0.0
      %1178 = vmatprep.subr.mxu0 0.0
      %1179 = vmatpush1.msra.mxu0 0.0
      %1180 = vmatprep.subr.mxu0 0.0
      %1181 = vmatpush1.msra.mxu0 0.0
      %1182 = vmatprep.subr.mxu0 0.0
      %1183 = vmatpush1.msra.mxu0 0.0
      %1184 = vmatprep.subr.mxu0 0.0
      %1185 = vmatpush1.msra.mxu0 0.0
      %1186 = vmatprep.subr.mxu0 0.0
      %1187 = vmatpush1.msra.mxu0 0.0
      %1188 = vmatprep.subr.mxu0 0.0
      %1189 = vmatpush1.msra.mxu0 0.0
      %1190 = vmatprep.subr.mxu0 0.0
      %1191 = vmatpush1.msra.mxu0 0.0
      %1192 = vmatprep.subr.mxu0 0.0
      %1193 = vmatpush1.msra.mxu0 0.0
      %1194 = vmatprep.subr.mxu0 0.0
      %1195 = vmatpush1.msra.mxu0 0.0
      %1196 = vmatprep.subr.mxu0 0.0
      %1197 = vmatpush1.msra.mxu0 0.0
      %1198 = vmatprep.subr.mxu0 0.0
      %1199 = vmatpush1.msra.mxu0 0.0
      %1200 = vmatprep.subr.mxu0 0.0
      %1201 = vmatpush1.msra.mxu0 0.0
      %1202 = vmatprep.subr.mxu0 0.0
      %1203 = vmatpush1.msra.mxu0 0.0
      %1204 = vmatprep.subr.mxu0 0.0
      %1205 = vmatpush1.msra.mxu0 0.0
      %1206 = vmatprep.subr.mxu0 0.0
      %1207 = vmatpush1.msra.mxu0 0.0
      %1208 = vmatprep.subr.mxu0 0.0
      %1209 = vmatpush1.msra.mxu0 0.0
      %1210 = vmatprep.mubr.f32.mxu0 0.0
      %1211 = vmatmul.mubr.f32.gmra.mrb[0].mxu0 %v1135
      %v1212 = vpop.f32.mrb[0].mxu0
      %v1213 = vadd.f32 0.0, %v1212
      %v1214 = vpop.f32.mrb[0].mxu0
      %1215 = vmatprep.mubr.f32.mxu0 0.0
      %1216 = vmatmul.mubr.f32.gmra.mrb[0].mxu0 %v1138
      %v1217 = vpop.f32.mrb[0].mxu0
      %v1218 = vadd.f32 0.0, %v1217
      %v1219 = vpop.f32.mrb[0].mxu0
      %1220 = vmatprep.mubr.f32.mxu0 0.0
      %1221 = vmatmul.mubr.f32.gmra.mrb[0].mxu0 %v1141
      %v1222 = vpop.f32.mrb[0].mxu0
      %v1223 = vadd.f32 0.0, %v1222
      %v1224 = vpop.f32.mrb[0].mxu0
      %1225 = vmatprep.mubr.f32.mxu0 0.0
      %1226 = vmatmul.mubr.f32.gmra.mrb[0].mxu0 %v1144
      %v1227 = vpop.f32.mrb[0].mxu0
      %v1228 = vadd.f32 0.0, %v1227
      %v1229 = vpop.f32.mrb[0].mxu0
      %1230 = vdwg.mxu0
      %v1232 = vsel %vm277, %v502, 0
      %v1235 = vsel %vm277, %v507, 0
      %v1238 = vsel %vm277, %v512, 0
      %v1241 = vsel %vm277, %v517, 0
      %1243 = vmatprep.subr.mxu0 0.0
      %1244 = vmatpush1.msra.mxu0 %v312
      %1245 = vmatprep.subr.mxu0 0.0
      %1246 = vmatpush1.msra.mxu0 %v313
      %1247 = vmatprep.subr.mxu0 0.0
      %1248 = vmatpush1.msra.mxu0 0.0
      %1249 = vmatprep.subr.mxu0 0.0
      %1250 = vmatpush1.msra.mxu0 0.0
      %1251 = vmatprep.subr.mxu0 0.0
      %1252 = vmatpush1.msra.mxu0 0.0
      %1253 = vmatprep.subr.mxu0 0.0
      %1254 = vmatpush1.msra.mxu0 0.0
      %1255 = vmatprep.subr.mxu0 0.0
      %1256 = vmatpush1.msra.mxu0 0.0
      %1257 = vmatprep.subr.mxu0 0.0
      %1258 = vmatpush1.msra.mxu0 0.0
      %1259 = vmatprep.subr.mxu0 0.0
      %1260 = vmatpush1.msra.mxu0 0.0
      %1261 = vmatprep.subr.mxu0 0.0
      %1262 = vmatpush1.msra.mxu0 0.0
      %1263 = vmatprep.subr.mxu0 0.0
      %1264 = vmatpush1.msra.mxu0 0.0
      %1265 = vmatprep.subr.mxu0 0.0
      %1266 = vmatpush1.msra.mxu0 0.0
      %1267 = vmatprep.subr.mxu0 0.0
      %1268 = vmatpush1.msra.mxu0 0.0
      %1269 = vmatprep.subr.mxu0 0.0
      %1270 = vmatpush1.msra.mxu0 0.0
      %1271 = vmatprep.subr.mxu0 0.0
      %1272 = vmatpush1.msra.mxu0 0.0
      %1273 = vmatprep.subr.mxu0 0.0
      %1274 = vmatpush1.msra.mxu0 0.0
      %1275 = vmatprep.subr.mxu0 0.0
      %1276 = vmatpush1.msra.mxu0 0.0
      %1277 = vmatprep.subr.mxu0 0.0
      %1278 = vmatpush1.msra.mxu0 0.0
      %1279 = vmatprep.subr.mxu0 0.0
      %1280 = vmatpush1.msra.mxu0 0.0
      %1281 = vmatprep.subr.mxu0 0.0
      %1282 = vmatpush1.msra.mxu0 0.0
      %1283 = vmatprep.subr.mxu0 0.0
      %1284 = vmatpush1.msra.mxu0 0.0
      %1285 = vmatprep.subr.mxu0 0.0
      %1286 = vmatpush1.msra.mxu0 0.0
      %1287 = vmatprep.subr.mxu0 0.0
      %1288 = vmatpush1.msra.mxu0 0.0
      %1289 = vmatprep.subr.mxu0 0.0
      %1290 = vmatpush1.msra.mxu0 0.0
      %1291 = vmatprep.subr.mxu0 0.0
      %1292 = vmatpush1.msra.mxu0 0.0
      %1293 = vmatprep.subr.mxu0 0.0
      %1294 = vmatpush1.msra.mxu0 0.0
      %1295 = vmatprep.subr.mxu0 0.0
      %1296 = vmatpush1.msra.mxu0 0.0
      %1297 = vmatprep.subr.mxu0 0.0
      %1298 = vmatpush1.msra.mxu0 0.0
      %1299 = vmatprep.subr.mxu0 0.0
      %1300 = vmatpush1.msra.mxu0 0.0
      %1301 = vmatprep.subr.mxu0 0.0
      %1302 = vmatpush1.msra.mxu0 0.0
      %1303 = vmatprep.subr.mxu0 0.0
      %1304 = vmatpush1.msra.mxu0 0.0
      %1305 = vmatprep.subr.mxu0 0.0
      %1306 = vmatpush1.msra.mxu0 0.0
      %1307 = vmatprep.mubr.f32.mxu0 0.0
      %1308 = vmatmul.mubr.f32.gmra.mrb[0].mxu0 %v1232
      %v1309 = vpop.f32.mrb[0].mxu0
      %v1310 = vadd.f32 0.0, %v1309
      %v1311 = vpop.f32.mrb[0].mxu0
      %1312 = vmatprep.mubr.f32.mxu0 0.0
      %1313 = vmatmul.mubr.f32.gmra.mrb[0].mxu0 %v1235
      %v1314 = vpop.f32.mrb[0].mxu0
      %v1315 = vadd.f32 0.0, %v1314
      %v1316 = vpop.f32.mrb[0].mxu0
      %1317 = vmatprep.mubr.f32.mxu0 0.0
      %1318 = vmatmul.mubr.f32.gmra.mrb[0].mxu0 %v1238
      %v1319 = vpop.f32.mrb[0].mxu0
      %v1320 = vadd.f32 0.0, %v1319
      %v1321 = vpop.f32.mrb[0].mxu0
      %1322 = vmatprep.mubr.f32.mxu0 0.0
      %1323 = vmatmul.mubr.f32.gmra.mrb[0].mxu0 %v1241
      %v1324 = vpop.f32.mrb[0].mxu0
      %v1325 = vadd.f32 0.0, %v1324
      %v1326 = vpop.f32.mrb[0].mxu0
      %1327 = vdwg.mxu0
      %v1329 = vsel %vm277, %v599, 0
      %v1332 = vsel %vm277, %v604, 0
      %v1335 = vsel %vm277, %v609, 0
      %v1338 = vsel %vm277, %v614, 0
      %1340 = vmatprep.subr.mxu0 0.0
      %1341 = vmatpush1.msra.mxu0 %v314
      %1342 = vmatprep.subr.mxu0 0.0
      %1343 = vmatpush1.msra.mxu0 %v315
      %1344 = vmatprep.subr.mxu0 0.0
      %1345 = vmatpush1.msra.mxu0 0.0
      %1346 = vmatprep.subr.mxu0 0.0
      %1347 = vmatpush1.msra.mxu0 0.0
      %1348 = vmatprep.subr.mxu0 0.0
      %1349 = vmatpush1.msra.mxu0 0.0
      %1350 = vmatprep.subr.mxu0 0.0
      %1351 = vmatpush1.msra.mxu0 0.0
      %1352 = vmatprep.subr.mxu0 0.0
      %1353 = vmatpush1.msra.mxu0 0.0
      %1354 = vmatprep.subr.mxu0 0.0
      %1355 = vmatpush1.msra.mxu0 0.0
      %1356 = vmatprep.subr.mxu0 0.0
      %1357 = vmatpush1.msra.mxu0 0.0
      %1358 = vmatprep.subr.mxu0 0.0
      %1359 = vmatpush1.msra.mxu0 0.0
      %1360 = vmatprep.subr.mxu0 0.0
      %1361 = vmatpush1.msra.mxu0 0.0
      %1362 = vmatprep.subr.mxu0 0.0
      %1363 = vmatpush1.msra.mxu0 0.0
      %1364 = vmatprep.subr.mxu0 0.0
      %1365 = vmatpush1.msra.mxu0 0.0
      %1366 = vmatprep.subr.mxu0 0.0
      %1367 = vmatpush1.msra.mxu0 0.0
      %1368 = vmatprep.subr.mxu0 0.0
      %1369 = vmatpush1.msra.mxu0 0.0
      %1370 = vmatprep.subr.mxu0 0.0
      %1371 = vmatpush1.msra.mxu0 0.0
      %1372 = vmatprep.subr.mxu0 0.0
      %1373 = vmatpush1.msra.mxu0 0.0
      %1374 = vmatprep.subr.mxu0 0.0
      %1375 = vmatpush1.msra.mxu0 0.0
      %1376 = vmatprep.subr.mxu0 0.0
      %1377 = vmatpush1.msra.mxu0 0.0
      %1378 = vmatprep.subr.mxu0 0.0
      %1379 = vmatpush1.msra.mxu0 0.0
      %1380 = vmatprep.subr.mxu0 0.0
      %1381 = vmatpush1.msra.mxu0 0.0
      %1382 = vmatprep.subr.mxu0 0.0
      %1383 = vmatpush1.msra.mxu0 0.0
      %1384 = vmatprep.subr.mxu0 0.0
      %1385 = vmatpush1.msra.mxu0 0.0
      %1386 = vmatprep.subr.mxu0 0.0
      %1387 = vmatpush1.msra.mxu0 0.0
      %1388 = vmatprep.subr.mxu0 0.0
      %1389 = vmatpush1.msra.mxu0 0.0
      %1390 = vmatprep.subr.mxu0 0.0
      %1391 = vmatpush1.msra.mxu0 0.0
      %1392 = vmatprep.subr.mxu0 0.0
      %1393 = vmatpush1.msra.mxu0 0.0
      %1394 = vmatprep.subr.mxu0 0.0
      %1395 = vmatpush1.msra.mxu0 0.0
      %1396 = vmatprep.subr.mxu0 0.0
      %1397 = vmatpush1.msra.mxu0 0.0
      %1398 = vmatprep.subr.mxu0 0.0
      %1399 = vmatpush1.msra.mxu0 0.0
      %1400 = vmatprep.subr.mxu0 0.0
      %1401 = vmatpush1.msra.mxu0 0.0
      %1402 = vmatprep.subr.mxu0 0.0
      %1403 = vmatpush1.msra.mxu0 0.0
      %1404 = vmatprep.mubr.f32.mxu0 0.0
      %1405 = vmatmul.mubr.f32.gmra.mrb[0].mxu0 %v1329
      %v1406 = vpop.f32.mrb[0].mxu0
      %v1407 = vadd.f32 0.0, %v1406
      %v1408 = vpop.f32.mrb[0].mxu0
      %1409 = vmatprep.mubr.f32.mxu0 0.0
      %1410 = vmatmul.mubr.f32.gmra.mrb[0].mxu0 %v1332
      %v1411 = vpop.f32.mrb[0].mxu0
      %v1412 = vadd.f32 0.0, %v1411
      %v1413 = vpop.f32.mrb[0].mxu0
      %1414 = vmatprep.mubr.f32.mxu0 0.0
      %1415 = vmatmul.mubr.f32.gmra.mrb[0].mxu0 %v1335
      %v1416 = vpop.f32.mrb[0].mxu0
      %v1417 = vadd.f32 0.0, %v1416
      %v1418 = vpop.f32.mrb[0].mxu0
      %1419 = vmatprep.mubr.f32.mxu0 0.0
      %1420 = vmatmul.mubr.f32.gmra.mrb[0].mxu0 %v1338
      %v1421 = vpop.f32.mrb[0].mxu0
      %v1422 = vadd.f32 0.0, %v1421
      %v1423 = vpop.f32.mrb[0].mxu0
      %1424 = vdwg.mxu0
      %v1426 = vsel %vm277, %v696, 0
      %v1429 = vsel %vm277, %v701, 0
      %v1432 = vsel %vm277, %v706, 0
      %v1435 = vsel %vm277, %v711, 0
      %1437 = vmatprep.subr.mxu0 0.0
      %1438 = vmatpush1.msra.mxu0 %v316
      %1439 = vmatprep.subr.mxu0 0.0
      %1440 = vmatpush1.msra.mxu0 %v317
      %1441 = vmatprep.subr.mxu0 0.0
      %1442 = vmatpush1.msra.mxu0 0.0
      %1443 = vmatprep.subr.mxu0 0.0
      %1444 = vmatpush1.msra.mxu0 0.0
      %1445 = vmatprep.subr.mxu0 0.0
      %1446 = vmatpush1.msra.mxu0 0.0
      %1447 = vmatprep.subr.mxu0 0.0
      %1448 = vmatpush1.msra.mxu0 0.0
      %1449 = vmatprep.subr.mxu0 0.0
      %1450 = vmatpush1.msra.mxu0 0.0
      %1451 = vmatprep.subr.mxu0 0.0
      %1452 = vmatpush1.msra.mxu0 0.0
      %1453 = vmatprep.subr.mxu0 0.0
      %1454 = vmatpush1.msra.mxu0 0.0
      %1455 = vmatprep.subr.mxu0 0.0
      %1456 = vmatpush1.msra.mxu0 0.0
      %1457 = vmatprep.subr.mxu0 0.0
      %1458 = vmatpush1.msra.mxu0 0.0
      %1459 = vmatprep.subr.mxu0 0.0
      %1460 = vmatpush1.msra.mxu0 0.0
      %1461 = vmatprep.subr.mxu0 0.0
      %1462 = vmatpush1.msra.mxu0 0.0
      %1463 = vmatprep.subr.mxu0 0.0
      %1464 = vmatpush1.msra.mxu0 0.0
      %1465 = vmatprep.subr.mxu0 0.0
      %1466 = vmatpush1.msra.mxu0 0.0
      %1467 = vmatprep.subr.mxu0 0.0
      %1468 = vmatpush1.msra.mxu0 0.0
      %1469 = vmatprep.subr.mxu0 0.0
      %1470 = vmatpush1.msra.mxu0 0.0
      %1471 = vmatprep.subr.mxu0 0.0
      %1472 = vmatpush1.msra.mxu0 0.0
      %1473 = vmatprep.subr.mxu0 0.0
      %1474 = vmatpush1.msra.mxu0 0.0
      %1475 = vmatprep.subr.mxu0 0.0
      %1476 = vmatpush1.msra.mxu0 0.0
      %1477 = vmatprep.subr.mxu0 0.0
      %1478 = vmatpush1.msra.mxu0 0.0
      %1479 = vmatprep.subr.mxu0 0.0
      %1480 = vmatpush1.msra.mxu0 0.0
      %1481 = vmatprep.subr.mxu0 0.0
      %1482 = vmatpush1.msra.mxu0 0.0
      %1483 = vmatprep.subr.mxu0 0.0
      %1484 = vmatpush1.msra.mxu0 0.0
      %1485 = vmatprep.subr.mxu0 0.0
      %1486 = vmatpush1.msra.mxu0 0.0
      %1487 = vmatprep.subr.mxu0 0.0
      %1488 = vmatpush1.msra.mxu0 0.0
      %1489 = vmatprep.subr.mxu0 0.0
      %1490 = vmatpush1.msra.mxu0 0.0
      %1491 = vmatprep.subr.mxu0 0.0
      %1492 = vmatpush1.msra.mxu0 0.0
      %1493 = vmatprep.subr.mxu0 0.0
      %1494 = vmatpush1.msra.mxu0 0.0
      %1495 = vmatprep.subr.mxu0 0.0
      %1496 = vmatpush1.msra.mxu0 0.0
      %1497 = vmatprep.subr.mxu0 0.0
      %1498 = vmatpush1.msra.mxu0 0.0
      %1499 = vmatprep.subr.mxu0 0.0
      %1500 = vmatpush1.msra.mxu0 0.0
      %1501 = vmatprep.mubr.f32.mxu0 0.0
      %1502 = vmatmul.mubr.f32.gmra.mrb[0].mxu0 %v1426
      %v1503 = vpop.f32.mrb[0].mxu0
      %v1504 = vadd.f32 0.0, %v1503
      %v1505 = vpop.f32.mrb[0].mxu0
      %1506 = vmatprep.mubr.f32.mxu0 0.0
      %1507 = vmatmul.mubr.f32.gmra.mrb[0].mxu0 %v1429
      %v1508 = vpop.f32.mrb[0].mxu0
      %v1509 = vadd.f32 0.0, %v1508
      %v1510 = vpop.f32.mrb[0].mxu0
      %1511 = vmatprep.mubr.f32.mxu0 0.0
      %1512 = vmatmul.mubr.f32.gmra.mrb[0].mxu0 %v1432
      %v1513 = vpop.f32.mrb[0].mxu0
      %v1514 = vadd.f32 0.0, %v1513
      %v1515 = vpop.f32.mrb[0].mxu0
      %1516 = vmatprep.mubr.f32.mxu0 0.0
      %1517 = vmatmul.mubr.f32.gmra.mrb[0].mxu0 %v1435
      %v1518 = vpop.f32.mrb[0].mxu0
      %v1519 = vadd.f32 0.0, %v1518
      %v1520 = vpop.f32.mrb[0].mxu0
      %1521 = vdwg.mxu0
      %v1523 = vsel %vm277, %v793, 0
      %v1526 = vsel %vm277, %v798, 0
      %v1529 = vsel %vm277, %v803, 0
      %v1532 = vsel %vm277, %v808, 0
      %1534 = vmatprep.subr.mxu0 0.0
      %1535 = vmatpush1.msra.mxu0 %v318
      %1536 = vmatprep.subr.mxu0 0.0
      %1537 = vmatpush1.msra.mxu0 %v319
      %1538 = vmatprep.subr.mxu0 0.0
      %1539 = vmatpush1.msra.mxu0 0.0
      %1540 = vmatprep.subr.mxu0 0.0
      %1541 = vmatpush1.msra.mxu0 0.0
      %1542 = vmatprep.subr.mxu0 0.0
      %1543 = vmatpush1.msra.mxu0 0.0
      %1544 = vmatprep.subr.mxu0 0.0
      %1545 = vmatpush1.msra.mxu0 0.0
      %1546 = vmatprep.subr.mxu0 0.0
      %1547 = vmatpush1.msra.mxu0 0.0
      %1548 = vmatprep.subr.mxu0 0.0
      %1549 = vmatpush1.msra.mxu0 0.0
      %1550 = vmatprep.subr.mxu0 0.0
      %1551 = vmatpush1.msra.mxu0 0.0
      %1552 = vmatprep.subr.mxu0 0.0
      %1553 = vmatpush1.msra.mxu0 0.0
      %1554 = vmatprep.subr.mxu0 0.0
      %1555 = vmatpush1.msra.mxu0 0.0
      %1556 = vmatprep.subr.mxu0 0.0
      %1557 = vmatpush1.msra.mxu0 0.0
      %1558 = vmatprep.subr.mxu0 0.0
      %1559 = vmatpush1.msra.mxu0 0.0
      %1560 = vmatprep.subr.mxu0 0.0
      %1561 = vmatpush1.msra.mxu0 0.0
      %1562 = vmatprep.subr.mxu0 0.0
      %1563 = vmatpush1.msra.mxu0 0.0
      %1564 = vmatprep.subr.mxu0 0.0
      %1565 = vmatpush1.msra.mxu0 0.0
      %1566 = vmatprep.subr.mxu0 0.0
      %1567 = vmatpush1.msra.mxu0 0.0
      %1568 = vmatprep.subr.mxu0 0.0
      %1569 = vmatpush1.msra.mxu0 0.0
      %1570 = vmatprep.subr.mxu0 0.0
      %1571 = vmatpush1.msra.mxu0 0.0
      %1572 = vmatprep.subr.mxu0 0.0
      %1573 = vmatpush1.msra.mxu0 0.0
      %1574 = vmatprep.subr.mxu0 0.0
      %1575 = vmatpush1.msra.mxu0 0.0
      %1576 = vmatprep.subr.mxu0 0.0
      %1577 = vmatpush1.msra.mxu0 0.0
      %1578 = vmatprep.subr.mxu0 0.0
      %1579 = vmatpush1.msra.mxu0 0.0
      %1580 = vmatprep.subr.mxu0 0.0
      %1581 = vmatpush1.msra.mxu0 0.0
      %1582 = vmatprep.subr.mxu0 0.0
      %1583 = vmatpush1.msra.mxu0 0.0
      %1584 = vmatprep.subr.mxu0 0.0
      %1585 = vmatpush1.msra.mxu0 0.0
      %1586 = vmatprep.subr.mxu0 0.0
      %1587 = vmatpush1.msra.mxu0 0.0
      %1588 = vmatprep.subr.mxu0 0.0
      %1589 = vmatpush1.msra.mxu0 0.0
      %1590 = vmatprep.subr.mxu0 0.0
      %1591 = vmatpush1.msra.mxu0 0.0
      %1592 = vmatprep.subr.mxu0 0.0
      %1593 = vmatpush1.msra.mxu0 0.0
      %1594 = vmatprep.subr.mxu0 0.0
      %1595 = vmatpush1.msra.mxu0 0.0
      %1596 = vmatprep.subr.mxu0 0.0
      %1597 = vmatpush1.msra.mxu0 0.0
      %1598 = vmatprep.mubr.f32.mxu0 0.0
      %1599 = vmatmul.mubr.f32.gmra.mrb[0].mxu0 %v1523
      %v1600 = vpop.f32.mrb[0].mxu0
      %v1601 = vadd.f32 0.0, %v1600
      %v1602 = vpop.f32.mrb[0].mxu0
      %1603 = vmatprep.mubr.f32.mxu0 0.0
      %1604 = vmatmul.mubr.f32.gmra.mrb[0].mxu0 %v1526
      %v1605 = vpop.f32.mrb[0].mxu0
      %v1606 = vadd.f32 0.0, %v1605
      %v1607 = vpop.f32.mrb[0].mxu0
      %1608 = vmatprep.mubr.f32.mxu0 0.0
      %1609 = vmatmul.mubr.f32.gmra.mrb[0].mxu0 %v1529
      %v1610 = vpop.f32.mrb[0].mxu0
      %v1611 = vadd.f32 0.0, %v1610
      %v1612 = vpop.f32.mrb[0].mxu0
      %1613 = vmatprep.mubr.f32.mxu0 0.0
      %1614 = vmatmul.mubr.f32.gmra.mrb[0].mxu0 %v1532
      %v1615 = vpop.f32.mrb[0].mxu0
      %v1616 = vadd.f32 0.0, %v1615
      %v1617 = vpop.f32.mrb[0].mxu0
      %1618 = vdwg.mxu0
      %v1620 = vsel %vm277, %v890, 0
      %v1623 = vsel %vm277, %v895, 0
      %v1626 = vsel %vm277, %v900, 0
      %v1629 = vsel %vm277, %v905, 0
      %1631 = vmatprep.subr.mxu0 0.0
      %1632 = vmatpush1.msra.mxu0 %v320
      %1633 = vmatprep.subr.mxu0 0.0
      %1634 = vmatpush1.msra.mxu0 %v321
      %1635 = vmatprep.subr.mxu0 0.0
      %1636 = vmatpush1.msra.mxu0 0.0
      %1637 = vmatprep.subr.mxu0 0.0
      %1638 = vmatpush1.msra.mxu0 0.0
      %1639 = vmatprep.subr.mxu0 0.0
      %1640 = vmatpush1.msra.mxu0 0.0
      %1641 = vmatprep.subr.mxu0 0.0
      %1642 = vmatpush1.msra.mxu0 0.0
      %1643 = vmatprep.subr.mxu0 0.0
      %1644 = vmatpush1.msra.mxu0 0.0
      %1645 = vmatprep.subr.mxu0 0.0
      %1646 = vmatpush1.msra.mxu0 0.0
      %1647 = vmatprep.subr.mxu0 0.0
      %1648 = vmatpush1.msra.mxu0 0.0
      %1649 = vmatprep.subr.mxu0 0.0
      %1650 = vmatpush1.msra.mxu0 0.0
      %1651 = vmatprep.subr.mxu0 0.0
      %1652 = vmatpush1.msra.mxu0 0.0
      %1653 = vmatprep.subr.mxu0 0.0
      %1654 = vmatpush1.msra.mxu0 0.0
      %1655 = vmatprep.subr.mxu0 0.0
      %1656 = vmatpush1.msra.mxu0 0.0
      %1657 = vmatprep.subr.mxu0 0.0
      %1658 = vmatpush1.msra.mxu0 0.0
      %1659 = vmatprep.subr.mxu0 0.0
      %1660 = vmatpush1.msra.mxu0 0.0
      %1661 = vmatprep.subr.mxu0 0.0
      %1662 = vmatpush1.msra.mxu0 0.0
      %1663 = vmatprep.subr.mxu0 0.0
      %1664 = vmatpush1.msra.mxu0 0.0
      %1665 = vmatprep.subr.mxu0 0.0
      %1666 = vmatpush1.msra.mxu0 0.0
      %1667 = vmatprep.subr.mxu0 0.0
      %1668 = vmatpush1.msra.mxu0 0.0
      %1669 = vmatprep.subr.mxu0 0.0
      %1670 = vmatpush1.msra.mxu0 0.0
      %1671 = vmatprep.subr.mxu0 0.0
      %1672 = vmatpush1.msra.mxu0 0.0
      %1673 = vmatprep.subr.mxu0 0.0
      %1674 = vmatpush1.msra.mxu0 0.0
      %1675 = vmatprep.subr.mxu0 0.0
      %1676 = vmatpush1.msra.mxu0 0.0
      %1677 = vmatprep.subr.mxu0 0.0
      %1678 = vmatpush1.msra.mxu0 0.0
      %1679 = vmatprep.subr.mxu0 0.0
      %1680 = vmatpush1.msra.mxu0 0.0
      %1681 = vmatprep.subr.mxu0 0.0
      %1682 = vmatpush1.msra.mxu0 0.0
      %1683 = vmatprep.subr.mxu0 0.0
      %1684 = vmatpush1.msra.mxu0 0.0
      %1685 = vmatprep.subr.mxu0 0.0
      %1686 = vmatpush1.msra.mxu0 0.0
      %1687 = vmatprep.subr.mxu0 0.0
      %1688 = vmatpush1.msra.mxu0 0.0
      %1689 = vmatprep.subr.mxu0 0.0
      %1690 = vmatpush1.msra.mxu0 0.0
      %1691 = vmatprep.subr.mxu0 0.0
      %1692 = vmatpush1.msra.mxu0 0.0
      %1693 = vmatprep.subr.mxu0 0.0
      %1694 = vmatpush1.msra.mxu0 0.0
      %1695 = vmatprep.mubr.f32.mxu0 0.0
      %1696 = vmatmul.mubr.f32.gmra.mrb[0].mxu0 %v1620
      %v1697 = vpop.f32.mrb[0].mxu0
      %v1698 = vadd.f32 0.0, %v1697
      %v1699 = vpop.f32.mrb[0].mxu0
      %1700 = vmatprep.mubr.f32.mxu0 0.0
      %1701 = vmatmul.mubr.f32.gmra.mrb[0].mxu0 %v1623
      %v1702 = vpop.f32.mrb[0].mxu0
      %v1703 = vadd.f32 0.0, %v1702
      %v1704 = vpop.f32.mrb[0].mxu0
      %1705 = vmatprep.mubr.f32.mxu0 0.0
      %1706 = vmatmul.mubr.f32.gmra.mrb[0].mxu0 %v1626
      %v1707 = vpop.f32.mrb[0].mxu0
      %v1708 = vadd.f32 0.0, %v1707
      %v1709 = vpop.f32.mrb[0].mxu0
      %1710 = vmatprep.mubr.f32.mxu0 0.0
      %1711 = vmatmul.mubr.f32.gmra.mrb[0].mxu0 %v1629
      %v1712 = vpop.f32.mrb[0].mxu0
      %v1713 = vadd.f32 0.0, %v1712
      %v1714 = vpop.f32.mrb[0].mxu0
      %1715 = vdwg.mxu0
      %v1717 = vsel %vm277, %v987, 0
      %v1720 = vsel %vm277, %v992, 0
      %v1723 = vsel %vm277, %v997, 0
      %v1726 = vsel %vm277, %v1002, 0
      %1728 = vmatprep.subr.mxu0 0.0
      %1729 = vmatpush1.msra.mxu0 %v322
      %1730 = vmatprep.subr.mxu0 0.0
      %1731 = vmatpush1.msra.mxu0 %v323
      %1732 = vmatprep.subr.mxu0 0.0
      %1733 = vmatpush1.msra.mxu0 0.0
      %1734 = vmatprep.subr.mxu0 0.0
      %1735 = vmatpush1.msra.mxu0 0.0
      %1736 = vmatprep.subr.mxu0 0.0
      %1737 = vmatpush1.msra.mxu0 0.0
      %1738 = vmatprep.subr.mxu0 0.0
      %1739 = vmatpush1.msra.mxu0 0.0
      %1740 = vmatprep.subr.mxu0 0.0
      %1741 = vmatpush1.msra.mxu0 0.0
      %1742 = vmatprep.subr.mxu0 0.0
      %1743 = vmatpush1.msra.mxu0 0.0
      %1744 = vmatprep.subr.mxu0 0.0
      %1745 = vmatpush1.msra.mxu0 0.0
      %1746 = vmatprep.subr.mxu0 0.0
      %1747 = vmatpush1.msra.mxu0 0.0
      %1748 = vmatprep.subr.mxu0 0.0
      %1749 = vmatpush1.msra.mxu0 0.0
      %1750 = vmatprep.subr.mxu0 0.0
      %1751 = vmatpush1.msra.mxu0 0.0
      %1752 = vmatprep.subr.mxu0 0.0
      %1753 = vmatpush1.msra.mxu0 0.0
      %1754 = vmatprep.subr.mxu0 0.0
      %1755 = vmatpush1.msra.mxu0 0.0
      %1756 = vmatprep.subr.mxu0 0.0
      %1757 = vmatpush1.msra.mxu0 0.0
      %1758 = vmatprep.subr.mxu0 0.0
      %1759 = vmatpush1.msra.mxu0 0.0
      %1760 = vmatprep.subr.mxu0 0.0
      %1761 = vmatpush1.msra.mxu0 0.0
      %1762 = vmatprep.subr.mxu0 0.0
      %1763 = vmatpush1.msra.mxu0 0.0
      %1764 = vmatprep.subr.mxu0 0.0
      %1765 = vmatpush1.msra.mxu0 0.0
      %1766 = vmatprep.subr.mxu0 0.0
      %1767 = vmatpush1.msra.mxu0 0.0
      %1768 = vmatprep.subr.mxu0 0.0
      %1769 = vmatpush1.msra.mxu0 0.0
      %1770 = vmatprep.subr.mxu0 0.0
      %1771 = vmatpush1.msra.mxu0 0.0
      %1772 = vmatprep.subr.mxu0 0.0
      %1773 = vmatpush1.msra.mxu0 0.0
      %1774 = vmatprep.subr.mxu0 0.0
      %1775 = vmatpush1.msra.mxu0 0.0
      %1776 = vmatprep.subr.mxu0 0.0
      %1777 = vmatpush1.msra.mxu0 0.0
      %1778 = vmatprep.subr.mxu0 0.0
      %1779 = vmatpush1.msra.mxu0 0.0
      %1780 = vmatprep.subr.mxu0 0.0
      %1781 = vmatpush1.msra.mxu0 0.0
      %1782 = vmatprep.subr.mxu0 0.0
      %1783 = vmatpush1.msra.mxu0 0.0
      %1784 = vmatprep.subr.mxu0 0.0
      %1785 = vmatpush1.msra.mxu0 0.0
      %1786 = vmatprep.subr.mxu0 0.0
      %1787 = vmatpush1.msra.mxu0 0.0
      %1788 = vmatprep.subr.mxu0 0.0
      %1789 = vmatpush1.msra.mxu0 0.0
      %1790 = vmatprep.subr.mxu0 0.0
      %1791 = vmatpush1.msra.mxu0 0.0
      %1792 = vmatprep.mubr.f32.mxu0 0.0
      %1793 = vmatmul.mubr.f32.gmra.mrb[0].mxu0 %v1717
      %v1794 = vpop.f32.mrb[0].mxu0
      %v1795 = vadd.f32 0.0, %v1794
      %v1796 = vpop.f32.mrb[0].mxu0
      %1797 = vmatprep.mubr.f32.mxu0 0.0
      %1798 = vmatmul.mubr.f32.gmra.mrb[0].mxu0 %v1720
      %v1799 = vpop.f32.mrb[0].mxu0
      %v1800 = vadd.f32 0.0, %v1799
      %v1801 = vpop.f32.mrb[0].mxu0
      %1802 = vmatprep.mubr.f32.mxu0 0.0
      %1803 = vmatmul.mubr.f32.gmra.mrb[0].mxu0 %v1723
      %v1804 = vpop.f32.mrb[0].mxu0
      %v1805 = vadd.f32 0.0, %v1804
      %v1806 = vpop.f32.mrb[0].mxu0
      %1807 = vmatprep.mubr.f32.mxu0 0.0
      %1808 = vmatmul.mubr.f32.gmra.mrb[0].mxu0 %v1726
      %v1809 = vpop.f32.mrb[0].mxu0
      %v1810 = vadd.f32 0.0, %v1809
      %v1811 = vpop.f32.mrb[0].mxu0
      %1812 = vdwg.mxu0
      %v1814 = vsel %vm277, %v1084, 0
      %v1817 = vsel %vm277, %v1089, 0
      %v1820 = vsel %vm277, %v1094, 0
      %v1823 = vsel %vm277, %v1099, 0
      %1825 = vmatprep.subr.mxu0 0.0
      %1826 = vmatpush1.msra.mxu0 %v324
      %1827 = vmatprep.subr.mxu0 0.0
      %1828 = vmatpush1.msra.mxu0 %v325
      %1829 = vmatprep.subr.mxu0 0.0
      %1830 = vmatpush1.msra.mxu0 0.0
      %1831 = vmatprep.subr.mxu0 0.0
      %1832 = vmatpush1.msra.mxu0 0.0
      %1833 = vmatprep.subr.mxu0 0.0
      %1834 = vmatpush1.msra.mxu0 0.0
      %1835 = vmatprep.subr.mxu0 0.0
      %1836 = vmatpush1.msra.mxu0 0.0
      %1837 = vmatprep.subr.mxu0 0.0
      %1838 = vmatpush1.msra.mxu0 0.0
      %1839 = vmatprep.subr.mxu0 0.0
      %1840 = vmatpush1.msra.mxu0 0.0
      %1841 = vmatprep.subr.mxu0 0.0
      %1842 = vmatpush1.msra.mxu0 0.0
      %1843 = vmatprep.subr.mxu0 0.0
      %1844 = vmatpush1.msra.mxu0 0.0
      %1845 = vmatprep.subr.mxu0 0.0
      %1846 = vmatpush1.msra.mxu0 0.0
      %1847 = vmatprep.subr.mxu0 0.0
      %1848 = vmatpush1.msra.mxu0 0.0
      %1849 = vmatprep.subr.mxu0 0.0
      %1850 = vmatpush1.msra.mxu0 0.0
      %1851 = vmatprep.subr.mxu0 0.0
      %1852 = vmatpush1.msra.mxu0 0.0
      %1853 = vmatprep.subr.mxu0 0.0
      %1854 = vmatpush1.msra.mxu0 0.0
      %1855 = vmatprep.subr.mxu0 0.0
      %1856 = vmatpush1.msra.mxu0 0.0
      %1857 = vmatprep.subr.mxu0 0.0
      %1858 = vmatpush1.msra.mxu0 0.0
      %1859 = vmatprep.subr.mxu0 0.0
      %1860 = vmatpush1.msra.mxu0 0.0
      %1861 = vmatprep.subr.mxu0 0.0
      %1862 = vmatpush1.msra.mxu0 0.0
      %1863 = vmatprep.subr.mxu0 0.0
      %1864 = vmatpush1.msra.mxu0 0.0
      %1865 = vmatprep.subr.mxu0 0.0
      %1866 = vmatpush1.msra.mxu0 0.0
      %1867 = vmatprep.subr.mxu0 0.0
      %1868 = vmatpush1.msra.mxu0 0.0
      %1869 = vmatprep.subr.mxu0 0.0
      %1870 = vmatpush1.msra.mxu0 0.0
      %1871 = vmatprep.subr.mxu0 0.0
      %1872 = vmatpush1.msra.mxu0 0.0
      %1873 = vmatprep.subr.mxu0 0.0
      %1874 = vmatpush1.msra.mxu0 0.0
      %1875 = vmatprep.subr.mxu0 0.0
      %1876 = vmatpush1.msra.mxu0 0.0
      %1877 = vmatprep.subr.mxu0 0.0
      %1878 = vmatpush1.msra.mxu0 0.0
      %1879 = vmatprep.subr.mxu0 0.0
      %1880 = vmatpush1.msra.mxu0 0.0
      %1881 = vmatprep.subr.mxu0 0.0
      %1882 = vmatpush1.msra.mxu0 0.0
      %1883 = vmatprep.subr.mxu0 0.0
      %1884 = vmatpush1.msra.mxu0 0.0
      %1885 = vmatprep.subr.mxu0 0.0
      %1886 = vmatpush1.msra.mxu0 0.0
      %1887 = vmatprep.subr.mxu0 0.0
      %1888 = vmatpush1.msra.mxu0 0.0
      %1889 = vmatprep.mubr.f32.mxu0 0.0
      %1890 = vmatmul.mubr.f32.gmra.mrb[0].mxu0 %v1814
      %v1891 = vpop.f32.mrb[0].mxu0
      %v1892 = vadd.f32 0.0, %v1891
      %v1893 = vpop.f32.mrb[0].mxu0
      %1894 = vmatprep.mubr.f32.mxu0 0.0
      %1895 = vmatmul.mubr.f32.gmra.mrb[0].mxu0 %v1817
      %v1896 = vpop.f32.mrb[0].mxu0
      %v1897 = vadd.f32 0.0, %v1896
      %v1898 = vpop.f32.mrb[0].mxu0
      %1899 = vmatprep.mubr.f32.mxu0 0.0
      %1900 = vmatmul.mubr.f32.gmra.mrb[0].mxu0 %v1820
      %v1901 = vpop.f32.mrb[0].mxu0
      %v1902 = vadd.f32 0.0, %v1901
      %v1903 = vpop.f32.mrb[0].mxu0
      %1904 = vmatprep.mubr.f32.mxu0 0.0
      %1905 = vmatmul.mubr.f32.gmra.mrb[0].mxu0 %v1823
      %v1906 = vpop.f32.mrb[0].mxu0
      %v1907 = vadd.f32 0.0, %v1906
      %v1908 = vpop.f32.mrb[0].mxu0
      %1909 = vdwg.mxu0
      %1910 = vst.msk [vmem:[#allocation2 + $0x40] sm:$0xff] %vm277, %v1213
      %1911 = vst.msk [vmem:[#allocation2 + $0x48] sm:$0xff] %vm277, %v1218
      %1912 = vst.msk [vmem:[#allocation2 + $0x50] sm:$0xff] %vm277, %v1223
      %1913 = vst.msk [vmem:[#allocation2 + $0x58] sm:$0xff] %vm277, %v1228
      %1914 = vst.msk [vmem:[#allocation2 + $0x120] sm:$0xff] %vm277, %v1310
      %1915 = vst.msk [vmem:[#allocation2 + $0x128] sm:$0xff] %vm277, %v1315
      %1916 = vst.msk [vmem:[#allocation2 + $0x130] sm:$0xff] %vm277, %v1320
      %1917 = vst.msk [vmem:[#allocation2 + $0x138] sm:$0xff] %vm277, %v1325
      %1918 = vst.msk [vmem:[#allocation2 + $0x200] sm:$0xff] %vm277, %v1407
      %1919 = vst.msk [vmem:[#allocation2 + $0x208] sm:$0xff] %vm277, %v1412
      %1920 = vst.msk [vmem:[#allocation2 + $0x210] sm:$0xff] %vm277, %v1417
      %1921 = vst.msk [vmem:[#allocation2 + $0x218] sm:$0xff] %vm277, %v1422
      %1922 = vst.msk [vmem:[#allocation2 + $0x2e0] sm:$0xff] %vm277, %v1504
      %1923 = vst.msk [vmem:[#allocation2 + $0x2e8] sm:$0xff] %vm277, %v1509
      %1924 = vst.msk [vmem:[#allocation2 + $0x2f0] sm:$0xff] %vm277, %v1514
      %1925 = vst.msk [vmem:[#allocation2 + $0x2f8] sm:$0xff] %vm277, %v1519
      %1926 = vst.msk [vmem:[#allocation2 + $0x3c0] sm:$0xff] %vm277, %v1601
      %1927 = vst.msk [vmem:[#allocation2 + $0x3c8] sm:$0xff] %vm277, %v1606
      %1928 = vst.msk [vmem:[#allocation2 + $0x3d0] sm:$0xff] %vm277, %v1611
      %1929 = vst.msk [vmem:[#allocation2 + $0x3d8] sm:$0xff] %vm277, %v1616
      %1930 = vst.msk [vmem:[#allocation2 + $0x4a0] sm:$0xff] %vm277, %v1698
      %1931 = vst.msk [vmem:[#allocation2 + $0x4a8] sm:$0xff] %vm277, %v1703
      %1932 = vst.msk [vmem:[#allocation2 + $0x4b0] sm:$0xff] %vm277, %v1708
      %1933 = vst.msk [vmem:[#allocation2 + $0x4b8] sm:$0xff] %vm277, %v1713
      %1934 = vst.msk [vmem:[#allocation2 + $0x580] sm:$0xff] %vm277, %v1795
      %1935 = vst.msk [vmem:[#allocation2 + $0x588] sm:$0xff] %vm277, %v1800
      %1936 = vst.msk [vmem:[#allocation2 + $0x590] sm:$0xff] %vm277, %v1805
      %1937 = vst.msk [vmem:[#allocation2 + $0x598] sm:$0xff] %vm277, %v1810
      %1938 = vst.msk [vmem:[#allocation2 + $0x660] sm:$0xff] %vm277, %v1892
      %1939 = vst.msk [vmem:[#allocation2 + $0x668] sm:$0xff] %vm277, %v1897
      %1940 = vst.msk [vmem:[#allocation2 + $0x670] sm:$0xff] %vm277, %v1902
      %1941 = vst.msk [vmem:[#allocation2 + $0x678] sm:$0xff] %vm277, %v1907
      %s1942 = scalar_lea.vmem %s239, 128
      %v1943 = vld [vmem:[%s1942] sm:$0xff]
      %v1944 = vld [vmem:[%s1942 + $0x8] sm:$0xff]
      %v1945 = vld [vmem:[%s1942 + $0x10] sm:$0xff]
      %v1946 = vld [vmem:[%s1942 + $0x18] sm:$0xff]
      %v1947 = vld [vmem:[%s1942 + $0x20] sm:$0xff]
      %v1948 = vld [vmem:[%s1942 + $0x28] sm:$0xff]
      %v1949 = vld [vmem:[%s1942 + $0x30] sm:$0xff]
      %v1950 = vld [vmem:[%s1942 + $0x38] sm:$0xff]
      %v1951 = vld [vmem:[%s1942 + $0x40] sm:$0xff]
      %v1952 = vld [vmem:[%s1942 + $0x48] sm:$0xff]
      %v1953 = vld [vmem:[%s1942 + $0x50] sm:$0xff]
      %v1954 = vld [vmem:[%s1942 + $0x58] sm:$0xff]
      %v1955 = vld [vmem:[%s1942 + $0x60] sm:$0xff]
      %v1956 = vld [vmem:[%s1942 + $0x68] sm:$0xff]
      %v1957 = vld [vmem:[%s1942 + $0x70] sm:$0xff]
      %v1958 = vld [vmem:[%s1942 + $0x78] sm:$0xff]
      %1959 = vmatprep.subr.mxu0 0.0
      %1960 = vmatpush1.msra.mxu0 %v1943
      %1961 = vmatprep.subr.mxu0 0.0
      %1962 = vmatpush1.msra.mxu0 %v1944
      %1963 = vmatprep.subr.mxu0 0.0
      %1964 = vmatpush1.msra.mxu0 0.0
      %1965 = vmatprep.subr.mxu0 0.0
      %1966 = vmatpush1.msra.mxu0 0.0
      %1967 = vmatprep.subr.mxu0 0.0
      %1968 = vmatpush1.msra.mxu0 0.0
      %1969 = vmatprep.subr.mxu0 0.0
      %1970 = vmatpush1.msra.mxu0 0.0
      %1971 = vmatprep.subr.mxu0 0.0
      %1972 = vmatpush1.msra.mxu0 0.0
      %1973 = vmatprep.subr.mxu0 0.0
      %1974 = vmatpush1.msra.mxu0 0.0
      %1975 = vmatprep.subr.mxu0 0.0
      %1976 = vmatpush1.msra.mxu0 0.0
      %1977 = vmatprep.subr.mxu0 0.0
      %1978 = vmatpush1.msra.mxu0 0.0
      %1979 = vmatprep.subr.mxu0 0.0
      %1980 = vmatpush1.msra.mxu0 0.0
      %1981 = vmatprep.subr.mxu0 0.0
      %1982 = vmatpush1.msra.mxu0 0.0
      %1983 = vmatprep.subr.mxu0 0.0
      %1984 = vmatpush1.msra.mxu0 0.0
      %1985 = vmatprep.subr.mxu0 0.0
      %1986 = vmatpush1.msra.mxu0 0.0
      %1987 = vmatprep.subr.mxu0 0.0
      %1988 = vmatpush1.msra.mxu0 0.0
      %1989 = vmatprep.subr.mxu0 0.0
      %1990 = vmatpush1.msra.mxu0 0.0
      %1991 = vmatprep.subr.mxu0 0.0
      %1992 = vmatpush1.msra.mxu0 0.0
      %1993 = vmatprep.subr.mxu0 0.0
      %1994 = vmatpush1.msra.mxu0 0.0
      %1995 = vmatprep.subr.mxu0 0.0
      %1996 = vmatpush1.msra.mxu0 0.0
      %1997 = vmatprep.subr.mxu0 0.0
      %1998 = vmatpush1.msra.mxu0 0.0
      %1999 = vmatprep.subr.mxu0 0.0
      %2000 = vmatpush1.msra.mxu0 0.0
      %2001 = vmatprep.subr.mxu0 0.0
      %2002 = vmatpush1.msra.mxu0 0.0
      %2003 = vmatprep.subr.mxu0 0.0
      %2004 = vmatpush1.msra.mxu0 0.0
      %2005 = vmatprep.subr.mxu0 0.0
      %2006 = vmatpush1.msra.mxu0 0.0
      %2007 = vmatprep.subr.mxu0 0.0
      %2008 = vmatpush1.msra.mxu0 0.0
      %2009 = vmatprep.subr.mxu0 0.0
      %2010 = vmatpush1.msra.mxu0 0.0
      %2011 = vmatprep.subr.mxu0 0.0
      %2012 = vmatpush1.msra.mxu0 0.0
      %2013 = vmatprep.subr.mxu0 0.0
      %2014 = vmatpush1.msra.mxu0 0.0
      %2015 = vmatprep.subr.mxu0 0.0
      %2016 = vmatpush1.msra.mxu0 0.0
      %2017 = vmatprep.subr.mxu0 0.0
      %2018 = vmatpush1.msra.mxu0 0.0
      %2019 = vmatprep.subr.mxu0 0.0
      %2020 = vmatpush1.msra.mxu0 0.0
      %2021 = vmatprep.subr.mxu0 0.0
      %2022 = vmatpush1.msra.mxu0 0.0
      %2023 = vmatprep.mubr.f32.mxu0 0.0
      %2024 = vmatmul.mubr.f32.gmra.mrb[0].mxu0 %v327
      %v2025 = vpop.f32.mrb[0].mxu0
      %v2026 = vadd.f32 0.0, %v2025
      %v2027 = vpop.f32.mrb[0].mxu0
      %2028 = vmatprep.mubr.f32.mxu0 0.0
      %2029 = vmatmul.mubr.f32.gmra.mrb[0].mxu0 %v330
      %v2030 = vpop.f32.mrb[0].mxu0
      %v2031 = vadd.f32 0.0, %v2030
      %v2032 = vpop.f32.mrb[0].mxu0
      %2033 = vmatprep.mubr.f32.mxu0 0.0
      %2034 = vmatmul.mubr.f32.gmra.mrb[0].mxu0 %v333
      %v2035 = vpop.f32.mrb[0].mxu0
      %v2036 = vadd.f32 0.0, %v2035
      %v2037 = vpop.f32.mrb[0].mxu0
      %2038 = vmatprep.mubr.f32.mxu0 0.0
      %2039 = vmatmul.mubr.f32.gmra.mrb[0].mxu0 %v336
      %v2040 = vpop.f32.mrb[0].mxu0
      %v2041 = vadd.f32 0.0, %v2040
      %v2042 = vpop.f32.mrb[0].mxu0
      %2043 = vdwg.mxu0
      %2044 = vmatprep.subr.mxu0 0.0
      %2045 = vmatpush1.msra.mxu0 %v1945
      %2046 = vmatprep.subr.mxu0 0.0
      %2047 = vmatpush1.msra.mxu0 %v1946
      %2048 = vmatprep.subr.mxu0 0.0
      %2049 = vmatpush1.msra.mxu0 0.0
      %2050 = vmatprep.subr.mxu0 0.0
      %2051 = vmatpush1.msra.mxu0 0.0
      %2052 = vmatprep.subr.mxu0 0.0
      %2053 = vmatpush1.msra.mxu0 0.0
      %2054 = vmatprep.subr.mxu0 0.0
      %2055 = vmatpush1.msra.mxu0 0.0
      %2056 = vmatprep.subr.mxu0 0.0
      %2057 = vmatpush1.msra.mxu0 0.0
      %2058 = vmatprep.subr.mxu0 0.0
      %2059 = vmatpush1.msra.mxu0 0.0
      %2060 = vmatprep.subr.mxu0 0.0
      %2061 = vmatpush1.msra.mxu0 0.0
      %2062 = vmatprep.subr.mxu0 0.0
      %2063 = vmatpush1.msra.mxu0 0.0
      %2064 = vmatprep.subr.mxu0 0.0
      %2065 = vmatpush1.msra.mxu0 0.0
      %2066 = vmatprep.subr.mxu0 0.0
      %2067 = vmatpush1.msra.mxu0 0.0
      %2068 = vmatprep.subr.mxu0 0.0
      %2069 = vmatpush1.msra.mxu0 0.0
      %2070 = vmatprep.subr.mxu0 0.0
      %2071 = vmatpush1.msra.mxu0 0.0
      %2072 = vmatprep.subr.mxu0 0.0
      %2073 = vmatpush1.msra.mxu0 0.0
      %2074 = vmatprep.subr.mxu0 0.0
      %2075 = vmatpush1.msra.mxu0 0.0
      %2076 = vmatprep.subr.mxu0 0.0
      %2077 = vmatpush1.msra.mxu0 0.0
      %2078 = vmatprep.subr.mxu0 0.0
      %2079 = vmatpush1.msra.mxu0 0.0
      %2080 = vmatprep.subr.mxu0 0.0
      %2081 = vmatpush1.msra.mxu0 0.0
      %2082 = vmatprep.subr.mxu0 0.0
      %2083 = vmatpush1.msra.mxu0 0.0
      %2084 = vmatprep.subr.mxu0 0.0
      %2085 = vmatpush1.msra.mxu0 0.0
      %2086 = vmatprep.subr.mxu0 0.0
      %2087 = vmatpush1.msra.mxu0 0.0
      %2088 = vmatprep.subr.mxu0 0.0
      %2089 = vmatpush1.msra.mxu0 0.0
      %2090 = vmatprep.subr.mxu0 0.0
      %2091 = vmatpush1.msra.mxu0 0.0
      %2092 = vmatprep.subr.mxu0 0.0
      %2093 = vmatpush1.msra.mxu0 0.0
      %2094 = vmatprep.subr.mxu0 0.0
      %2095 = vmatpush1.msra.mxu0 0.0
      %2096 = vmatprep.subr.mxu0 0.0
      %2097 = vmatpush1.msra.mxu0 0.0
      %2098 = vmatprep.subr.mxu0 0.0
      %2099 = vmatpush1.msra.mxu0 0.0
      %2100 = vmatprep.subr.mxu0 0.0
      %2101 = vmatpush1.msra.mxu0 0.0
      %2102 = vmatprep.subr.mxu0 0.0
      %2103 = vmatpush1.msra.mxu0 0.0
      %2104 = vmatprep.subr.mxu0 0.0
      %2105 = vmatpush1.msra.mxu0 0.0
      %2106 = vmatprep.subr.mxu0 0.0
      %2107 = vmatpush1.msra.mxu0 0.0
      %2108 = vmatprep.mubr.f32.mxu0 0.0
      %2109 = vmatmul.mubr.f32.gmra.mrb[0].mxu0 %v424
      %v2110 = vpop.f32.mrb[0].mxu0
      %v2111 = vadd.f32 0.0, %v2110
      %v2112 = vpop.f32.mrb[0].mxu0
      %2113 = vmatprep.mubr.f32.mxu0 0.0
      %2114 = vmatmul.mubr.f32.gmra.mrb[0].mxu0 %v427
      %v2115 = vpop.f32.mrb[0].mxu0
      %v2116 = vadd.f32 0.0, %v2115
      %v2117 = vpop.f32.mrb[0].mxu0
      %2118 = vmatprep.mubr.f32.mxu0 0.0
      %2119 = vmatmul.mubr.f32.gmra.mrb[0].mxu0 %v430
      %v2120 = vpop.f32.mrb[0].mxu0
      %v2121 = vadd.f32 0.0, %v2120
      %v2122 = vpop.f32.mrb[0].mxu0
      %2123 = vmatprep.mubr.f32.mxu0 0.0
      %2124 = vmatmul.mubr.f32.gmra.mrb[0].mxu0 %v433
      %v2125 = vpop.f32.mrb[0].mxu0
      %v2126 = vadd.f32 0.0, %v2125
      %v2127 = vpop.f32.mrb[0].mxu0
      %2128 = vdwg.mxu0
      %2129 = vmatprep.subr.mxu0 0.0
      %2130 = vmatpush1.msra.mxu0 %v1947
      %2131 = vmatprep.subr.mxu0 0.0
      %2132 = vmatpush1.msra.mxu0 %v1948
      %2133 = vmatprep.subr.mxu0 0.0
      %2134 = vmatpush1.msra.mxu0 0.0
      %2135 = vmatprep.subr.mxu0 0.0
      %2136 = vmatpush1.msra.mxu0 0.0
      %2137 = vmatprep.subr.mxu0 0.0
      %2138 = vmatpush1.msra.mxu0 0.0
      %2139 = vmatprep.subr.mxu0 0.0
      %2140 = vmatpush1.msra.mxu0 0.0
      %2141 = vmatprep.subr.mxu0 0.0
      %2142 = vmatpush1.msra.mxu0 0.0
      %2143 = vmatprep.subr.mxu0 0.0
      %2144 = vmatpush1.msra.mxu0 0.0
      %2145 = vmatprep.subr.mxu0 0.0
      %2146 = vmatpush1.msra.mxu0 0.0
      %2147 = vmatprep.subr.mxu0 0.0
      %2148 = vmatpush1.msra.mxu0 0.0
      %2149 = vmatprep.subr.mxu0 0.0
      %2150 = vmatpush1.msra.mxu0 0.0
      %2151 = vmatprep.subr.mxu0 0.0
      %2152 = vmatpush1.msra.mxu0 0.0
      %2153 = vmatprep.subr.mxu0 0.0
      %2154 = vmatpush1.msra.mxu0 0.0
      %2155 = vmatprep.subr.mxu0 0.0
      %2156 = vmatpush1.msra.mxu0 0.0
      %2157 = vmatprep.subr.mxu0 0.0
      %2158 = vmatpush1.msra.mxu0 0.0
      %2159 = vmatprep.subr.mxu0 0.0
      %2160 = vmatpush1.msra.mxu0 0.0
      %2161 = vmatprep.subr.mxu0 0.0
      %2162 = vmatpush1.msra.mxu0 0.0
      %2163 = vmatprep.subr.mxu0 0.0
      %2164 = vmatpush1.msra.mxu0 0.0
      %2165 = vmatprep.subr.mxu0 0.0
      %2166 = vmatpush1.msra.mxu0 0.0
      %2167 = vmatprep.subr.mxu0 0.0
      %2168 = vmatpush1.msra.mxu0 0.0
      %2169 = vmatprep.subr.mxu0 0.0
      %2170 = vmatpush1.msra.mxu0 0.0
      %2171 = vmatprep.subr.mxu0 0.0
      %2172 = vmatpush1.msra.mxu0 0.0
      %2173 = vmatprep.subr.mxu0 0.0
      %2174 = vmatpush1.msra.mxu0 0.0
      %2175 = vmatprep.subr.mxu0 0.0
      %2176 = vmatpush1.msra.mxu0 0.0
      %2177 = vmatprep.subr.mxu0 0.0
      %2178 = vmatpush1.msra.mxu0 0.0
      %2179 = vmatprep.subr.mxu0 0.0
      %2180 = vmatpush1.msra.mxu0 0.0
      %2181 = vmatprep.subr.mxu0 0.0
      %2182 = vmatpush1.msra.mxu0 0.0
      %2183 = vmatprep.subr.mxu0 0.0
      %2184 = vmatpush1.msra.mxu0 0.0
      %2185 = vmatprep.subr.mxu0 0.0
      %2186 = vmatpush1.msra.mxu0 0.0
      %2187 = vmatprep.subr.mxu0 0.0
      %2188 = vmatpush1.msra.mxu0 0.0
      %2189 = vmatprep.subr.mxu0 0.0
      %2190 = vmatpush1.msra.mxu0 0.0
      %2191 = vmatprep.subr.mxu0 0.0
      %2192 = vmatpush1.msra.mxu0 0.0
      %2193 = vmatprep.mubr.f32.mxu0 0.0
      %2194 = vmatmul.mubr.f32.gmra.mrb[0].mxu0 %v521
      %v2195 = vpop.f32.mrb[0].mxu0
      %v2196 = vadd.f32 0.0, %v2195
      %v2197 = vpop.f32.mrb[0].mxu0
      %2198 = vmatprep.mubr.f32.mxu0 0.0
      %2199 = vmatmul.mubr.f32.gmra.mrb[0].mxu0 %v524
      %v2200 = vpop.f32.mrb[0].mxu0
      %v2201 = vadd.f32 0.0, %v2200
      %v2202 = vpop.f32.mrb[0].mxu0
      %2203 = vmatprep.mubr.f32.mxu0 0.0
      %2204 = vmatmul.mubr.f32.gmra.mrb[0].mxu0 %v527
      %v2205 = vpop.f32.mrb[0].mxu0
      %v2206 = vadd.f32 0.0, %v2205
      %v2207 = vpop.f32.mrb[0].mxu0
      %2208 = vmatprep.mubr.f32.mxu0 0.0
      %2209 = vmatmul.mubr.f32.gmra.mrb[0].mxu0 %v530
      %v2210 = vpop.f32.mrb[0].mxu0
      %v2211 = vadd.f32 0.0, %v2210
      %v2212 = vpop.f32.mrb[0].mxu0
      %2213 = vdwg.mxu0
      %2214 = vmatprep.subr.mxu0 0.0
      %2215 = vmatpush1.msra.mxu0 %v1949
      %2216 = vmatprep.subr.mxu0 0.0
      %2217 = vmatpush1.msra.mxu0 %v1950
      %2218 = vmatprep.subr.mxu0 0.0
      %2219 = vmatpush1.msra.mxu0 0.0
      %2220 = vmatprep.subr.mxu0 0.0
      %2221 = vmatpush1.msra.mxu0 0.0
      %2222 = vmatprep.subr.mxu0 0.0
      %2223 = vmatpush1.msra.mxu0 0.0
      %2224 = vmatprep.subr.mxu0 0.0
      %2225 = vmatpush1.msra.mxu0 0.0
      %2226 = vmatprep.subr.mxu0 0.0
      %2227 = vmatpush1.msra.mxu0 0.0
      %2228 = vmatprep.subr.mxu0 0.0
      %2229 = vmatpush1.msra.mxu0 0.0
      %2230 = vmatprep.subr.mxu0 0.0
      %2231 = vmatpush1.msra.mxu0 0.0
      %2232 = vmatprep.subr.mxu0 0.0
      %2233 = vmatpush1.msra.mxu0 0.0
      %2234 = vmatprep.subr.mxu0 0.0
      %2235 = vmatpush1.msra.mxu0 0.0
      %2236 = vmatprep.subr.mxu0 0.0
      %2237 = vmatpush1.msra.mxu0 0.0
      %2238 = vmatprep.subr.mxu0 0.0
      %2239 = vmatpush1.msra.mxu0 0.0
      %2240 = vmatprep.subr.mxu0 0.0
      %2241 = vmatpush1.msra.mxu0 0.0
      %2242 = vmatprep.subr.mxu0 0.0
      %2243 = vmatpush1.msra.mxu0 0.0
      %2244 = vmatprep.subr.mxu0 0.0
      %2245 = vmatpush1.msra.mxu0 0.0
      %2246 = vmatprep.subr.mxu0 0.0
      %2247 = vmatpush1.msra.mxu0 0.0
      %2248 = vmatprep.subr.mxu0 0.0
      %2249 = vmatpush1.msra.mxu0 0.0
      %2250 = vmatprep.subr.mxu0 0.0
      %2251 = vmatpush1.msra.mxu0 0.0
      %2252 = vmatprep.subr.mxu0 0.0
      %2253 = vmatpush1.msra.mxu0 0.0
      %2254 = vmatprep.subr.mxu0 0.0
      %2255 = vmatpush1.msra.mxu0 0.0
      %2256 = vmatprep.subr.mxu0 0.0
      %2257 = vmatpush1.msra.mxu0 0.0
      %2258 = vmatprep.subr.mxu0 0.0
      %2259 = vmatpush1.msra.mxu0 0.0
      %2260 = vmatprep.subr.mxu0 0.0
      %2261 = vmatpush1.msra.mxu0 0.0
      %2262 = vmatprep.subr.mxu0 0.0
      %2263 = vmatpush1.msra.mxu0 0.0
      %2264 = vmatprep.subr.mxu0 0.0
      %2265 = vmatpush1.msra.mxu0 0.0
      %2266 = vmatprep.subr.mxu0 0.0
      %2267 = vmatpush1.msra.mxu0 0.0
      %2268 = vmatprep.subr.mxu0 0.0
      %2269 = vmatpush1.msra.mxu0 0.0
      %2270 = vmatprep.subr.mxu0 0.0
      %2271 = vmatpush1.msra.mxu0 0.0
      %2272 = vmatprep.subr.mxu0 0.0
      %2273 = vmatpush1.msra.mxu0 0.0
      %2274 = vmatprep.subr.mxu0 0.0
      %2275 = vmatpush1.msra.mxu0 0.0
      %2276 = vmatprep.subr.mxu0 0.0
      %2277 = vmatpush1.msra.mxu0 0.0
      %2278 = vmatprep.mubr.f32.mxu0 0.0
      %2279 = vmatmul.mubr.f32.gmra.mrb[0].mxu0 %v618
      %v2280 = vpop.f32.mrb[0].mxu0
      %v2281 = vadd.f32 0.0, %v2280
      %v2282 = vpop.f32.mrb[0].mxu0
      %2283 = vmatprep.mubr.f32.mxu0 0.0
      %2284 = vmatmul.mubr.f32.gmra.mrb[0].mxu0 %v621
      %v2285 = vpop.f32.mrb[0].mxu0
      %v2286 = vadd.f32 0.0, %v2285
      %v2287 = vpop.f32.mrb[0].mxu0
      %2288 = vmatprep.mubr.f32.mxu0 0.0
      %2289 = vmatmul.mubr.f32.gmra.mrb[0].mxu0 %v624
      %v2290 = vpop.f32.mrb[0].mxu0
      %v2291 = vadd.f32 0.0, %v2290
      %v2292 = vpop.f32.mrb[0].mxu0
      %2293 = vmatprep.mubr.f32.mxu0 0.0
      %2294 = vmatmul.mubr.f32.gmra.mrb[0].mxu0 %v627
      %v2295 = vpop.f32.mrb[0].mxu0
      %v2296 = vadd.f32 0.0, %v2295
      %v2297 = vpop.f32.mrb[0].mxu0
      %2298 = vdwg.mxu0
      %2299 = vmatprep.subr.mxu0 0.0
      %2300 = vmatpush1.msra.mxu0 %v1951
      %2301 = vmatprep.subr.mxu0 0.0
      %2302 = vmatpush1.msra.mxu0 %v1952
      %2303 = vmatprep.subr.mxu0 0.0
      %2304 = vmatpush1.msra.mxu0 0.0
      %2305 = vmatprep.subr.mxu0 0.0
      %2306 = vmatpush1.msra.mxu0 0.0
      %2307 = vmatprep.subr.mxu0 0.0
      %2308 = vmatpush1.msra.mxu0 0.0
      %2309 = vmatprep.subr.mxu0 0.0
      %2310 = vmatpush1.msra.mxu0 0.0
      %2311 = vmatprep.subr.mxu0 0.0
      %2312 = vmatpush1.msra.mxu0 0.0
      %2313 = vmatprep.subr.mxu0 0.0
      %2314 = vmatpush1.msra.mxu0 0.0
      %2315 = vmatprep.subr.mxu0 0.0
      %2316 = vmatpush1.msra.mxu0 0.0
      %2317 = vmatprep.subr.mxu0 0.0
      %2318 = vmatpush1.msra.mxu0 0.0
      %2319 = vmatprep.subr.mxu0 0.0
      %2320 = vmatpush1.msra.mxu0 0.0
      %2321 = vmatprep.subr.mxu0 0.0
      %2322 = vmatpush1.msra.mxu0 0.0
      %2323 = vmatprep.subr.mxu0 0.0
      %2324 = vmatpush1.msra.mxu0 0.0
      %2325 = vmatprep.subr.mxu0 0.0
      %2326 = vmatpush1.msra.mxu0 0.0
      %2327 = vmatprep.subr.mxu0 0.0
      %2328 = vmatpush1.msra.mxu0 0.0
      %2329 = vmatprep.subr.mxu0 0.0
      %2330 = vmatpush1.msra.mxu0 0.0
      %2331 = vmatprep.subr.mxu0 0.0
      %2332 = vmatpush1.msra.mxu0 0.0
      %2333 = vmatprep.subr.mxu0 0.0
      %2334 = vmatpush1.msra.mxu0 0.0
      %2335 = vmatprep.subr.mxu0 0.0
      %2336 = vmatpush1.msra.mxu0 0.0
      %2337 = vmatprep.subr.mxu0 0.0
      %2338 = vmatpush1.msra.mxu0 0.0
      %2339 = vmatprep.subr.mxu0 0.0
      %2340 = vmatpush1.msra.mxu0 0.0
      %2341 = vmatprep.subr.mxu0 0.0
      %2342 = vmatpush1.msra.mxu0 0.0
      %2343 = vmatprep.subr.mxu0 0.0
      %2344 = vmatpush1.msra.mxu0 0.0
      %2345 = vmatprep.subr.mxu0 0.0
      %2346 = vmatpush1.msra.mxu0 0.0
      %2347 = vmatprep.subr.mxu0 0.0
      %2348 = vmatpush1.msra.mxu0 0.0
      %2349 = vmatprep.subr.mxu0 0.0
      %2350 = vmatpush1.msra.mxu0 0.0
      %2351 = vmatprep.subr.mxu0 0.0
      %2352 = vmatpush1.msra.mxu0 0.0
      %2353 = vmatprep.subr.mxu0 0.0
      %2354 = vmatpush1.msra.mxu0 0.0
      %2355 = vmatprep.subr.mxu0 0.0
      %2356 = vmatpush1.msra.mxu0 0.0
      %2357 = vmatprep.subr.mxu0 0.0
      %2358 = vmatpush1.msra.mxu0 0.0
      %2359 = vmatprep.subr.mxu0 0.0
      %2360 = vmatpush1.msra.mxu0 0.0
      %2361 = vmatprep.subr.mxu0 0.0
      %2362 = vmatpush1.msra.mxu0 0.0
      %2363 = vmatprep.mubr.f32.mxu0 0.0
      %2364 = vmatmul.mubr.f32.gmra.mrb[0].mxu0 %v715
      %v2365 = vpop.f32.mrb[0].mxu0
      %v2366 = vadd.f32 0.0, %v2365
      %v2367 = vpop.f32.mrb[0].mxu0
      %2368 = vmatprep.mubr.f32.mxu0 0.0
      %2369 = vmatmul.mubr.f32.gmra.mrb[0].mxu0 %v718
      %v2370 = vpop.f32.mrb[0].mxu0
      %v2371 = vadd.f32 0.0, %v2370
      %v2372 = vpop.f32.mrb[0].mxu0
      %2373 = vmatprep.mubr.f32.mxu0 0.0
      %2374 = vmatmul.mubr.f32.gmra.mrb[0].mxu0 %v721
      %v2375 = vpop.f32.mrb[0].mxu0
      %v2376 = vadd.f32 0.0, %v2375
      %v2377 = vpop.f32.mrb[0].mxu0
      %2378 = vmatprep.mubr.f32.mxu0 0.0
      %2379 = vmatmul.mubr.f32.gmra.mrb[0].mxu0 %v724
      %v2380 = vpop.f32.mrb[0].mxu0
      %v2381 = vadd.f32 0.0, %v2380
      %v2382 = vpop.f32.mrb[0].mxu0
      %2383 = vdwg.mxu0
      %2384 = vmatprep.subr.mxu0 0.0
      %2385 = vmatpush1.msra.mxu0 %v1953
      %2386 = vmatprep.subr.mxu0 0.0
      %2387 = vmatpush1.msra.mxu0 %v1954
      %2388 = vmatprep.subr.mxu0 0.0
      %2389 = vmatpush1.msra.mxu0 0.0
      %2390 = vmatprep.subr.mxu0 0.0
      %2391 = vmatpush1.msra.mxu0 0.0
      %2392 = vmatprep.subr.mxu0 0.0
      %2393 = vmatpush1.msra.mxu0 0.0
      %2394 = vmatprep.subr.mxu0 0.0
      %2395 = vmatpush1.msra.mxu0 0.0
      %2396 = vmatprep.subr.mxu0 0.0
      %2397 = vmatpush1.msra.mxu0 0.0
      %2398 = vmatprep.subr.mxu0 0.0
      %2399 = vmatpush1.msra.mxu0 0.0
      %2400 = vmatprep.subr.mxu0 0.0
      %2401 = vmatpush1.msra.mxu0 0.0
      %2402 = vmatprep.subr.mxu0 0.0
      %2403 = vmatpush1.msra.mxu0 0.0
      %2404 = vmatprep.subr.mxu0 0.0
      %2405 = vmatpush1.msra.mxu0 0.0
      %2406 = vmatprep.subr.mxu0 0.0
      %2407 = vmatpush1.msra.mxu0 0.0
      %2408 = vmatprep.subr.mxu0 0.0
      %2409 = vmatpush1.msra.mxu0 0.0
      %2410 = vmatprep.subr.mxu0 0.0
      %2411 = vmatpush1.msra.mxu0 0.0
      %2412 = vmatprep.subr.mxu0 0.0
      %2413 = vmatpush1.msra.mxu0 0.0
      %2414 = vmatprep.subr.mxu0 0.0
      %2415 = vmatpush1.msra.mxu0 0.0
      %2416 = vmatprep.subr.mxu0 0.0
      %2417 = vmatpush1.msra.mxu0 0.0
      %2418 = vmatprep.subr.mxu0 0.0
      %2419 = vmatpush1.msra.mxu0 0.0
      %2420 = vmatprep.subr.mxu0 0.0
      %2421 = vmatpush1.msra.mxu0 0.0
      %2422 = vmatprep.subr.mxu0 0.0
      %2423 = vmatpush1.msra.mxu0 0.0
      %2424 = vmatprep.subr.mxu0 0.0
      %2425 = vmatpush1.msra.mxu0 0.0
      %2426 = vmatprep.subr.mxu0 0.0
      %2427 = vmatpush1.msra.mxu0 0.0
      %2428 = vmatprep.subr.mxu0 0.0
      %2429 = vmatpush1.msra.mxu0 0.0
      %2430 = vmatprep.subr.mxu0 0.0
      %2431 = vmatpush1.msra.mxu0 0.0
      %2432 = vmatprep.subr.mxu0 0.0
      %2433 = vmatpush1.msra.mxu0 0.0
      %2434 = vmatprep.subr.mxu0 0.0
      %2435 = vmatpush1.msra.mxu0 0.0
      %2436 = vmatprep.subr.mxu0 0.0
      %2437 = vmatpush1.msra.mxu0 0.0
      %2438 = vmatprep.subr.mxu0 0.0
      %2439 = vmatpush1.msra.mxu0 0.0
      %2440 = vmatprep.subr.mxu0 0.0
      %2441 = vmatpush1.msra.mxu0 0.0
      %2442 = vmatprep.subr.mxu0 0.0
      %2443 = vmatpush1.msra.mxu0 0.0
      %2444 = vmatprep.subr.mxu0 0.0
      %2445 = vmatpush1.msra.mxu0 0.0
      %2446 = vmatprep.subr.mxu0 0.0
      %2447 = vmatpush1.msra.mxu0 0.0
      %2448 = vmatprep.mubr.f32.mxu0 0.0
      %2449 = vmatmul.mubr.f32.gmra.mrb[0].mxu0 %v812
      %v2450 = vpop.f32.mrb[0].mxu0
      %v2451 = vadd.f32 0.0, %v2450
      %v2452 = vpop.f32.mrb[0].mxu0
      %2453 = vmatprep.mubr.f32.mxu0 0.0
      %2454 = vmatmul.mubr.f32.gmra.mrb[0].mxu0 %v815
      %v2455 = vpop.f32.mrb[0].mxu0
      %v2456 = vadd.f32 0.0, %v2455
      %v2457 = vpop.f32.mrb[0].mxu0
      %2458 = vmatprep.mubr.f32.mxu0 0.0
      %2459 = vmatmul.mubr.f32.gmra.mrb[0].mxu0 %v818
      %v2460 = vpop.f32.mrb[0].mxu0
      %v2461 = vadd.f32 0.0, %v2460
      %v2462 = vpop.f32.mrb[0].mxu0
      %2463 = vmatprep.mubr.f32.mxu0 0.0
      %2464 = vmatmul.mubr.f32.gmra.mrb[0].mxu0 %v821
      %v2465 = vpop.f32.mrb[0].mxu0
      %v2466 = vadd.f32 0.0, %v2465
      %v2467 = vpop.f32.mrb[0].mxu0
      %2468 = vdwg.mxu0
      %2469 = vmatprep.subr.mxu0 0.0
      %2470 = vmatpush1.msra.mxu0 %v1955
      %2471 = vmatprep.subr.mxu0 0.0
      %2472 = vmatpush1.msra.mxu0 %v1956
      %2473 = vmatprep.subr.mxu0 0.0
      %2474 = vmatpush1.msra.mxu0 0.0
      %2475 = vmatprep.subr.mxu0 0.0
      %2476 = vmatpush1.msra.mxu0 0.0
      %2477 = vmatprep.subr.mxu0 0.0
      %2478 = vmatpush1.msra.mxu0 0.0
      %2479 = vmatprep.subr.mxu0 0.0
      %2480 = vmatpush1.msra.mxu0 0.0
      %2481 = vmatprep.subr.mxu0 0.0
      %2482 = vmatpush1.msra.mxu0 0.0
      %2483 = vmatprep.subr.mxu0 0.0
      %2484 = vmatpush1.msra.mxu0 0.0
      %2485 = vmatprep.subr.mxu0 0.0
      %2486 = vmatpush1.msra.mxu0 0.0
      %2487 = vmatprep.subr.mxu0 0.0
      %2488 = vmatpush1.msra.mxu0 0.0
      %2489 = vmatprep.subr.mxu0 0.0
      %2490 = vmatpush1.msra.mxu0 0.0
      %2491 = vmatprep.subr.mxu0 0.0
      %2492 = vmatpush1.msra.mxu0 0.0
      %2493 = vmatprep.subr.mxu0 0.0
      %2494 = vmatpush1.msra.mxu0 0.0
      %2495 = vmatprep.subr.mxu0 0.0
      %2496 = vmatpush1.msra.mxu0 0.0
      %2497 = vmatprep.subr.mxu0 0.0
      %2498 = vmatpush1.msra.mxu0 0.0
      %2499 = vmatprep.subr.mxu0 0.0
      %2500 = vmatpush1.msra.mxu0 0.0
      %2501 = vmatprep.subr.mxu0 0.0
      %2502 = vmatpush1.msra.mxu0 0.0
      %2503 = vmatprep.subr.mxu0 0.0
      %2504 = vmatpush1.msra.mxu0 0.0
      %2505 = vmatprep.subr.mxu0 0.0
      %2506 = vmatpush1.msra.mxu0 0.0
      %2507 = vmatprep.subr.mxu0 0.0
      %2508 = vmatpush1.msra.mxu0 0.0
      %2509 = vmatprep.subr.mxu0 0.0
      %2510 = vmatpush1.msra.mxu0 0.0
      %2511 = vmatprep.subr.mxu0 0.0
      %2512 = vmatpush1.msra.mxu0 0.0
      %2513 = vmatprep.subr.mxu0 0.0
      %2514 = vmatpush1.msra.mxu0 0.0
      %2515 = vmatprep.subr.mxu0 0.0
      %2516 = vmatpush1.msra.mxu0 0.0
      %2517 = vmatprep.subr.mxu0 0.0
      %2518 = vmatpush1.msra.mxu0 0.0
      %2519 = vmatprep.subr.mxu0 0.0
      %2520 = vmatpush1.msra.mxu0 0.0
      %2521 = vmatprep.subr.mxu0 0.0
      %2522 = vmatpush1.msra.mxu0 0.0
      %2523 = vmatprep.subr.mxu0 0.0
      %2524 = vmatpush1.msra.mxu0 0.0
      %2525 = vmatprep.subr.mxu0 0.0
      %2526 = vmatpush1.msra.mxu0 0.0
      %2527 = vmatprep.subr.mxu0 0.0
      %2528 = vmatpush1.msra.mxu0 0.0
      %2529 = vmatprep.subr.mxu0 0.0
      %2530 = vmatpush1.msra.mxu0 0.0
      %2531 = vmatprep.subr.mxu0 0.0
      %2532 = vmatpush1.msra.mxu0 0.0
      %2533 = vmatprep.mubr.f32.mxu0 0.0
      %2534 = vmatmul.mubr.f32.gmra.mrb[0].mxu0 %v909
      %v2535 = vpop.f32.mrb[0].mxu0
      %v2536 = vadd.f32 0.0, %v2535
      %v2537 = vpop.f32.mrb[0].mxu0
      %2538 = vmatprep.mubr.f32.mxu0 0.0
      %2539 = vmatmul.mubr.f32.gmra.mrb[0].mxu0 %v912
      %v2540 = vpop.f32.mrb[0].mxu0
      %v2541 = vadd.f32 0.0, %v2540
      %v2542 = vpop.f32.mrb[0].mxu0
      %2543 = vmatprep.mubr.f32.mxu0 0.0
      %2544 = vmatmul.mubr.f32.gmra.mrb[0].mxu0 %v915
      %v2545 = vpop.f32.mrb[0].mxu0
      %v2546 = vadd.f32 0.0, %v2545
      %v2547 = vpop.f32.mrb[0].mxu0
      %2548 = vmatprep.mubr.f32.mxu0 0.0
      %2549 = vmatmul.mubr.f32.gmra.mrb[0].mxu0 %v918
      %v2550 = vpop.f32.mrb[0].mxu0
      %v2551 = vadd.f32 0.0, %v2550
      %v2552 = vpop.f32.mrb[0].mxu0
      %2553 = vdwg.mxu0
      %2554 = vmatprep.subr.mxu0 0.0
      %2555 = vmatpush1.msra.mxu0 %v1957
      %2556 = vmatprep.subr.mxu0 0.0
      %2557 = vmatpush1.msra.mxu0 %v1958
      %2558 = vmatprep.subr.mxu0 0.0
      %2559 = vmatpush1.msra.mxu0 0.0
      %2560 = vmatprep.subr.mxu0 0.0
      %2561 = vmatpush1.msra.mxu0 0.0
      %2562 = vmatprep.subr.mxu0 0.0
      %2563 = vmatpush1.msra.mxu0 0.0
      %2564 = vmatprep.subr.mxu0 0.0
      %2565 = vmatpush1.msra.mxu0 0.0
      %2566 = vmatprep.subr.mxu0 0.0
      %2567 = vmatpush1.msra.mxu0 0.0
      %2568 = vmatprep.subr.mxu0 0.0
      %2569 = vmatpush1.msra.mxu0 0.0
      %2570 = vmatprep.subr.mxu0 0.0
      %2571 = vmatpush1.msra.mxu0 0.0
      %2572 = vmatprep.subr.mxu0 0.0
      %2573 = vmatpush1.msra.mxu0 0.0
      %2574 = vmatprep.subr.mxu0 0.0
      %2575 = vmatpush1.msra.mxu0 0.0
      %2576 = vmatprep.subr.mxu0 0.0
      %2577 = vmatpush1.msra.mxu0 0.0
      %2578 = vmatprep.subr.mxu0 0.0
      %2579 = vmatpush1.msra.mxu0 0.0
      %2580 = vmatprep.subr.mxu0 0.0
      %2581 = vmatpush1.msra.mxu0 0.0
      %2582 = vmatprep.subr.mxu0 0.0
      %2583 = vmatpush1.msra.mxu0 0.0
      %2584 = vmatprep.subr.mxu0 0.0
      %2585 = vmatpush1.msra.mxu0 0.0
      %2586 = vmatprep.subr.mxu0 0.0
      %2587 = vmatpush1.msra.mxu0 0.0
      %2588 = vmatprep.subr.mxu0 0.0
      %2589 = vmatpush1.msra.mxu0 0.0
      %2590 = vmatprep.subr.mxu0 0.0
      %2591 = vmatpush1.msra.mxu0 0.0
      %2592 = vmatprep.subr.mxu0 0.0
      %2593 = vmatpush1.msra.mxu0 0.0
      %2594 = vmatprep.subr.mxu0 0.0
      %2595 = vmatpush1.msra.mxu0 0.0
      %2596 = vmatprep.subr.mxu0 0.0
      %2597 = vmatpush1.msra.mxu0 0.0
      %2598 = vmatprep.subr.mxu0 0.0
      %2599 = vmatpush1.msra.mxu0 0.0
      %2600 = vmatprep.subr.mxu0 0.0
      %2601 = vmatpush1.msra.mxu0 0.0
      %2602 = vmatprep.subr.mxu0 0.0
      %2603 = vmatpush1.msra.mxu0 0.0
      %2604 = vmatprep.subr.mxu0 0.0
      %2605 = vmatpush1.msra.mxu0 0.0
      %2606 = vmatprep.subr.mxu0 0.0
      %2607 = vmatpush1.msra.mxu0 0.0
      %2608 = vmatprep.subr.mxu0 0.0
      %2609 = vmatpush1.msra.mxu0 0.0
      %2610 = vmatprep.subr.mxu0 0.0
      %2611 = vmatpush1.msra.mxu0 0.0
      %2612 = vmatprep.subr.mxu0 0.0
      %2613 = vmatpush1.msra.mxu0 0.0
      %2614 = vmatprep.subr.mxu0 0.0
      %2615 = vmatpush1.msra.mxu0 0.0
      %2616 = vmatprep.subr.mxu0 0.0
      %2617 = vmatpush1.msra.mxu0 0.0
      %2618 = vmatprep.mubr.f32.mxu0 0.0
      %2619 = vmatmul.mubr.f32.gmra.mrb[0].mxu0 %v1006
      %v2620 = vpop.f32.mrb[0].mxu0
      %v2621 = vadd.f32 0.0, %v2620
      %v2622 = vpop.f32.mrb[0].mxu0
      %2623 = vmatprep.mubr.f32.mxu0 0.0
      %2624 = vmatmul.mubr.f32.gmra.mrb[0].mxu0 %v1009
      %v2625 = vpop.f32.mrb[0].mxu0
      %v2626 = vadd.f32 0.0, %v2625
      %v2627 = vpop.f32.mrb[0].mxu0
      %2628 = vmatprep.mubr.f32.mxu0 0.0
      %2629 = vmatmul.mubr.f32.gmra.mrb[0].mxu0 %v1012
      %v2630 = vpop.f32.mrb[0].mxu0
      %v2631 = vadd.f32 0.0, %v2630
      %v2632 = vpop.f32.mrb[0].mxu0
      %2633 = vmatprep.mubr.f32.mxu0 0.0
      %2634 = vmatmul.mubr.f32.gmra.mrb[0].mxu0 %v1015
      %v2635 = vpop.f32.mrb[0].mxu0
      %v2636 = vadd.f32 0.0, %v2635
      %v2637 = vpop.f32.mrb[0].mxu0
      %2638 = vdwg.mxu0
      %2639 = vst.msk [vmem:[#allocation2 + $0x60] sm:$0xff] %vm277, %v2026
      %2640 = vst.msk [vmem:[#allocation2 + $0x68] sm:$0xff] %vm277, %v2031
      %2641 = vst.msk [vmem:[#allocation2 + $0x70] sm:$0xff] %vm277, %v2036
      %2642 = vst.msk [vmem:[#allocation2 + $0x78] sm:$0xff] %vm277, %v2041
      %2643 = vst.msk [vmem:[#allocation2 + $0x140] sm:$0xff] %vm277, %v2111
      %2644 = vst.msk [vmem:[#allocation2 + $0x148] sm:$0xff] %vm277, %v2116
      %2645 = vst.msk [vmem:[#allocation2 + $0x150] sm:$0xff] %vm277, %v2121
      %2646 = vst.msk [vmem:[#allocation2 + $0x158] sm:$0xff] %vm277, %v2126
      %2647 = vst.msk [vmem:[#allocation2 + $0x220] sm:$0xff] %vm277, %v2196
      %2648 = vst.msk [vmem:[#allocation2 + $0x228] sm:$0xff] %vm277, %v2201
      %2649 = vst.msk [vmem:[#allocation2 + $0x230] sm:$0xff] %vm277, %v2206
      %2650 = vst.msk [vmem:[#allocation2 + $0x238] sm:$0xff] %vm277, %v2211
      %2651 = vst.msk [vmem:[#allocation2 + $0x300] sm:$0xff] %vm277, %v2281
      %2652 = vst.msk [vmem:[#allocation2 + $0x308] sm:$0xff] %vm277, %v2286
      %2653 = vst.msk [vmem:[#allocation2 + $0x310] sm:$0xff] %vm277, %v2291
      %2654 = vst.msk [vmem:[#allocation2 + $0x318] sm:$0xff] %vm277, %v2296
      %2655 = vst.msk [vmem:[#allocation2 + $0x3e0] sm:$0xff] %vm277, %v2366
      %2656 = vst.msk [vmem:[#allocation2 + $0x3e8] sm:$0xff] %vm277, %v2371
      %2657 = vst.msk [vmem:[#allocation2 + $0x3f0] sm:$0xff] %vm277, %v2376
      %2658 = vst.msk [vmem:[#allocation2 + $0x3f8] sm:$0xff] %vm277, %v2381
      %2659 = vst.msk [vmem:[#allocation2 + $0x4c0] sm:$0xff] %vm277, %v2451
      %2660 = vst.msk [vmem:[#allocation2 + $0x4c8] sm:$0xff] %vm277, %v2456
      %2661 = vst.msk [vmem:[#allocation2 + $0x4d0] sm:$0xff] %vm277, %v2461
      %2662 = vst.msk [vmem:[#allocation2 + $0x4d8] sm:$0xff] %vm277, %v2466
      %2663 = vst.msk [vmem:[#allocation2 + $0x5a0] sm:$0xff] %vm277, %v2536
      %2664 = vst.msk [vmem:[#allocation2 + $0x5a8] sm:$0xff] %vm277, %v2541
      %2665 = vst.msk [vmem:[#allocation2 + $0x5b0] sm:$0xff] %vm277, %v2546
      %2666 = vst.msk [vmem:[#allocation2 + $0x5b8] sm:$0xff] %vm277, %v2551
      %2667 = vst.msk [vmem:[#allocation2 + $0x680] sm:$0xff] %vm277, %v2621
      %2668 = vst.msk [vmem:[#allocation2 + $0x688] sm:$0xff] %vm277, %v2626
      %2669 = vst.msk [vmem:[#allocation2 + $0x690] sm:$0xff] %vm277, %v2631
      %2670 = vst.msk [vmem:[#allocation2 + $0x698] sm:$0xff] %vm277, %v2636
      %v2672 = vsel %vm277, %v2026, 0
      %v2675 = vsel %vm277, %v2031, 0
      %v2678 = vsel %vm277, %v2036, 0
      %v2681 = vsel %vm277, %v2041, 0
      %2683 = vmatprep.subr.mxu0 0.0
      %2684 = vmatpush1.msra.mxu0 %v1943
      %2685 = vmatprep.subr.mxu0 0.0
      %2686 = vmatpush1.msra.mxu0 %v1944
      %2687 = vmatprep.subr.mxu0 0.0
      %2688 = vmatpush1.msra.mxu0 0.0
      %2689 = vmatprep.subr.mxu0 0.0
      %2690 = vmatpush1.msra.mxu0 0.0
      %2691 = vmatprep.subr.mxu0 0.0
      %2692 = vmatpush1.msra.mxu0 0.0
      %2693 = vmatprep.subr.mxu0 0.0
      %2694 = vmatpush1.msra.mxu0 0.0
      %2695 = vmatprep.subr.mxu0 0.0
      %2696 = vmatpush1.msra.mxu0 0.0
      %2697 = vmatprep.subr.mxu0 0.0
      %2698 = vmatpush1.msra.mxu0 0.0
      %2699 = vmatprep.subr.mxu0 0.0
      %2700 = vmatpush1.msra.mxu0 0.0
      %2701 = vmatprep.subr.mxu0 0.0
      %2702 = vmatpush1.msra.mxu0 0.0
      %2703 = vmatprep.subr.mxu0 0.0
      %2704 = vmatpush1.msra.mxu0 0.0
      %2705 = vmatprep.subr.mxu0 0.0
      %2706 = vmatpush1.msra.mxu0 0.0
      %2707 = vmatprep.subr.mxu0 0.0
      %2708 = vmatpush1.msra.mxu0 0.0
      %2709 = vmatprep.subr.mxu0 0.0
      %2710 = vmatpush1.msra.mxu0 0.0
      %2711 = vmatprep.subr.mxu0 0.0
      %2712 = vmatpush1.msra.mxu0 0.0
      %2713 = vmatprep.subr.mxu0 0.0
      %2714 = vmatpush1.msra.mxu0 0.0
      %2715 = vmatprep.subr.mxu0 0.0
      %2716 = vmatpush1.msra.mxu0 0.0
      %2717 = vmatprep.subr.mxu0 0.0
      %2718 = vmatpush1.msra.mxu0 0.0
      %2719 = vmatprep.subr.mxu0 0.0
      %2720 = vmatpush1.msra.mxu0 0.0
      %2721 = vmatprep.subr.mxu0 0.0
      %2722 = vmatpush1.msra.mxu0 0.0
      %2723 = vmatprep.subr.mxu0 0.0
      %2724 = vmatpush1.msra.mxu0 0.0
      %2725 = vmatprep.subr.mxu0 0.0
      %2726 = vmatpush1.msra.mxu0 0.0
      %2727 = vmatprep.subr.mxu0 0.0
      %2728 = vmatpush1.msra.mxu0 0.0
      %2729 = vmatprep.subr.mxu0 0.0
      %2730 = vmatpush1.msra.mxu0 0.0
      %2731 = vmatprep.subr.mxu0 0.0
      %2732 = vmatpush1.msra.mxu0 0.0
      %2733 = vmatprep.subr.mxu0 0.0
      %2734 = vmatpush1.msra.mxu0 0.0
      %2735 = vmatprep.subr.mxu0 0.0
      %2736 = vmatpush1.msra.mxu0 0.0
      %2737 = vmatprep.subr.mxu0 0.0
      %2738 = vmatpush1.msra.mxu0 0.0
      %2739 = vmatprep.subr.mxu0 0.0
      %2740 = vmatpush1.msra.mxu0 0.0
      %2741 = vmatprep.subr.mxu0 0.0
      %2742 = vmatpush1.msra.mxu0 0.0
      %2743 = vmatprep.subr.mxu0 0.0
      %2744 = vmatpush1.msra.mxu0 0.0
      %2745 = vmatprep.subr.mxu0 0.0
      %2746 = vmatpush1.msra.mxu0 0.0
      %2747 = vmatprep.mubr.f32.mxu0 0.0
      %2748 = vmatmul.mubr.f32.gmra.mrb[0].mxu0 %v2672
      %v2749 = vpop.f32.mrb[0].mxu0
      %v2750 = vadd.f32 0.0, %v2749
      %v2751 = vpop.f32.mrb[0].mxu0
      %2752 = vmatprep.mubr.f32.mxu0 0.0
      %2753 = vmatmul.mubr.f32.gmra.mrb[0].mxu0 %v2675
      %v2754 = vpop.f32.mrb[0].mxu0
      %v2755 = vadd.f32 0.0, %v2754
      %v2756 = vpop.f32.mrb[0].mxu0
      %2757 = vmatprep.mubr.f32.mxu0 0.0
      %2758 = vmatmul.mubr.f32.gmra.mrb[0].mxu0 %v2678
      %v2759 = vpop.f32.mrb[0].mxu0
      %v2760 = vadd.f32 0.0, %v2759
      %v2761 = vpop.f32.mrb[0].mxu0
      %2762 = vmatprep.mubr.f32.mxu0 0.0
      %2763 = vmatmul.mubr.f32.gmra.mrb[0].mxu0 %v2681
      %v2764 = vpop.f32.mrb[0].mxu0
      %v2765 = vadd.f32 0.0, %v2764
      %v2766 = vpop.f32.mrb[0].mxu0
      %2767 = vdwg.mxu0
      %v2769 = vsel %vm277, %v2111, 0
      %v2772 = vsel %vm277, %v2116, 0
      %v2775 = vsel %vm277, %v2121, 0
      %v2778 = vsel %vm277, %v2126, 0
      %2780 = vmatprep.subr.mxu0 0.0
      %2781 = vmatpush1.msra.mxu0 %v1945
      %2782 = vmatprep.subr.mxu0 0.0
      %2783 = vmatpush1.msra.mxu0 %v1946
      %2784 = vmatprep.subr.mxu0 0.0
      %2785 = vmatpush1.msra.mxu0 0.0
      %2786 = vmatprep.subr.mxu0 0.0
      %2787 = vmatpush1.msra.mxu0 0.0
      %2788 = vmatprep.subr.mxu0 0.0
      %2789 = vmatpush1.msra.mxu0 0.0
      %2790 = vmatprep.subr.mxu0 0.0
      %2791 = vmatpush1.msra.mxu0 0.0
      %2792 = vmatprep.subr.mxu0 0.0
      %2793 = vmatpush1.msra.mxu0 0.0
      %2794 = vmatprep.subr.mxu0 0.0
      %2795 = vmatpush1.msra.mxu0 0.0
      %2796 = vmatprep.subr.mxu0 0.0
      %2797 = vmatpush1.msra.mxu0 0.0
      %2798 = vmatprep.subr.mxu0 0.0
      %2799 = vmatpush1.msra.mxu0 0.0
      %2800 = vmatprep.subr.mxu0 0.0
      %2801 = vmatpush1.msra.mxu0 0.0
      %2802 = vmatprep.subr.mxu0 0.0
      %2803 = vmatpush1.msra.mxu0 0.0
      %2804 = vmatprep.subr.mxu0 0.0
      %2805 = vmatpush1.msra.mxu0 0.0
      %2806 = vmatprep.subr.mxu0 0.0
      %2807 = vmatpush1.msra.mxu0 0.0
      %2808 = vmatprep.subr.mxu0 0.0
      %2809 = vmatpush1.msra.mxu0 0.0
      %2810 = vmatprep.subr.mxu0 0.0
      %2811 = vmatpush1.msra.mxu0 0.0
      %2812 = vmatprep.subr.mxu0 0.0
      %2813 = vmatpush1.msra.mxu0 0.0
      %2814 = vmatprep.subr.mxu0 0.0
      %2815 = vmatpush1.msra.mxu0 0.0
      %2816 = vmatprep.subr.mxu0 0.0
      %2817 = vmatpush1.msra.mxu0 0.0
      %2818 = vmatprep.subr.mxu0 0.0
      %2819 = vmatpush1.msra.mxu0 0.0
      %2820 = vmatprep.subr.mxu0 0.0
      %2821 = vmatpush1.msra.mxu0 0.0
      %2822 = vmatprep.subr.mxu0 0.0
      %2823 = vmatpush1.msra.mxu0 0.0
      %2824 = vmatprep.subr.mxu0 0.0
      %2825 = vmatpush1.msra.mxu0 0.0
      %2826 = vmatprep.subr.mxu0 0.0
      %2827 = vmatpush1.msra.mxu0 0.0
      %2828 = vmatprep.subr.mxu0 0.0
      %2829 = vmatpush1.msra.mxu0 0.0
      %2830 = vmatprep.subr.mxu0 0.0
      %2831 = vmatpush1.msra.mxu0 0.0
      %2832 = vmatprep.subr.mxu0 0.0
      %2833 = vmatpush1.msra.mxu0 0.0
      %2834 = vmatprep.subr.mxu0 0.0
      %2835 = vmatpush1.msra.mxu0 0.0
      %2836 = vmatprep.subr.mxu0 0.0
      %2837 = vmatpush1.msra.mxu0 0.0
      %2838 = vmatprep.subr.mxu0 0.0
      %2839 = vmatpush1.msra.mxu0 0.0
      %2840 = vmatprep.subr.mxu0 0.0
      %2841 = vmatpush1.msra.mxu0 0.0
      %2842 = vmatprep.subr.mxu0 0.0
      %2843 = vmatpush1.msra.mxu0 0.0
      %2844 = vmatprep.mubr.f32.mxu0 0.0
      %2845 = vmatmul.mubr.f32.gmra.mrb[0].mxu0 %v2769
      %v2846 = vpop.f32.mrb[0].mxu0
      %v2847 = vadd.f32 0.0, %v2846
      %v2848 = vpop.f32.mrb[0].mxu0
      %2849 = vmatprep.mubr.f32.mxu0 0.0
      %2850 = vmatmul.mubr.f32.gmra.mrb[0].mxu0 %v2772
      %v2851 = vpop.f32.mrb[0].mxu0
      %v2852 = vadd.f32 0.0, %v2851
      %v2853 = vpop.f32.mrb[0].mxu0
      %2854 = vmatprep.mubr.f32.mxu0 0.0
      %2855 = vmatmul.mubr.f32.gmra.mrb[0].mxu0 %v2775
      %v2856 = vpop.f32.mrb[0].mxu0
      %v2857 = vadd.f32 0.0, %v2856
      %v2858 = vpop.f32.mrb[0].mxu0
      %2859 = vmatprep.mubr.f32.mxu0 0.0
      %2860 = vmatmul.mubr.f32.gmra.mrb[0].mxu0 %v2778
      %v2861 = vpop.f32.mrb[0].mxu0
      %v2862 = vadd.f32 0.0, %v2861
      %v2863 = vpop.f32.mrb[0].mxu0
      %2864 = vdwg.mxu0
      %v2866 = vsel %vm277, %v2196, 0
      %v2869 = vsel %vm277, %v2201, 0
      %v2872 = vsel %vm277, %v2206, 0
      %v2875 = vsel %vm277, %v2211, 0
      %2877 = vmatprep.subr.mxu0 0.0
      %2878 = vmatpush1.msra.mxu0 %v1947
      %2879 = vmatprep.subr.mxu0 0.0
      %2880 = vmatpush1.msra.mxu0 %v1948
      %2881 = vmatprep.subr.mxu0 0.0
      %2882 = vmatpush1.msra.mxu0 0.0
      %2883 = vmatprep.subr.mxu0 0.0
      %2884 = vmatpush1.msra.mxu0 0.0
      %2885 = vmatprep.subr.mxu0 0.0
      %2886 = vmatpush1.msra.mxu0 0.0
      %2887 = vmatprep.subr.mxu0 0.0
      %2888 = vmatpush1.msra.mxu0 0.0
      %2889 = vmatprep.subr.mxu0 0.0
      %2890 = vmatpush1.msra.mxu0 0.0
      %2891 = vmatprep.subr.mxu0 0.0
      %2892 = vmatpush1.msra.mxu0 0.0
      %2893 = vmatprep.subr.mxu0 0.0
      %2894 = vmatpush1.msra.mxu0 0.0
      %2895 = vmatprep.subr.mxu0 0.0
      %2896 = vmatpush1.msra.mxu0 0.0
      %2897 = vmatprep.subr.mxu0 0.0
      %2898 = vmatpush1.msra.mxu0 0.0
      %2899 = vmatprep.subr.mxu0 0.0
      %2900 = vmatpush1.msra.mxu0 0.0
      %2901 = vmatprep.subr.mxu0 0.0
      %2902 = vmatpush1.msra.mxu0 0.0
      %2903 = vmatprep.subr.mxu0 0.0
      %2904 = vmatpush1.msra.mxu0 0.0
      %2905 = vmatprep.subr.mxu0 0.0
      %2906 = vmatpush1.msra.mxu0 0.0
      %2907 = vmatprep.subr.mxu0 0.0
      %2908 = vmatpush1.msra.mxu0 0.0
      %2909 = vmatprep.subr.mxu0 0.0
      %2910 = vmatpush1.msra.mxu0 0.0
      %2911 = vmatprep.subr.mxu0 0.0
      %2912 = vmatpush1.msra.mxu0 0.0
      %2913 = vmatprep.subr.mxu0 0.0
      %2914 = vmatpush1.msra.mxu0 0.0
      %2915 = vmatprep.subr.mxu0 0.0
      %2916 = vmatpush1.msra.mxu0 0.0
      %2917 = vmatprep.subr.mxu0 0.0
      %2918 = vmatpush1.msra.mxu0 0.0
      %2919 = vmatprep.subr.mxu0 0.0
      %2920 = vmatpush1.msra.mxu0 0.0
      %2921 = vmatprep.subr.mxu0 0.0
      %2922 = vmatpush1.msra.mxu0 0.0
      %2923 = vmatprep.subr.mxu0 0.0
      %2924 = vmatpush1.msra.mxu0 0.0
      %2925 = vmatprep.subr.mxu0 0.0
      %2926 = vmatpush1.msra.mxu0 0.0
      %2927 = vmatprep.subr.mxu0 0.0
      %2928 = vmatpush1.msra.mxu0 0.0
      %2929 = vmatprep.subr.mxu0 0.0
      %2930 = vmatpush1.msra.mxu0 0.0
      %2931 = vmatprep.subr.mxu0 0.0
      %2932 = vmatpush1.msra.mxu0 0.0
      %2933 = vmatprep.subr.mxu0 0.0
      %2934 = vmatpush1.msra.mxu0 0.0
      %2935 = vmatprep.subr.mxu0 0.0
      %2936 = vmatpush1.msra.mxu0 0.0
      %2937 = vmatprep.subr.mxu0 0.0
      %2938 = vmatpush1.msra.mxu0 0.0
      %2939 = vmatprep.subr.mxu0 0.0
      %2940 = vmatpush1.msra.mxu0 0.0
      %2941 = vmatprep.mubr.f32.mxu0 0.0
      %2942 = vmatmul.mubr.f32.gmra.mrb[0].mxu0 %v2866
      %v2943 = vpop.f32.mrb[0].mxu0
      %v2944 = vadd.f32 0.0, %v2943
      %v2945 = vpop.f32.mrb[0].mxu0
      %2946 = vmatprep.mubr.f32.mxu0 0.0
      %2947 = vmatmul.mubr.f32.gmra.mrb[0].mxu0 %v2869
      %v2948 = vpop.f32.mrb[0].mxu0
      %v2949 = vadd.f32 0.0, %v2948
      %v2950 = vpop.f32.mrb[0].mxu0
      %2951 = vmatprep.mubr.f32.mxu0 0.0
      %2952 = vmatmul.mubr.f32.gmra.mrb[0].mxu0 %v2872
      %v2953 = vpop.f32.mrb[0].mxu0
      %v2954 = vadd.f32 0.0, %v2953
      %v2955 = vpop.f32.mrb[0].mxu0
      %2956 = vmatprep.mubr.f32.mxu0 0.0
      %2957 = vmatmul.mubr.f32.gmra.mrb[0].mxu0 %v2875
      %v2958 = vpop.f32.mrb[0].mxu0
      %v2959 = vadd.f32 0.0, %v2958
      %v2960 = vpop.f32.mrb[0].mxu0
      %2961 = vdwg.mxu0
      %v2963 = vsel %vm277, %v2281, 0
      %v2966 = vsel %vm277, %v2286, 0
      %v2969 = vsel %vm277, %v2291, 0
      %v2972 = vsel %vm277, %v2296, 0
      %2974 = vmatprep.subr.mxu0 0.0
      %2975 = vmatpush1.msra.mxu0 %v1949
      %2976 = vmatprep.subr.mxu0 0.0
      %2977 = vmatpush1.msra.mxu0 %v1950
      %2978 = vmatprep.subr.mxu0 0.0
      %2979 = vmatpush1.msra.mxu0 0.0
      %2980 = vmatprep.subr.mxu0 0.0
      %2981 = vmatpush1.msra.mxu0 0.0
      %2982 = vmatprep.subr.mxu0 0.0
      %2983 = vmatpush1.msra.mxu0 0.0
      %2984 = vmatprep.subr.mxu0 0.0
      %2985 = vmatpush1.msra.mxu0 0.0
      %2986 = vmatprep.subr.mxu0 0.0
      %2987 = vmatpush1.msra.mxu0 0.0
      %2988 = vmatprep.subr.mxu0 0.0
      %2989 = vmatpush1.msra.mxu0 0.0
      %2990 = vmatprep.subr.mxu0 0.0
      %2991 = vmatpush1.msra.mxu0 0.0
      %2992 = vmatprep.subr.mxu0 0.0
      %2993 = vmatpush1.msra.mxu0 0.0
      %2994 = vmatprep.subr.mxu0 0.0
      %2995 = vmatpush1.msra.mxu0 0.0
      %2996 = vmatprep.subr.mxu0 0.0
      %2997 = vmatpush1.msra.mxu0 0.0
      %2998 = vmatprep.subr.mxu0 0.0
      %2999 = vmatpush1.msra.mxu0 0.0
      %3000 = vmatprep.subr.mxu0 0.0
      %3001 = vmatpush1.msra.mxu0 0.0
      %3002 = vmatprep.subr.mxu0 0.0
      %3003 = vmatpush1.msra.mxu0 0.0
      %3004 = vmatprep.subr.mxu0 0.0
      %3005 = vmatpush1.msra.mxu0 0.0
      %3006 = vmatprep.subr.mxu0 0.0
      %3007 = vmatpush1.msra.mxu0 0.0
      %3008 = vmatprep.subr.mxu0 0.0
      %3009 = vmatpush1.msra.mxu0 0.0
      %3010 = vmatprep.subr.mxu0 0.0
      %3011 = vmatpush1.msra.mxu0 0.0
      %3012 = vmatprep.subr.mxu0 0.0
      %3013 = vmatpush1.msra.mxu0 0.0
      %3014 = vmatprep.subr.mxu0 0.0
      %3015 = vmatpush1.msra.mxu0 0.0
      %3016 = vmatprep.subr.mxu0 0.0
      %3017 = vmatpush1.msra.mxu0 0.0
      %3018 = vmatprep.subr.mxu0 0.0
      %3019 = vmatpush1.msra.mxu0 0.0
      %3020 = vmatprep.subr.mxu0 0.0
      %3021 = vmatpush1.msra.mxu0 0.0
      %3022 = vmatprep.subr.mxu0 0.0
      %3023 = vmatpush1.msra.mxu0 0.0
      %3024 = vmatprep.subr.mxu0 0.0
      %3025 = vmatpush1.msra.mxu0 0.0
      %3026 = vmatprep.subr.mxu0 0.0
      %3027 = vmatpush1.msra.mxu0 0.0
      %3028 = vmatprep.subr.mxu0 0.0
      %3029 = vmatpush1.msra.mxu0 0.0
      %3030 = vmatprep.subr.mxu0 0.0
      %3031 = vmatpush1.msra.mxu0 0.0
      %3032 = vmatprep.subr.mxu0 0.0
      %3033 = vmatpush1.msra.mxu0 0.0
      %3034 = vmatprep.subr.mxu0 0.0
      %3035 = vmatpush1.msra.mxu0 0.0
      %3036 = vmatprep.subr.mxu0 0.0
      %3037 = vmatpush1.msra.mxu0 0.0
      %3038 = vmatprep.mubr.f32.mxu0 0.0
      %3039 = vmatmul.mubr.f32.gmra.mrb[0].mxu0 %v2963
      %v3040 = vpop.f32.mrb[0].mxu0
      %v3041 = vadd.f32 0.0, %v3040
      %v3042 = vpop.f32.mrb[0].mxu0
      %3043 = vmatprep.mubr.f32.mxu0 0.0
      %3044 = vmatmul.mubr.f32.gmra.mrb[0].mxu0 %v2966
      %v3045 = vpop.f32.mrb[0].mxu0
      %v3046 = vadd.f32 0.0, %v3045
      %v3047 = vpop.f32.mrb[0].mxu0
      %3048 = vmatprep.mubr.f32.mxu0 0.0
      %3049 = vmatmul.mubr.f32.gmra.mrb[0].mxu0 %v2969
      %v3050 = vpop.f32.mrb[0].mxu0
      %v3051 = vadd.f32 0.0, %v3050
      %v3052 = vpop.f32.mrb[0].mxu0
      %3053 = vmatprep.mubr.f32.mxu0 0.0
      %3054 = vmatmul.mubr.f32.gmra.mrb[0].mxu0 %v2972
      %v3055 = vpop.f32.mrb[0].mxu0
      %v3056 = vadd.f32 0.0, %v3055
      %v3057 = vpop.f32.mrb[0].mxu0
      %3058 = vdwg.mxu0
      %v3060 = vsel %vm277, %v2366, 0
      %v3063 = vsel %vm277, %v2371, 0
      %v3066 = vsel %vm277, %v2376, 0
      %v3069 = vsel %vm277, %v2381, 0
      %3071 = vmatprep.subr.mxu0 0.0
      %3072 = vmatpush1.msra.mxu0 %v1951
      %3073 = vmatprep.subr.mxu0 0.0
      %3074 = vmatpush1.msra.mxu0 %v1952
      %3075 = vmatprep.subr.mxu0 0.0
      %3076 = vmatpush1.msra.mxu0 0.0
      %3077 = vmatprep.subr.mxu0 0.0
      %3078 = vmatpush1.msra.mxu0 0.0
      %3079 = vmatprep.subr.mxu0 0.0
      %3080 = vmatpush1.msra.mxu0 0.0
      %3081 = vmatprep.subr.mxu0 0.0
      %3082 = vmatpush1.msra.mxu0 0.0
      %3083 = vmatprep.subr.mxu0 0.0
      %3084 = vmatpush1.msra.mxu0 0.0
      %3085 = vmatprep.subr.mxu0 0.0
      %3086 = vmatpush1.msra.mxu0 0.0
      %3087 = vmatprep.subr.mxu0 0.0
      %3088 = vmatpush1.msra.mxu0 0.0
      %3089 = vmatprep.subr.mxu0 0.0
      %3090 = vmatpush1.msra.mxu0 0.0
      %3091 = vmatprep.subr.mxu0 0.0
      %3092 = vmatpush1.msra.mxu0 0.0
      %3093 = vmatprep.subr.mxu0 0.0
      %3094 = vmatpush1.msra.mxu0 0.0
      %3095 = vmatprep.subr.mxu0 0.0
      %3096 = vmatpush1.msra.mxu0 0.0
      %3097 = vmatprep.subr.mxu0 0.0
      %3098 = vmatpush1.msra.mxu0 0.0
      %3099 = vmatprep.subr.mxu0 0.0
      %3100 = vmatpush1.msra.mxu0 0.0
      %3101 = vmatprep.subr.mxu0 0.0
      %3102 = vmatpush1.msra.mxu0 0.0
      %3103 = vmatprep.subr.mxu0 0.0
      %3104 = vmatpush1.msra.mxu0 0.0
      %3105 = vmatprep.subr.mxu0 0.0
      %3106 = vmatpush1.msra.mxu0 0.0
      %3107 = vmatprep.subr.mxu0 0.0
      %3108 = vmatpush1.msra.mxu0 0.0
      %3109 = vmatprep.subr.mxu0 0.0
      %3110 = vmatpush1.msra.mxu0 0.0
      %3111 = vmatprep.subr.mxu0 0.0
      %3112 = vmatpush1.msra.mxu0 0.0
      %3113 = vmatprep.subr.mxu0 0.0
      %3114 = vmatpush1.msra.mxu0 0.0
      %3115 = vmatprep.subr.mxu0 0.0
      %3116 = vmatpush1.msra.mxu0 0.0
      %3117 = vmatprep.subr.mxu0 0.0
      %3118 = vmatpush1.msra.mxu0 0.0
      %3119 = vmatprep.subr.mxu0 0.0
      %3120 = vmatpush1.msra.mxu0 0.0
      %3121 = vmatprep.subr.mxu0 0.0
      %3122 = vmatpush1.msra.mxu0 0.0
      %3123 = vmatprep.subr.mxu0 0.0
      %3124 = vmatpush1.msra.mxu0 0.0
      %3125 = vmatprep.subr.mxu0 0.0
      %3126 = vmatpush1.msra.mxu0 0.0
      %3127 = vmatprep.subr.mxu0 0.0
      %3128 = vmatpush1.msra.mxu0 0.0
      %3129 = vmatprep.subr.mxu0 0.0
      %3130 = vmatpush1.msra.mxu0 0.0
      %3131 = vmatprep.subr.mxu0 0.0
      %3132 = vmatpush1.msra.mxu0 0.0
      %3133 = vmatprep.subr.mxu0 0.0
      %3134 = vmatpush1.msra.mxu0 0.0
      %3135 = vmatprep.mubr.f32.mxu0 0.0
      %3136 = vmatmul.mubr.f32.gmra.mrb[0].mxu0 %v3060
      %v3137 = vpop.f32.mrb[0].mxu0
      %v3138 = vadd.f32 0.0, %v3137
      %v3139 = vpop.f32.mrb[0].mxu0
      %3140 = vmatprep.mubr.f32.mxu0 0.0
      %3141 = vmatmul.mubr.f32.gmra.mrb[0].mxu0 %v3063
      %v3142 = vpop.f32.mrb[0].mxu0
      %v3143 = vadd.f32 0.0, %v3142
      %v3144 = vpop.f32.mrb[0].mxu0
      %3145 = vmatprep.mubr.f32.mxu0 0.0
      %3146 = vmatmul.mubr.f32.gmra.mrb[0].mxu0 %v3066
      %v3147 = vpop.f32.mrb[0].mxu0
      %v3148 = vadd.f32 0.0, %v3147
      %v3149 = vpop.f32.mrb[0].mxu0
      %3150 = vmatprep.mubr.f32.mxu0 0.0
      %3151 = vmatmul.mubr.f32.gmra.mrb[0].mxu0 %v3069
      %v3152 = vpop.f32.mrb[0].mxu0
      %v3153 = vadd.f32 0.0, %v3152
      %v3154 = vpop.f32.mrb[0].mxu0
      %3155 = vdwg.mxu0
      %v3157 = vsel %vm277, %v2451, 0
      %v3160 = vsel %vm277, %v2456, 0
      %v3163 = vsel %vm277, %v2461, 0
      %v3166 = vsel %vm277, %v2466, 0
      %3168 = vmatprep.subr.mxu0 0.0
      %3169 = vmatpush1.msra.mxu0 %v1953
      %3170 = vmatprep.subr.mxu0 0.0
      %3171 = vmatpush1.msra.mxu0 %v1954
      %3172 = vmatprep.subr.mxu0 0.0
      %3173 = vmatpush1.msra.mxu0 0.0
      %3174 = vmatprep.subr.mxu0 0.0
      %3175 = vmatpush1.msra.mxu0 0.0
      %3176 = vmatprep.subr.mxu0 0.0
      %3177 = vmatpush1.msra.mxu0 0.0
      %3178 = vmatprep.subr.mxu0 0.0
      %3179 = vmatpush1.msra.mxu0 0.0
      %3180 = vmatprep.subr.mxu0 0.0
      %3181 = vmatpush1.msra.mxu0 0.0
      %3182 = vmatprep.subr.mxu0 0.0
      %3183 = vmatpush1.msra.mxu0 0.0
      %3184 = vmatprep.subr.mxu0 0.0
      %3185 = vmatpush1.msra.mxu0 0.0
      %3186 = vmatprep.subr.mxu0 0.0
      %3187 = vmatpush1.msra.mxu0 0.0
      %3188 = vmatprep.subr.mxu0 0.0
      %3189 = vmatpush1.msra.mxu0 0.0
      %3190 = vmatprep.subr.mxu0 0.0
      %3191 = vmatpush1.msra.mxu0 0.0
      %3192 = vmatprep.subr.mxu0 0.0
      %3193 = vmatpush1.msra.mxu0 0.0
      %3194 = vmatprep.subr.mxu0 0.0
      %3195 = vmatpush1.msra.mxu0 0.0
      %3196 = vmatprep.subr.mxu0 0.0
      %3197 = vmatpush1.msra.mxu0 0.0
      %3198 = vmatprep.subr.mxu0 0.0
      %3199 = vmatpush1.msra.mxu0 0.0
      %3200 = vmatprep.subr.mxu0 0.0
      %3201 = vmatpush1.msra.mxu0 0.0
      %3202 = vmatprep.subr.mxu0 0.0
      %3203 = vmatpush1.msra.mxu0 0.0
      %3204 = vmatprep.subr.mxu0 0.0
      %3205 = vmatpush1.msra.mxu0 0.0
      %3206 = vmatprep.subr.mxu0 0.0
      %3207 = vmatpush1.msra.mxu0 0.0
      %3208 = vmatprep.subr.mxu0 0.0
      %3209 = vmatpush1.msra.mxu0 0.0
      %3210 = vmatprep.subr.mxu0 0.0
      %3211 = vmatpush1.msra.mxu0 0.0
      %3212 = vmatprep.subr.mxu0 0.0
      %3213 = vmatpush1.msra.mxu0 0.0
      %3214 = vmatprep.subr.mxu0 0.0
      %3215 = vmatpush1.msra.mxu0 0.0
      %3216 = vmatprep.subr.mxu0 0.0
      %3217 = vmatpush1.msra.mxu0 0.0
      %3218 = vmatprep.subr.mxu0 0.0
      %3219 = vmatpush1.msra.mxu0 0.0
      %3220 = vmatprep.subr.mxu0 0.0
      %3221 = vmatpush1.msra.mxu0 0.0
      %3222 = vmatprep.subr.mxu0 0.0
      %3223 = vmatpush1.msra.mxu0 0.0
      %3224 = vmatprep.subr.mxu0 0.0
      %3225 = vmatpush1.msra.mxu0 0.0
      %3226 = vmatprep.subr.mxu0 0.0
      %3227 = vmatpush1.msra.mxu0 0.0
      %3228 = vmatprep.subr.mxu0 0.0
      %3229 = vmatpush1.msra.mxu0 0.0
      %3230 = vmatprep.subr.mxu0 0.0
      %3231 = vmatpush1.msra.mxu0 0.0
      %3232 = vmatprep.mubr.f32.mxu0 0.0
      %3233 = vmatmul.mubr.f32.gmra.mrb[0].mxu0 %v3157
      %v3234 = vpop.f32.mrb[0].mxu0
      %v3235 = vadd.f32 0.0, %v3234
      %v3236 = vpop.f32.mrb[0].mxu0
      %3237 = vmatprep.mubr.f32.mxu0 0.0
      %3238 = vmatmul.mubr.f32.gmra.mrb[0].mxu0 %v3160
      %v3239 = vpop.f32.mrb[0].mxu0
      %v3240 = vadd.f32 0.0, %v3239
      %v3241 = vpop.f32.mrb[0].mxu0
      %3242 = vmatprep.mubr.f32.mxu0 0.0
      %3243 = vmatmul.mubr.f32.gmra.mrb[0].mxu0 %v3163
      %v3244 = vpop.f32.mrb[0].mxu0
      %v3245 = vadd.f32 0.0, %v3244
      %v3246 = vpop.f32.mrb[0].mxu0
      %3247 = vmatprep.mubr.f32.mxu0 0.0
      %3248 = vmatmul.mubr.f32.gmra.mrb[0].mxu0 %v3166
      %v3249 = vpop.f32.mrb[0].mxu0
      %v3250 = vadd.f32 0.0, %v3249
      %v3251 = vpop.f32.mrb[0].mxu0
      %3252 = vdwg.mxu0
      %v3254 = vsel %vm277, %v2536, 0
      %v3257 = vsel %vm277, %v2541, 0
      %v3260 = vsel %vm277, %v2546, 0
      %v3263 = vsel %vm277, %v2551, 0
      %3265 = vmatprep.subr.mxu0 0.0
      %3266 = vmatpush1.msra.mxu0 %v1955
      %3267 = vmatprep.subr.mxu0 0.0
      %3268 = vmatpush1.msra.mxu0 %v1956
      %3269 = vmatprep.subr.mxu0 0.0
      %3270 = vmatpush1.msra.mxu0 0.0
      %3271 = vmatprep.subr.mxu0 0.0
      %3272 = vmatpush1.msra.mxu0 0.0
      %3273 = vmatprep.subr.mxu0 0.0
      %3274 = vmatpush1.msra.mxu0 0.0
      %3275 = vmatprep.subr.mxu0 0.0
      %3276 = vmatpush1.msra.mxu0 0.0
      %3277 = vmatprep.subr.mxu0 0.0
      %3278 = vmatpush1.msra.mxu0 0.0
      %3279 = vmatprep.subr.mxu0 0.0
      %3280 = vmatpush1.msra.mxu0 0.0
      %3281 = vmatprep.subr.mxu0 0.0
      %3282 = vmatpush1.msra.mxu0 0.0
      %3283 = vmatprep.subr.mxu0 0.0
      %3284 = vmatpush1.msra.mxu0 0.0
      %3285 = vmatprep.subr.mxu0 0.0
      %3286 = vmatpush1.msra.mxu0 0.0
      %3287 = vmatprep.subr.mxu0 0.0
      %3288 = vmatpush1.msra.mxu0 0.0
      %3289 = vmatprep.subr.mxu0 0.0
      %3290 = vmatpush1.msra.mxu0 0.0
      %3291 = vmatprep.subr.mxu0 0.0
      %3292 = vmatpush1.msra.mxu0 0.0
      %3293 = vmatprep.subr.mxu0 0.0
      %3294 = vmatpush1.msra.mxu0 0.0
      %3295 = vmatprep.subr.mxu0 0.0
      %3296 = vmatpush1.msra.mxu0 0.0
      %3297 = vmatprep.subr.mxu0 0.0
      %3298 = vmatpush1.msra.mxu0 0.0
      %3299 = vmatprep.subr.mxu0 0.0
      %3300 = vmatpush1.msra.mxu0 0.0
      %3301 = vmatprep.subr.mxu0 0.0
      %3302 = vmatpush1.msra.mxu0 0.0
      %3303 = vmatprep.subr.mxu0 0.0
      %3304 = vmatpush1.msra.mxu0 0.0
      %3305 = vmatprep.subr.mxu0 0.0
      %3306 = vmatpush1.msra.mxu0 0.0
      %3307 = vmatprep.subr.mxu0 0.0
      %3308 = vmatpush1.msra.mxu0 0.0
      %3309 = vmatprep.subr.mxu0 0.0
      %3310 = vmatpush1.msra.mxu0 0.0
      %3311 = vmatprep.subr.mxu0 0.0
      %3312 = vmatpush1.msra.mxu0 0.0
      %3313 = vmatprep.subr.mxu0 0.0
      %3314 = vmatpush1.msra.mxu0 0.0
      %3315 = vmatprep.subr.mxu0 0.0
      %3316 = vmatpush1.msra.mxu0 0.0
      %3317 = vmatprep.subr.mxu0 0.0
      %3318 = vmatpush1.msra.mxu0 0.0
      %3319 = vmatprep.subr.mxu0 0.0
      %3320 = vmatpush1.msra.mxu0 0.0
      %3321 = vmatprep.subr.mxu0 0.0
      %3322 = vmatpush1.msra.mxu0 0.0
      %3323 = vmatprep.subr.mxu0 0.0
      %3324 = vmatpush1.msra.mxu0 0.0
      %3325 = vmatprep.subr.mxu0 0.0
      %3326 = vmatpush1.msra.mxu0 0.0
      %3327 = vmatprep.subr.mxu0 0.0
      %3328 = vmatpush1.msra.mxu0 0.0
      %3329 = vmatprep.mubr.f32.mxu0 0.0
      %3330 = vmatmul.mubr.f32.gmra.mrb[0].mxu0 %v3254
      %v3331 = vpop.f32.mrb[0].mxu0
      %v3332 = vadd.f32 0.0, %v3331
      %v3333 = vpop.f32.mrb[0].mxu0
      %3334 = vmatprep.mubr.f32.mxu0 0.0
      %3335 = vmatmul.mubr.f32.gmra.mrb[0].mxu0 %v3257
      %v3336 = vpop.f32.mrb[0].mxu0
      %v3337 = vadd.f32 0.0, %v3336
      %v3338 = vpop.f32.mrb[0].mxu0
      %3339 = vmatprep.mubr.f32.mxu0 0.0
      %3340 = vmatmul.mubr.f32.gmra.mrb[0].mxu0 %v3260
      %v3341 = vpop.f32.mrb[0].mxu0
      %v3342 = vadd.f32 0.0, %v3341
      %v3343 = vpop.f32.mrb[0].mxu0
      %3344 = vmatprep.mubr.f32.mxu0 0.0
      %3345 = vmatmul.mubr.f32.gmra.mrb[0].mxu0 %v3263
      %v3346 = vpop.f32.mrb[0].mxu0
      %v3347 = vadd.f32 0.0, %v3346
      %v3348 = vpop.f32.mrb[0].mxu0
      %3349 = vdwg.mxu0
      %v3351 = vsel %vm277, %v2621, 0
      %v3354 = vsel %vm277, %v2626, 0
      %v3357 = vsel %vm277, %v2631, 0
      %v3360 = vsel %vm277, %v2636, 0
      %3362 = vmatprep.subr.mxu0 0.0
      %3363 = vmatpush1.msra.mxu0 %v1957
      %3364 = vmatprep.subr.mxu0 0.0
      %3365 = vmatpush1.msra.mxu0 %v1958
      %3366 = vmatprep.subr.mxu0 0.0
      %3367 = vmatpush1.msra.mxu0 0.0
      %3368 = vmatprep.subr.mxu0 0.0
      %3369 = vmatpush1.msra.mxu0 0.0
      %3370 = vmatprep.subr.mxu0 0.0
      %3371 = vmatpush1.msra.mxu0 0.0
      %3372 = vmatprep.subr.mxu0 0.0
      %3373 = vmatpush1.msra.mxu0 0.0
      %3374 = vmatprep.subr.mxu0 0.0
      %3375 = vmatpush1.msra.mxu0 0.0
      %3376 = vmatprep.subr.mxu0 0.0
      %3377 = vmatpush1.msra.mxu0 0.0
      %3378 = vmatprep.subr.mxu0 0.0
      %3379 = vmatpush1.msra.mxu0 0.0
      %3380 = vmatprep.subr.mxu0 0.0
      %3381 = vmatpush1.msra.mxu0 0.0
      %3382 = vmatprep.subr.mxu0 0.0
      %3383 = vmatpush1.msra.mxu0 0.0
      %3384 = vmatprep.subr.mxu0 0.0
      %3385 = vmatpush1.msra.mxu0 0.0
      %3386 = vmatprep.subr.mxu0 0.0
      %3387 = vmatpush1.msra.mxu0 0.0
      %3388 = vmatprep.subr.mxu0 0.0
      %3389 = vmatpush1.msra.mxu0 0.0
      %3390 = vmatprep.subr.mxu0 0.0
      %3391 = vmatpush1.msra.mxu0 0.0
      %3392 = vmatprep.subr.mxu0 0.0
      %3393 = vmatpush1.msra.mxu0 0.0
      %3394 = vmatprep.subr.mxu0 0.0
      %3395 = vmatpush1.msra.mxu0 0.0
      %3396 = vmatprep.subr.mxu0 0.0
      %3397 = vmatpush1.msra.mxu0 0.0
      %3398 = vmatprep.subr.mxu0 0.0
      %3399 = vmatpush1.msra.mxu0 0.0
      %3400 = vmatprep.subr.mxu0 0.0
      %3401 = vmatpush1.msra.mxu0 0.0
      %3402 = vmatprep.subr.mxu0 0.0
      %3403 = vmatpush1.msra.mxu0 0.0
      %3404 = vmatprep.subr.mxu0 0.0
      %3405 = vmatpush1.msra.mxu0 0.0
      %3406 = vmatprep.subr.mxu0 0.0
      %3407 = vmatpush1.msra.mxu0 0.0
      %3408 = vmatprep.subr.mxu0 0.0
      %3409 = vmatpush1.msra.mxu0 0.0
      %3410 = vmatprep.subr.mxu0 0.0
      %3411 = vmatpush1.msra.mxu0 0.0
      %3412 = vmatprep.subr.mxu0 0.0
      %3413 = vmatpush1.msra.mxu0 0.0
      %3414 = vmatprep.subr.mxu0 0.0
      %3415 = vmatpush1.msra.mxu0 0.0
      %3416 = vmatprep.subr.mxu0 0.0
      %3417 = vmatpush1.msra.mxu0 0.0
      %3418 = vmatprep.subr.mxu0 0.0
      %3419 = vmatpush1.msra.mxu0 0.0
      %3420 = vmatprep.subr.mxu0 0.0
      %3421 = vmatpush1.msra.mxu0 0.0
      %3422 = vmatprep.subr.mxu0 0.0
      %3423 = vmatpush1.msra.mxu0 0.0
      %3424 = vmatprep.subr.mxu0 0.0
      %3425 = vmatpush1.msra.mxu0 0.0
      %3426 = vmatprep.mubr.f32.mxu0 0.0
      %3427 = vmatmul.mubr.f32.gmra.mrb[0].mxu0 %v3351
      %v3428 = vpop.f32.mrb[0].mxu0
      %v3429 = vadd.f32 0.0, %v3428
      %v3430 = vpop.f32.mrb[0].mxu0
      %3431 = vmatprep.mubr.f32.mxu0 0.0
      %3432 = vmatmul.mubr.f32.gmra.mrb[0].mxu0 %v3354
      %v3433 = vpop.f32.mrb[0].mxu0
      %v3434 = vadd.f32 0.0, %v3433
      %v3435 = vpop.f32.mrb[0].mxu0
      %3436 = vmatprep.mubr.f32.mxu0 0.0
      %3437 = vmatmul.mubr.f32.gmra.mrb[0].mxu0 %v3357
      %v3438 = vpop.f32.mrb[0].mxu0
      %v3439 = vadd.f32 0.0, %v3438
      %v3440 = vpop.f32.mrb[0].mxu0
      %3441 = vmatprep.mubr.f32.mxu0 0.0
      %3442 = vmatmul.mubr.f32.gmra.mrb[0].mxu0 %v3360
      %v3443 = vpop.f32.mrb[0].mxu0
      %v3444 = vadd.f32 0.0, %v3443
      %v3445 = vpop.f32.mrb[0].mxu0
      %3446 = vdwg.mxu0
      %3447 = vst.msk [vmem:[#allocation2 + $0x80] sm:$0xff] %vm277, %v2750
      %3448 = vst.msk [vmem:[#allocation2 + $0x88] sm:$0xff] %vm277, %v2755
      %3449 = vst.msk [vmem:[#allocation2 + $0x90] sm:$0xff] %vm277, %v2760
      %3450 = vst.msk [vmem:[#allocation2 + $0x98] sm:$0xff] %vm277, %v2765
      %3451 = vst.msk [vmem:[#allocation2 + $0x160] sm:$0xff] %vm277, %v2847
      %3452 = vst.msk [vmem:[#allocation2 + $0x168] sm:$0xff] %vm277, %v2852
      %3453 = vst.msk [vmem:[#allocation2 + $0x170] sm:$0xff] %vm277, %v2857
      %3454 = vst.msk [vmem:[#allocation2 + $0x178] sm:$0xff] %vm277, %v2862
      %3455 = vst.msk [vmem:[#allocation2 + $0x240] sm:$0xff] %vm277, %v2944
      %3456 = vst.msk [vmem:[#allocation2 + $0x248] sm:$0xff] %vm277, %v2949
      %3457 = vst.msk [vmem:[#allocation2 + $0x250] sm:$0xff] %vm277, %v2954
      %3458 = vst.msk [vmem:[#allocation2 + $0x258] sm:$0xff] %vm277, %v2959
      %3459 = vst.msk [vmem:[#allocation2 + $0x320] sm:$0xff] %vm277, %v3041
      %3460 = vst.msk [vmem:[#allocation2 + $0x328] sm:$0xff] %vm277, %v3046
      %3461 = vst.msk [vmem:[#allocation2 + $0x330] sm:$0xff] %vm277, %v3051
      %3462 = vst.msk [vmem:[#allocation2 + $0x338] sm:$0xff] %vm277, %v3056
      %3463 = vst.msk [vmem:[#allocation2 + $0x400] sm:$0xff] %vm277, %v3138
      %3464 = vst.msk [vmem:[#allocation2 + $0x408] sm:$0xff] %vm277, %v3143
      %3465 = vst.msk [vmem:[#allocation2 + $0x410] sm:$0xff] %vm277, %v3148
      %3466 = vst.msk [vmem:[#allocation2 + $0x418] sm:$0xff] %vm277, %v3153
      %3467 = vst.msk [vmem:[#allocation2 + $0x4e0] sm:$0xff] %vm277, %v3235
      %3468 = vst.msk [vmem:[#allocation2 + $0x4e8] sm:$0xff] %vm277, %v3240
      %3469 = vst.msk [vmem:[#allocation2 + $0x4f0] sm:$0xff] %vm277, %v3245
      %3470 = vst.msk [vmem:[#allocation2 + $0x4f8] sm:$0xff] %vm277, %v3250
      %3471 = vst.msk [vmem:[#allocation2 + $0x5c0] sm:$0xff] %vm277, %v3332
      %3472 = vst.msk [vmem:[#allocation2 + $0x5c8] sm:$0xff] %vm277, %v3337
      %3473 = vst.msk [vmem:[#allocation2 + $0x5d0] sm:$0xff] %vm277, %v3342
      %3474 = vst.msk [vmem:[#allocation2 + $0x5d8] sm:$0xff] %vm277, %v3347
      %3475 = vst.msk [vmem:[#allocation2 + $0x6a0] sm:$0xff] %vm277, %v3429
      %3476 = vst.msk [vmem:[#allocation2 + $0x6a8] sm:$0xff] %vm277, %v3434
      %3477 = vst.msk [vmem:[#allocation2 + $0x6b0] sm:$0xff] %vm277, %v3439
      %3478 = vst.msk [vmem:[#allocation2 + $0x6b8] sm:$0xff] %vm277, %v3444
      %v3479 = vld [vmem:[%s2] sm:$0xff]
      %v3480 = vld [vmem:[%s2 + $0x8] sm:$0xff]
      %3481 = vmatprep.subr.mxu0 0.0
      %3482 = vmatpush1.msra.mxu0 %v3479
      %3483 = vmatprep.subr.mxu0 0.0
      %3484 = vmatpush1.msra.mxu0 %v3480
      %3485 = vmatprep.subr.mxu0 0.0
      %3486 = vmatpush1.msra.mxu0 0.0
      %3487 = vmatprep.subr.mxu0 0.0
      %3488 = vmatpush1.msra.mxu0 0.0
      %3489 = vmatprep.subr.mxu0 0.0
      %3490 = vmatpush1.msra.mxu0 0.0
      %3491 = vmatprep.subr.mxu0 0.0
      %3492 = vmatpush1.msra.mxu0 0.0
      %3493 = vmatprep.subr.mxu0 0.0
      %3494 = vmatpush1.msra.mxu0 0.0
      %3495 = vmatprep.subr.mxu0 0.0
      %3496 = vmatpush1.msra.mxu0 0.0
      %3497 = vmatprep.subr.mxu0 0.0
      %3498 = vmatpush1.msra.mxu0 0.0
      %3499 = vmatprep.subr.mxu0 0.0
      %3500 = vmatpush1.msra.mxu0 0.0
      %3501 = vmatprep.subr.mxu0 0.0
      %3502 = vmatpush1.msra.mxu0 0.0
      %3503 = vmatprep.subr.mxu0 0.0
      %3504 = vmatpush1.msra.mxu0 0.0
      %3505 = vmatprep.subr.mxu0 0.0
      %3506 = vmatpush1.msra.mxu0 0.0
      %3507 = vmatprep.subr.mxu0 0.0
      %3508 = vmatpush1.msra.mxu0 0.0
      %3509 = vmatprep.subr.mxu0 0.0
      %3510 = vmatpush1.msra.mxu0 0.0
      %3511 = vmatprep.subr.mxu0 0.0
      %3512 = vmatpush1.msra.mxu0 0.0
      %3513 = vmatprep.subr.mxu0 0.0
      %3514 = vmatpush1.msra.mxu0 0.0
      %3515 = vmatprep.subr.mxu0 0.0
      %3516 = vmatpush1.msra.mxu0 0.0
      %3517 = vmatprep.subr.mxu0 0.0
      %3518 = vmatpush1.msra.mxu0 0.0
      %3519 = vmatprep.subr.mxu0 0.0
      %3520 = vmatpush1.msra.mxu0 0.0
      %3521 = vmatprep.subr.mxu0 0.0
      %3522 = vmatpush1.msra.mxu0 0.0
      %3523 = vmatprep.subr.mxu0 0.0
      %3524 = vmatpush1.msra.mxu0 0.0
      %3525 = vmatprep.subr.mxu0 0.0
      %3526 = vmatpush1.msra.mxu0 0.0
      %3527 = vmatprep.subr.mxu0 0.0
      %3528 = vmatpush1.msra.mxu0 0.0
      %3529 = vmatprep.subr.mxu0 0.0
      %3530 = vmatpush1.msra.mxu0 0.0
      %3531 = vmatprep.subr.mxu0 0.0
      %3532 = vmatpush1.msra.mxu0 0.0
      %3533 = vmatprep.subr.mxu0 0.0
      %3534 = vmatpush1.msra.mxu0 0.0
      %3535 = vmatprep.subr.mxu0 0.0
      %3536 = vmatpush1.msra.mxu0 0.0
      %3537 = vmatprep.subr.mxu0 0.0
      %3538 = vmatpush1.msra.mxu0 0.0
      %3539 = vmatprep.subr.mxu0 0.0
      %3540 = vmatpush1.msra.mxu0 0.0
      %3541 = vmatprep.subr.mxu0 0.0
      %3542 = vmatpush1.msra.mxu0 0.0
      %3543 = vmatprep.subr.mxu0 0.0
      %3544 = vmatpush1.msra.mxu0 0.0
      %3545 = vmatprep.mubr.f32.mxu0 0.0
      %3546 = vmatmul.mubr.f32.gmra.mrb[0].mxu0 %v327
      %v3547 = vpop.f32.mrb[0].mxu0
      %v3548 = vadd.f32 0.0, %v3547
      %v3549 = vpop.f32.mrb[0].mxu0
      %3550 = vmatprep.mubr.f32.mxu0 0.0
      %3551 = vmatmul.mubr.f32.gmra.mrb[0].mxu0 %v330
      %v3552 = vpop.f32.mrb[0].mxu0
      %v3553 = vadd.f32 0.0, %v3552
      %v3554 = vpop.f32.mrb[0].mxu0
      %3555 = vmatprep.mubr.f32.mxu0 0.0
      %3556 = vmatmul.mubr.f32.gmra.mrb[0].mxu0 %v333
      %v3557 = vpop.f32.mrb[0].mxu0
      %v3558 = vadd.f32 0.0, %v3557
      %v3559 = vpop.f32.mrb[0].mxu0
      %3560 = vmatprep.mubr.f32.mxu0 0.0
      %3561 = vmatmul.mubr.f32.gmra.mrb[0].mxu0 %v336
      %v3562 = vpop.f32.mrb[0].mxu0
      %v3563 = vadd.f32 0.0, %v3562
      %v3564 = vpop.f32.mrb[0].mxu0
      %3565 = vmatprep.mubr.f32.mxu0 0.0
      %3566 = vmatmul.mubr.f32.gmra.mrb[0].mxu0 %v424
      %v3567 = vpop.f32.mrb[0].mxu0
      %v3568 = vadd.f32 0.0, %v3567
      %v3569 = vpop.f32.mrb[0].mxu0
      %3570 = vmatprep.mubr.f32.mxu0 0.0
      %3571 = vmatmul.mubr.f32.gmra.mrb[0].mxu0 %v427
      %v3572 = vpop.f32.mrb[0].mxu0
      %v3573 = vadd.f32 0.0, %v3572
      %v3574 = vpop.f32.mrb[0].mxu0
      %3575 = vmatprep.mubr.f32.mxu0 0.0
      %3576 = vmatmul.mubr.f32.gmra.mrb[0].mxu0 %v430
      %v3577 = vpop.f32.mrb[0].mxu0
      %v3578 = vadd.f32 0.0, %v3577
      %v3579 = vpop.f32.mrb[0].mxu0
      %3580 = vmatprep.mubr.f32.mxu0 0.0
      %3581 = vmatmul.mubr.f32.gmra.mrb[0].mxu0 %v433
      %v3582 = vpop.f32.mrb[0].mxu0
      %v3583 = vadd.f32 0.0, %v3582
      %v3584 = vpop.f32.mrb[0].mxu0
      %3585 = vmatprep.mubr.f32.mxu0 0.0
      %3586 = vmatmul.mubr.f32.gmra.mrb[0].mxu0 %v521
      %v3587 = vpop.f32.mrb[0].mxu0
      %v3588 = vadd.f32 0.0, %v3587
      %v3589 = vpop.f32.mrb[0].mxu0
      %3590 = vmatprep.mubr.f32.mxu0 0.0
      %3591 = vmatmul.mubr.f32.gmra.mrb[0].mxu0 %v524
      %v3592 = vpop.f32.mrb[0].mxu0
      %v3593 = vadd.f32 0.0, %v3592
      %v3594 = vpop.f32.mrb[0].mxu0
      %3595 = vmatprep.mubr.f32.mxu0 0.0
      %3596 = vmatmul.mubr.f32.gmra.mrb[0].mxu0 %v527
      %v3597 = vpop.f32.mrb[0].mxu0
      %v3598 = vadd.f32 0.0, %v3597
      %v3599 = vpop.f32.mrb[0].mxu0
      %3600 = vmatprep.mubr.f32.mxu0 0.0
      %3601 = vmatmul.mubr.f32.gmra.mrb[0].mxu0 %v530
      %v3602 = vpop.f32.mrb[0].mxu0
      %v3603 = vadd.f32 0.0, %v3602
      %v3604 = vpop.f32.mrb[0].mxu0
      %3605 = vmatprep.mubr.f32.mxu0 0.0
      %3606 = vmatmul.mubr.f32.gmra.mrb[0].mxu0 %v618
      %v3607 = vpop.f32.mrb[0].mxu0
      %v3608 = vadd.f32 0.0, %v3607
      %v3609 = vpop.f32.mrb[0].mxu0
      %3610 = vmatprep.mubr.f32.mxu0 0.0
      %3611 = vmatmul.mubr.f32.gmra.mrb[0].mxu0 %v621
      %v3612 = vpop.f32.mrb[0].mxu0
      %v3613 = vadd.f32 0.0, %v3612
      %v3614 = vpop.f32.mrb[0].mxu0
      %3615 = vmatprep.mubr.f32.mxu0 0.0
      %3616 = vmatmul.mubr.f32.gmra.mrb[0].mxu0 %v624
      %v3617 = vpop.f32.mrb[0].mxu0
      %v3618 = vadd.f32 0.0, %v3617
      %v3619 = vpop.f32.mrb[0].mxu0
      %3620 = vmatprep.mubr.f32.mxu0 0.0
      %3621 = vmatmul.mubr.f32.gmra.mrb[0].mxu0 %v627
      %v3622 = vpop.f32.mrb[0].mxu0
      %v3623 = vadd.f32 0.0, %v3622
      %v3624 = vpop.f32.mrb[0].mxu0
      %3625 = vmatprep.mubr.f32.mxu0 0.0
      %3626 = vmatmul.mubr.f32.gmra.mrb[0].mxu0 %v715
      %v3627 = vpop.f32.mrb[0].mxu0
      %v3628 = vadd.f32 0.0, %v3627
      %v3629 = vpop.f32.mrb[0].mxu0
      %3630 = vmatprep.mubr.f32.mxu0 0.0
      %3631 = vmatmul.mubr.f32.gmra.mrb[0].mxu0 %v718
      %v3632 = vpop.f32.mrb[0].mxu0
      %v3633 = vadd.f32 0.0, %v3632
      %v3634 = vpop.f32.mrb[0].mxu0
      %3635 = vmatprep.mubr.f32.mxu0 0.0
      %3636 = vmatmul.mubr.f32.gmra.mrb[0].mxu0 %v721
      %v3637 = vpop.f32.mrb[0].mxu0
      %v3638 = vadd.f32 0.0, %v3637
      %v3639 = vpop.f32.mrb[0].mxu0
      %3640 = vmatprep.mubr.f32.mxu0 0.0
      %3641 = vmatmul.mubr.f32.gmra.mrb[0].mxu0 %v724
      %v3642 = vpop.f32.mrb[0].mxu0
      %v3643 = vadd.f32 0.0, %v3642
      %v3644 = vpop.f32.mrb[0].mxu0
      %3645 = vmatprep.mubr.f32.mxu0 0.0
      %3646 = vmatmul.mubr.f32.gmra.mrb[0].mxu0 %v812
      %v3647 = vpop.f32.mrb[0].mxu0
      %v3648 = vadd.f32 0.0, %v3647
      %v3649 = vpop.f32.mrb[0].mxu0
      %3650 = vmatprep.mubr.f32.mxu0 0.0
      %3651 = vmatmul.mubr.f32.gmra.mrb[0].mxu0 %v815
      %v3652 = vpop.f32.mrb[0].mxu0
      %v3653 = vadd.f32 0.0, %v3652
      %v3654 = vpop.f32.mrb[0].mxu0
      %3655 = vmatprep.mubr.f32.mxu0 0.0
      %3656 = vmatmul.mubr.f32.gmra.mrb[0].mxu0 %v818
      %v3657 = vpop.f32.mrb[0].mxu0
      %v3658 = vadd.f32 0.0, %v3657
      %v3659 = vpop.f32.mrb[0].mxu0
      %3660 = vmatprep.mubr.f32.mxu0 0.0
      %3661 = vmatmul.mubr.f32.gmra.mrb[0].mxu0 %v821
      %v3662 = vpop.f32.mrb[0].mxu0
      %v3663 = vadd.f32 0.0, %v3662
      %v3664 = vpop.f32.mrb[0].mxu0
      %3665 = vmatprep.mubr.f32.mxu0 0.0
      %3666 = vmatmul.mubr.f32.gmra.mrb[0].mxu0 %v909
      %v3667 = vpop.f32.mrb[0].mxu0
      %v3668 = vadd.f32 0.0, %v3667
      %v3669 = vpop.f32.mrb[0].mxu0
      %3670 = vmatprep.mubr.f32.mxu0 0.0
      %3671 = vmatmul.mubr.f32.gmra.mrb[0].mxu0 %v912
      %v3672 = vpop.f32.mrb[0].mxu0
      %v3673 = vadd.f32 0.0, %v3672
      %v3674 = vpop.f32.mrb[0].mxu0
      %3675 = vmatprep.mubr.f32.mxu0 0.0
      %3676 = vmatmul.mubr.f32.gmra.mrb[0].mxu0 %v915
      %v3677 = vpop.f32.mrb[0].mxu0
      %v3678 = vadd.f32 0.0, %v3677
      %v3679 = vpop.f32.mrb[0].mxu0
      %3680 = vmatprep.mubr.f32.mxu0 0.0
      %3681 = vmatmul.mubr.f32.gmra.mrb[0].mxu0 %v918
      %v3682 = vpop.f32.mrb[0].mxu0
      %v3683 = vadd.f32 0.0, %v3682
      %v3684 = vpop.f32.mrb[0].mxu0
      %3685 = vmatprep.mubr.f32.mxu0 0.0
      %3686 = vmatmul.mubr.f32.gmra.mrb[0].mxu0 %v1006
      %v3687 = vpop.f32.mrb[0].mxu0
      %v3688 = vadd.f32 0.0, %v3687
      %v3689 = vpop.f32.mrb[0].mxu0
      %3690 = vmatprep.mubr.f32.mxu0 0.0
      %3691 = vmatmul.mubr.f32.gmra.mrb[0].mxu0 %v1009
      %v3692 = vpop.f32.mrb[0].mxu0
      %v3693 = vadd.f32 0.0, %v3692
      %v3694 = vpop.f32.mrb[0].mxu0
      %3695 = vmatprep.mubr.f32.mxu0 0.0
      %3696 = vmatmul.mubr.f32.gmra.mrb[0].mxu0 %v1012
      %v3697 = vpop.f32.mrb[0].mxu0
      %v3698 = vadd.f32 0.0, %v3697
      %v3699 = vpop.f32.mrb[0].mxu0
      %3700 = vmatprep.mubr.f32.mxu0 0.0
      %3701 = vmatmul.mubr.f32.gmra.mrb[0].mxu0 %v1015
      %v3702 = vpop.f32.mrb[0].mxu0
      %v3703 = vadd.f32 0.0, %v3702
      %v3704 = vpop.f32.mrb[0].mxu0
      %3705 = vdwg.mxu0
      %3706 = vst.msk [vmem:[#allocation2 + $0xa0] sm:$0xff] %vm277, %v3548
      %3707 = vst.msk [vmem:[#allocation2 + $0xa8] sm:$0xff] %vm277, %v3553
      %3708 = vst.msk [vmem:[#allocation2 + $0xb0] sm:$0xff] %vm277, %v3558
      %3709 = vst.msk [vmem:[#allocation2 + $0xb8] sm:$0xff] %vm277, %v3563
      %3710 = vst.msk [vmem:[#allocation2 + $0x180] sm:$0xff] %vm277, %v3568
      %3711 = vst.msk [vmem:[#allocation2 + $0x188] sm:$0xff] %vm277, %v3573
      %3712 = vst.msk [vmem:[#allocation2 + $0x190] sm:$0xff] %vm277, %v3578
      %3713 = vst.msk [vmem:[#allocation2 + $0x198] sm:$0xff] %vm277, %v3583
      %3714 = vst.msk [vmem:[#allocation2 + $0x260] sm:$0xff] %vm277, %v3588
      %3715 = vst.msk [vmem:[#allocation2 + $0x268] sm:$0xff] %vm277, %v3593
      %3716 = vst.msk [vmem:[#allocation2 + $0x270] sm:$0xff] %vm277, %v3598
      %3717 = vst.msk [vmem:[#allocation2 + $0x278] sm:$0xff] %vm277, %v3603
      %3718 = vst.msk [vmem:[#allocation2 + $0x340] sm:$0xff] %vm277, %v3608
      %3719 = vst.msk [vmem:[#allocation2 + $0x348] sm:$0xff] %vm277, %v3613
      %3720 = vst.msk [vmem:[#allocation2 + $0x350] sm:$0xff] %vm277, %v3618
      %3721 = vst.msk [vmem:[#allocation2 + $0x358] sm:$0xff] %vm277, %v3623
      %3722 = vst.msk [vmem:[#allocation2 + $0x420] sm:$0xff] %vm277, %v3628
      %3723 = vst.msk [vmem:[#allocation2 + $0x428] sm:$0xff] %vm277, %v3633
      %3724 = vst.msk [vmem:[#allocation2 + $0x430] sm:$0xff] %vm277, %v3638
      %3725 = vst.msk [vmem:[#allocation2 + $0x438] sm:$0xff] %vm277, %v3643
      %3726 = vst.msk [vmem:[#allocation2 + $0x500] sm:$0xff] %vm277, %v3648
      %3727 = vst.msk [vmem:[#allocation2 + $0x508] sm:$0xff] %vm277, %v3653
      %3728 = vst.msk [vmem:[#allocation2 + $0x510] sm:$0xff] %vm277, %v3658
      %3729 = vst.msk [vmem:[#allocation2 + $0x518] sm:$0xff] %vm277, %v3663
      %3730 = vst.msk [vmem:[#allocation2 + $0x5e0] sm:$0xff] %vm277, %v3668
      %3731 = vst.msk [vmem:[#allocation2 + $0x5e8] sm:$0xff] %vm277, %v3673
      %3732 = vst.msk [vmem:[#allocation2 + $0x5f0] sm:$0xff] %vm277, %v3678
      %3733 = vst.msk [vmem:[#allocation2 + $0x5f8] sm:$0xff] %vm277, %v3683
      %3734 = vst.msk [vmem:[#allocation2 + $0x6c0] sm:$0xff] %vm277, %v3688
      %3735 = vst.msk [vmem:[#allocation2 + $0x6c8] sm:$0xff] %vm277, %v3693
      %3736 = vst.msk [vmem:[#allocation2 + $0x6d0] sm:$0xff] %vm277, %v3698
      %3737 = vst.msk [vmem:[#allocation2 + $0x6d8] sm:$0xff] %vm277, %v3703
      %v3739 = vsel %vm277, %v3548, 0
      %v3742 = vsel %vm277, %v3553, 0
      %v3745 = vsel %vm277, %v3558, 0
      %v3748 = vsel %vm277, %v3563, 0
      %v3751 = vsel %vm277, %v3568, 0
      %v3754 = vsel %vm277, %v3573, 0
      %v3757 = vsel %vm277, %v3578, 0
      %v3760 = vsel %vm277, %v3583, 0
      %v3763 = vsel %vm277, %v3588, 0
      %v3766 = vsel %vm277, %v3593, 0
      %v3769 = vsel %vm277, %v3598, 0
      %v3772 = vsel %vm277, %v3603, 0
      %v3775 = vsel %vm277, %v3608, 0
      %v3778 = vsel %vm277, %v3613, 0
      %v3781 = vsel %vm277, %v3618, 0
      %v3784 = vsel %vm277, %v3623, 0
      %v3787 = vsel %vm277, %v3628, 0
      %v3790 = vsel %vm277, %v3633, 0
      %v3793 = vsel %vm277, %v3638, 0
      %v3796 = vsel %vm277, %v3643, 0
      %v3799 = vsel %vm277, %v3648, 0
      %v3802 = vsel %vm277, %v3653, 0
      %v3805 = vsel %vm277, %v3658, 0
      %v3808 = vsel %vm277, %v3663, 0
      %v3811 = vsel %vm277, %v3668, 0
      %v3814 = vsel %vm277, %v3673, 0
      %v3817 = vsel %vm277, %v3678, 0
      %v3820 = vsel %vm277, %v3683, 0
      %v3823 = vsel %vm277, %v3688, 0
      %v3826 = vsel %vm277, %v3693, 0
      %v3829 = vsel %vm277, %v3698, 0
      %v3832 = vsel %vm277, %v3703, 0
      %3834 = vmatprep.subr.mxu0 0.0
      %3835 = vmatpush1.msra.mxu0 %v3479
      %3836 = vmatprep.subr.mxu0 0.0
      %3837 = vmatpush1.msra.mxu0 %v3480
      %3838 = vmatprep.subr.mxu0 0.0
      %3839 = vmatpush1.msra.mxu0 0.0
      %3840 = vmatprep.subr.mxu0 0.0
      %3841 = vmatpush1.msra.mxu0 0.0
      %3842 = vmatprep.subr.mxu0 0.0
      %3843 = vmatpush1.msra.mxu0 0.0
      %3844 = vmatprep.subr.mxu0 0.0
      %3845 = vmatpush1.msra.mxu0 0.0
      %3846 = vmatprep.subr.mxu0 0.0
      %3847 = vmatpush1.msra.mxu0 0.0
      %3848 = vmatprep.subr.mxu0 0.0
      %3849 = vmatpush1.msra.mxu0 0.0
      %3850 = vmatprep.subr.mxu0 0.0
      %3851 = vmatpush1.msra.mxu0 0.0
      %3852 = vmatprep.subr.mxu0 0.0
      %3853 = vmatpush1.msra.mxu0 0.0
      %3854 = vmatprep.subr.mxu0 0.0
      %3855 = vmatpush1.msra.mxu0 0.0
      %3856 = vmatprep.subr.mxu0 0.0
      %3857 = vmatpush1.msra.mxu0 0.0
      %3858 = vmatprep.subr.mxu0 0.0
      %3859 = vmatpush1.msra.mxu0 0.0
      %3860 = vmatprep.subr.mxu0 0.0
      %3861 = vmatpush1.msra.mxu0 0.0
      %3862 = vmatprep.subr.mxu0 0.0
      %3863 = vmatpush1.msra.mxu0 0.0
      %3864 = vmatprep.subr.mxu0 0.0
      %3865 = vmatpush1.msra.mxu0 0.0
      %3866 = vmatprep.subr.mxu0 0.0
      %3867 = vmatpush1.msra.mxu0 0.0
      %3868 = vmatprep.subr.mxu0 0.0
      %3869 = vmatpush1.msra.mxu0 0.0
      %3870 = vmatprep.subr.mxu0 0.0
      %3871 = vmatpush1.msra.mxu0 0.0
      %3872 = vmatprep.subr.mxu0 0.0
      %3873 = vmatpush1.msra.mxu0 0.0
      %3874 = vmatprep.subr.mxu0 0.0
      %3875 = vmatpush1.msra.mxu0 0.0
      %3876 = vmatprep.subr.mxu0 0.0
      %3877 = vmatpush1.msra.mxu0 0.0
      %3878 = vmatprep.subr.mxu0 0.0
      %3879 = vmatpush1.msra.mxu0 0.0
      %3880 = vmatprep.subr.mxu0 0.0
      %3881 = vmatpush1.msra.mxu0 0.0
      %3882 = vmatprep.subr.mxu0 0.0
      %3883 = vmatpush1.msra.mxu0 0.0
      %3884 = vmatprep.subr.mxu0 0.0
      %3885 = vmatpush1.msra.mxu0 0.0
      %3886 = vmatprep.subr.mxu0 0.0
      %3887 = vmatpush1.msra.mxu0 0.0
      %3888 = vmatprep.subr.mxu0 0.0
      %3889 = vmatpush1.msra.mxu0 0.0
      %3890 = vmatprep.subr.mxu0 0.0
      %3891 = vmatpush1.msra.mxu0 0.0
      %3892 = vmatprep.subr.mxu0 0.0
      %3893 = vmatpush1.msra.mxu0 0.0
      %3894 = vmatprep.subr.mxu0 0.0
      %3895 = vmatpush1.msra.mxu0 0.0
      %3896 = vmatprep.subr.mxu0 0.0
      %3897 = vmatpush1.msra.mxu0 0.0
      %3898 = vmatprep.mubr.f32.mxu0 0.0
      %3899 = vmatmul.mubr.f32.gmra.mrb[0].mxu0 %v3739
      %v3900 = vpop.f32.mrb[0].mxu0
      %v3901 = vadd.f32 0.0, %v3900
      %v3902 = vpop.f32.mrb[0].mxu0
      %3903 = vmatprep.mubr.f32.mxu0 0.0
      %3904 = vmatmul.mubr.f32.gmra.mrb[0].mxu0 %v3742
      %v3905 = vpop.f32.mrb[0].mxu0
      %v3906 = vadd.f32 0.0, %v3905
      %v3907 = vpop.f32.mrb[0].mxu0
      %3908 = vmatprep.mubr.f32.mxu0 0.0
      %3909 = vmatmul.mubr.f32.gmra.mrb[0].mxu0 %v3745
      %v3910 = vpop.f32.mrb[0].mxu0
      %v3911 = vadd.f32 0.0, %v3910
      %v3912 = vpop.f32.mrb[0].mxu0
      %3913 = vmatprep.mubr.f32.mxu0 0.0
      %3914 = vmatmul.mubr.f32.gmra.mrb[0].mxu0 %v3748
      %v3915 = vpop.f32.mrb[0].mxu0
      %v3916 = vadd.f32 0.0, %v3915
      %v3917 = vpop.f32.mrb[0].mxu0
      %3918 = vmatprep.mubr.f32.mxu0 0.0
      %3919 = vmatmul.mubr.f32.gmra.mrb[0].mxu0 %v3751
      %v3920 = vpop.f32.mrb[0].mxu0
      %v3921 = vadd.f32 0.0, %v3920
      %v3922 = vpop.f32.mrb[0].mxu0
      %3923 = vmatprep.mubr.f32.mxu0 0.0
      %3924 = vmatmul.mubr.f32.gmra.mrb[0].mxu0 %v3754
      %v3925 = vpop.f32.mrb[0].mxu0
      %v3926 = vadd.f32 0.0, %v3925
      %v3927 = vpop.f32.mrb[0].mxu0
      %3928 = vmatprep.mubr.f32.mxu0 0.0
      %3929 = vmatmul.mubr.f32.gmra.mrb[0].mxu0 %v3757
      %v3930 = vpop.f32.mrb[0].mxu0
      %v3931 = vadd.f32 0.0, %v3930
      %v3932 = vpop.f32.mrb[0].mxu0
      %3933 = vmatprep.mubr.f32.mxu0 0.0
      %3934 = vmatmul.mubr.f32.gmra.mrb[0].mxu0 %v3760
      %v3935 = vpop.f32.mrb[0].mxu0
      %v3936 = vadd.f32 0.0, %v3935
      %v3937 = vpop.f32.mrb[0].mxu0
      %3938 = vmatprep.mubr.f32.mxu0 0.0
      %3939 = vmatmul.mubr.f32.gmra.mrb[0].mxu0 %v3763
      %v3940 = vpop.f32.mrb[0].mxu0
      %v3941 = vadd.f32 0.0, %v3940
      %v3942 = vpop.f32.mrb[0].mxu0
      %3943 = vmatprep.mubr.f32.mxu0 0.0
      %3944 = vmatmul.mubr.f32.gmra.mrb[0].mxu0 %v3766
      %v3945 = vpop.f32.mrb[0].mxu0
      %v3946 = vadd.f32 0.0, %v3945
      %v3947 = vpop.f32.mrb[0].mxu0
      %3948 = vmatprep.mubr.f32.mxu0 0.0
      %3949 = vmatmul.mubr.f32.gmra.mrb[0].mxu0 %v3769
      %v3950 = vpop.f32.mrb[0].mxu0
      %v3951 = vadd.f32 0.0, %v3950
      %v3952 = vpop.f32.mrb[0].mxu0
      %3953 = vmatprep.mubr.f32.mxu0 0.0
      %3954 = vmatmul.mubr.f32.gmra.mrb[0].mxu0 %v3772
      %v3955 = vpop.f32.mrb[0].mxu0
      %v3956 = vadd.f32 0.0, %v3955
      %v3957 = vpop.f32.mrb[0].mxu0
      %3958 = vmatprep.mubr.f32.mxu0 0.0
      %3959 = vmatmul.mubr.f32.gmra.mrb[0].mxu0 %v3775
      %v3960 = vpop.f32.mrb[0].mxu0
      %v3961 = vadd.f32 0.0, %v3960
      %v3962 = vpop.f32.mrb[0].mxu0
      %3963 = vmatprep.mubr.f32.mxu0 0.0
      %3964 = vmatmul.mubr.f32.gmra.mrb[0].mxu0 %v3778
      %v3965 = vpop.f32.mrb[0].mxu0
      %v3966 = vadd.f32 0.0, %v3965
      %v3967 = vpop.f32.mrb[0].mxu0
      %3968 = vmatprep.mubr.f32.mxu0 0.0
      %3969 = vmatmul.mubr.f32.gmra.mrb[0].mxu0 %v3781
      %v3970 = vpop.f32.mrb[0].mxu0
      %v3971 = vadd.f32 0.0, %v3970
      %v3972 = vpop.f32.mrb[0].mxu0
      %3973 = vmatprep.mubr.f32.mxu0 0.0
      %3974 = vmatmul.mubr.f32.gmra.mrb[0].mxu0 %v3784
      %v3975 = vpop.f32.mrb[0].mxu0
      %v3976 = vadd.f32 0.0, %v3975
      %v3977 = vpop.f32.mrb[0].mxu0
      %3978 = vmatprep.mubr.f32.mxu0 0.0
      %3979 = vmatmul.mubr.f32.gmra.mrb[0].mxu0 %v3787
      %v3980 = vpop.f32.mrb[0].mxu0
      %v3981 = vadd.f32 0.0, %v3980
      %v3982 = vpop.f32.mrb[0].mxu0
      %3983 = vmatprep.mubr.f32.mxu0 0.0
      %3984 = vmatmul.mubr.f32.gmra.mrb[0].mxu0 %v3790
      %v3985 = vpop.f32.mrb[0].mxu0
      %v3986 = vadd.f32 0.0, %v3985
      %v3987 = vpop.f32.mrb[0].mxu0
      %3988 = vmatprep.mubr.f32.mxu0 0.0
      %3989 = vmatmul.mubr.f32.gmra.mrb[0].mxu0 %v3793
      %v3990 = vpop.f32.mrb[0].mxu0
      %v3991 = vadd.f32 0.0, %v3990
      %v3992 = vpop.f32.mrb[0].mxu0
      %3993 = vmatprep.mubr.f32.mxu0 0.0
      %3994 = vmatmul.mubr.f32.gmra.mrb[0].mxu0 %v3796
      %v3995 = vpop.f32.mrb[0].mxu0
      %v3996 = vadd.f32 0.0, %v3995
      %v3997 = vpop.f32.mrb[0].mxu0
      %3998 = vmatprep.mubr.f32.mxu0 0.0
      %3999 = vmatmul.mubr.f32.gmra.mrb[0].mxu0 %v3799
      %v4000 = vpop.f32.mrb[0].mxu0
      %v4001 = vadd.f32 0.0, %v4000
      %v4002 = vpop.f32.mrb[0].mxu0
      %4003 = vmatprep.mubr.f32.mxu0 0.0
      %4004 = vmatmul.mubr.f32.gmra.mrb[0].mxu0 %v3802
      %v4005 = vpop.f32.mrb[0].mxu0
      %v4006 = vadd.f32 0.0, %v4005
      %v4007 = vpop.f32.mrb[0].mxu0
      %4008 = vmatprep.mubr.f32.mxu0 0.0
      %4009 = vmatmul.mubr.f32.gmra.mrb[0].mxu0 %v3805
      %v4010 = vpop.f32.mrb[0].mxu0
      %v4011 = vadd.f32 0.0, %v4010
      %v4012 = vpop.f32.mrb[0].mxu0
      %4013 = vmatprep.mubr.f32.mxu0 0.0
      %4014 = vmatmul.mubr.f32.gmra.mrb[0].mxu0 %v3808
      %v4015 = vpop.f32.mrb[0].mxu0
      %v4016 = vadd.f32 0.0, %v4015
      %v4017 = vpop.f32.mrb[0].mxu0
      %4018 = vmatprep.mubr.f32.mxu0 0.0
      %4019 = vmatmul.mubr.f32.gmra.mrb[0].mxu0 %v3811
      %v4020 = vpop.f32.mrb[0].mxu0
      %v4021 = vadd.f32 0.0, %v4020
      %v4022 = vpop.f32.mrb[0].mxu0
      %4023 = vmatprep.mubr.f32.mxu0 0.0
      %4024 = vmatmul.mubr.f32.gmra.mrb[0].mxu0 %v3814
      %v4025 = vpop.f32.mrb[0].mxu0
      %v4026 = vadd.f32 0.0, %v4025
      %v4027 = vpop.f32.mrb[0].mxu0
      %4028 = vmatprep.mubr.f32.mxu0 0.0
      %4029 = vmatmul.mubr.f32.gmra.mrb[0].mxu0 %v3817
      %v4030 = vpop.f32.mrb[0].mxu0
      %v4031 = vadd.f32 0.0, %v4030
      %v4032 = vpop.f32.mrb[0].mxu0
      %4033 = vmatprep.mubr.f32.mxu0 0.0
      %4034 = vmatmul.mubr.f32.gmra.mrb[0].mxu0 %v3820
      %v4035 = vpop.f32.mrb[0].mxu0
      %v4036 = vadd.f32 0.0, %v4035
      %v4037 = vpop.f32.mrb[0].mxu0
      %4038 = vmatprep.mubr.f32.mxu0 0.0
      %4039 = vmatmul.mubr.f32.gmra.mrb[0].mxu0 %v3823
      %v4040 = vpop.f32.mrb[0].mxu0
      %v4041 = vadd.f32 0.0, %v4040
      %v4042 = vpop.f32.mrb[0].mxu0
      %4043 = vmatprep.mubr.f32.mxu0 0.0
      %4044 = vmatmul.mubr.f32.gmra.mrb[0].mxu0 %v3826
      %v4045 = vpop.f32.mrb[0].mxu0
      %v4046 = vadd.f32 0.0, %v4045
      %v4047 = vpop.f32.mrb[0].mxu0
      %4048 = vmatprep.mubr.f32.mxu0 0.0
      %4049 = vmatmul.mubr.f32.gmra.mrb[0].mxu0 %v3829
      %v4050 = vpop.f32.mrb[0].mxu0
      %v4051 = vadd.f32 0.0, %v4050
      %v4052 = vpop.f32.mrb[0].mxu0
      %4053 = vmatprep.mubr.f32.mxu0 0.0
      %4054 = vmatmul.mubr.f32.gmra.mrb[0].mxu0 %v3832
      %v4055 = vpop.f32.mrb[0].mxu0
      %v4056 = vadd.f32 0.0, %v4055
      %v4057 = vpop.f32.mrb[0].mxu0
      %4058 = vdwg.mxu0
      %4059 = vst.msk [vmem:[#allocation2 + $0xc0] sm:$0xff] %vm277, %v3901
      %4060 = vst.msk [vmem:[#allocation2 + $0xc8] sm:$0xff] %vm277, %v3906
      %4061 = vst.msk [vmem:[#allocation2 + $0xd0] sm:$0xff] %vm277, %v3911
      %4062 = vst.msk [vmem:[#allocation2 + $0xd8] sm:$0xff] %vm277, %v3916
      %4063 = vst.msk [vmem:[#allocation2 + $0x1a0] sm:$0xff] %vm277, %v3921
      %4064 = vst.msk [vmem:[#allocation2 + $0x1a8] sm:$0xff] %vm277, %v3926
      %4065 = vst.msk [vmem:[#allocation2 + $0x1b0] sm:$0xff] %vm277, %v3931
      %4066 = vst.msk [vmem:[#allocation2 + $0x1b8] sm:$0xff] %vm277, %v3936
      %4067 = vst.msk [vmem:[#allocation2 + $0x280] sm:$0xff] %vm277, %v3941
      %4068 = vst.msk [vmem:[#allocation2 + $0x288] sm:$0xff] %vm277, %v3946
      %4069 = vst.msk [vmem:[#allocation2 + $0x290] sm:$0xff] %vm277, %v3951
      %4070 = vst.msk [vmem:[#allocation2 + $0x298] sm:$0xff] %vm277, %v3956
      %4071 = vst.msk [vmem:[#allocation2 + $0x360] sm:$0xff] %vm277, %v3961
      %4072 = vst.msk [vmem:[#allocation2 + $0x368] sm:$0xff] %vm277, %v3966
      %4073 = vst.msk [vmem:[#allocation2 + $0x370] sm:$0xff] %vm277, %v3971
      %4074 = vst.msk [vmem:[#allocation2 + $0x378] sm:$0xff] %vm277, %v3976
      %4075 = vst.msk [vmem:[#allocation2 + $0x440] sm:$0xff] %vm277, %v3981
      %4076 = vst.msk [vmem:[#allocation2 + $0x448] sm:$0xff] %vm277, %v3986
      %4077 = vst.msk [vmem:[#allocation2 + $0x450] sm:$0xff] %vm277, %v3991
      %4078 = vst.msk [vmem:[#allocation2 + $0x458] sm:$0xff] %vm277, %v3996
      %4079 = vst.msk [vmem:[#allocation2 + $0x520] sm:$0xff] %vm277, %v4001
      %4080 = vst.msk [vmem:[#allocation2 + $0x528] sm:$0xff] %vm277, %v4006
      %4081 = vst.msk [vmem:[#allocation2 + $0x530] sm:$0xff] %vm277, %v4011
      %4082 = vst.msk [vmem:[#allocation2 + $0x538] sm:$0xff] %vm277, %v4016
      %4083 = vst.msk [vmem:[#allocation2 + $0x600] sm:$0xff] %vm277, %v4021
      %4084 = vst.msk [vmem:[#allocation2 + $0x608] sm:$0xff] %vm277, %v4026
      %4085 = vst.msk [vmem:[#allocation2 + $0x610] sm:$0xff] %vm277, %v4031
      %4086 = vst.msk [vmem:[#allocation2 + $0x618] sm:$0xff] %vm277, %v4036
      %4087 = vst.msk [vmem:[#allocation2 + $0x6e0] sm:$0xff] %vm277, %v4041
      %4088 = vst.msk [vmem:[#allocation2 + $0x6e8] sm:$0xff] %vm277, %v4046
      %4089 = vst.msk [vmem:[#allocation2 + $0x6f0] sm:$0xff] %vm277, %v4051
      %4090 = vst.msk [vmem:[#allocation2 + $0x6f8] sm:$0xff] %vm277, %v4056
      %v4091 = vld [vmem:[%s3] sm:$0xff]
      %v4092 = vld [vmem:[%s3 + $0x8] sm:$0xff]
      %v4093 = vld [vmem:[%s3 + $0x10] sm:$0xff]
      %v4094 = vld [vmem:[%s3 + $0x18] sm:$0xff]
      %v4095 = vld [vmem:[%s3 + $0x20] sm:$0xff]
      %v4096 = vld [vmem:[%s3 + $0x28] sm:$0xff]
      %v4097 = vld [vmem:[%s3 + $0x30] sm:$0xff]
      %v4098 = vld [vmem:[%s3 + $0x38] sm:$0xff]
      %v4099 = vld [vmem:[#allocation2] sm:$0xff]
      %v4100 = vld [vmem:[#allocation2 + $0x8] sm:$0xff]
      %v4101 = vld [vmem:[#allocation2 + $0x10] sm:$0xff]
      %v4102 = vld [vmem:[#allocation2 + $0x18] sm:$0xff]
      %v4103 = vld [vmem:[#allocation2 + $0x20] sm:$0xff]
      %v4104 = vld [vmem:[#allocation2 + $0x28] sm:$0xff]
      %v4105 = vld [vmem:[#allocation2 + $0x30] sm:$0xff]
      %v4106 = vld [vmem:[#allocation2 + $0x38] sm:$0xff]
      %v4107 = vld [vmem:[#allocation2 + $0x40] sm:$0xff]
      %v4108 = vld [vmem:[#allocation2 + $0x48] sm:$0xff]
      %v4109 = vld [vmem:[#allocation2 + $0x50] sm:$0xff]
      %v4110 = vld [vmem:[#allocation2 + $0x58] sm:$0xff]
      %v4111 = vld [vmem:[#allocation2 + $0x60] sm:$0xff]
      %v4112 = vld [vmem:[#allocation2 + $0x68] sm:$0xff]
      %v4113 = vld [vmem:[#allocation2 + $0x70] sm:$0xff]
      %v4114 = vld [vmem:[#allocation2 + $0x78] sm:$0xff]
      %v4115 = vld [vmem:[#allocation2 + $0x80] sm:$0xff]
      %v4116 = vld [vmem:[#allocation2 + $0x88] sm:$0xff]
      %v4117 = vld [vmem:[#allocation2 + $0x90] sm:$0xff]
      %v4118 = vld [vmem:[#allocation2 + $0x98] sm:$0xff]
      %v4119 = vld [vmem:[#allocation2 + $0xa0] sm:$0xff]
      %v4120 = vld [vmem:[#allocation2 + $0xa8] sm:$0xff]
      %v4121 = vld [vmem:[#allocation2 + $0xb0] sm:$0xff]
      %v4122 = vld [vmem:[#allocation2 + $0xb8] sm:$0xff]
      %v4123 = vld [vmem:[#allocation2 + $0xc0] sm:$0xff]
      %v4124 = vld [vmem:[#allocation2 + $0xc8] sm:$0xff]
      %v4125 = vld [vmem:[#allocation2 + $0xd0] sm:$0xff]
      %v4126 = vld [vmem:[#allocation2 + $0xd8] sm:$0xff]
      %v4127 = vld [vmem:[#allocation2 + $0xe0] sm:$0xff]
      %v4128 = vld [vmem:[#allocation2 + $0xe8] sm:$0xff]
      %v4129 = vld [vmem:[#allocation2 + $0xf0] sm:$0xff]
      %v4130 = vld [vmem:[#allocation2 + $0xf8] sm:$0xff]
      %v4131 = vld [vmem:[#allocation2 + $0x100] sm:$0xff]
      %v4132 = vld [vmem:[#allocation2 + $0x108] sm:$0xff]
      %v4133 = vld [vmem:[#allocation2 + $0x110] sm:$0xff]
      %v4134 = vld [vmem:[#allocation2 + $0x118] sm:$0xff]
      %v4135 = vld [vmem:[#allocation2 + $0x120] sm:$0xff]
      %v4136 = vld [vmem:[#allocation2 + $0x128] sm:$0xff]
      %v4137 = vld [vmem:[#allocation2 + $0x130] sm:$0xff]
      %v4138 = vld [vmem:[#allocation2 + $0x138] sm:$0xff]
      %v4139 = vld [vmem:[#allocation2 + $0x140] sm:$0xff]
      %v4140 = vld [vmem:[#allocation2 + $0x148] sm:$0xff]
      %v4141 = vld [vmem:[#allocation2 + $0x150] sm:$0xff]
      %v4142 = vld [vmem:[#allocation2 + $0x158] sm:$0xff]
      %v4143 = vld [vmem:[#allocation2 + $0x160] sm:$0xff]
      %v4144 = vld [vmem:[#allocation2 + $0x168] sm:$0xff]
      %v4145 = vld [vmem:[#allocation2 + $0x170] sm:$0xff]
      %v4146 = vld [vmem:[#allocation2 + $0x178] sm:$0xff]
      %v4147 = vld [vmem:[#allocation2 + $0x180] sm:$0xff]
      %v4148 = vld [vmem:[#allocation2 + $0x188] sm:$0xff]
      %v4149 = vld [vmem:[#allocation2 + $0x190] sm:$0xff]
      %v4150 = vld [vmem:[#allocation2 + $0x198] sm:$0xff]
      %v4151 = vld [vmem:[#allocation2 + $0x1a0] sm:$0xff]
      %v4152 = vld [vmem:[#allocation2 + $0x1a8] sm:$0xff]
      %v4153 = vld [vmem:[#allocation2 + $0x1b0] sm:$0xff]
      %v4154 = vld [vmem:[#allocation2 + $0x1b8] sm:$0xff]
      %v4155 = vld [vmem:[#allocation2 + $0x1c0] sm:$0xff]
      %v4156 = vld [vmem:[#allocation2 + $0x1c8] sm:$0xff]
      %v4157 = vld [vmem:[#allocation2 + $0x1d0] sm:$0xff]
      %v4158 = vld [vmem:[#allocation2 + $0x1d8] sm:$0xff]
      %v4159 = vld [vmem:[#allocation2 + $0x1e0] sm:$0xff]
      %v4160 = vld [vmem:[#allocation2 + $0x1e8] sm:$0xff]
      %v4161 = vld [vmem:[#allocation2 + $0x1f0] sm:$0xff]
      %v4162 = vld [vmem:[#allocation2 + $0x1f8] sm:$0xff]
      %v4163 = vld [vmem:[#allocation2 + $0x200] sm:$0xff]
      %v4164 = vld [vmem:[#allocation2 + $0x208] sm:$0xff]
      %v4165 = vld [vmem:[#allocation2 + $0x210] sm:$0xff]
      %v4166 = vld [vmem:[#allocation2 + $0x218] sm:$0xff]
      %v4167 = vld [vmem:[#allocation2 + $0x220] sm:$0xff]
      %v4168 = vld [vmem:[#allocation2 + $0x228] sm:$0xff]
      %v4169 = vld [vmem:[#allocation2 + $0x230] sm:$0xff]
      %v4170 = vld [vmem:[#allocation2 + $0x238] sm:$0xff]
      %v4171 = vld [vmem:[#allocation2 + $0x240] sm:$0xff]
      %v4172 = vld [vmem:[#allocation2 + $0x248] sm:$0xff]
      %v4173 = vld [vmem:[#allocation2 + $0x250] sm:$0xff]
      %v4174 = vld [vmem:[#allocation2 + $0x258] sm:$0xff]
      %v4175 = vld [vmem:[#allocation2 + $0x260] sm:$0xff]
      %v4176 = vld [vmem:[#allocation2 + $0x268] sm:$0xff]
      %v4177 = vld [vmem:[#allocation2 + $0x270] sm:$0xff]
      %v4178 = vld [vmem:[#allocation2 + $0x278] sm:$0xff]
      %v4179 = vld [vmem:[#allocation2 + $0x280] sm:$0xff]
      %v4180 = vld [vmem:[#allocation2 + $0x288] sm:$0xff]
      %v4181 = vld [vmem:[#allocation2 + $0x290] sm:$0xff]
      %v4182 = vld [vmem:[#allocation2 + $0x298] sm:$0xff]
      %v4183 = vld [vmem:[#allocation2 + $0x2a0] sm:$0xff]
      %v4184 = vld [vmem:[#allocation2 + $0x2a8] sm:$0xff]
      %v4185 = vld [vmem:[#allocation2 + $0x2b0] sm:$0xff]
      %v4186 = vld [vmem:[#allocation2 + $0x2b8] sm:$0xff]
      %v4187 = vld [vmem:[#allocation2 + $0x2c0] sm:$0xff]
      %v4188 = vld [vmem:[#allocation2 + $0x2c8] sm:$0xff]
      %v4189 = vld [vmem:[#allocation2 + $0x2d0] sm:$0xff]
      %v4190 = vld [vmem:[#allocation2 + $0x2d8] sm:$0xff]
      %v4191 = vld [vmem:[#allocation2 + $0x2e0] sm:$0xff]
      %v4192 = vld [vmem:[#allocation2 + $0x2e8] sm:$0xff]
      %v4193 = vld [vmem:[#allocation2 + $0x2f0] sm:$0xff]
      %v4194 = vld [vmem:[#allocation2 + $0x2f8] sm:$0xff]
      %v4195 = vld [vmem:[#allocation2 + $0x300] sm:$0xff]
      %v4196 = vld [vmem:[#allocation2 + $0x308] sm:$0xff]
      %v4197 = vld [vmem:[#allocation2 + $0x310] sm:$0xff]
      %v4198 = vld [vmem:[#allocation2 + $0x318] sm:$0xff]
      %v4199 = vld [vmem:[#allocation2 + $0x320] sm:$0xff]
      %v4200 = vld [vmem:[#allocation2 + $0x328] sm:$0xff]
      %v4201 = vld [vmem:[#allocation2 + $0x330] sm:$0xff]
      %v4202 = vld [vmem:[#allocation2 + $0x338] sm:$0xff]
      %v4203 = vld [vmem:[#allocation2 + $0x340] sm:$0xff]
      %v4204 = vld [vmem:[#allocation2 + $0x348] sm:$0xff]
      %v4205 = vld [vmem:[#allocation2 + $0x350] sm:$0xff]
      %v4206 = vld [vmem:[#allocation2 + $0x358] sm:$0xff]
      %v4207 = vld [vmem:[#allocation2 + $0x360] sm:$0xff]
      %v4208 = vld [vmem:[#allocation2 + $0x368] sm:$0xff]
      %v4209 = vld [vmem:[#allocation2 + $0x370] sm:$0xff]
      %v4210 = vld [vmem:[#allocation2 + $0x378] sm:$0xff]
      %v4211 = vld [vmem:[#allocation2 + $0x380] sm:$0xff]
      %v4212 = vld [vmem:[#allocation2 + $0x388] sm:$0xff]
      %v4213 = vld [vmem:[#allocation2 + $0x390] sm:$0xff]
      %v4214 = vld [vmem:[#allocation2 + $0x398] sm:$0xff]
      %v4215 = vld [vmem:[#allocation2 + $0x3a0] sm:$0xff]
      %v4216 = vld [vmem:[#allocation2 + $0x3a8] sm:$0xff]
      %v4217 = vld [vmem:[#allocation2 + $0x3b0] sm:$0xff]
      %v4218 = vld [vmem:[#allocation2 + $0x3b8] sm:$0xff]
      %v4219 = vld [vmem:[#allocation2 + $0x3c0] sm:$0xff]
      %v4220 = vld [vmem:[#allocation2 + $0x3c8] sm:$0xff]
      %v4221 = vld [vmem:[#allocation2 + $0x3d0] sm:$0xff]
      %v4222 = vld [vmem:[#allocation2 + $0x3d8] sm:$0xff]
      %v4223 = vld [vmem:[#allocation2 + $0x3e0] sm:$0xff]
      %v4224 = vld [vmem:[#allocation2 + $0x3e8] sm:$0xff]
      %v4225 = vld [vmem:[#allocation2 + $0x3f0] sm:$0xff]
      %v4226 = vld [vmem:[#allocation2 + $0x3f8] sm:$0xff]
      %v4227 = vld [vmem:[#allocation2 + $0x400] sm:$0xff]
      %v4228 = vld [vmem:[#allocation2 + $0x408] sm:$0xff]
      %v4229 = vld [vmem:[#allocation2 + $0x410] sm:$0xff]
      %v4230 = vld [vmem:[#allocation2 + $0x418] sm:$0xff]
      %v4231 = vld [vmem:[#allocation2 + $0x420] sm:$0xff]
      %v4232 = vld [vmem:[#allocation2 + $0x428] sm:$0xff]
      %v4233 = vld [vmem:[#allocation2 + $0x430] sm:$0xff]
      %v4234 = vld [vmem:[#allocation2 + $0x438] sm:$0xff]
      %v4235 = vld [vmem:[#allocation2 + $0x440] sm:$0xff]
      %v4236 = vld [vmem:[#allocation2 + $0x448] sm:$0xff]
      %v4237 = vld [vmem:[#allocation2 + $0x450] sm:$0xff]
      %v4238 = vld [vmem:[#allocation2 + $0x458] sm:$0xff]
      %v4239 = vld [vmem:[#allocation2 + $0x460] sm:$0xff]
      %v4240 = vld [vmem:[#allocation2 + $0x468] sm:$0xff]
      %v4241 = vld [vmem:[#allocation2 + $0x470] sm:$0xff]
      %v4242 = vld [vmem:[#allocation2 + $0x478] sm:$0xff]
      %v4243 = vld [vmem:[#allocation2 + $0x480] sm:$0xff]
      %v4244 = vld [vmem:[#allocation2 + $0x488] sm:$0xff]
      %v4245 = vld [vmem:[#allocation2 + $0x490] sm:$0xff]
      %v4246 = vld [vmem:[#allocation2 + $0x498] sm:$0xff]
      %v4247 = vld [vmem:[#allocation2 + $0x4a0] sm:$0xff]
      %v4248 = vld [vmem:[#allocation2 + $0x4a8] sm:$0xff]
      %v4249 = vld [vmem:[#allocation2 + $0x4b0] sm:$0xff]
      %v4250 = vld [vmem:[#allocation2 + $0x4b8] sm:$0xff]
      %v4251 = vld [vmem:[#allocation2 + $0x4c0] sm:$0xff]
      %v4252 = vld [vmem:[#allocation2 + $0x4c8] sm:$0xff]
      %v4253 = vld [vmem:[#allocation2 + $0x4d0] sm:$0xff]
      %v4254 = vld [vmem:[#allocation2 + $0x4d8] sm:$0xff]
      %v4255 = vld [vmem:[#allocation2 + $0x4e0] sm:$0xff]
      %v4256 = vld [vmem:[#allocation2 + $0x4e8] sm:$0xff]
      %v4257 = vld [vmem:[#allocation2 + $0x4f0] sm:$0xff]
      %v4258 = vld [vmem:[#allocation2 + $0x4f8] sm:$0xff]
      %v4259 = vld [vmem:[#allocation2 + $0x500] sm:$0xff]
      %v4260 = vld [vmem:[#allocation2 + $0x508] sm:$0xff]
      %v4261 = vld [vmem:[#allocation2 + $0x510] sm:$0xff]
      %v4262 = vld [vmem:[#allocation2 + $0x518] sm:$0xff]
      %v4263 = vld [vmem:[#allocation2 + $0x520] sm:$0xff]
      %v4264 = vld [vmem:[#allocation2 + $0x528] sm:$0xff]
      %v4265 = vld [vmem:[#allocation2 + $0x530] sm:$0xff]
      %v4266 = vld [vmem:[#allocation2 + $0x538] sm:$0xff]
      %v4267 = vld [vmem:[#allocation2 + $0x540] sm:$0xff]
      %v4268 = vld [vmem:[#allocation2 + $0x548] sm:$0xff]
      %v4269 = vld [vmem:[#allocation2 + $0x550] sm:$0xff]
      %v4270 = vld [vmem:[#allocation2 + $0x558] sm:$0xff]
      %v4271 = vld [vmem:[#allocation2 + $0x560] sm:$0xff]
      %v4272 = vld [vmem:[#allocation2 + $0x568] sm:$0xff]
      %v4273 = vld [vmem:[#allocation2 + $0x570] sm:$0xff]
      %v4274 = vld [vmem:[#allocation2 + $0x578] sm:$0xff]
      %v4275 = vld [vmem:[#allocation2 + $0x580] sm:$0xff]
      %v4276 = vld [vmem:[#allocation2 + $0x588] sm:$0xff]
      %v4277 = vld [vmem:[#allocation2 + $0x590] sm:$0xff]
      %v4278 = vld [vmem:[#allocation2 + $0x598] sm:$0xff]
      %v4279 = vld [vmem:[#allocation2 + $0x5a0] sm:$0xff]
      %v4280 = vld [vmem:[#allocation2 + $0x5a8] sm:$0xff]
      %v4281 = vld [vmem:[#allocation2 + $0x5b0] sm:$0xff]
      %v4282 = vld [vmem:[#allocation2 + $0x5b8] sm:$0xff]
      %v4283 = vld [vmem:[#allocation2 + $0x5c0] sm:$0xff]
      %v4284 = vld [vmem:[#allocation2 + $0x5c8] sm:$0xff]
      %v4285 = vld [vmem:[#allocation2 + $0x5d0] sm:$0xff]
      %v4286 = vld [vmem:[#allocation2 + $0x5d8] sm:$0xff]
      %v4287 = vld [vmem:[#allocation2 + $0x5e0] sm:$0xff]
      %v4288 = vld [vmem:[#allocation2 + $0x5e8] sm:$0xff]
      %v4289 = vld [vmem:[#allocation2 + $0x5f0] sm:$0xff]
      %v4290 = vld [vmem:[#allocation2 + $0x5f8] sm:$0xff]
      %v4291 = vld [vmem:[#allocation2 + $0x600] sm:$0xff]
      %v4292 = vld [vmem:[#allocation2 + $0x608] sm:$0xff]
      %v4293 = vld [vmem:[#allocation2 + $0x610] sm:$0xff]
      %v4294 = vld [vmem:[#allocation2 + $0x618] sm:$0xff]
      %v4295 = vld [vmem:[#allocation2 + $0x620] sm:$0xff]
      %v4296 = vld [vmem:[#allocation2 + $0x628] sm:$0xff]
      %v4297 = vld [vmem:[#allocation2 + $0x630] sm:$0xff]
      %v4298 = vld [vmem:[#allocation2 + $0x638] sm:$0xff]
      %v4299 = vld [vmem:[#allocation2 + $0x640] sm:$0xff]
      %v4300 = vld [vmem:[#allocation2 + $0x648] sm:$0xff]
      %v4301 = vld [vmem:[#allocation2 + $0x650] sm:$0xff]
      %v4302 = vld [vmem:[#allocation2 + $0x658] sm:$0xff]
      %v4303 = vld [vmem:[#allocation2 + $0x660] sm:$0xff]
      %v4304 = vld [vmem:[#allocation2 + $0x668] sm:$0xff]
      %v4305 = vld [vmem:[#allocation2 + $0x670] sm:$0xff]
      %v4306 = vld [vmem:[#allocation2 + $0x678] sm:$0xff]
      %v4307 = vld [vmem:[#allocation2 + $0x680] sm:$0xff]
      %v4308 = vld [vmem:[#allocation2 + $0x688] sm:$0xff]
      %v4309 = vld [vmem:[#allocation2 + $0x690] sm:$0xff]
      %v4310 = vld [vmem:[#allocation2 + $0x698] sm:$0xff]
      %v4311 = vld [vmem:[#allocation2 + $0x6a0] sm:$0xff]
      %v4312 = vld [vmem:[#allocation2 + $0x6a8] sm:$0xff]
      %v4313 = vld [vmem:[#allocation2 + $0x6b0] sm:$0xff]
      %v4314 = vld [vmem:[#allocation2 + $0x6b8] sm:$0xff]
      %v4315 = vld [vmem:[#allocation2 + $0x6c0] sm:$0xff]
      %v4316 = vld [vmem:[#allocation2 + $0x6c8] sm:$0xff]
      %v4317 = vld [vmem:[#allocation2 + $0x6d0] sm:$0xff]
      %v4318 = vld [vmem:[#allocation2 + $0x6d8] sm:$0xff]
      %v4319 = vld [vmem:[#allocation2 + $0x6e0] sm:$0xff]
      %v4320 = vld [vmem:[#allocation2 + $0x6e8] sm:$0xff]
      %v4321 = vld [vmem:[#allocation2 + $0x6f0] sm:$0xff]
      %v4322 = vld [vmem:[#allocation2 + $0x6f8] sm:$0xff]
      %v4323 = vld [vmem:[%s4] sm:$0xff]
      %v4324 = vld [vmem:[%s4 + $0x8] sm:$0xff]
      %v4325 = vld [vmem:[%s4 + $0x10] sm:$0xff]
      %v4326 = vld [vmem:[%s4 + $0x18] sm:$0xff]
      %4328 = vset.pattern.permute.xlu0 0
      %4329 = vperm.xlu0 %4328, %v4323
      %v4330 = vpop.permute.xlu0 %4329
      %4333 = vset.pattern.permute.xlu0 0
      %4334 = vperm.xlu0 %4333, %v4324
      %v4335 = vpop.permute.xlu0 %4334
      %4338 = vset.pattern.permute.xlu0 0
      %4339 = vperm.xlu0 %4338, %v4325
      %v4340 = vpop.permute.xlu0 %4339
      %4343 = vset.pattern.permute.xlu0 0
      %4344 = vperm.xlu0 %4343, %v4326
      %v4345 = vpop.permute.xlu0 %4344
      %vm4347 = vcmask 785408
      %v4349 = vsel %vm4347, %v4092, 0
      %v4352 = vsel %vm4347, %v4094, 0
      %v4355 = vsel %vm4347, %v4096, 0
      %v4358 = vsel %vm4347, %v4098, 0
      %4360 = vmatprep.subr.mxu0 0.0
      %4361 = vmatpush1.msra.mxu0 %v4099
      %4362 = vmatprep.subr.mxu0 0.0
      %4363 = vmatpush1.msra.mxu0 %v4100
      %4364 = vmatprep.subr.mxu0 0.0
      %4365 = vmatpush1.msra.mxu0 %v4101
      %4366 = vmatprep.subr.mxu0 0.0
      %4367 = vmatpush1.msra.mxu0 %v4102
      %4368 = vmatprep.subr.mxu0 0.0
      %4369 = vmatpush1.msra.mxu0 %v4103
      %4370 = vmatprep.subr.mxu0 0.0
      %4371 = vmatpush1.msra.mxu0 %v4104
      %4372 = vmatprep.subr.mxu0 0.0
      %4373 = vmatpush1.msra.mxu0 %v4105
      %4374 = vmatprep.subr.mxu0 0.0
      %4375 = vmatpush1.msra.mxu0 %v4106
      %4376 = vmatprep.subr.mxu0 0.0
      %4377 = vmatpush1.msra.mxu0 %v4107
      %4378 = vmatprep.subr.mxu0 0.0
      %4379 = vmatpush1.msra.mxu0 %v4108
      %4380 = vmatprep.subr.mxu0 0.0
      %4381 = vmatpush1.msra.mxu0 %v4109
      %4382 = vmatprep.subr.mxu0 0.0
      %4383 = vmatpush1.msra.mxu0 %v4110
      %4384 = vmatprep.subr.mxu0 0.0
      %4385 = vmatpush1.msra.mxu0 %v4111
      %4386 = vmatprep.subr.mxu0 0.0
      %4387 = vmatpush1.msra.mxu0 %v4112
      %4388 = vmatprep.subr.mxu0 0.0
      %4389 = vmatpush1.msra.mxu0 %v4113
      %4390 = vmatprep.subr.mxu0 0.0
      %4391 = vmatpush1.msra.mxu0 %v4114
      %4392 = vmatprep.subr.mxu0 0.0
      %4393 = vmatpush1.msra.mxu0 %v4115
      %4394 = vmatprep.subr.mxu0 0.0
      %4395 = vmatpush1.msra.mxu0 %v4116
      %4396 = vmatprep.subr.mxu0 0.0
      %4397 = vmatpush1.msra.mxu0 %v4117
      %4398 = vmatprep.subr.mxu0 0.0
      %4399 = vmatpush1.msra.mxu0 %v4118
      %4400 = vmatprep.subr.mxu0 0.0
      %4401 = vmatpush1.msra.mxu0 %v4119
      %4402 = vmatprep.subr.mxu0 0.0
      %4403 = vmatpush1.msra.mxu0 %v4120
      %4404 = vmatprep.subr.mxu0 0.0
      %4405 = vmatpush1.msra.mxu0 %v4121
      %4406 = vmatprep.subr.mxu0 0.0
      %4407 = vmatpush1.msra.mxu0 %v4122
      %4408 = vmatprep.subr.mxu0 0.0
      %4409 = vmatpush1.msra.mxu0 %v4123
      %4410 = vmatprep.subr.mxu0 0.0
      %4411 = vmatpush1.msra.mxu0 %v4124
      %4412 = vmatprep.subr.mxu0 0.0
      %4413 = vmatpush1.msra.mxu0 %v4125
      %4414 = vmatprep.subr.mxu0 0.0
      %4415 = vmatpush1.msra.mxu0 %v4126
      %4416 = vmatprep.subr.mxu0 0.0
      %4417 = vmatpush1.msra.mxu0 0.0
      %4418 = vmatprep.subr.mxu0 0.0
      %4419 = vmatpush1.msra.mxu0 0.0
      %4420 = vmatprep.subr.mxu0 0.0
      %4421 = vmatpush1.msra.mxu0 0.0
      %4422 = vmatprep.subr.mxu0 0.0
      %4423 = vmatpush1.msra.mxu0 0.0
      %4424 = vmatprep.mubr.f32.mxu0 %v4349
      %4425 = vmatmul.mubr.f32.gmra.mrb[0].mxu0 %v4091
      %v4426 = vpop.f32.mrb[0].mxu0
      %v4427 = vadd.f32 %v4330, %v4426
      %v4428 = vpop.f32.mrb[0].mxu0
      %4429 = vmatprep.mubr.f32.mxu0 %v4352
      %4430 = vmatmul.mubr.f32.gmra.mrb[0].mxu0 %v4093
      %v4431 = vpop.f32.mrb[0].mxu0
      %v4432 = vadd.f32 %v4335, %v4431
      %v4433 = vpop.f32.mrb[0].mxu0
      %4434 = vmatprep.mubr.f32.mxu0 %v4355
      %4435 = vmatmul.mubr.f32.gmra.mrb[0].mxu0 %v4095
      %v4436 = vpop.f32.mrb[0].mxu0
      %v4437 = vadd.f32 %v4340, %v4436
      %v4438 = vpop.f32.mrb[0].mxu0
      %4439 = vmatprep.mubr.f32.mxu0 %v4358
      %4440 = vmatmul.mubr.f32.gmra.mrb[0].mxu0 %v4097
      %v4441 = vpop.f32.mrb[0].mxu0
      %v4442 = vadd.f32 %v4345, %v4441
      %v4443 = vpop.f32.mrb[0].mxu0
      %4444 = vdwg.mxu0
      %4445 = vmatprep.subr.mxu0 0.0
      %4446 = vmatpush1.msra.mxu0 %v4127
      %4447 = vmatprep.subr.mxu0 0.0
      %4448 = vmatpush1.msra.mxu0 %v4128
      %4449 = vmatprep.subr.mxu0 0.0
      %4450 = vmatpush1.msra.mxu0 %v4129
      %4451 = vmatprep.subr.mxu0 0.0
      %4452 = vmatpush1.msra.mxu0 %v4130
      %4453 = vmatprep.subr.mxu0 0.0
      %4454 = vmatpush1.msra.mxu0 %v4131
      %4455 = vmatprep.subr.mxu0 0.0
      %4456 = vmatpush1.msra.mxu0 %v4132
      %4457 = vmatprep.subr.mxu0 0.0
      %4458 = vmatpush1.msra.mxu0 %v4133
      %4459 = vmatprep.subr.mxu0 0.0
      %4460 = vmatpush1.msra.mxu0 %v4134
      %4461 = vmatprep.subr.mxu0 0.0
      %4462 = vmatpush1.msra.mxu0 %v4135
      %4463 = vmatprep.subr.mxu0 0.0
      %4464 = vmatpush1.msra.mxu0 %v4136
      %4465 = vmatprep.subr.mxu0 0.0
      %4466 = vmatpush1.msra.mxu0 %v4137
      %4467 = vmatprep.subr.mxu0 0.0
      %4468 = vmatpush1.msra.mxu0 %v4138
      %4469 = vmatprep.subr.mxu0 0.0
      %4470 = vmatpush1.msra.mxu0 %v4139
      %4471 = vmatprep.subr.mxu0 0.0
      %4472 = vmatpush1.msra.mxu0 %v4140
      %4473 = vmatprep.subr.mxu0 0.0
      %4474 = vmatpush1.msra.mxu0 %v4141
      %4475 = vmatprep.subr.mxu0 0.0
      %4476 = vmatpush1.msra.mxu0 %v4142
      %4477 = vmatprep.subr.mxu0 0.0
      %4478 = vmatpush1.msra.mxu0 %v4143
      %4479 = vmatprep.subr.mxu0 0.0
      %4480 = vmatpush1.msra.mxu0 %v4144
      %4481 = vmatprep.subr.mxu0 0.0
      %4482 = vmatpush1.msra.mxu0 %v4145
      %4483 = vmatprep.subr.mxu0 0.0
      %4484 = vmatpush1.msra.mxu0 %v4146
      %4485 = vmatprep.subr.mxu0 0.0
      %4486 = vmatpush1.msra.mxu0 %v4147
      %4487 = vmatprep.subr.mxu0 0.0
      %4488 = vmatpush1.msra.mxu0 %v4148
      %4489 = vmatprep.subr.mxu0 0.0
      %4490 = vmatpush1.msra.mxu0 %v4149
      %4491 = vmatprep.subr.mxu0 0.0
      %4492 = vmatpush1.msra.mxu0 %v4150
      %4493 = vmatprep.subr.mxu0 0.0
      %4494 = vmatpush1.msra.mxu0 %v4151
      %4495 = vmatprep.subr.mxu0 0.0
      %4496 = vmatpush1.msra.mxu0 %v4152
      %4497 = vmatprep.subr.mxu0 0.0
      %4498 = vmatpush1.msra.mxu0 %v4153
      %4499 = vmatprep.subr.mxu0 0.0
      %4500 = vmatpush1.msra.mxu0 %v4154
      %4501 = vmatprep.subr.mxu0 0.0
      %4502 = vmatpush1.msra.mxu0 0.0
      %4503 = vmatprep.subr.mxu0 0.0
      %4504 = vmatpush1.msra.mxu0 0.0
      %4505 = vmatprep.subr.mxu0 0.0
      %4506 = vmatpush1.msra.mxu0 0.0
      %4507 = vmatprep.subr.mxu0 0.0
      %4508 = vmatpush1.msra.mxu0 0.0
      %4509 = vmatprep.mubr.f32.mxu0 %v4349
      %4510 = vmatmul.mubr.f32.gmra.mrb[0].mxu0 %v4091
      %v4511 = vpop.f32.mrb[0].mxu0
      %v4512 = vadd.f32 %v4330, %v4511
      %v4513 = vpop.f32.mrb[0].mxu0
      %4514 = vmatprep.mubr.f32.mxu0 %v4352
      %4515 = vmatmul.mubr.f32.gmra.mrb[0].mxu0 %v4093
      %v4516 = vpop.f32.mrb[0].mxu0
      %v4517 = vadd.f32 %v4335, %v4516
      %v4518 = vpop.f32.mrb[0].mxu0
      %4519 = vmatprep.mubr.f32.mxu0 %v4355
      %4520 = vmatmul.mubr.f32.gmra.mrb[0].mxu0 %v4095
      %v4521 = vpop.f32.mrb[0].mxu0
      %v4522 = vadd.f32 %v4340, %v4521
      %v4523 = vpop.f32.mrb[0].mxu0
      %4524 = vmatprep.mubr.f32.mxu0 %v4358
      %4525 = vmatmul.mubr.f32.gmra.mrb[0].mxu0 %v4097
      %v4526 = vpop.f32.mrb[0].mxu0
      %v4527 = vadd.f32 %v4345, %v4526
      %v4528 = vpop.f32.mrb[0].mxu0
      %4529 = vdwg.mxu0
      %4530 = vmatprep.subr.mxu0 0.0
      %4531 = vmatpush1.msra.mxu0 %v4155
      %4532 = vmatprep.subr.mxu0 0.0
      %4533 = vmatpush1.msra.mxu0 %v4156
      %4534 = vmatprep.subr.mxu0 0.0
      %4535 = vmatpush1.msra.mxu0 %v4157
      %4536 = vmatprep.subr.mxu0 0.0
      %4537 = vmatpush1.msra.mxu0 %v4158
      %4538 = vmatprep.subr.mxu0 0.0
      %4539 = vmatpush1.msra.mxu0 %v4159
      %4540 = vmatprep.subr.mxu0 0.0
      %4541 = vmatpush1.msra.mxu0 %v4160
      %4542 = vmatprep.subr.mxu0 0.0
      %4543 = vmatpush1.msra.mxu0 %v4161
      %4544 = vmatprep.subr.mxu0 0.0
      %4545 = vmatpush1.msra.mxu0 %v4162
      %4546 = vmatprep.subr.mxu0 0.0
      %4547 = vmatpush1.msra.mxu0 %v4163
      %4548 = vmatprep.subr.mxu0 0.0
      %4549 = vmatpush1.msra.mxu0 %v4164
      %4550 = vmatprep.subr.mxu0 0.0
      %4551 = vmatpush1.msra.mxu0 %v4165
      %4552 = vmatprep.subr.mxu0 0.0
      %4553 = vmatpush1.msra.mxu0 %v4166
      %4554 = vmatprep.subr.mxu0 0.0
      %4555 = vmatpush1.msra.mxu0 %v4167
      %4556 = vmatprep.subr.mxu0 0.0
      %4557 = vmatpush1.msra.mxu0 %v4168
      %4558 = vmatprep.subr.mxu0 0.0
      %4559 = vmatpush1.msra.mxu0 %v4169
      %4560 = vmatprep.subr.mxu0 0.0
      %4561 = vmatpush1.msra.mxu0 %v4170
      %4562 = vmatprep.subr.mxu0 0.0
      %4563 = vmatpush1.msra.mxu0 %v4171
      %4564 = vmatprep.subr.mxu0 0.0
      %4565 = vmatpush1.msra.mxu0 %v4172
      %4566 = vmatprep.subr.mxu0 0.0
      %4567 = vmatpush1.msra.mxu0 %v4173
      %4568 = vmatprep.subr.mxu0 0.0
      %4569 = vmatpush1.msra.mxu0 %v4174
      %4570 = vmatprep.subr.mxu0 0.0
      %4571 = vmatpush1.msra.mxu0 %v4175
      %4572 = vmatprep.subr.mxu0 0.0
      %4573 = vmatpush1.msra.mxu0 %v4176
      %4574 = vmatprep.subr.mxu0 0.0
      %4575 = vmatpush1.msra.mxu0 %v4177
      %4576 = vmatprep.subr.mxu0 0.0
      %4577 = vmatpush1.msra.mxu0 %v4178
      %4578 = vmatprep.subr.mxu0 0.0
      %4579 = vmatpush1.msra.mxu0 %v4179
      %4580 = vmatprep.subr.mxu0 0.0
      %4581 = vmatpush1.msra.mxu0 %v4180
      %4582 = vmatprep.subr.mxu0 0.0
      %4583 = vmatpush1.msra.mxu0 %v4181
      %4584 = vmatprep.subr.mxu0 0.0
      %4585 = vmatpush1.msra.mxu0 %v4182
      %4586 = vmatprep.subr.mxu0 0.0
      %4587 = vmatpush1.msra.mxu0 0.0
      %4588 = vmatprep.subr.mxu0 0.0
      %4589 = vmatpush1.msra.mxu0 0.0
      %4590 = vmatprep.subr.mxu0 0.0
      %4591 = vmatpush1.msra.mxu0 0.0
      %4592 = vmatprep.subr.mxu0 0.0
      %4593 = vmatpush1.msra.mxu0 0.0
      %4594 = vmatprep.mubr.f32.mxu0 %v4349
      %4595 = vmatmul.mubr.f32.gmra.mrb[0].mxu0 %v4091
      %v4596 = vpop.f32.mrb[0].mxu0
      %v4597 = vadd.f32 %v4330, %v4596
      %v4598 = vpop.f32.mrb[0].mxu0
      %4599 = vmatprep.mubr.f32.mxu0 %v4352
      %4600 = vmatmul.mubr.f32.gmra.mrb[0].mxu0 %v4093
      %v4601 = vpop.f32.mrb[0].mxu0
      %v4602 = vadd.f32 %v4335, %v4601
      %v4603 = vpop.f32.mrb[0].mxu0
      %4604 = vmatprep.mubr.f32.mxu0 %v4355
      %4605 = vmatmul.mubr.f32.gmra.mrb[0].mxu0 %v4095
      %v4606 = vpop.f32.mrb[0].mxu0
      %v4607 = vadd.f32 %v4340, %v4606
      %v4608 = vpop.f32.mrb[0].mxu0
      %4609 = vmatprep.mubr.f32.mxu0 %v4358
      %4610 = vmatmul.mubr.f32.gmra.mrb[0].mxu0 %v4097
      %v4611 = vpop.f32.mrb[0].mxu0
      %v4612 = vadd.f32 %v4345, %v4611
      %v4613 = vpop.f32.mrb[0].mxu0
      %4614 = vdwg.mxu0
      %4615 = vmatprep.subr.mxu0 0.0
      %4616 = vmatpush1.msra.mxu0 %v4183
      %4617 = vmatprep.subr.mxu0 0.0
      %4618 = vmatpush1.msra.mxu0 %v4184
      %4619 = vmatprep.subr.mxu0 0.0
      %4620 = vmatpush1.msra.mxu0 %v4185
      %4621 = vmatprep.subr.mxu0 0.0
      %4622 = vmatpush1.msra.mxu0 %v4186
      %4623 = vmatprep.subr.mxu0 0.0
      %4624 = vmatpush1.msra.mxu0 %v4187
      %4625 = vmatprep.subr.mxu0 0.0
      %4626 = vmatpush1.msra.mxu0 %v4188
      %4627 = vmatprep.subr.mxu0 0.0
      %4628 = vmatpush1.msra.mxu0 %v4189
      %4629 = vmatprep.subr.mxu0 0.0
      %4630 = vmatpush1.msra.mxu0 %v4190
      %4631 = vmatprep.subr.mxu0 0.0
      %4632 = vmatpush1.msra.mxu0 %v4191
      %4633 = vmatprep.subr.mxu0 0.0
      %4634 = vmatpush1.msra.mxu0 %v4192
      %4635 = vmatprep.subr.mxu0 0.0
      %4636 = vmatpush1.msra.mxu0 %v4193
      %4637 = vmatprep.subr.mxu0 0.0
      %4638 = vmatpush1.msra.mxu0 %v4194
      %4639 = vmatprep.subr.mxu0 0.0
      %4640 = vmatpush1.msra.mxu0 %v4195
      %4641 = vmatprep.subr.mxu0 0.0
      %4642 = vmatpush1.msra.mxu0 %v4196
      %4643 = vmatprep.subr.mxu0 0.0
      %4644 = vmatpush1.msra.mxu0 %v4197
      %4645 = vmatprep.subr.mxu0 0.0
      %4646 = vmatpush1.msra.mxu0 %v4198
      %4647 = vmatprep.subr.mxu0 0.0
      %4648 = vmatpush1.msra.mxu0 %v4199
      %4649 = vmatprep.subr.mxu0 0.0
      %4650 = vmatpush1.msra.mxu0 %v4200
      %4651 = vmatprep.subr.mxu0 0.0
      %4652 = vmatpush1.msra.mxu0 %v4201
      %4653 = vmatprep.subr.mxu0 0.0
      %4654 = vmatpush1.msra.mxu0 %v4202
      %4655 = vmatprep.subr.mxu0 0.0
      %4656 = vmatpush1.msra.mxu0 %v4203
      %4657 = vmatprep.subr.mxu0 0.0
      %4658 = vmatpush1.msra.mxu0 %v4204
      %4659 = vmatprep.subr.mxu0 0.0
      %4660 = vmatpush1.msra.mxu0 %v4205
      %4661 = vmatprep.subr.mxu0 0.0
      %4662 = vmatpush1.msra.mxu0 %v4206
      %4663 = vmatprep.subr.mxu0 0.0
      %4664 = vmatpush1.msra.mxu0 %v4207
      %4665 = vmatprep.subr.mxu0 0.0
      %4666 = vmatpush1.msra.mxu0 %v4208
      %4667 = vmatprep.subr.mxu0 0.0
      %4668 = vmatpush1.msra.mxu0 %v4209
      %4669 = vmatprep.subr.mxu0 0.0
      %4670 = vmatpush1.msra.mxu0 %v4210
      %4671 = vmatprep.subr.mxu0 0.0
      %4672 = vmatpush1.msra.mxu0 0.0
      %4673 = vmatprep.subr.mxu0 0.0
      %4674 = vmatpush1.msra.mxu0 0.0
      %4675 = vmatprep.subr.mxu0 0.0
      %4676 = vmatpush1.msra.mxu0 0.0
      %4677 = vmatprep.subr.mxu0 0.0
      %4678 = vmatpush1.msra.mxu0 0.0
      %4679 = vmatprep.mubr.f32.mxu0 %v4349
      %4680 = vmatmul.mubr.f32.gmra.mrb[0].mxu0 %v4091
      %v4681 = vpop.f32.mrb[0].mxu0
      %v4682 = vadd.f32 %v4330, %v4681
      %v4683 = vpop.f32.mrb[0].mxu0
      %4684 = vmatprep.mubr.f32.mxu0 %v4352
      %4685 = vmatmul.mubr.f32.gmra.mrb[0].mxu0 %v4093
      %v4686 = vpop.f32.mrb[0].mxu0
      %v4687 = vadd.f32 %v4335, %v4686
      %v4688 = vpop.f32.mrb[0].mxu0
      %4689 = vmatprep.mubr.f32.mxu0 %v4355
      %4690 = vmatmul.mubr.f32.gmra.mrb[0].mxu0 %v4095
      %v4691 = vpop.f32.mrb[0].mxu0
      %v4692 = vadd.f32 %v4340, %v4691
      %v4693 = vpop.f32.mrb[0].mxu0
      %4694 = vmatprep.mubr.f32.mxu0 %v4358
      %4695 = vmatmul.mubr.f32.gmra.mrb[0].mxu0 %v4097
      %v4696 = vpop.f32.mrb[0].mxu0
      %v4697 = vadd.f32 %v4345, %v4696
      %v4698 = vpop.f32.mrb[0].mxu0
      %4699 = vdwg.mxu0
      %4700 = vmatprep.subr.mxu0 0.0
      %4701 = vmatpush1.msra.mxu0 %v4211
      %4702 = vmatprep.subr.mxu0 0.0
      %4703 = vmatpush1.msra.mxu0 %v4212
      %4704 = vmatprep.subr.mxu0 0.0
      %4705 = vmatpush1.msra.mxu0 %v4213
      %4706 = vmatprep.subr.mxu0 0.0
      %4707 = vmatpush1.msra.mxu0 %v4214
      %4708 = vmatprep.subr.mxu0 0.0
      %4709 = vmatpush1.msra.mxu0 %v4215
      %4710 = vmatprep.subr.mxu0 0.0
      %4711 = vmatpush1.msra.mxu0 %v4216
      %4712 = vmatprep.subr.mxu0 0.0
      %4713 = vmatpush1.msra.mxu0 %v4217
      %4714 = vmatprep.subr.mxu0 0.0
      %4715 = vmatpush1.msra.mxu0 %v4218
      %4716 = vmatprep.subr.mxu0 0.0
      %4717 = vmatpush1.msra.mxu0 %v4219
      %4718 = vmatprep.subr.mxu0 0.0
      %4719 = vmatpush1.msra.mxu0 %v4220
      %4720 = vmatprep.subr.mxu0 0.0
      %4721 = vmatpush1.msra.mxu0 %v4221
      %4722 = vmatprep.subr.mxu0 0.0
      %4723 = vmatpush1.msra.mxu0 %v4222
      %4724 = vmatprep.subr.mxu0 0.0
      %4725 = vmatpush1.msra.mxu0 %v4223
      %4726 = vmatprep.subr.mxu0 0.0
      %4727 = vmatpush1.msra.mxu0 %v4224
      %4728 = vmatprep.subr.mxu0 0.0
      %4729 = vmatpush1.msra.mxu0 %v4225
      %4730 = vmatprep.subr.mxu0 0.0
      %4731 = vmatpush1.msra.mxu0 %v4226
      %4732 = vmatprep.subr.mxu0 0.0
      %4733 = vmatpush1.msra.mxu0 %v4227
      %4734 = vmatprep.subr.mxu0 0.0
      %4735 = vmatpush1.msra.mxu0 %v4228
      %4736 = vmatprep.subr.mxu0 0.0
      %4737 = vmatpush1.msra.mxu0 %v4229
      %4738 = vmatprep.subr.mxu0 0.0
      %4739 = vmatpush1.msra.mxu0 %v4230
      %4740 = vmatprep.subr.mxu0 0.0
      %4741 = vmatpush1.msra.mxu0 %v4231
      %4742 = vmatprep.subr.mxu0 0.0
      %4743 = vmatpush1.msra.mxu0 %v4232
      %4744 = vmatprep.subr.mxu0 0.0
      %4745 = vmatpush1.msra.mxu0 %v4233
      %4746 = vmatprep.subr.mxu0 0.0
      %4747 = vmatpush1.msra.mxu0 %v4234
      %4748 = vmatprep.subr.mxu0 0.0
      %4749 = vmatpush1.msra.mxu0 %v4235
      %4750 = vmatprep.subr.mxu0 0.0
      %4751 = vmatpush1.msra.mxu0 %v4236
      %4752 = vmatprep.subr.mxu0 0.0
      %4753 = vmatpush1.msra.mxu0 %v4237
      %4754 = vmatprep.subr.mxu0 0.0
      %4755 = vmatpush1.msra.mxu0 %v4238
      %4756 = vmatprep.subr.mxu0 0.0
      %4757 = vmatpush1.msra.mxu0 0.0
      %4758 = vmatprep.subr.mxu0 0.0
      %4759 = vmatpush1.msra.mxu0 0.0
      %4760 = vmatprep.subr.mxu0 0.0
      %4761 = vmatpush1.msra.mxu0 0.0
      %4762 = vmatprep.subr.mxu0 0.0
      %4763 = vmatpush1.msra.mxu0 0.0
      %4764 = vmatprep.mubr.f32.mxu0 %v4349
      %4765 = vmatmul.mubr.f32.gmra.mrb[0].mxu0 %v4091
      %v4766 = vpop.f32.mrb[0].mxu0
      %v4767 = vadd.f32 %v4330, %v4766
      %v4768 = vpop.f32.mrb[0].mxu0
      %4769 = vmatprep.mubr.f32.mxu0 %v4352
      %4770 = vmatmul.mubr.f32.gmra.mrb[0].mxu0 %v4093
      %v4771 = vpop.f32.mrb[0].mxu0
      %v4772 = vadd.f32 %v4335, %v4771
      %v4773 = vpop.f32.mrb[0].mxu0
      %4774 = vmatprep.mubr.f32.mxu0 %v4355
      %4775 = vmatmul.mubr.f32.gmra.mrb[0].mxu0 %v4095
      %v4776 = vpop.f32.mrb[0].mxu0
      %v4777 = vadd.f32 %v4340, %v4776
      %v4778 = vpop.f32.mrb[0].mxu0
      %4779 = vmatprep.mubr.f32.mxu0 %v4358
      %4780 = vmatmul.mubr.f32.gmra.mrb[0].mxu0 %v4097
      %v4781 = vpop.f32.mrb[0].mxu0
      %v4782 = vadd.f32 %v4345, %v4781
      %v4783 = vpop.f32.mrb[0].mxu0
      %4784 = vdwg.mxu0
      %4785 = vmatprep.subr.mxu0 0.0
      %4786 = vmatpush1.msra.mxu0 %v4239
      %4787 = vmatprep.subr.mxu0 0.0
      %4788 = vmatpush1.msra.mxu0 %v4240
      %4789 = vmatprep.subr.mxu0 0.0
      %4790 = vmatpush1.msra.mxu0 %v4241
      %4791 = vmatprep.subr.mxu0 0.0
      %4792 = vmatpush1.msra.mxu0 %v4242
      %4793 = vmatprep.subr.mxu0 0.0
      %4794 = vmatpush1.msra.mxu0 %v4243
      %4795 = vmatprep.subr.mxu0 0.0
      %4796 = vmatpush1.msra.mxu0 %v4244
      %4797 = vmatprep.subr.mxu0 0.0
      %4798 = vmatpush1.msra.mxu0 %v4245
      %4799 = vmatprep.subr.mxu0 0.0
      %4800 = vmatpush1.msra.mxu0 %v4246
      %4801 = vmatprep.subr.mxu0 0.0
      %4802 = vmatpush1.msra.mxu0 %v4247
      %4803 = vmatprep.subr.mxu0 0.0
      %4804 = vmatpush1.msra.mxu0 %v4248
      %4805 = vmatprep.subr.mxu0 0.0
      %4806 = vmatpush1.msra.mxu0 %v4249
      %4807 = vmatprep.subr.mxu0 0.0
      %4808 = vmatpush1.msra.mxu0 %v4250
      %4809 = vmatprep.subr.mxu0 0.0
      %4810 = vmatpush1.msra.mxu0 %v4251
      %4811 = vmatprep.subr.mxu0 0.0
      %4812 = vmatpush1.msra.mxu0 %v4252
      %4813 = vmatprep.subr.mxu0 0.0
      %4814 = vmatpush1.msra.mxu0 %v4253
      %4815 = vmatprep.subr.mxu0 0.0
      %4816 = vmatpush1.msra.mxu0 %v4254
      %4817 = vmatprep.subr.mxu0 0.0
      %4818 = vmatpush1.msra.mxu0 %v4255
      %4819 = vmatprep.subr.mxu0 0.0
      %4820 = vmatpush1.msra.mxu0 %v4256
      %4821 = vmatprep.subr.mxu0 0.0
      %4822 = vmatpush1.msra.mxu0 %v4257
      %4823 = vmatprep.subr.mxu0 0.0
      %4824 = vmatpush1.msra.mxu0 %v4258
      %4825 = vmatprep.subr.mxu0 0.0
      %4826 = vmatpush1.msra.mxu0 %v4259
      %4827 = vmatprep.subr.mxu0 0.0
      %4828 = vmatpush1.msra.mxu0 %v4260
      %4829 = vmatprep.subr.mxu0 0.0
      %4830 = vmatpush1.msra.mxu0 %v4261
      %4831 = vmatprep.subr.mxu0 0.0
      %4832 = vmatpush1.msra.mxu0 %v4262
      %4833 = vmatprep.subr.mxu0 0.0
      %4834 = vmatpush1.msra.mxu0 %v4263
      %4835 = vmatprep.subr.mxu0 0.0
      %4836 = vmatpush1.msra.mxu0 %v4264
      %4837 = vmatprep.subr.mxu0 0.0
      %4838 = vmatpush1.msra.mxu0 %v4265
      %4839 = vmatprep.subr.mxu0 0.0
      %4840 = vmatpush1.msra.mxu0 %v4266
      %4841 = vmatprep.subr.mxu0 0.0
      %4842 = vmatpush1.msra.mxu0 0.0
      %4843 = vmatprep.subr.mxu0 0.0
      %4844 = vmatpush1.msra.mxu0 0.0
      %4845 = vmatprep.subr.mxu0 0.0
      %4846 = vmatpush1.msra.mxu0 0.0
      %4847 = vmatprep.subr.mxu0 0.0
      %4848 = vmatpush1.msra.mxu0 0.0
      %4849 = vmatprep.mubr.f32.mxu0 %v4349
      %4850 = vmatmul.mubr.f32.gmra.mrb[0].mxu0 %v4091
      %v4851 = vpop.f32.mrb[0].mxu0
      %v4852 = vadd.f32 %v4330, %v4851
      %v4853 = vpop.f32.mrb[0].mxu0
      %4854 = vmatprep.mubr.f32.mxu0 %v4352
      %4855 = vmatmul.mubr.f32.gmra.mrb[0].mxu0 %v4093
      %v4856 = vpop.f32.mrb[0].mxu0
      %v4857 = vadd.f32 %v4335, %v4856
      %v4858 = vpop.f32.mrb[0].mxu0
      %4859 = vmatprep.mubr.f32.mxu0 %v4355
      %4860 = vmatmul.mubr.f32.gmra.mrb[0].mxu0 %v4095
      %v4861 = vpop.f32.mrb[0].mxu0
      %v4862 = vadd.f32 %v4340, %v4861
      %v4863 = vpop.f32.mrb[0].mxu0
      %4864 = vmatprep.mubr.f32.mxu0 %v4358
      %4865 = vmatmul.mubr.f32.gmra.mrb[0].mxu0 %v4097
      %v4866 = vpop.f32.mrb[0].mxu0
      %v4867 = vadd.f32 %v4345, %v4866
      %v4868 = vpop.f32.mrb[0].mxu0
      %4869 = vdwg.mxu0
      %4870 = vmatprep.subr.mxu0 0.0
      %4871 = vmatpush1.msra.mxu0 %v4267
      %4872 = vmatprep.subr.mxu0 0.0
      %4873 = vmatpush1.msra.mxu0 %v4268
      %4874 = vmatprep.subr.mxu0 0.0
      %4875 = vmatpush1.msra.mxu0 %v4269
      %4876 = vmatprep.subr.mxu0 0.0
      %4877 = vmatpush1.msra.mxu0 %v4270
      %4878 = vmatprep.subr.mxu0 0.0
      %4879 = vmatpush1.msra.mxu0 %v4271
      %4880 = vmatprep.subr.mxu0 0.0
      %4881 = vmatpush1.msra.mxu0 %v4272
      %4882 = vmatprep.subr.mxu0 0.0
      %4883 = vmatpush1.msra.mxu0 %v4273
      %4884 = vmatprep.subr.mxu0 0.0
      %4885 = vmatpush1.msra.mxu0 %v4274
      %4886 = vmatprep.subr.mxu0 0.0
      %4887 = vmatpush1.msra.mxu0 %v4275
      %4888 = vmatprep.subr.mxu0 0.0
      %4889 = vmatpush1.msra.mxu0 %v4276
      %4890 = vmatprep.subr.mxu0 0.0
      %4891 = vmatpush1.msra.mxu0 %v4277
      %4892 = vmatprep.subr.mxu0 0.0
      %4893 = vmatpush1.msra.mxu0 %v4278
      %4894 = vmatprep.subr.mxu0 0.0
      %4895 = vmatpush1.msra.mxu0 %v4279
      %4896 = vmatprep.subr.mxu0 0.0
      %4897 = vmatpush1.msra.mxu0 %v4280
      %4898 = vmatprep.subr.mxu0 0.0
      %4899 = vmatpush1.msra.mxu0 %v4281
      %4900 = vmatprep.subr.mxu0 0.0
      %4901 = vmatpush1.msra.mxu0 %v4282
      %4902 = vmatprep.subr.mxu0 0.0
      %4903 = vmatpush1.msra.mxu0 %v4283
      %4904 = vmatprep.subr.mxu0 0.0
      %4905 = vmatpush1.msra.mxu0 %v4284
      %4906 = vmatprep.subr.mxu0 0.0
      %4907 = vmatpush1.msra.mxu0 %v4285
      %4908 = vmatprep.subr.mxu0 0.0
      %4909 = vmatpush1.msra.mxu0 %v4286
      %4910 = vmatprep.subr.mxu0 0.0
      %4911 = vmatpush1.msra.mxu0 %v4287
      %4912 = vmatprep.subr.mxu0 0.0
      %4913 = vmatpush1.msra.mxu0 %v4288
      %4914 = vmatprep.subr.mxu0 0.0
      %4915 = vmatpush1.msra.mxu0 %v4289
      %4916 = vmatprep.subr.mxu0 0.0
      %4917 = vmatpush1.msra.mxu0 %v4290
      %4918 = vmatprep.subr.mxu0 0.0
      %4919 = vmatpush1.msra.mxu0 %v4291
      %4920 = vmatprep.subr.mxu0 0.0
      %4921 = vmatpush1.msra.mxu0 %v4292
      %4922 = vmatprep.subr.mxu0 0.0
      %4923 = vmatpush1.msra.mxu0 %v4293
      %4924 = vmatprep.subr.mxu0 0.0
      %4925 = vmatpush1.msra.mxu0 %v4294
      %4926 = vmatprep.subr.mxu0 0.0
      %4927 = vmatpush1.msra.mxu0 0.0
      %4928 = vmatprep.subr.mxu0 0.0
      %4929 = vmatpush1.msra.mxu0 0.0
      %4930 = vmatprep.subr.mxu0 0.0
      %4931 = vmatpush1.msra.mxu0 0.0
      %4932 = vmatprep.subr.mxu0 0.0
      %4933 = vmatpush1.msra.mxu0 0.0
      %4934 = vmatprep.mubr.f32.mxu0 %v4349
      %4935 = vmatmul.mubr.f32.gmra.mrb[0].mxu0 %v4091
      %v4936 = vpop.f32.mrb[0].mxu0
      %v4937 = vadd.f32 %v4330, %v4936
      %v4938 = vpop.f32.mrb[0].mxu0
      %4939 = vmatprep.mubr.f32.mxu0 %v4352
      %4940 = vmatmul.mubr.f32.gmra.mrb[0].mxu0 %v4093
      %v4941 = vpop.f32.mrb[0].mxu0
      %v4942 = vadd.f32 %v4335, %v4941
      %v4943 = vpop.f32.mrb[0].mxu0
      %4944 = vmatprep.mubr.f32.mxu0 %v4355
      %4945 = vmatmul.mubr.f32.gmra.mrb[0].mxu0 %v4095
      %v4946 = vpop.f32.mrb[0].mxu0
      %v4947 = vadd.f32 %v4340, %v4946
      %v4948 = vpop.f32.mrb[0].mxu0
      %4949 = vmatprep.mubr.f32.mxu0 %v4358
      %4950 = vmatmul.mubr.f32.gmra.mrb[0].mxu0 %v4097
      %v4951 = vpop.f32.mrb[0].mxu0
      %v4952 = vadd.f32 %v4345, %v4951
      %v4953 = vpop.f32.mrb[0].mxu0
      %4954 = vdwg.mxu0
      %4955 = vmatprep.subr.mxu0 0.0
      %4956 = vmatpush1.msra.mxu0 %v4295
      %4957 = vmatprep.subr.mxu0 0.0
      %4958 = vmatpush1.msra.mxu0 %v4296
      %4959 = vmatprep.subr.mxu0 0.0
      %4960 = vmatpush1.msra.mxu0 %v4297
      %4961 = vmatprep.subr.mxu0 0.0
      %4962 = vmatpush1.msra.mxu0 %v4298
      %4963 = vmatprep.subr.mxu0 0.0
      %4964 = vmatpush1.msra.mxu0 %v4299
      %4965 = vmatprep.subr.mxu0 0.0
      %4966 = vmatpush1.msra.mxu0 %v4300
      %4967 = vmatprep.subr.mxu0 0.0
      %4968 = vmatpush1.msra.mxu0 %v4301
      %4969 = vmatprep.subr.mxu0 0.0
      %4970 = vmatpush1.msra.mxu0 %v4302
      %4971 = vmatprep.subr.mxu0 0.0
      %4972 = vmatpush1.msra.mxu0 %v4303
      %4973 = vmatprep.subr.mxu0 0.0
      %4974 = vmatpush1.msra.mxu0 %v4304
      %4975 = vmatprep.subr.mxu0 0.0
      %4976 = vmatpush1.msra.mxu0 %v4305
      %4977 = vmatprep.subr.mxu0 0.0
      %4978 = vmatpush1.msra.mxu0 %v4306
      %4979 = vmatprep.subr.mxu0 0.0
      %4980 = vmatpush1.msra.mxu0 %v4307
      %4981 = vmatprep.subr.mxu0 0.0
      %4982 = vmatpush1.msra.mxu0 %v4308
      %4983 = vmatprep.subr.mxu0 0.0
      %4984 = vmatpush1.msra.mxu0 %v4309
      %4985 = vmatprep.subr.mxu0 0.0
      %4986 = vmatpush1.msra.mxu0 %v4310
      %4987 = vmatprep.subr.mxu0 0.0
      %4988 = vmatpush1.msra.mxu0 %v4311
      %4989 = vmatprep.subr.mxu0 0.0
      %4990 = vmatpush1.msra.mxu0 %v4312
      %4991 = vmatprep.subr.mxu0 0.0
      %4992 = vmatpush1.msra.mxu0 %v4313
      %4993 = vmatprep.subr.mxu0 0.0
      %4994 = vmatpush1.msra.mxu0 %v4314
      %4995 = vmatprep.subr.mxu0 0.0
      %4996 = vmatpush1.msra.mxu0 %v4315
      %4997 = vmatprep.subr.mxu0 0.0
      %4998 = vmatpush1.msra.mxu0 %v4316
      %4999 = vmatprep.subr.mxu0 0.0
      %5000 = vmatpush1.msra.mxu0 %v4317
      %5001 = vmatprep.subr.mxu0 0.0
      %5002 = vmatpush1.msra.mxu0 %v4318
      %5003 = vmatprep.subr.mxu0 0.0
      %5004 = vmatpush1.msra.mxu0 %v4319
      %5005 = vmatprep.subr.mxu0 0.0
      %5006 = vmatpush1.msra.mxu0 %v4320
      %5007 = vmatprep.subr.mxu0 0.0
      %5008 = vmatpush1.msra.mxu0 %v4321
      %5009 = vmatprep.subr.mxu0 0.0
      %5010 = vmatpush1.msra.mxu0 %v4322
      %5011 = vmatprep.subr.mxu0 0.0
      %5012 = vmatpush1.msra.mxu0 0.0
      %5013 = vmatprep.subr.mxu0 0.0
      %5014 = vmatpush1.msra.mxu0 0.0
      %5015 = vmatprep.subr.mxu0 0.0
      %5016 = vmatpush1.msra.mxu0 0.0
      %5017 = vmatprep.subr.mxu0 0.0
      %5018 = vmatpush1.msra.mxu0 0.0
      %5019 = vmatprep.mubr.f32.mxu0 %v4349
      %5020 = vmatmul.mubr.f32.gmra.mrb[0].mxu0 %v4091
      %v5021 = vpop.f32.mrb[0].mxu0
      %v5022 = vadd.f32 %v4330, %v5021
      %v5023 = vpop.f32.mrb[0].mxu0
      %5024 = vmatprep.mubr.f32.mxu0 %v4352
      %5025 = vmatmul.mubr.f32.gmra.mrb[0].mxu0 %v4093
      %v5026 = vpop.f32.mrb[0].mxu0
      %v5027 = vadd.f32 %v4335, %v5026
      %v5028 = vpop.f32.mrb[0].mxu0
      %5029 = vmatprep.mubr.f32.mxu0 %v4355
      %5030 = vmatmul.mubr.f32.gmra.mrb[0].mxu0 %v4095
      %v5031 = vpop.f32.mrb[0].mxu0
      %v5032 = vadd.f32 %v4340, %v5031
      %v5033 = vpop.f32.mrb[0].mxu0
      %5034 = vmatprep.mubr.f32.mxu0 %v4358
      %5035 = vmatmul.mubr.f32.gmra.mrb[0].mxu0 %v4097
      %v5036 = vpop.f32.mrb[0].mxu0
      %v5037 = vadd.f32 %v4345, %v5036
      %v5038 = vpop.f32.mrb[0].mxu0
      %5039 = vdwg.mxu0
      %5040 = vst.msk [vmem:[%s244] sm:$0xff] %vm277, %v4427
      %5041 = vst.msk [vmem:[%s244 + $0x8] sm:$0xff] %vm277, %v4432
      %5042 = vst.msk [vmem:[%s244 + $0x10] sm:$0xff] %vm277, %v4437
      %5043 = vst.msk [vmem:[%s244 + $0x18] sm:$0xff] %vm277, %v4442
      %5044 = vst.msk [vmem:[%s244 + $0x20] sm:$0xff] %vm277, %v4512
      %5045 = vst.msk [vmem:[%s244 + $0x28] sm:$0xff] %vm277, %v4517
      %5046 = vst.msk [vmem:[%s244 + $0x30] sm:$0xff] %vm277, %v4522
      %5047 = vst.msk [vmem:[%s244 + $0x38] sm:$0xff] %vm277, %v4527
      %5048 = vst.msk [vmem:[%s244 + $0x40] sm:$0xff] %vm277, %v4597
      %5049 = vst.msk [vmem:[%s244 + $0x48] sm:$0xff] %vm277, %v4602
      %5050 = vst.msk [vmem:[%s244 + $0x50] sm:$0xff] %vm277, %v4607
      %5051 = vst.msk [vmem:[%s244 + $0x58] sm:$0xff] %vm277, %v4612
      %5052 = vst.msk [vmem:[%s244 + $0x60] sm:$0xff] %vm277, %v4682
      %5053 = vst.msk [vmem:[%s244 + $0x68] sm:$0xff] %vm277, %v4687
      %5054 = vst.msk [vmem:[%s244 + $0x70] sm:$0xff] %vm277, %v4692
      %5055 = vst.msk [vmem:[%s244 + $0x78] sm:$0xff] %vm277, %v4697
      %5056 = vst.msk [vmem:[%s244 + $0x80] sm:$0xff] %vm277, %v4767
      %5057 = vst.msk [vmem:[%s244 + $0x88] sm:$0xff] %vm277, %v4772
      %5058 = vst.msk [vmem:[%s244 + $0x90] sm:$0xff] %vm277, %v4777
      %5059 = vst.msk [vmem:[%s244 + $0x98] sm:$0xff] %vm277, %v4782
      %5060 = vst.msk [vmem:[%s244 + $0xa0] sm:$0xff] %vm277, %v4852
      %5061 = vst.msk [vmem:[%s244 + $0xa8] sm:$0xff] %vm277, %v4857
      %5062 = vst.msk [vmem:[%s244 + $0xb0] sm:$0xff] %vm277, %v4862
      %5063 = vst.msk [vmem:[%s244 + $0xb8] sm:$0xff] %vm277, %v4867
      %5064 = vst.msk [vmem:[%s244 + $0xc0] sm:$0xff] %vm277, %v4937
      %5065 = vst.msk [vmem:[%s244 + $0xc8] sm:$0xff] %vm277, %v4942
      %5066 = vst.msk [vmem:[%s244 + $0xd0] sm:$0xff] %vm277, %v4947
      %5067 = vst.msk [vmem:[%s244 + $0xd8] sm:$0xff] %vm277, %v4952
      %5068 = vst.msk [vmem:[%s244 + $0xe0] sm:$0xff] %vm277, %v5022
      %5069 = vst.msk [vmem:[%s244 + $0xe8] sm:$0xff] %vm277, %v5027
      %5070 = vst.msk [vmem:[%s244 + $0xf0] sm:$0xff] %vm277, %v5032
      %5071 = vst.msk [vmem:[%s244 + $0xf8] sm:$0xff] %vm277, %v5037
      %p5072 = scmp.lt.s32.totalorder %s16, 1
      %s5073 = scalar_select %p5072, %s16, 1
      %s5074 = smul.addr %s5073, 32
      %s5075 = smul.addr %s5074, 8
      %s5076 = scalar_lea.vmem %s5, %s5075
      // Predicated region
      $region41: #{tpu_custom_call.1} parent=39 // pred_check
        %p5077 = pneg %p149
      $region42: #{tpu_custom_call.1} parent=39 // pred_check_branch
        %5079 = sbr.rel (%p5077) target = $region44
      $region43: #{tpu_custom_call.1} parent=39 // pred_region
        _
      $region44: #{tpu_custom_call.1} parent=39 // pred_fallthru
        _
    $region40: #{tpu_custom_call.1} parent=5 // pred_fallthru
      _
    %p5080 = scmp.le.s32.totalorder 2, %s11
    // Predicated region
    $region45: #{tpu_custom_call.1} parent=5 // pred_check
      %p5081 = pneg %p5080
    $region46: #{tpu_custom_call.1} parent=5 // pred_check_branch
      %5083 = sbr.rel (%p5081) target = $region48
    $region47: #{tpu_custom_call.1} parent=5 // pred_region
      %s5084 = ssub.s32 %s11, 2
      // Predicated region
      $region49: #{tpu_custom_call.1} parent=47 // pred_check
        %p5085 = pneg %p155
      $region50: #{tpu_custom_call.1} parent=47 // pred_check_branch
        %5087 = sbr.rel (%p5085) target = $region52
      $region51: #{tpu_custom_call.1} parent=47 // pred_region
        %p5088 = scmp.lt.s32.totalorder %s17, 1
        %s5089 = scalar_select %p5088, %s17, 1
        %s5090 = smul.addr %s5089, 32
        %s5091 = smul.addr %s5090, 8
        %s5092 = scalar_lea.vmem %s5, %s5091
      $region52: #{tpu_custom_call.1} parent=47 // pred_fallthru
        _
    $region48: #{tpu_custom_call.1} parent=5 // pred_fallthru
      _
  $region6: #{tpu_custom_call.1} parent=0 // loop_footer
    %s15 = sadd.s32 1, %s11
  $region7: #{tpu_custom_call.1} parent=0 // loop_footer_branch
    %10 = sbr.rel target = $region3
  $region8: #{tpu_custom_call.1} parent=0 // loop_exit
    _

</llo_original>
